<compile_context>
chip_gen: v7x
topology: tpu7x:2x2x1
jax: 0.10.0
libtpu: 0.0.40
codegen_flags: <defaults>
</compile_context>

<pallas_src>
import functools
import math

import jax
import jax.numpy as jnp
from jax import lax
from jax.experimental import pallas as pl
from jax.experimental.pallas import tpu as pltpu

_SQRT_HALF = 0.7071067811865476          # 1/sqrt(2) for exact (erf) GELU
_VMEM_LIMIT = 32 * 1024 * 1024           # safe scoped-VMEM budget on v5e/v6e/v7x


def _compiler_params():
    return pltpu.CompilerParams(
        dimension_semantics=("parallel",),
        vmem_limit_bytes=_VMEM_LIMIT,
    )


def _choose_tm(M, tm_max):
    """Largest row tile <= tm_max that is a multiple of 8 and divides M."""
    t = min(tm_max, M)
    t -= t % 8
    while t >= 8:
        if M % t == 0:
            return t
        t -= 8
    # TODO(synk): for M with no multiple-of-8 divisor, pad M to a tile multiple
    # instead of falling back to a single block.
    return M


# --------------------------- kernel 1: pre chain ---------------------------- #

def _fused_pre_kernel(x_ref, g1_ref, b1_ref, g2_ref, b2_ref, w1_ref, w2_ref,
                      x1_ref, h1_ref, h2_ref, *, eps):
    x = x_ref[...].astype(jnp.float32)

    m1 = jnp.mean(x, axis=-1, keepdims=True)
    v1 = jnp.mean(jnp.square(x - m1), axis=-1, keepdims=True)
    n1 = (x - m1) * lax.rsqrt(v1 + eps)
    n1 = n1 * g1_ref[...].astype(jnp.float32) + b1_ref[...].astype(jnp.float32)

    # TODO(synk): `ConvNat` attention module definition was not provided in the
    # reference source; it is treated as identity on norm1(x). drop_path=0 -> Identity.
    x1 = x + n1

    m2 = jnp.mean(x1, axis=-1, keepdims=True)
    v2 = jnp.mean(jnp.square(x1 - m2), axis=-1, keepdims=True)
    n2 = (x1 - m2) * lax.rsqrt(v2 + eps)
    n2 = n2 * g2_ref[...].astype(jnp.float32) + b2_ref[...].astype(jnp.float32)

    x1_ref[...] = x1.astype(x1_ref.dtype)
    lhs = n2.astype(w1_ref.dtype)   # f32, or bf16 if weights were pre-cast (v6e/v7x)
    h1_ref[...] = jnp.dot(lhs, w1_ref[...],
                          preferred_element_type=jnp.float32).astype(h1_ref.dtype)
    h2_ref[...] = jnp.dot(lhs, w2_ref[...],
                          preferred_element_type=jnp.float32).astype(h2_ref.dtype)


def fused_pre(x_rows, g1, b1, g2, b2, w1, w2, *, tm, eps):
    M, C = x_rows.shape
    half = w1.shape[1]
    assert M % tm == 0
    return pl.pallas_call(
        functools.partial(_fused_pre_kernel, eps=eps),
        out_shape=(
            jax.ShapeDtypeStruct((M, C), x_rows.dtype),
            jax.ShapeDtypeStruct((M, half), x_rows.dtype),
            jax.ShapeDtypeStruct((M, half), x_rows.dtype),
        ),
        grid_spec=pltpu.PrefetchScalarGridSpec(
            num_scalar_prefetch=0,
            grid=(M // tm,),
            in_specs=[
                pl.BlockSpec((tm, C), lambda i: (i, 0)),
                pl.BlockSpec((1, C), lambda i: (0, 0)),
                pl.BlockSpec((1, C), lambda i: (0, 0)),
                pl.BlockSpec((1, C), lambda i: (0, 0)),
                pl.BlockSpec((1, C), lambda i: (0, 0)),
                pl.BlockSpec((C, half), lambda i: (0, 0)),
                pl.BlockSpec((C, half), lambda i: (0, 0)),
            ],
            out_specs=(
                pl.BlockSpec((tm, C), lambda i: (i, 0)),
                pl.BlockSpec((tm, half), lambda i: (i, 0)),
                pl.BlockSpec((tm, half), lambda i: (i, 0)),
            ),
        ),
        compiler_params=_compiler_params(),
    )(x_rows, g1, b1, g2, b2, w1, w2)


# ----------------------- kernel 2: 3x3 depthwise conv ----------------------- #

def _dwconv_pair_kernel(h1_ref, h2_ref, w1_ref, w2_ref, d1_ref, d2_ref, *, H, W, ch):
    WC = W * ch

    def conv_one(h_ref, wk_ref, d_ref):
        x = h_ref[0].astype(jnp.float32)       # (H, W*ch)  lane-folded NHWC tile
        wk = wk_ref[...].astype(jnp.float32)   # (9, W*ch)  per-tap weights, lane-tiled
        zcol = jnp.zeros((H, ch), jnp.float32)
        zrow = jnp.zeros((1, WC), jnp.float32)
        acc = jnp.zeros((H, WC), jnp.float32)
        for dh in (-1, 0, 1):
            for dw in (-1, 0, 1):
                v = x
                # zero-fill shift along W (lane axis in this layout)
                if dw == 1:
                    v = jnp.concatenate([v[:, ch:], zcol], axis=1)
                elif dw == -1:
                    v = jnp.concatenate([zcol, v[:, :WC - ch]], axis=1)
                # zero-fill shift along H (sublane axis)
                if dh == 1:
                    v = jnp.concatenate([v[1:, :], zrow], axis=0)
                elif dh == -1:
                    v = jnp.concatenate([zrow, v[:H - 1, :]], axis=0)
                k = (dh + 1) * 3 + (dw + 1)
                acc = acc + v * wk[k:k + 1, :]
        d_ref[0] = acc.astype(d_ref.dtype)

    conv_one(h1_ref, w1_ref, d1_ref)
    conv_one(h2_ref, w2_ref, d2_ref)


def dwconv3x3_pair(h1_img, h2_img, w1_t, w2_t, *, H, W, ch):
    # h*_img: (B, H, W*ch) lane-folded; w*_t: (9, W*ch). padding=1, stride=1, groups=ch.
    B = h1_img.shape[0]
    WC = W * ch
    img_spec = pl.BlockSpec((1, H, WC), lambda b: (b, 0, 0))
    wt_spec = pl.BlockSpec((9, WC), lambda b: (0, 0))
    # TODO(synk): for very large H*W*ch, additionally tile over H with a 2-row halo.
    return pl.pallas_call(
        functools.partial(_dwconv_pair_kernel, H=H, W=W, ch=ch),
        out_shape=(
            jax.ShapeDtypeStruct((B, H, WC), h1_img.dtype),
            jax.ShapeDtypeStruct((B, H, WC), h2_img.dtype),
        ),
        grid_spec=pltpu.PrefetchScalarGridSpec(
            num_scalar_prefetch=0,
            grid=(B,),
            in_specs=[img_spec, img_spec, wt_spec, wt_spec],
            out_specs=(img_spec, img_spec),
        ),
        compiler_params=_compiler_params(),
    )(h1_img, h2_img, w1_t, w2_t)


# --------------------------- kernel 3: post chain --------------------------- #

def _fused_post_kernel(d1_ref, d2_ref, x1_ref, w_ref, o_ref):
    a = d1_ref[...].astype(jnp.float32)
    b = d2_ref[...].astype(jnp.float32)
    gated = 0.5 * a * (1.0 + lax.erf(a * _SQRT_HALF)) * b   # exact GELU (PyTorch default)
    acc = jnp.dot(gated.astype(w_ref.dtype), w_ref[...],
                  preferred_element_type=jnp.float32)
    o_ref[...] = (acc + x1_ref[...].astype(jnp.float32)).astype(o_ref.dtype)


def fused_post(d1, d2, x1, w_out, *, tm):
    M, half = d1.shape
    C = w_out.shape[1]
    assert M % tm == 0
    return pl.pallas_call(
        _fused_post_kernel,
        out_shape=jax.ShapeDtypeStruct((M, C), x1.dtype),
        grid_spec=pltpu.PrefetchScalarGridSpec(
            num_scalar_prefetch=0,
            grid=(M // tm,),
            in_specs=[
                pl.BlockSpec((tm, half), lambda i: (i, 0)),
                pl.BlockSpec((tm, half), lambda i: (i, 0)),
                pl.BlockSpec((tm, C), lambda i: (i, 0)),
                pl.BlockSpec((half, C), lambda i: (0, 0)),
            ],
            out_specs=pl.BlockSpec((tm, C), lambda i: (i, 0)),
        ),
        compiler_params=_compiler_params(),
    )(d1, d2, x1, w_out)


# ----------------------------- params / wrapper ----------------------------- #

def init_convnat_block_params(key, dim, mlp_ratio=2):
    """Deterministic synthetic parameters in PyTorch-__init__ shapes."""
    hidden = int(dim * mlp_ratio)
    ks = jax.random.split(key, 7)
    params = {
        "norm1_g": 1.0 + 0.02 * jax.random.normal(ks[0], (dim,), jnp.float32),
        "norm1_b": 0.02 * jax.random.normal(ks[1], (dim,), jnp.float32),
        "norm2_g": 1.0 + 0.02 * jax.random.normal(ks[2], (dim,), jnp.float32),
        "norm2_b": 0.02 * jax.random.normal(ks[3], (dim,), jnp.float32),
        # Mlp.project_in: Conv2d(dim, hidden, 1, bias=False) -> (hidden, dim, 1, 1)
        "w_in": jax.random.normal(ks[4], (hidden, dim, 1, 1), jnp.float32) * 0.1,
        # Mlp.dwconv: Conv2d(hidden, hidden, 3, padding=1, groups=hidden) -> (hidden, 1, 3, 3)
        "w_dw": jax.random.normal(ks[5], (hidden, 1, 3, 3), jnp.float32) * 0.1,
        # Mlp.project_out: Conv2d(dim, dim, 1, bias=False) -> (dim, dim, 1, 1)
        "w_out": jax.random.normal(ks[6], (dim, dim, 1, 1), jnp.float32) * 0.1,
    }
    return params, hidden


def prepare_params(params, img_w, *, matmul_dtype=jnp.float32):
    """Hoist weight reshapes/transposes out of the per-step forward."""
    dim = params["norm1_g"].shape[0]
    hidden = params["w_in"].shape[0]
    half = hidden // 2
    # Reference Mlp only type-checks when hidden // 2 == dim (i.e. mlp_ratio == 2).
    assert hidden % 2 == 0 and half == dim, "ConvNatBlock Mlp requires hidden // 2 == dim"

    w_in_mat = jnp.transpose(params["w_in"][:, :, 0, 0], (1, 0))     # (dim, hidden)
    w_dw_k = jnp.transpose(params["w_dw"][:, 0, :, :], (1, 2, 0))    # (3, 3, hidden)
    w_out_mat = jnp.transpose(params["w_out"][:, :, 0, 0], (1, 0))   # (half, dim)

    def tile_dw(k33c):  # (3, 3, ch) -> (9, img_w*ch), matching the lane-folded layout
        ch = k33c.shape[-1]
        return jnp.tile(k33c, (1, 1, img_w)).reshape(9, img_w * ch)

    return {
        "g1": params["norm1_g"].reshape(1, dim),
        "b1": params["norm1_b"].reshape(1, dim),
        "g2": params["norm2_g"].reshape(1, dim),
        "b2": params["norm2_b"].reshape(1, dim),
        "w_in1": w_in_mat[:, :half].astype(matmul_dtype),
        "w_in2": w_in_mat[:, half:].astype(matmul_dtype),
        "w_dw1_t": tile_dw(w_dw_k[:, :, :half]),
        "w_dw2_t": tile_dw(w_dw_k[:, :, half:]),
        "w_out": w_out_mat.astype(matmul_dtype),
    }


def convnat_block_forward(x_nchw, prep, *, tm=512, eps=1e-5):
    B, C, H, W = x_nchw.shape
    half = prep["w_out"].shape[0]
    assert half == C, "project_out expects hidden//2 == dim"
    assert prep["w_dw1_t"].shape == (9, W * half), "params were prepared for a different W"

    M = B * H * W
    tm_eff = _choose_tm(M, tm)

    # NCHW -> (B*H*W, C) token rows (channels-last)
    rows = jnp.transpose(x_nchw, (0, 2, 3, 1)).reshape(M, C)

    x1, h1, h2 = fused_pre(rows, prep["g1"], prep["b1"], prep["g2"], prep["b2"],
                           prep["w_in1"], prep["w_in2"], tm=tm_eff, eps=eps)

    # (M, half) -> (B, H, W*half): contiguous (free) reshape into the lane-folded layout
    d1_img, d2_img = dwconv3x3_pair(
        h1.reshape(B, H, W * half), h2.reshape(B, H, W * half),
        prep["w_dw1_t"], prep["w_dw2_t"], H=H, W=W, ch=half)

    out_rows = fused_post(d1_img.reshape(M, half), d2_img.reshape(M, half),
                          x1, prep["w_out"], tm=tm_eff)

    # back to NCHW
    return jnp.transpose(out_rows.reshape(B, H, W, C), (0, 3, 1, 2))


# ------------------------------ pure-JAX reference -------------------------- #

def reference_forward(x_nchw, params, eps=1e-5):
    B, C, H, W = x_nchw.shape
    x = jnp.transpose(x_nchw, (0, 2, 3, 1)).reshape(B, H * W, C)

    def ln(t, g, b):
        m = jnp.mean(t, -1, keepdims=True)
        v = jnp.mean(jnp.square(t - m), -1, keepdims=True)
        return (t - m) * lax.rsqrt(v + eps) * g + b

    x1 = x + ln(x, params["norm1_g"], params["norm1_b"])   # ConvNat treated as identity
    n2 = ln(x1, params["norm2_g"], params["norm2_b"]).reshape(B, H, W, C)

    w_in = params["w_in"][:, :, 0, 0]                       # (hidden, dim)
    h = jnp.einsum("bhwc,oc->bhwo", n2, w_in, precision=lax.Precision.HIGHEST)

    wd = jnp.transpose(params["w_dw"][:, 0], (1, 2, 0))     # (3, 3, hidden)
    hp = jnp.pad(h, ((0, 0), (1, 1), (1, 1), (0, 0)))
    d = sum(hp[:, i:i + H, j:j + W, :] * wd[i, j] for i in range(3) for j in range(3))

    half = d.shape[-1] // 2
    a, b = d[..., :half], d[..., half:]
    gated = 0.5 * a * (1.0 + lax.erf(a * _SQRT_HALF)) * b

    w_out = params["w_out"][:, :, 0, 0]                     # (dim, half)
    y = jnp.einsum("bhwk,ck->bhwc", gated, w_out, precision=lax.Precision.HIGHEST)
    out = x1.reshape(B, H, W, C) + y
    return jnp.transpose(out, (0, 3, 1, 2))


# ----------------------------------- main ----------------------------------- #

if __name__ == "__main__":
    key = jax.random.PRNGKey(0)
    k_x, k_p = jax.random.split(key)

    # dim=32, spatial 32x32, batch 2  ->  M = 2048 rows, hidden = 64 (mlp_ratio = 2)
    B, C, H, W = 2, 32, 32, 32
    x = jax.random.normal(k_x, (B, C, H, W), jnp.float32)

    params, hidden = init_convnat_block_params(k_p, dim=C, mlp_ratio=2)
    # keep f32 matmuls for exact PyTorch semantics; pass matmul_dtype=jnp.bfloat16
    # on v6e/v7x if the model tolerates it.
    prep = prepare_params(params, W)

    fwd = jax.jit(convnat_block_forward)
    out = jax.block_until_ready(fwd(x, prep))

    assert out.shape == (B, C, H, W) and out.dtype == jnp.float32
    assert bool(jnp.all(jnp.isfinite(out)))

    ref = reference_forward(x, params)
    assert bool(jnp.allclose(out, ref, rtol=1e-2, atol=1e-2)), \
        float(jnp.max(jnp.abs(out - ref)))

    print("KERNEL_OK")
</pallas_src>

<mosaic_0001>
module attributes {stable_mosaic.version = 11 : i64} {
  func.func @_dwconv_pair_kernel(%arg0: i32, %arg1: memref<1x32x1024xf32, #tpu.memory_space<vmem>>, %arg2: memref<1x32x1024xf32, #tpu.memory_space<vmem>>, %arg3: memref<9x1024xf32, #tpu.memory_space<vmem>>, %arg4: memref<9x1024xf32, #tpu.memory_space<vmem>>, %arg5: memref<1x32x1024xf32, #tpu.memory_space<vmem>>, %arg6: memref<1x32x1024xf32, #tpu.memory_space<vmem>>) attributes {dimension_semantics = [#tpu.dimension_semantics<parallel>], iteration_bounds = array<i64: 2>, scalar_prefetch = 0 : i64, scratch_operands = 0 : i64, tpu.core_type = #tpu.core_type<tc>, window_params = [{transform_indices = @transform_0, window_bounds = array<i64: 1, 32, 1024>}, {transform_indices = @transform_1, window_bounds = array<i64: 1, 32, 1024>}, {pipeline_mode = #tpu.pipeline_mode<synchronous>, transform_indices = @transform_2, window_bounds = array<i64: 9, 1024>}, {pipeline_mode = #tpu.pipeline_mode<synchronous>, transform_indices = @transform_3, window_bounds = array<i64: 9, 1024>}, {transform_indices = @transform_4, window_bounds = array<i64: 1, 32, 1024>}, {transform_indices = @transform_5, window_bounds = array<i64: 1, 32, 1024>}]} {
    %c0 = arith.constant 0 : index
    %c0_0 = arith.constant 0 : index
    %c0_1 = arith.constant 0 : index
    %0 = vector.load %arg1[%c0, %c0_0, %c0_1] : memref<1x32x1024xf32, #tpu.memory_space<vmem>>, vector<1x32x1024xf32>
    %1 = vector.shape_cast %0 : vector<1x32x1024xf32> to vector<32x1024xf32>
    %c0_2 = arith.constant 0 : index
    %c0_3 = arith.constant 0 : index
    %2 = vector.load %arg3[%c0_2, %c0_3] : memref<9x1024xf32, #tpu.memory_space<vmem>>, vector<9x1024xf32>
    %cst = arith.constant 0.000000e+00 : f32
    %3 = vector.broadcast %cst : f32 to vector<32x32xf32>
    %cst_4 = arith.constant 0.000000e+00 : f32
    %4 = vector.broadcast %cst_4 : f32 to vector<1x1024xf32>
    %cst_5 = arith.constant 0.000000e+00 : f32
    %5 = vector.broadcast %cst_5 : f32 to vector<32x1024xf32>
    %6 = vector.extract_strided_slice %1 {offsets = [0, 0], sizes = [32, 992], strides = [1, 1]} : vector<32x1024xf32> to vector<32x992xf32>
    %7 = tpu.concatenate %3, %6 in 1 : vector<32x32xf32>, vector<32x992xf32> -> vector<32x1024xf32>
    %8 = vector.extract_strided_slice %7 {offsets = [0, 0], sizes = [31, 1024], strides = [1, 1]} : vector<32x1024xf32> to vector<31x1024xf32>
    %9 = tpu.concatenate %4, %8 in 0 : vector<1x1024xf32>, vector<31x1024xf32> -> vector<32x1024xf32>
    %10 = vector.extract_strided_slice %2 {offsets = [0, 0], sizes = [1, 1024], strides = [1, 1]} : vector<9x1024xf32> to vector<1x1024xf32>
    %11 = vector.broadcast %10 : vector<1x1024xf32> to vector<32x1024xf32>
    %12 = arith.mulf %9, %11 : vector<32x1024xf32>
    %13 = arith.addf %5, %12 : vector<32x1024xf32>
    %14 = vector.extract_strided_slice %1 {offsets = [0, 0], sizes = [31, 1024], strides = [1, 1]} : vector<32x1024xf32> to vector<31x1024xf32>
    %15 = tpu.concatenate %4, %14 in 0 : vector<1x1024xf32>, vector<31x1024xf32> -> vector<32x1024xf32>
    %16 = vector.extract_strided_slice %2 {offsets = [1, 0], sizes = [1, 1024], strides = [1, 1]} : vector<9x1024xf32> to vector<1x1024xf32>
    %17 = vector.broadcast %16 : vector<1x1024xf32> to vector<32x1024xf32>
    %18 = arith.mulf %15, %17 : vector<32x1024xf32>
    %19 = arith.addf %13, %18 : vector<32x1024xf32>
    %20 = vector.extract_strided_slice %1 {offsets = [0, 32], sizes = [32, 992], strides = [1, 1]} : vector<32x1024xf32> to vector<32x992xf32>
    %21 = tpu.concatenate %20, %3 in 1 : vector<32x992xf32>, vector<32x32xf32> -> vector<32x1024xf32>
    %22 = vector.extract_strided_slice %21 {offsets = [0, 0], sizes = [31, 1024], strides = [1, 1]} : vector<32x1024xf32> to vector<31x1024xf32>
    %23 = tpu.concatenate %4, %22 in 0 : vector<1x1024xf32>, vector<31x1024xf32> -> vector<32x1024xf32>
    %24 = vector.extract_strided_slice %2 {offsets = [2, 0], sizes = [1, 1024], strides = [1, 1]} : vector<9x1024xf32> to vector<1x1024xf32>
    %25 = vector.broadcast %24 : vector<1x1024xf32> to vector<32x1024xf32>
    %26 = arith.mulf %23, %25 : vector<32x1024xf32>
    %27 = arith.addf %19, %26 : vector<32x1024xf32>
    %28 = vector.extract_strided_slice %1 {offsets = [0, 0], sizes = [32, 992], strides = [1, 1]} : vector<32x1024xf32> to vector<32x992xf32>
    %29 = tpu.concatenate %3, %28 in 1 : vector<32x32xf32>, vector<32x992xf32> -> vector<32x1024xf32>
    %30 = vector.extract_strided_slice %2 {offsets = [3, 0], sizes = [1, 1024], strides = [1, 1]} : vector<9x1024xf32> to vector<1x1024xf32>
    %31 = vector.broadcast %30 : vector<1x1024xf32> to vector<32x1024xf32>
    %32 = arith.mulf %29, %31 : vector<32x1024xf32>
    %33 = arith.addf %27, %32 : vector<32x1024xf32>
    %34 = vector.extract_strided_slice %2 {offsets = [4, 0], sizes = [1, 1024], strides = [1, 1]} : vector<9x1024xf32> to vector<1x1024xf32>
    %35 = vector.broadcast %34 : vector<1x1024xf32> to vector<32x1024xf32>
    %36 = arith.mulf %1, %35 : vector<32x1024xf32>
    %37 = arith.addf %33, %36 : vector<32x1024xf32>
    %38 = vector.extract_strided_slice %1 {offsets = [0, 32], sizes = [32, 992], strides = [1, 1]} : vector<32x1024xf32> to vector<32x992xf32>
    %39 = tpu.concatenate %38, %3 in 1 : vector<32x992xf32>, vector<32x32xf32> -> vector<32x1024xf32>
    %40 = vector.extract_strided_slice %2 {offsets = [5, 0], sizes = [1, 1024], strides = [1, 1]} : vector<9x1024xf32> to vector<1x1024xf32>
    %41 = vector.broadcast %40 : vector<1x1024xf32> to vector<32x1024xf32>
    %42 = arith.mulf %39, %41 : vector<32x1024xf32>
    %43 = arith.addf %37, %42 : vector<32x1024xf32>
    %44 = vector.extract_strided_slice %1 {offsets = [0, 0], sizes = [32, 992], strides = [1, 1]} : vector<32x1024xf32> to vector<32x992xf32>
    %45 = tpu.concatenate %3, %44 in 1 : vector<32x32xf32>, vector<32x992xf32> -> vector<32x1024xf32>
    %46 = vector.extract_strided_slice %45 {offsets = [1, 0], sizes = [31, 1024], strides = [1, 1]} : vector<32x1024xf32> to vector<31x1024xf32>
    %47 = tpu.concatenate %46, %4 in 0 : vector<31x1024xf32>, vector<1x1024xf32> -> vector<32x1024xf32>
    %48 = vector.extract_strided_slice %2 {offsets = [6, 0], sizes = [1, 1024], strides = [1, 1]} : vector<9x1024xf32> to vector<1x1024xf32>
    %49 = vector.broadcast %48 : vector<1x1024xf32> to vector<32x1024xf32>
    %50 = arith.mulf %47, %49 : vector<32x1024xf32>
    %51 = arith.addf %43, %50 : vector<32x1024xf32>
    %52 = vector.extract_strided_slice %1 {offsets = [1, 0], sizes = [31, 1024], strides = [1, 1]} : vector<32x1024xf32> to vector<31x1024xf32>
    %53 = tpu.concatenate %52, %4 in 0 : vector<31x1024xf32>, vector<1x1024xf32> -> vector<32x1024xf32>
    %54 = vector.extract_strided_slice %2 {offsets = [7, 0], sizes = [1, 1024], strides = [1, 1]} : vector<9x1024xf32> to vector<1x1024xf32>
    %55 = vector.broadcast %54 : vector<1x1024xf32> to vector<32x1024xf32>
    %56 = arith.mulf %53, %55 : vector<32x1024xf32>
    %57 = arith.addf %51, %56 : vector<32x1024xf32>
    %58 = vector.extract_strided_slice %1 {offsets = [0, 32], sizes = [32, 992], strides = [1, 1]} : vector<32x1024xf32> to vector<32x992xf32>
    %59 = tpu.concatenate %58, %3 in 1 : vector<32x992xf32>, vector<32x32xf32> -> vector<32x1024xf32>
    %60 = vector.extract_strided_slice %59 {offsets = [1, 0], sizes = [31, 1024], strides = [1, 1]} : vector<32x1024xf32> to vector<31x1024xf32>
    %61 = tpu.concatenate %60, %4 in 0 : vector<31x1024xf32>, vector<1x1024xf32> -> vector<32x1024xf32>
    %62 = vector.extract_strided_slice %2 {offsets = [8, 0], sizes = [1, 1024], strides = [1, 1]} : vector<9x1024xf32> to vector<1x1024xf32>
    %63 = vector.broadcast %62 : vector<1x1024xf32> to vector<32x1024xf32>
    %64 = arith.mulf %61, %63 : vector<32x1024xf32>
    %65 = arith.addf %57, %64 : vector<32x1024xf32>
    %c0_6 = arith.constant 0 : index
    %c0_7 = arith.constant 0 : index
    %c0_8 = arith.constant 0 : index
    %66 = vector.load %arg5[%c0_6, %c0_7, %c0_8] : memref<1x32x1024xf32, #tpu.memory_space<vmem>>, vector<1x32x1024xf32>
    %67 = vector.shape_cast %66 : vector<1x32x1024xf32> to vector<32x1024xf32>
    %68 = vector.shape_cast %65 : vector<32x1024xf32> to vector<1x32x1024xf32>
    tpu.vector_store %arg5[%c0_6, %c0_7, %c0_8], %68 {strides = array<i32>} : memref<1x32x1024xf32, #tpu.memory_space<vmem>>, vector<1x32x1024xf32>,
    %c0_9 = arith.constant 0 : index
    %c0_10 = arith.constant 0 : index
    %c0_11 = arith.constant 0 : index
    %69 = vector.load %arg2[%c0_9, %c0_10, %c0_11] : memref<1x32x1024xf32, #tpu.memory_space<vmem>>, vector<1x32x1024xf32>
    %70 = vector.shape_cast %69 : vector<1x32x1024xf32> to vector<32x1024xf32>
    %c0_12 = arith.constant 0 : index
    %c0_13 = arith.constant 0 : index
    %71 = vector.load %arg4[%c0_12, %c0_13] : memref<9x1024xf32, #tpu.memory_space<vmem>>, vector<9x1024xf32>
    %cst_14 = arith.constant 0.000000e+00 : f32
    %72 = vector.broadcast %cst_14 : f32 to vector<32x32xf32>
    %cst_15 = arith.constant 0.000000e+00 : f32
    %73 = vector.broadcast %cst_15 : f32 to vector<1x1024xf32>
    %cst_16 = arith.constant 0.000000e+00 : f32
    %74 = vector.broadcast %cst_16 : f32 to vector<32x1024xf32>
    %75 = vector.extract_strided_slice %70 {offsets = [0, 0], sizes = [32, 992], strides = [1, 1]} : vector<32x1024xf32> to vector<32x992xf32>
    %76 = tpu.concatenate %72, %75 in 1 : vector<32x32xf32>, vector<32x992xf32> -> vector<32x1024xf32>
    %77 = vector.extract_strided_slice %76 {offsets = [0, 0], sizes = [31, 1024], strides = [1, 1]} : vector<32x1024xf32> to vector<31x1024xf32>
    %78 = tpu.concatenate %73, %77 in 0 : vector<1x1024xf32>, vector<31x1024xf32> -> vector<32x1024xf32>
    %79 = vector.extract_strided_slice %71 {offsets = [0, 0], sizes = [1, 1024], strides = [1, 1]} : vector<9x1024xf32> to vector<1x1024xf32>
    %80 = vector.broadcast %79 : vector<1x1024xf32> to vector<32x1024xf32>
    %81 = arith.mulf %78, %80 : vector<32x1024xf32>
    %82 = arith.addf %74, %81 : vector<32x1024xf32>
    %83 = vector.extract_strided_slice %70 {offsets = [0, 0], sizes = [31, 1024], strides = [1, 1]} : vector<32x1024xf32> to vector<31x1024xf32>
    %84 = tpu.concatenate %73, %83 in 0 : vector<1x1024xf32>, vector<31x1024xf32> -> vector<32x1024xf32>
    %85 = vector.extract_strided_slice %71 {offsets = [1, 0], sizes = [1, 1024], strides = [1, 1]} : vector<9x1024xf32> to vector<1x1024xf32>
    %86 = vector.broadcast %85 : vector<1x1024xf32> to vector<32x1024xf32>
    %87 = arith.mulf %84, %86 : vector<32x1024xf32>
    %88 = arith.addf %82, %87 : vector<32x1024xf32>
    %89 = vector.extract_strided_slice %70 {offsets = [0, 32], sizes = [32, 992], strides = [1, 1]} : vector<32x1024xf32> to vector<32x992xf32>
    %90 = tpu.concatenate %89, %72 in 1 : vector<32x992xf32>, vector<32x32xf32> -> vector<32x1024xf32>
    %91 = vector.extract_strided_slice %90 {offsets = [0, 0], sizes = [31, 1024], strides = [1, 1]} : vector<32x1024xf32> to vector<31x1024xf32>
    %92 = tpu.concatenate %73, %91 in 0 : vector<1x1024xf32>, vector<31x1024xf32> -> vector<32x1024xf32>
    %93 = vector.extract_strided_slice %71 {offsets = [2, 0], sizes = [1, 1024], strides = [1, 1]} : vector<9x1024xf32> to vector<1x1024xf32>
    %94 = vector.broadcast %93 : vector<1x1024xf32> to vector<32x1024xf32>
    %95 = arith.mulf %92, %94 : vector<32x1024xf32>
    %96 = arith.addf %88, %95 : vector<32x1024xf32>
    %97 = vector.extract_strided_slice %70 {offsets = [0, 0], sizes = [32, 992], strides = [1, 1]} : vector<32x1024xf32> to vector<32x992xf32>
    %98 = tpu.concatenate %72, %97 in 1 : vector<32x32xf32>, vector<32x992xf32> -> vector<32x1024xf32>
    %99 = vector.extract_strided_slice %71 {offsets = [3, 0], sizes = [1, 1024], strides = [1, 1]} : vector<9x1024xf32> to vector<1x1024xf32>
    %100 = vector.broadcast %99 : vector<1x1024xf32> to vector<32x1024xf32>
    %101 = arith.mulf %98, %100 : vector<32x1024xf32>
    %102 = arith.addf %96, %101 : vector<32x1024xf32>
    %103 = vector.extract_strided_slice %71 {offsets = [4, 0], sizes = [1, 1024], strides = [1, 1]} : vector<9x1024xf32> to vector<1x1024xf32>
    %104 = vector.broadcast %103 : vector<1x1024xf32> to vector<32x1024xf32>
    %105 = arith.mulf %70, %104 : vector<32x1024xf32>
    %106 = arith.addf %102, %105 : vector<32x1024xf32>
    %107 = vector.extract_strided_slice %70 {offsets = [0, 32], sizes = [32, 992], strides = [1, 1]} : vector<32x1024xf32> to vector<32x992xf32>
    %108 = tpu.concatenate %107, %72 in 1 : vector<32x992xf32>, vector<32x32xf32> -> vector<32x1024xf32>
    %109 = vector.extract_strided_slice %71 {offsets = [5, 0], sizes = [1, 1024], strides = [1, 1]} : vector<9x1024xf32> to vector<1x1024xf32>
    %110 = vector.broadcast %109 : vector<1x1024xf32> to vector<32x1024xf32>
    %111 = arith.mulf %108, %110 : vector<32x1024xf32>
    %112 = arith.addf %106, %111 : vector<32x1024xf32>
    %113 = vector.extract_strided_slice %70 {offsets = [0, 0], sizes = [32, 992], strides = [1, 1]} : vector<32x1024xf32> to vector<32x992xf32>
    %114 = tpu.concatenate %72, %113 in 1 : vector<32x32xf32>, vector<32x992xf32> -> vector<32x1024xf32>
    %115 = vector.extract_strided_slice %114 {offsets = [1, 0], sizes = [31, 1024], strides = [1, 1]} : vector<32x1024xf32> to vector<31x1024xf32>
    %116 = tpu.concatenate %115, %73 in 0 : vector<31x1024xf32>, vector<1x1024xf32> -> vector<32x1024xf32>
    %117 = vector.extract_strided_slice %71 {offsets = [6, 0], sizes = [1, 1024], strides = [1, 1]} : vector<9x1024xf32> to vector<1x1024xf32>
    %118 = vector.broadcast %117 : vector<1x1024xf32> to vector<32x1024xf32>
    %119 = arith.mulf %116, %118 : vector<32x1024xf32>
    %120 = arith.addf %112, %119 : vector<32x1024xf32>
    %121 = vector.extract_strided_slice %70 {offsets = [1, 0], sizes = [31, 1024], strides = [1, 1]} : vector<32x1024xf32> to vector<31x1024xf32>
    %122 = tpu.concatenate %121, %73 in 0 : vector<31x1024xf32>, vector<1x1024xf32> -> vector<32x1024xf32>
    %123 = vector.extract_strided_slice %71 {offsets = [7, 0], sizes = [1, 1024], strides = [1, 1]} : vector<9x1024xf32> to vector<1x1024xf32>
    %124 = vector.broadcast %123 : vector<1x1024xf32> to vector<32x1024xf32>
    %125 = arith.mulf %122, %124 : vector<32x1024xf32>
    %126 = arith.addf %120, %125 : vector<32x1024xf32>
    %127 = vector.extract_strided_slice %70 {offsets = [0, 32], sizes = [32, 992], strides = [1, 1]} : vector<32x1024xf32> to vector<32x992xf32>
    %128 = tpu.concatenate %127, %72 in 1 : vector<32x992xf32>, vector<32x32xf32> -> vector<32x1024xf32>
    %129 = vector.extract_strided_slice %128 {offsets = [1, 0], sizes = [31, 1024], strides = [1, 1]} : vector<32x1024xf32> to vector<31x1024xf32>
    %130 = tpu.concatenate %129, %73 in 0 : vector<31x1024xf32>, vector<1x1024xf32> -> vector<32x1024xf32>
    %131 = vector.extract_strided_slice %71 {offsets = [8, 0], sizes = [1, 1024], strides = [1, 1]} : vector<9x1024xf32> to vector<1x1024xf32>
    %132 = vector.broadcast %131 : vector<1x1024xf32> to vector<32x1024xf32>
    %133 = arith.mulf %130, %132 : vector<32x1024xf32>
    %134 = arith.addf %126, %133 : vector<32x1024xf32>
    %c0_17 = arith.constant 0 : index
    %c0_18 = arith.constant 0 : index
    %c0_19 = arith.constant 0 : index
    %135 = vector.load %arg6[%c0_17, %c0_18, %c0_19] : memref<1x32x1024xf32, #tpu.memory_space<vmem>>, vector<1x32x1024xf32>
    %136 = vector.shape_cast %135 : vector<1x32x1024xf32> to vector<32x1024xf32>
    %137 = vector.shape_cast %134 : vector<32x1024xf32> to vector<1x32x1024xf32>
    tpu.vector_store %arg6[%c0_17, %c0_18, %c0_19], %137 {strides = array<i32>} : memref<1x32x1024xf32, #tpu.memory_space<vmem>>, vector<1x32x1024xf32>,
    return
  }
  func.func @transform_0(%arg0: i32) -> (i32, i32, i32) {
    %c0_i32 = arith.constant 0 : i32
    %c0_i32_0 = arith.constant 0 : i32
    %c0_i32_1 = arith.constant 0 : i32
    return %arg0, %c0_i32, %c0_i32_0 : i32, i32, i32
  }
  func.func @transform_1(%arg0: i32) -> (i32, i32, i32) {
    %c0_i32 = arith.constant 0 : i32
    %c0_i32_0 = arith.constant 0 : i32
    %c0_i32_1 = arith.constant 0 : i32
    return %arg0, %c0_i32, %c0_i32_0 : i32, i32, i32
  }
  func.func @transform_2(%arg0: i32) -> (i32, i32) {
    %c0_i32 = arith.constant 0 : i32
    %c0_i32_0 = arith.constant 0 : i32
    %c0_i32_1 = arith.constant 0 : i32
    return %c0_i32, %c0_i32_0 : i32, i32
  }
  func.func @transform_3(%arg0: i32) -> (i32, i32) {
    %c0_i32 = arith.constant 0 : i32
    %c0_i32_0 = arith.constant 0 : i32
    %c0_i32_1 = arith.constant 0 : i32
    return %c0_i32, %c0_i32_0 : i32, i32
  }
  func.func @transform_4(%arg0: i32) -> (i32, i32, i32) {
    %c0_i32 = arith.constant 0 : i32
    %c0_i32_0 = arith.constant 0 : i32
    %c0_i32_1 = arith.constant 0 : i32
    return %arg0, %c0_i32, %c0_i32_0 : i32, i32, i32
  }
  func.func @transform_5(%arg0: i32) -> (i32, i32, i32) {
    %c0_i32 = arith.constant 0 : i32
    %c0_i32_0 = arith.constant 0 : i32
    %c0_i32_1 = arith.constant 0 : i32
    return %arg0, %c0_i32, %c0_i32_0 : i32, i32, i32
  }
}

module attributes {stable_mosaic.version = 11 : i64} {
  func.func @_fused_pre_kernel(%arg0: i32, %arg1: memref<512x32xf32, #tpu.memory_space<vmem>>, %arg2: memref<1x32xf32, #tpu.memory_space<vmem>>, %arg3: memref<1x32xf32, #tpu.memory_space<vmem>>, %arg4: memref<1x32xf32, #tpu.memory_space<vmem>>, %arg5: memref<1x32xf32, #tpu.memory_space<vmem>>, %arg6: memref<32x32xf32, #tpu.memory_space<vmem>>, %arg7: memref<32x32xf32, #tpu.memory_space<vmem>>, %arg8: memref<512x32xf32, #tpu.memory_space<vmem>>, %arg9: memref<512x32xf32, #tpu.memory_space<vmem>>, %arg10: memref<512x32xf32, #tpu.memory_space<vmem>>) attributes {dimension_semantics = [#tpu.dimension_semantics<parallel>], iteration_bounds = array<i64: 4>, scalar_prefetch = 0 : i64, scratch_operands = 0 : i64, tpu.core_type = #tpu.core_type<tc>, window_params = [{transform_indices = @transform_0, window_bounds = array<i64: 512, 32>}, {pipeline_mode = #tpu.pipeline_mode<synchronous>, transform_indices = @transform_1, window_bounds = array<i64: 1, 32>}, {pipeline_mode = #tpu.pipeline_mode<synchronous>, transform_indices = @transform_2, window_bounds = array<i64: 1, 32>}, {pipeline_mode = #tpu.pipeline_mode<synchronous>, transform_indices = @transform_3, window_bounds = array<i64: 1, 32>}, {pipeline_mode = #tpu.pipeline_mode<synchronous>, transform_indices = @transform_4, window_bounds = array<i64: 1, 32>}, {pipeline_mode = #tpu.pipeline_mode<synchronous>, transform_indices = @transform_5, window_bounds = array<i64: 32, 32>}, {pipeline_mode = #tpu.pipeline_mode<synchronous>, transform_indices = @transform_6, window_bounds = array<i64: 32, 32>}, {transform_indices = @transform_7, window_bounds = array<i64: 512, 32>}, {transform_indices = @transform_8, window_bounds = array<i64: 512, 32>}, {transform_indices = @transform_9, window_bounds = array<i64: 512, 32>}]} {
    %c0 = arith.constant 0 : index
    %c0_0 = arith.constant 0 : index
    %0 = vector.load %arg1[%c0, %c0_0] : memref<512x32xf32, #tpu.memory_space<vmem>>, vector<512x32xf32>
    %cst = arith.constant dense<0.000000e+00> : vector<512xf32>
    %1 = vector.multi_reduction <add>, %0, %cst [1] : vector<512x32xf32> to vector<512xf32>
    %2 = vector.shape_cast %1 : vector<512xf32> to vector<512x1xf32>
    %cst_1 = arith.constant 3.200000e+01 : f32
    %3 = vector.broadcast %cst_1 : f32 to vector<512x1xf32>
    %4 = arith.divf %2, %3 : vector<512x1xf32>
    %5 = vector.broadcast %4 : vector<512x1xf32> to vector<512x32xf32>
    %6 = arith.subf %0, %5 : vector<512x32xf32>
    %7 = arith.mulf %6, %6 : vector<512x32xf32>
    %cst_2 = arith.constant dense<0.000000e+00> : vector<512xf32>
    %8 = vector.multi_reduction <add>, %7, %cst_2 [1] : vector<512x32xf32> to vector<512xf32>
    %9 = vector.shape_cast %8 : vector<512xf32> to vector<512x1xf32>
    %cst_3 = arith.constant 3.200000e+01 : f32
    %10 = vector.broadcast %cst_3 : f32 to vector<512x1xf32>
    %11 = arith.divf %9, %10 : vector<512x1xf32>
    %12 = vector.broadcast %4 : vector<512x1xf32> to vector<512x32xf32>
    %13 = arith.subf %0, %12 : vector<512x32xf32>
    %cst_4 = arith.constant 9.99999974E-6 : f32
    %14 = vector.broadcast %cst_4 : f32 to vector<512x1xf32>
    %15 = arith.addf %11, %14 : vector<512x1xf32>
    %16 = math.rsqrt %15 : vector<512x1xf32>
    %17 = vector.broadcast %16 : vector<512x1xf32> to vector<512x32xf32>
    %18 = arith.mulf %13, %17 : vector<512x32xf32>
    %c0_5 = arith.constant 0 : index
    %c0_6 = arith.constant 0 : index
    %19 = vector.load %arg2[%c0_5, %c0_6] : memref<1x32xf32, #tpu.memory_space<vmem>>, vector<1x32xf32>
    %20 = vector.broadcast %19 : vector<1x32xf32> to vector<512x32xf32>
    %21 = arith.mulf %18, %20 : vector<512x32xf32>
    %c0_7 = arith.constant 0 : index
    %c0_8 = arith.constant 0 : index
    %22 = vector.load %arg3[%c0_7, %c0_8] : memref<1x32xf32, #tpu.memory_space<vmem>>, vector<1x32xf32>
    %23 = vector.broadcast %22 : vector<1x32xf32> to vector<512x32xf32>
    %24 = arith.addf %21, %23 : vector<512x32xf32>
    %25 = arith.addf %0, %24 : vector<512x32xf32>
    %cst_9 = arith.constant dense<0.000000e+00> : vector<512xf32>
    %26 = vector.multi_reduction <add>, %25, %cst_9 [1] : vector<512x32xf32> to vector<512xf32>
    %27 = vector.shape_cast %26 : vector<512xf32> to vector<512x1xf32>
    %cst_10 = arith.constant 3.200000e+01 : f32
    %28 = vector.broadcast %cst_10 : f32 to vector<512x1xf32>
    %29 = arith.divf %27, %28 : vector<512x1xf32>
    %30 = vector.broadcast %29 : vector<512x1xf32> to vector<512x32xf32>
    %31 = arith.subf %25, %30 : vector<512x32xf32>
    %32 = arith.mulf %31, %31 : vector<512x32xf32>
    %cst_11 = arith.constant dense<0.000000e+00> : vector<512xf32>
    %33 = vector.multi_reduction <add>, %32, %cst_11 [1] : vector<512x32xf32> to vector<512xf32>
    %34 = vector.shape_cast %33 : vector<512xf32> to vector<512x1xf32>
    %cst_12 = arith.constant 3.200000e+01 : f32
    %35 = vector.broadcast %cst_12 : f32 to vector<512x1xf32>
    %36 = arith.divf %34, %35 : vector<512x1xf32>
    %37 = vector.broadcast %29 : vector<512x1xf32> to vector<512x32xf32>
    %38 = arith.subf %25, %37 : vector<512x32xf32>
    %cst_13 = arith.constant 9.99999974E-6 : f32
    %39 = vector.broadcast %cst_13 : f32 to vector<512x1xf32>
    %40 = arith.addf %36, %39 : vector<512x1xf32>
    %41 = math.rsqrt %40 : vector<512x1xf32>
    %42 = vector.broadcast %41 : vector<512x1xf32> to vector<512x32xf32>
    %43 = arith.mulf %38, %42 : vector<512x32xf32>
    %c0_14 = arith.constant 0 : index
    %c0_15 = arith.constant 0 : index
    %44 = vector.load %arg4[%c0_14, %c0_15] : memref<1x32xf32, #tpu.memory_space<vmem>>, vector<1x32xf32>
    %45 = vector.broadcast %44 : vector<1x32xf32> to vector<512x32xf32>
    %46 = arith.mulf %43, %45 : vector<512x32xf32>
    %c0_16 = arith.constant 0 : index
    %c0_17 = arith.constant 0 : index
    %47 = vector.load %arg5[%c0_16, %c0_17] : memref<1x32xf32, #tpu.memory_space<vmem>>, vector<1x32xf32>
    %48 = vector.broadcast %47 : vector<1x32xf32> to vector<512x32xf32>
    %49 = arith.addf %46, %48 : vector<512x32xf32>
    %c0_18 = arith.constant 0 : index
    %c0_19 = arith.constant 0 : index
    %50 = vector.load %arg8[%c0_18, %c0_19] : memref<512x32xf32, #tpu.memory_space<vmem>>, vector<512x32xf32>
    tpu.vector_store %arg8[%c0_18, %c0_19], %25 {strides = array<i32>} : memref<512x32xf32, #tpu.memory_space<vmem>>, vector<512x32xf32>,
    %c0_20 = arith.constant 0 : index
    %c0_21 = arith.constant 0 : index
    %51 = vector.load %arg6[%c0_20, %c0_21] : memref<32x32xf32, #tpu.memory_space<vmem>>, vector<32x32xf32>
    %cst_22 = arith.constant dense<0.000000e+00> : vector<512x32xf32>
    %52 = tpu.matmul %49, %51, %cst_22 {dimension_numbers = #tpu.dot_dimension_numbers<[1], [0], [0], [1], [0, 0, 1, 1], [], []>} : vector<512x32xf32>, vector<32x32xf32>, vector<512x32xf32> -> vector<512x32xf32>
    %c0_23 = arith.constant 0 : index
    %c0_24 = arith.constant 0 : index
    %53 = vector.load %arg9[%c0_23, %c0_24] : memref<512x32xf32, #tpu.memory_space<vmem>>, vector<512x32xf32>
    tpu.vector_store %arg9[%c0_23, %c0_24], %52 {strides = array<i32>} : memref<512x32xf32, #tpu.memory_space<vmem>>, vector<512x32xf32>,
    %c0_25 = arith.constant 0 : index
    %c0_26 = arith.constant 0 : index
    %54 = vector.load %arg7[%c0_25, %c0_26] : memref<32x32xf32, #tpu.memory_space<vmem>>, vector<32x32xf32>
    %cst_27 = arith.constant dense<0.000000e+00> : vector<512x32xf32>
    %55 = tpu.matmul %49, %54, %cst_27 {dimension_numbers = #tpu.dot_dimension_numbers<[1], [0], [0], [1], [0, 0, 1, 1], [], []>} : vector<512x32xf32>, vector<32x32xf32>, vector<512x32xf32> -> vector<512x32xf32>
    %c0_28 = arith.constant 0 : index
    %c0_29 = arith.constant 0 : index
    %56 = vector.load %arg10[%c0_28, %c0_29] : memref<512x32xf32, #tpu.memory_space<vmem>>, vector<512x32xf32>
    tpu.vector_store %arg10[%c0_28, %c0_29], %55 {strides = array<i32>} : memref<512x32xf32, #tpu.memory_space<vmem>>, vector<512x32xf32>,
    return
  }
  func.func @transform_0(%arg0: i32) -> (i32, i32) {
    %c0_i32 = arith.constant 0 : i32
    %c0_i32_0 = arith.constant 0 : i32
    return %arg0, %c0_i32 : i32, i32
  }
  func.func @transform_1(%arg0: i32) -> (i32, i32) {
    %c0_i32 = arith.constant 0 : i32
    %c0_i32_0 = arith.constant 0 : i32
    %c0_i32_1 = arith.constant 0 : i32
    return %c0_i32, %c0_i32_0 : i32, i32
  }
  func.func @transform_2(%arg0: i32) -> (i32, i32) {
    %c0_i32 = arith.constant 0 : i32
    %c0_i32_0 = arith.constant 0 : i32
    %c0_i32_1 = arith.constant 0 : i32
    return %c0_i32, %c0_i32_0 : i32, i32
  }
  func.func @transform_3(%arg0: i32) -> (i32, i32) {
    %c0_i32 = arith.constant 0 : i32
    %c0_i32_0 = arith.constant 0 : i32
    %c0_i32_1 = arith.constant 0 : i32
    return %c0_i32, %c0_i32_0 : i32, i32
  }
  func.func @transform_4(%arg0: i32) -> (i32, i32) {
    %c0_i32 = arith.constant 0 : i32
    %c0_i32_0 = arith.constant 0 : i32
    %c0_i32_1 = arith.constant 0 : i32
    return %c0_i32, %c0_i32_0 : i32, i32
  }
  func.func @transform_5(%arg0: i32) -> (i32, i32) {
    %c0_i32 = arith.constant 0 : i32
    %c0_i32_0 = arith.constant 0 : i32
    %c0_i32_1 = arith.constant 0 : i32
    return %c0_i32, %c0_i32_0 : i32, i32
  }
  func.func @transform_6(%arg0: i32) -> (i32, i32) {
    %c0_i32 = arith.constant 0 : i32
    %c0_i32_0 = arith.constant 0 : i32
    %c0_i32_1 = arith.constant 0 : i32
    return %c0_i32, %c0_i32_0 : i32, i32
  }
  func.func @transform_7(%arg0: i32) -> (i32, i32) {
    %c0_i32 = arith.constant 0 : i32
    %c0_i32_0 = arith.constant 0 : i32
    return %arg0, %c0_i32 : i32, i32
  }
  func.func @transform_8(%arg0: i32) -> (i32, i32) {
    %c0_i32 = arith.constant 0 : i32
    %c0_i32_0 = arith.constant 0 : i32
    return %arg0, %c0_i32 : i32, i32
  }
  func.func @transform_9(%arg0: i32) -> (i32, i32) {
    %c0_i32 = arith.constant 0 : i32
    %c0_i32_0 = arith.constant 0 : i32
    return %arg0, %c0_i32 : i32, i32
  }
}

module attributes {stable_mosaic.version = 11 : i64} {
  func.func @_fused_post_kernel(%arg0: i32, %arg1: memref<512x32xf32, #tpu.memory_space<vmem>>, %arg2: memref<512x32xf32, #tpu.memory_space<vmem>>, %arg3: memref<512x32xf32, #tpu.memory_space<vmem>>, %arg4: memref<32x32xf32, #tpu.memory_space<vmem>>, %arg5: memref<512x32xf32, #tpu.memory_space<vmem>>) attributes {dimension_semantics = [#tpu.dimension_semantics<parallel>], iteration_bounds = array<i64: 4>, scalar_prefetch = 0 : i64, scratch_operands = 0 : i64, tpu.core_type = #tpu.core_type<tc>, window_params = [{transform_indices = @transform_0, window_bounds = array<i64: 512, 32>}, {transform_indices = @transform_1, window_bounds = array<i64: 512, 32>}, {transform_indices = @transform_2, window_bounds = array<i64: 512, 32>}, {pipeline_mode = #tpu.pipeline_mode<synchronous>, transform_indices = @transform_3, window_bounds = array<i64: 32, 32>}, {transform_indices = @transform_4, window_bounds = array<i64: 512, 32>}]} {
    %c0 = arith.constant 0 : index
    %c0_0 = arith.constant 0 : index
    %0 = vector.load %arg1[%c0, %c0_0] : memref<512x32xf32, #tpu.memory_space<vmem>>, vector<512x32xf32>
    %c0_1 = arith.constant 0 : index
    %c0_2 = arith.constant 0 : index
    %1 = vector.load %arg2[%c0_1, %c0_2] : memref<512x32xf32, #tpu.memory_space<vmem>>, vector<512x32xf32>
    %cst = arith.constant 5.000000e-01 : f32
    %2 = vector.broadcast %cst : f32 to vector<512x32xf32>
    %3 = arith.mulf %2, %0 : vector<512x32xf32>
    %cst_3 = arith.constant 0.707106769 : f32
    %4 = vector.broadcast %cst_3 : f32 to vector<512x32xf32>
    %5 = arith.mulf %0, %4 : vector<512x32xf32>
    %6 = math.erf %5 : vector<512x32xf32>
    %cst_4 = arith.constant 1.000000e+00 : f32
    %7 = vector.broadcast %cst_4 : f32 to vector<512x32xf32>
    %8 = arith.addf %7, %6 : vector<512x32xf32>
    %9 = arith.mulf %3, %8 : vector<512x32xf32>
    %10 = arith.mulf %9, %1 : vector<512x32xf32>
    %c0_5 = arith.constant 0 : index
    %c0_6 = arith.constant 0 : index
    %11 = vector.load %arg4[%c0_5, %c0_6] : memref<32x32xf32, #tpu.memory_space<vmem>>, vector<32x32xf32>
    %cst_7 = arith.constant dense<0.000000e+00> : vector<512x32xf32>
    %12 = tpu.matmul %10, %11, %cst_7 {dimension_numbers = #tpu.dot_dimension_numbers<[1], [0], [0], [1], [0, 0, 1, 1], [], []>} : vector<512x32xf32>, vector<32x32xf32>, vector<512x32xf32> -> vector<512x32xf32>
    %c0_8 = arith.constant 0 : index
    %c0_9 = arith.constant 0 : index
    %13 = vector.load %arg3[%c0_8, %c0_9] : memref<512x32xf32, #tpu.memory_space<vmem>>, vector<512x32xf32>
    %14 = arith.addf %12, %13 : vector<512x32xf32>
    %c0_10 = arith.constant 0 : index
    %c0_11 = arith.constant 0 : index
    %15 = vector.load %arg5[%c0_10, %c0_11] : memref<512x32xf32, #tpu.memory_space<vmem>>, vector<512x32xf32>
    tpu.vector_store %arg5[%c0_10, %c0_11], %14 {strides = array<i32>} : memref<512x32xf32, #tpu.memory_space<vmem>>, vector<512x32xf32>,
    return
  }
  func.func @transform_0(%arg0: i32) -> (i32, i32) {
    %c0_i32 = arith.constant 0 : i32
    %c0_i32_0 = arith.constant 0 : i32
    return %arg0, %c0_i32 : i32, i32
  }
  func.func @transform_1(%arg0: i32) -> (i32, i32) {
    %c0_i32 = arith.constant 0 : i32
    %c0_i32_0 = arith.constant 0 : i32
    return %arg0, %c0_i32 : i32, i32
  }
  func.func @transform_2(%arg0: i32) -> (i32, i32) {
    %c0_i32 = arith.constant 0 : i32
    %c0_i32_0 = arith.constant 0 : i32
    return %arg0, %c0_i32 : i32, i32
  }
  func.func @transform_3(%arg0: i32) -> (i32, i32) {
    %c0_i32 = arith.constant 0 : i32
    %c0_i32_0 = arith.constant 0 : i32
    %c0_i32_1 = arith.constant 0 : i32
    return %c0_i32, %c0_i32_0 : i32, i32
  }
  func.func @transform_4(%arg0: i32) -> (i32, i32) {
    %c0_i32 = arith.constant 0 : i32
    %c0_i32_0 = arith.constant 0 : i32
    return %arg0, %c0_i32 : i32, i32
  }
}

</mosaic_0001>

<llo_original>
// kernel: convnat_block_forward.3
$region0: #{convnat_block_forward.3}
  #allocation0 [shape = 'u32[]', space=smem, size = 0x4, offset = 0x4, fixed_abs, tag = 'smem constant byte address 0x4 - core index']
  #allocation1 [shape = 'u32[144,128]{1,0:T(1,128)}', space=vmem, size = 0x12000, scoped, tag = 'internal scratch']
  %s0 = inlined_call_operand.vmem [shape: f32[2048,32], index: 0, kind: input, shape index: {}]
  %s1 = inlined_call_operand.vmem [shape: f32[1,32], index: 1, kind: input, shape index: {}]
  %s2 = inlined_call_operand.vmem [shape: f32[1,32], index: 2, kind: input, shape index: {}]
  %s3 = inlined_call_operand.vmem [shape: f32[1,32], index: 3, kind: input, shape index: {}]
  %s4 = inlined_call_operand.vmem [shape: f32[1,32], index: 4, kind: input, shape index: {}]
  %s5 = inlined_call_operand.vmem [shape: f32[32,32], index: 5, kind: input, shape index: {}]
  %s6 = inlined_call_operand.vmem [shape: f32[32,32], index: 6, kind: input, shape index: {}]
  %s7 = inlined_call_operand.vmem [shape: f32[2048,32], index: 7, kind: output, shape index: {0}]
  %s8 = inlined_call_operand.vmem [shape: f32[2048,32], index: 8, kind: output, shape index: {1}]
  %s9 = inlined_call_operand.vmem [shape: f32[2048,32], index: 9, kind: output, shape index: {2}]
  %10 = xla_tuple %s7, %s8, %s9
  %s11 = sld [smem:[#allocation0]]
  $region77: #{convnat_block_forward.3} parent=0
    _
  %s13 = ssub.s32 1, %s11
  %s14 = scalar_select 0, %s13, %s11
  loop: start=0, step=1, limit=6
  $region2: #{convnat_block_forward.3} parent=0 // loop_pre_header
    _
  $region3: #{convnat_block_forward.3} parent=0 // loop_header
    %s16 = sphi 0, %s20
    %p17 = scmp.ge.s32.totalorder %s16, 6
    %s26 = sphi 0, %s28
    %s29 = sphi 0, %s26
    %s30 = sphi 0, %s29
    %s46 = sphi 0, %s30
    %s50 = sphi 0, %s50
    %s52 = sphi 0, %s50
    %s53 = sphi 0, %s52
    %s67 = sphi 0, %s53
    %s71 = sphi 0, %s71
    %s73 = sphi 0, %s71
    %s74 = sphi 0, %s73
    %s88 = sphi 0, %s74
    %s92 = sphi 0, %s92
    %s94 = sphi 0, %s92
    %s95 = sphi 0, %s94
    %s109 = sphi 0, %s95
    %s113 = sphi 0, %s113
    %s115 = sphi 0, %s113
    %s116 = sphi 0, %s115
    %s130 = sphi 0, %s116
    %s134 = sphi 0, %s134
    %s136 = sphi 0, %s134
    %s137 = sphi 0, %s136
    %s151 = sphi 0, %s137
    %s155 = sphi 0, %s155
    %s157 = sphi 0, %s155
    %s158 = sphi 0, %s157
    %s172 = sphi 0, %s158
    %s178 = sphi 0, %s180
    %s181 = sphi 0, %s178
    %s182 = sphi 0, %s181
    %s198 = sphi 0, %s182
    %s204 = sphi 0, %s206
    %s207 = sphi 0, %s204
    %s208 = sphi 0, %s207
    %s224 = sphi 0, %s208
    %s230 = sphi 0, %s232
    %s233 = sphi 0, %s230
    %s234 = sphi 0, %s233
    %s250 = sphi 0, %s234
  $region4: #{convnat_block_forward.3} parent=0 // loop_header_branch
    %19 = sbr.rel (%p17) target = $region8
  $region5: #{convnat_block_forward.3} parent=0 // loop_body
    %s21 = ssub.s32 %s16, 1
    %s22 = ssub.s32 %s16, 2
    %s23 = sadd.s32 %s16, 1
    %s24 = ssub.s32 %s16, %s23
    %p25 = scmp.eq.s32.totalorder %s24, 0
    %s27 = sadd.s32 %s26, 1
    %s28 = scalar_select %p25, %s26, %s27
    %p31 = pneg %p25
    %p32 = scmp.eq.s32.totalorder %s16, 3
    %p33 = por %p31, %p32
    %p34 = scmp.ne.s32.totalorder %s26, %s29
    %p35 = scmp.eq.s32.totalorder %s16, 0
    %p36 = por %p34, %p35
    %p37 = scmp.ne.s32.totalorder %s26, %s29
    %p38 = scmp.eq.s32.totalorder %s21, 3
    %p39 = por %p37, %p38
    %p40 = scmp.ne.s32.totalorder %s29, %s30
    %p41 = scmp.eq.s32.totalorder %s21, 0
    %p42 = por %p40, %p41
    %p43 = scmp.ne.s32.totalorder %s29, %s30
    %p44 = scmp.eq.s32.totalorder %s22, 3
    %p45 = por %p43, %p44
    %p47 = scmp.ne.s32.totalorder %s30, %s46
    %p48 = scmp.eq.s32.totalorder %s22, 0
    %p49 = por %p47, %p48
    %s51 = sadd.s32 %s50, 1
    %p54 = scmp.eq.s32.totalorder %s16, 3
    %p55 = scmp.ne.s32.totalorder %s50, %s52
    %p56 = scmp.eq.s32.totalorder %s16, 0
    %p57 = por %p55, %p56
    %p58 = scmp.ne.s32.totalorder %s50, %s52
    %p59 = scmp.eq.s32.totalorder %s21, 3
    %p60 = por %p58, %p59
    %p61 = scmp.ne.s32.totalorder %s52, %s53
    %p62 = scmp.eq.s32.totalorder %s21, 0
    %p63 = por %p61, %p62
    %p64 = scmp.ne.s32.totalorder %s52, %s53
    %p65 = scmp.eq.s32.totalorder %s22, 3
    %p66 = por %p64, %p65
    %p68 = scmp.ne.s32.totalorder %s53, %s67
    %p69 = scmp.eq.s32.totalorder %s22, 0
    %p70 = por %p68, %p69
    %s72 = sadd.s32 %s71, 1
    %p75 = scmp.eq.s32.totalorder %s16, 3
    %p76 = scmp.ne.s32.totalorder %s71, %s73
    %p77 = scmp.eq.s32.totalorder %s16, 0
    %p78 = por %p76, %p77
    %p79 = scmp.ne.s32.totalorder %s71, %s73
    %p80 = scmp.eq.s32.totalorder %s21, 3
    %p81 = por %p79, %p80
    %p82 = scmp.ne.s32.totalorder %s73, %s74
    %p83 = scmp.eq.s32.totalorder %s21, 0
    %p84 = por %p82, %p83
    %p85 = scmp.ne.s32.totalorder %s73, %s74
    %p86 = scmp.eq.s32.totalorder %s22, 3
    %p87 = por %p85, %p86
    %p89 = scmp.ne.s32.totalorder %s74, %s88
    %p90 = scmp.eq.s32.totalorder %s22, 0
    %p91 = por %p89, %p90
    %s93 = sadd.s32 %s92, 1
    %p96 = scmp.eq.s32.totalorder %s16, 3
    %p97 = scmp.ne.s32.totalorder %s92, %s94
    %p98 = scmp.eq.s32.totalorder %s16, 0
    %p99 = por %p97, %p98
    %p100 = scmp.ne.s32.totalorder %s92, %s94
    %p101 = scmp.eq.s32.totalorder %s21, 3
    %p102 = por %p100, %p101
    %p103 = scmp.ne.s32.totalorder %s94, %s95
    %p104 = scmp.eq.s32.totalorder %s21, 0
    %p105 = por %p103, %p104
    %p106 = scmp.ne.s32.totalorder %s94, %s95
    %p107 = scmp.eq.s32.totalorder %s22, 3
    %p108 = por %p106, %p107
    %p110 = scmp.ne.s32.totalorder %s95, %s109
    %p111 = scmp.eq.s32.totalorder %s22, 0
    %p112 = por %p110, %p111
    %s114 = sadd.s32 %s113, 1
    %p117 = scmp.eq.s32.totalorder %s16, 3
    %p118 = scmp.ne.s32.totalorder %s113, %s115
    %p119 = scmp.eq.s32.totalorder %s16, 0
    %p120 = por %p118, %p119
    %p121 = scmp.ne.s32.totalorder %s113, %s115
    %p122 = scmp.eq.s32.totalorder %s21, 3
    %p123 = por %p121, %p122
    %p124 = scmp.ne.s32.totalorder %s115, %s116
    %p125 = scmp.eq.s32.totalorder %s21, 0
    %p126 = por %p124, %p125
    %p127 = scmp.ne.s32.totalorder %s115, %s116
    %p128 = scmp.eq.s32.totalorder %s22, 3
    %p129 = por %p127, %p128
    %p131 = scmp.ne.s32.totalorder %s116, %s130
    %p132 = scmp.eq.s32.totalorder %s22, 0
    %p133 = por %p131, %p132
    %s135 = sadd.s32 %s134, 1
    %p138 = scmp.eq.s32.totalorder %s16, 3
    %p139 = scmp.ne.s32.totalorder %s134, %s136
    %p140 = scmp.eq.s32.totalorder %s16, 0
    %p141 = por %p139, %p140
    %p142 = scmp.ne.s32.totalorder %s134, %s136
    %p143 = scmp.eq.s32.totalorder %s21, 3
    %p144 = por %p142, %p143
    %p145 = scmp.ne.s32.totalorder %s136, %s137
    %p146 = scmp.eq.s32.totalorder %s21, 0
    %p147 = por %p145, %p146
    %p148 = scmp.ne.s32.totalorder %s136, %s137
    %p149 = scmp.eq.s32.totalorder %s22, 3
    %p150 = por %p148, %p149
    %p152 = scmp.ne.s32.totalorder %s137, %s151
    %p153 = scmp.eq.s32.totalorder %s22, 0
    %p154 = por %p152, %p153
    %s156 = sadd.s32 %s155, 1
    %p159 = scmp.eq.s32.totalorder %s16, 3
    %p160 = scmp.ne.s32.totalorder %s155, %s157
    %p161 = scmp.eq.s32.totalorder %s16, 0
    %p162 = por %p160, %p161
    %p163 = scmp.ne.s32.totalorder %s155, %s157
    %p164 = scmp.eq.s32.totalorder %s21, 3
    %p165 = por %p163, %p164
    %p166 = scmp.ne.s32.totalorder %s157, %s158
    %p167 = scmp.eq.s32.totalorder %s21, 0
    %p168 = por %p166, %p167
    %p169 = scmp.ne.s32.totalorder %s157, %s158
    %p170 = scmp.eq.s32.totalorder %s22, 3
    %p171 = por %p169, %p170
    %p173 = scmp.ne.s32.totalorder %s158, %s172
    %p174 = scmp.eq.s32.totalorder %s22, 0
    %p175 = por %p173, %p174
    %s176 = ssub.s32 %s16, %s23
    %p177 = scmp.eq.s32.totalorder %s176, 0
    %s179 = sadd.s32 %s178, 1
    %s180 = scalar_select %p177, %s178, %s179
    %p183 = pneg %p177
    %p184 = scmp.eq.s32.totalorder %s16, 3
    %p185 = por %p183, %p184
    %p186 = scmp.ne.s32.totalorder %s178, %s181
    %p187 = scmp.eq.s32.totalorder %s16, 0
    %p188 = por %p186, %p187
    %p189 = scmp.ne.s32.totalorder %s178, %s181
    %p190 = scmp.eq.s32.totalorder %s21, 3
    %p191 = por %p189, %p190
    %p192 = scmp.ne.s32.totalorder %s181, %s182
    %p193 = scmp.eq.s32.totalorder %s21, 0
    %p194 = por %p192, %p193
    %p195 = scmp.ne.s32.totalorder %s181, %s182
    %p196 = scmp.eq.s32.totalorder %s22, 3
    %p197 = por %p195, %p196
    %p199 = scmp.ne.s32.totalorder %s182, %s198
    %p200 = scmp.eq.s32.totalorder %s22, 0
    %p201 = por %p199, %p200
    %s202 = ssub.s32 %s16, %s23
    %p203 = scmp.eq.s32.totalorder %s202, 0
    %s205 = sadd.s32 %s204, 1
    %s206 = scalar_select %p203, %s204, %s205
    %p209 = pneg %p203
    %p210 = scmp.eq.s32.totalorder %s16, 3
    %p211 = por %p209, %p210
    %p212 = scmp.ne.s32.totalorder %s204, %s207
    %p213 = scmp.eq.s32.totalorder %s16, 0
    %p214 = por %p212, %p213
    %p215 = scmp.ne.s32.totalorder %s204, %s207
    %p216 = scmp.eq.s32.totalorder %s21, 3
    %p217 = por %p215, %p216
    %p218 = scmp.ne.s32.totalorder %s207, %s208
    %p219 = scmp.eq.s32.totalorder %s21, 0
    %p220 = por %p218, %p219
    %p221 = scmp.ne.s32.totalorder %s207, %s208
    %p222 = scmp.eq.s32.totalorder %s22, 3
    %p223 = por %p221, %p222
    %p225 = scmp.ne.s32.totalorder %s208, %s224
    %p226 = scmp.eq.s32.totalorder %s22, 0
    %p227 = por %p225, %p226
    %s228 = ssub.s32 %s16, %s23
    %p229 = scmp.eq.s32.totalorder %s228, 0
    %s231 = sadd.s32 %s230, 1
    %s232 = scalar_select %p229, %s230, %s231
    %p235 = pneg %p229
    %p236 = scmp.eq.s32.totalorder %s16, 3
    %p237 = por %p235, %p236
    %p238 = scmp.ne.s32.totalorder %s230, %s233
    %p239 = scmp.eq.s32.totalorder %s16, 0
    %p240 = por %p238, %p239
    %p241 = scmp.ne.s32.totalorder %s230, %s233
    %p242 = scmp.eq.s32.totalorder %s21, 3
    %p243 = por %p241, %p242
    %p244 = scmp.ne.s32.totalorder %s233, %s234
    %p245 = scmp.eq.s32.totalorder %s21, 0
    %p246 = por %p244, %p245
    %p247 = scmp.ne.s32.totalorder %s233, %s234
    %p248 = scmp.eq.s32.totalorder %s22, 3
    %p249 = por %p247, %p248
    %p251 = scmp.ne.s32.totalorder %s234, %s250
    %p252 = scmp.eq.s32.totalorder %s22, 0
    %p253 = por %p251, %p252
    %p254 = scmp.le.s32.totalorder 1, %s16
    %p255 = scmp.lt.s32.totalorder %s16, 5
    %p256 = pnand %p254, %p255
    %p257 = pneg %p256
    // Predicated region
    $region9: #{convnat_block_forward.3} parent=5 // pred_check
      _
    $region10: #{convnat_block_forward.3} parent=5 // pred_check_branch
      %259 = sbr.rel (%p256) target = $region12
    $region11: #{convnat_block_forward.3} parent=5 // pred_region
      %s260 = ssub.s32 %s16, 1
      // Predicated region
      $region13: #{convnat_block_forward.3} parent=11 // pred_check
        %p261 = pneg %p63
      $region14: #{convnat_block_forward.3} parent=11 // pred_check_branch
        %263 = sbr.rel (%p261) target = $region16
      $region15: #{convnat_block_forward.3} parent=11 // pred_region
        _
      $region16: #{convnat_block_forward.3} parent=11 // pred_fallthru
        _
      // Predicated region
      $region17: #{convnat_block_forward.3} parent=11 // pred_check
        %p264 = pneg %p84
      $region18: #{convnat_block_forward.3} parent=11 // pred_check_branch
        %266 = sbr.rel (%p264) target = $region20
      $region19: #{convnat_block_forward.3} parent=11 // pred_region
        _
      $region20: #{convnat_block_forward.3} parent=11 // pred_fallthru
        _
      // Predicated region
      $region21: #{convnat_block_forward.3} parent=11 // pred_check
        %p267 = pneg %p105
      $region22: #{convnat_block_forward.3} parent=11 // pred_check_branch
        %269 = sbr.rel (%p267) target = $region24
      $region23: #{convnat_block_forward.3} parent=11 // pred_region
        _
      $region24: #{convnat_block_forward.3} parent=11 // pred_fallthru
        _
      // Predicated region
      $region25: #{convnat_block_forward.3} parent=11 // pred_check
        %p270 = pneg %p126
      $region26: #{convnat_block_forward.3} parent=11 // pred_check_branch
        %272 = sbr.rel (%p270) target = $region28
      $region27: #{convnat_block_forward.3} parent=11 // pred_region
        _
      $region28: #{convnat_block_forward.3} parent=11 // pred_fallthru
        _
      // Predicated region
      $region29: #{convnat_block_forward.3} parent=11 // pred_check
        %p273 = pneg %p147
      $region30: #{convnat_block_forward.3} parent=11 // pred_check_branch
        %275 = sbr.rel (%p273) target = $region32
      $region31: #{convnat_block_forward.3} parent=11 // pred_region
        _
      $region32: #{convnat_block_forward.3} parent=11 // pred_fallthru
        _
      // Predicated region
      $region33: #{convnat_block_forward.3} parent=11 // pred_check
        %p276 = pneg %p168
      $region34: #{convnat_block_forward.3} parent=11 // pred_check_branch
        %278 = sbr.rel (%p276) target = $region36
      $region35: #{convnat_block_forward.3} parent=11 // pred_region
        _
      $region36: #{convnat_block_forward.3} parent=11 // pred_fallthru
        _
    $region12: #{convnat_block_forward.3} parent=5 // pred_fallthru
      _
    %p279 = scmp.lt.s32.totalorder %s16, 4
    // Predicated region
    $region37: #{convnat_block_forward.3} parent=5 // pred_check
      %p280 = pneg %p279
    $region38: #{convnat_block_forward.3} parent=5 // pred_check_branch
      %282 = sbr.rel (%p280) target = $region40
    $region39: #{convnat_block_forward.3} parent=5 // pred_region
      // Predicated region
      $region41: #{convnat_block_forward.3} parent=39 // pred_check
        %p283 = pneg %p36
      $region42: #{convnat_block_forward.3} parent=39 // pred_check_branch
        %285 = sbr.rel (%p283) target = $region44
      $region43: #{convnat_block_forward.3} parent=39 // pred_region
        %s286 = smul.u32 64, %s16
        %p287 = scmp.lt.s32.totalorder %s286, 255
        %s288 = scalar_select %p287, %s286, 255
        %s289 = smul.addr %s288, 8
        %s290 = scalar_lea.vmem %s0, %s289
        %s291 = smul.u32 64, %s16
      $region44: #{convnat_block_forward.3} parent=39 // pred_fallthru
        _
    $region40: #{convnat_block_forward.3} parent=5 // pred_fallthru
      _
    %p292 = scmp.le.s32.totalorder 1, %s16
    %p293 = scmp.lt.s32.totalorder %s16, 5
    %p294 = pnand %p292, %p293
    %p295 = pneg %p294
    // Predicated region
    $region45: #{convnat_block_forward.3} parent=5 // pred_check
      _
    $region46: #{convnat_block_forward.3} parent=5 // pred_check_branch
      %297 = sbr.rel (%p294) target = $region48
    $region47: #{convnat_block_forward.3} parent=5 // pred_region
      %s298 = ssub.s32 %s16, 1
      %s299 = smul.u32 64, %s21
      %p300 = scmp.lt.s32.totalorder %s299, 255
      %s301 = scalar_select %p300, %s299, 255
      %s302 = smul.addr %s301, 8
      %s303 = scalar_lea.vmem %s0, %s302
      %p304 = pneg %p42
      %p305 = pneg %p39
      %p306 = pneg %p63
      %p307 = pneg %p60
      %p308 = pneg %p84
      %p309 = pneg %p81
      %p310 = pneg %p105
      %p311 = pneg %p102
      %p312 = pneg %p126
      %p313 = pneg %p123
      %p314 = pneg %p147
      %p315 = pneg %p144
      %p316 = pneg %p168
      %p317 = pneg %p165
      %p318 = pneg %p194
      %p319 = pneg %p191
      %s320 = smul.u32 64, %s21
      %p321 = scmp.lt.s32.totalorder %s320, 255
      %s322 = scalar_select %p321, %s320, 255
      %s323 = smul.addr %s322, 8
      %s324 = scalar_lea.vmem %s7, %s323
      %p325 = pneg %p220
      %p326 = pneg %p217
      %s327 = smul.u32 64, %s21
      %p328 = scmp.lt.s32.totalorder %s327, 255
      %s329 = scalar_select %p328, %s327, 255
      %s330 = smul.addr %s329, 8
      %s331 = scalar_lea.vmem %s8, %s330
      %p332 = pneg %p246
      %p333 = pneg %p243
      %s334 = smul.u32 64, %s21
      %p335 = scmp.lt.s32.totalorder %s334, 255
      %s336 = scalar_select %p335, %s334, 255
      %s337 = smul.addr %s336, 8
      %s338 = scalar_lea.vmem %s9, %s337
      %s339 = smul.u32 64, %s21
      %p340 = scmp.lt.s32.totalorder %s339, 255
      %s341 = scalar_select %p340, %s339, 255
      %s342 = smul.addr %s341, 8
      %s343 = scalar_lea.vmem %s0, %s342
      %s344 = smul.u32 64, %s21
      %s345 = smul.u32 64, %s21
      %p346 = scmp.lt.s32.totalorder %s345, 255
      %s347 = scalar_select %p346, %s345, 255
      %s348 = smul.addr %s347, 8
      %s349 = scalar_lea.vmem %s7, %s348
      %s350 = smul.u32 64, %s21
      %s351 = smul.u32 64, %s21
      %p352 = scmp.lt.s32.totalorder %s351, 255
      %s353 = scalar_select %p352, %s351, 255
      %s354 = smul.addr %s353, 8
      %s355 = scalar_lea.vmem %s8, %s354
      %s356 = smul.u32 64, %s21
      %s357 = smul.u32 64, %s21
      %p358 = scmp.lt.s32.totalorder %s357, 255
      %s359 = scalar_select %p358, %s357, 255
      %s360 = smul.addr %s359, 8
      %s361 = scalar_lea.vmem %s9, %s360
      %s362 = smul.u32 64, %s21
      %v363 = vld [vmem:[%s343] sm:$0xff]
      %v364 = vld [vmem:[%s343 + $0x8] sm:$0xff]
      %v365 = vld [vmem:[%s343 + $0x10] sm:$0xff]
      %v366 = vld [vmem:[%s343 + $0x18] sm:$0xff]
      %v367 = vld [vmem:[%s343 + $0x20] sm:$0xff]
      %v368 = vld [vmem:[%s343 + $0x28] sm:$0xff]
      %v369 = vld [vmem:[%s343 + $0x30] sm:$0xff]
      %v370 = vld [vmem:[%s343 + $0x38] sm:$0xff]
      %v371 = vld [vmem:[%s343 + $0x40] sm:$0xff]
      %v372 = vld [vmem:[%s343 + $0x48] sm:$0xff]
      %v373 = vld [vmem:[%s343 + $0x50] sm:$0xff]
      %v374 = vld [vmem:[%s343 + $0x58] sm:$0xff]
      %v375 = vld [vmem:[%s343 + $0x60] sm:$0xff]
      %v376 = vld [vmem:[%s343 + $0x68] sm:$0xff]
      %v377 = vld [vmem:[%s343 + $0x70] sm:$0xff]
      %v378 = vld [vmem:[%s343 + $0x78] sm:$0xff]
      %v379 = vld [vmem:[%s343 + $0x80] sm:$0xff]
      %v380 = vld [vmem:[%s343 + $0x88] sm:$0xff]
      %v381 = vld [vmem:[%s343 + $0x90] sm:$0xff]
      %v382 = vld [vmem:[%s343 + $0x98] sm:$0xff]
      %v383 = vld [vmem:[%s343 + $0xa0] sm:$0xff]
      %v384 = vld [vmem:[%s343 + $0xa8] sm:$0xff]
      %v385 = vld [vmem:[%s343 + $0xb0] sm:$0xff]
      %v386 = vld [vmem:[%s343 + $0xb8] sm:$0xff]
      %v387 = vld [vmem:[%s343 + $0xc0] sm:$0xff]
      %v388 = vld [vmem:[%s343 + $0xc8] sm:$0xff]
      %v389 = vld [vmem:[%s343 + $0xd0] sm:$0xff]
      %v390 = vld [vmem:[%s343 + $0xd8] sm:$0xff]
      %v391 = vld [vmem:[%s343 + $0xe0] sm:$0xff]
      %v392 = vld [vmem:[%s343 + $0xe8] sm:$0xff]
      %v393 = vld [vmem:[%s343 + $0xf0] sm:$0xff]
      %v394 = vld [vmem:[%s343 + $0xf8] sm:$0xff]
      %v395 = vld [vmem:[%s343 + $0x100] sm:$0xff]
      %v396 = vld [vmem:[%s343 + $0x108] sm:$0xff]
      %v397 = vld [vmem:[%s343 + $0x110] sm:$0xff]
      %v398 = vld [vmem:[%s343 + $0x118] sm:$0xff]
      %v399 = vld [vmem:[%s343 + $0x120] sm:$0xff]
      %v400 = vld [vmem:[%s343 + $0x128] sm:$0xff]
      %v401 = vld [vmem:[%s343 + $0x130] sm:$0xff]
      %v402 = vld [vmem:[%s343 + $0x138] sm:$0xff]
      %v403 = vld [vmem:[%s343 + $0x140] sm:$0xff]
      %v404 = vld [vmem:[%s343 + $0x148] sm:$0xff]
      %v405 = vld [vmem:[%s343 + $0x150] sm:$0xff]
      %v406 = vld [vmem:[%s343 + $0x158] sm:$0xff]
      %v407 = vld [vmem:[%s343 + $0x160] sm:$0xff]
      %v408 = vld [vmem:[%s343 + $0x168] sm:$0xff]
      %v409 = vld [vmem:[%s343 + $0x170] sm:$0xff]
      %v410 = vld [vmem:[%s343 + $0x178] sm:$0xff]
      %v411 = vld [vmem:[%s343 + $0x180] sm:$0xff]
      %v412 = vld [vmem:[%s343 + $0x188] sm:$0xff]
      %v413 = vld [vmem:[%s343 + $0x190] sm:$0xff]
      %v414 = vld [vmem:[%s343 + $0x198] sm:$0xff]
      %v415 = vld [vmem:[%s343 + $0x1a0] sm:$0xff]
      %v416 = vld [vmem:[%s343 + $0x1a8] sm:$0xff]
      %v417 = vld [vmem:[%s343 + $0x1b0] sm:$0xff]
      %v418 = vld [vmem:[%s343 + $0x1b8] sm:$0xff]
      %v419 = vld [vmem:[%s343 + $0x1c0] sm:$0xff]
      %v420 = vld [vmem:[%s343 + $0x1c8] sm:$0xff]
      %v421 = vld [vmem:[%s343 + $0x1d0] sm:$0xff]
      %v422 = vld [vmem:[%s343 + $0x1d8] sm:$0xff]
      %v423 = vld [vmem:[%s343 + $0x1e0] sm:$0xff]
      %v424 = vld [vmem:[%s343 + $0x1e8] sm:$0xff]
      %v425 = vld [vmem:[%s343 + $0x1f0] sm:$0xff]
      %v426 = vld [vmem:[%s343 + $0x1f8] sm:$0xff]
      %vm427 = vcmask 261120
      %v428 = vsel %vm427, %v363, 0.0
      %429 = vadd.xlane.f32.xlu0 %v428
      %v430 = vpop.xlane.xlu0 %429
      %v431 = vsel %vm427, %v364, 0.0
      %432 = vadd.xlane.f32.xlu0 %v431
      %v433 = vpop.xlane.xlu0 %432
      %v434 = vsel %vm427, %v365, 0.0
      %435 = vadd.xlane.f32.xlu0 %v434
      %v436 = vpop.xlane.xlu0 %435
      %v437 = vsel %vm427, %v366, 0.0
      %438 = vadd.xlane.f32.xlu0 %v437
      %v439 = vpop.xlane.xlu0 %438
      %v440 = vsel %vm427, %v367, 0.0
      %441 = vadd.xlane.f32.xlu0 %v440
      %v442 = vpop.xlane.xlu0 %441
      %v443 = vsel %vm427, %v368, 0.0
      %444 = vadd.xlane.f32.xlu0 %v443
      %v445 = vpop.xlane.xlu0 %444
      %v446 = vsel %vm427, %v369, 0.0
      %447 = vadd.xlane.f32.xlu0 %v446
      %v448 = vpop.xlane.xlu0 %447
      %v449 = vsel %vm427, %v370, 0.0
      %450 = vadd.xlane.f32.xlu0 %v449
      %v451 = vpop.xlane.xlu0 %450
      %v452 = vsel %vm427, %v371, 0.0
      %453 = vadd.xlane.f32.xlu0 %v452
      %v454 = vpop.xlane.xlu0 %453
      %v455 = vsel %vm427, %v372, 0.0
      %456 = vadd.xlane.f32.xlu0 %v455
      %v457 = vpop.xlane.xlu0 %456
      %v458 = vsel %vm427, %v373, 0.0
      %459 = vadd.xlane.f32.xlu0 %v458
      %v460 = vpop.xlane.xlu0 %459
      %v461 = vsel %vm427, %v374, 0.0
      %462 = vadd.xlane.f32.xlu0 %v461
      %v463 = vpop.xlane.xlu0 %462
      %v464 = vsel %vm427, %v375, 0.0
      %465 = vadd.xlane.f32.xlu0 %v464
      %v466 = vpop.xlane.xlu0 %465
      %v467 = vsel %vm427, %v376, 0.0
      %468 = vadd.xlane.f32.xlu0 %v467
      %v469 = vpop.xlane.xlu0 %468
      %v470 = vsel %vm427, %v377, 0.0
      %471 = vadd.xlane.f32.xlu0 %v470
      %v472 = vpop.xlane.xlu0 %471
      %v473 = vsel %vm427, %v378, 0.0
      %474 = vadd.xlane.f32.xlu0 %v473
      %v475 = vpop.xlane.xlu0 %474
      %v476 = vsel %vm427, %v379, 0.0
      %477 = vadd.xlane.f32.xlu0 %v476
      %v478 = vpop.xlane.xlu0 %477
      %v479 = vsel %vm427, %v380, 0.0
      %480 = vadd.xlane.f32.xlu0 %v479
      %v481 = vpop.xlane.xlu0 %480
      %v482 = vsel %vm427, %v381, 0.0
      %483 = vadd.xlane.f32.xlu0 %v482
      %v484 = vpop.xlane.xlu0 %483
      %v485 = vsel %vm427, %v382, 0.0
      %486 = vadd.xlane.f32.xlu0 %v485
      %v487 = vpop.xlane.xlu0 %486
      %v488 = vsel %vm427, %v383, 0.0
      %489 = vadd.xlane.f32.xlu0 %v488
      %v490 = vpop.xlane.xlu0 %489
      %v491 = vsel %vm427, %v384, 0.0
      %492 = vadd.xlane.f32.xlu0 %v491
      %v493 = vpop.xlane.xlu0 %492
      %v494 = vsel %vm427, %v385, 0.0
      %495 = vadd.xlane.f32.xlu0 %v494
      %v496 = vpop.xlane.xlu0 %495
      %v497 = vsel %vm427, %v386, 0.0
      %498 = vadd.xlane.f32.xlu0 %v497
      %v499 = vpop.xlane.xlu0 %498
      %v500 = vsel %vm427, %v387, 0.0
      %501 = vadd.xlane.f32.xlu0 %v500
      %v502 = vpop.xlane.xlu0 %501
      %v503 = vsel %vm427, %v388, 0.0
      %504 = vadd.xlane.f32.xlu0 %v503
      %v505 = vpop.xlane.xlu0 %504
      %v506 = vsel %vm427, %v389, 0.0
      %507 = vadd.xlane.f32.xlu0 %v506
      %v508 = vpop.xlane.xlu0 %507
      %v509 = vsel %vm427, %v390, 0.0
      %510 = vadd.xlane.f32.xlu0 %v509
      %v511 = vpop.xlane.xlu0 %510
      %v512 = vsel %vm427, %v391, 0.0
      %513 = vadd.xlane.f32.xlu0 %v512
      %v514 = vpop.xlane.xlu0 %513
      %v515 = vsel %vm427, %v392, 0.0
      %516 = vadd.xlane.f32.xlu0 %v515
      %v517 = vpop.xlane.xlu0 %516
      %v518 = vsel %vm427, %v393, 0.0
      %519 = vadd.xlane.f32.xlu0 %v518
      %v520 = vpop.xlane.xlu0 %519
      %v521 = vsel %vm427, %v394, 0.0
      %522 = vadd.xlane.f32.xlu0 %v521
      %v523 = vpop.xlane.xlu0 %522
      %v524 = vsel %vm427, %v395, 0.0
      %525 = vadd.xlane.f32.xlu0 %v524
      %v526 = vpop.xlane.xlu0 %525
      %v527 = vsel %vm427, %v396, 0.0
      %528 = vadd.xlane.f32.xlu0 %v527
      %v529 = vpop.xlane.xlu0 %528
      %v530 = vsel %vm427, %v397, 0.0
      %531 = vadd.xlane.f32.xlu0 %v530
      %v532 = vpop.xlane.xlu0 %531
      %v533 = vsel %vm427, %v398, 0.0
      %534 = vadd.xlane.f32.xlu0 %v533
      %v535 = vpop.xlane.xlu0 %534
      %v536 = vsel %vm427, %v399, 0.0
      %537 = vadd.xlane.f32.xlu0 %v536
      %v538 = vpop.xlane.xlu0 %537
      %v539 = vsel %vm427, %v400, 0.0
      %540 = vadd.xlane.f32.xlu0 %v539
      %v541 = vpop.xlane.xlu0 %540
      %v542 = vsel %vm427, %v401, 0.0
      %543 = vadd.xlane.f32.xlu0 %v542
      %v544 = vpop.xlane.xlu0 %543
      %v545 = vsel %vm427, %v402, 0.0
      %546 = vadd.xlane.f32.xlu0 %v545
      %v547 = vpop.xlane.xlu0 %546
      %v548 = vsel %vm427, %v403, 0.0
      %549 = vadd.xlane.f32.xlu0 %v548
      %v550 = vpop.xlane.xlu0 %549
      %v551 = vsel %vm427, %v404, 0.0
      %552 = vadd.xlane.f32.xlu0 %v551
      %v553 = vpop.xlane.xlu0 %552
      %v554 = vsel %vm427, %v405, 0.0
      %555 = vadd.xlane.f32.xlu0 %v554
      %v556 = vpop.xlane.xlu0 %555
      %v557 = vsel %vm427, %v406, 0.0
      %558 = vadd.xlane.f32.xlu0 %v557
      %v559 = vpop.xlane.xlu0 %558
      %v560 = vsel %vm427, %v407, 0.0
      %561 = vadd.xlane.f32.xlu0 %v560
      %v562 = vpop.xlane.xlu0 %561
      %v563 = vsel %vm427, %v408, 0.0
      %564 = vadd.xlane.f32.xlu0 %v563
      %v565 = vpop.xlane.xlu0 %564
      %v566 = vsel %vm427, %v409, 0.0
      %567 = vadd.xlane.f32.xlu0 %v566
      %v568 = vpop.xlane.xlu0 %567
      %v569 = vsel %vm427, %v410, 0.0
      %570 = vadd.xlane.f32.xlu0 %v569
      %v571 = vpop.xlane.xlu0 %570
      %v572 = vsel %vm427, %v411, 0.0
      %573 = vadd.xlane.f32.xlu0 %v572
      %v574 = vpop.xlane.xlu0 %573
      %v575 = vsel %vm427, %v412, 0.0
      %576 = vadd.xlane.f32.xlu0 %v575
      %v577 = vpop.xlane.xlu0 %576
      %v578 = vsel %vm427, %v413, 0.0
      %579 = vadd.xlane.f32.xlu0 %v578
      %v580 = vpop.xlane.xlu0 %579
      %v581 = vsel %vm427, %v414, 0.0
      %582 = vadd.xlane.f32.xlu0 %v581
      %v583 = vpop.xlane.xlu0 %582
      %v584 = vsel %vm427, %v415, 0.0
      %585 = vadd.xlane.f32.xlu0 %v584
      %v586 = vpop.xlane.xlu0 %585
      %v587 = vsel %vm427, %v416, 0.0
      %588 = vadd.xlane.f32.xlu0 %v587
      %v589 = vpop.xlane.xlu0 %588
      %v590 = vsel %vm427, %v417, 0.0
      %591 = vadd.xlane.f32.xlu0 %v590
      %v592 = vpop.xlane.xlu0 %591
      %v593 = vsel %vm427, %v418, 0.0
      %594 = vadd.xlane.f32.xlu0 %v593
      %v595 = vpop.xlane.xlu0 %594
      %v596 = vsel %vm427, %v419, 0.0
      %597 = vadd.xlane.f32.xlu0 %v596
      %v598 = vpop.xlane.xlu0 %597
      %v599 = vsel %vm427, %v420, 0.0
      %600 = vadd.xlane.f32.xlu0 %v599
      %v601 = vpop.xlane.xlu0 %600
      %v602 = vsel %vm427, %v421, 0.0
      %603 = vadd.xlane.f32.xlu0 %v602
      %v604 = vpop.xlane.xlu0 %603
      %v605 = vsel %vm427, %v422, 0.0
      %606 = vadd.xlane.f32.xlu0 %v605
      %v607 = vpop.xlane.xlu0 %606
      %v608 = vsel %vm427, %v423, 0.0
      %609 = vadd.xlane.f32.xlu0 %v608
      %v610 = vpop.xlane.xlu0 %609
      %v611 = vsel %vm427, %v424, 0.0
      %612 = vadd.xlane.f32.xlu0 %v611
      %v613 = vpop.xlane.xlu0 %612
      %v614 = vsel %vm427, %v425, 0.0
      %615 = vadd.xlane.f32.xlu0 %v614
      %v616 = vpop.xlane.xlu0 %615
      %v617 = vsel %vm427, %v426, 0.0
      %618 = vadd.xlane.f32.xlu0 %v617
      %v619 = vpop.xlane.xlu0 %618
      %v620 = vrcp.pop 32.0
      %v621 = vmul.f32 %v430, %v620
      %v622 = vmul.f32 %v433, %v620
      %v623 = vmul.f32 %v436, %v620
      %v624 = vmul.f32 %v439, %v620
      %v625 = vmul.f32 %v442, %v620
      %v626 = vmul.f32 %v445, %v620
      %v627 = vmul.f32 %v448, %v620
      %v628 = vmul.f32 %v451, %v620
      %v629 = vmul.f32 %v454, %v620
      %v630 = vmul.f32 %v457, %v620
      %v631 = vmul.f32 %v460, %v620
      %v632 = vmul.f32 %v463, %v620
      %v633 = vmul.f32 %v466, %v620
      %v634 = vmul.f32 %v469, %v620
      %v635 = vmul.f32 %v472, %v620
      %v636 = vmul.f32 %v475, %v620
      %v637 = vmul.f32 %v478, %v620
      %v638 = vmul.f32 %v481, %v620
      %v639 = vmul.f32 %v484, %v620
      %v640 = vmul.f32 %v487, %v620
      %v641 = vmul.f32 %v490, %v620
      %v642 = vmul.f32 %v493, %v620
      %v643 = vmul.f32 %v496, %v620
      %v644 = vmul.f32 %v499, %v620
      %v645 = vmul.f32 %v502, %v620
      %v646 = vmul.f32 %v505, %v620
      %v647 = vmul.f32 %v508, %v620
      %v648 = vmul.f32 %v511, %v620
      %v649 = vmul.f32 %v514, %v620
      %v650 = vmul.f32 %v517, %v620
      %v651 = vmul.f32 %v520, %v620
      %v652 = vmul.f32 %v523, %v620
      %v653 = vmul.f32 %v526, %v620
      %v654 = vmul.f32 %v529, %v620
      %v655 = vmul.f32 %v532, %v620
      %v656 = vmul.f32 %v535, %v620
      %v657 = vmul.f32 %v538, %v620
      %v658 = vmul.f32 %v541, %v620
      %v659 = vmul.f32 %v544, %v620
      %v660 = vmul.f32 %v547, %v620
      %v661 = vmul.f32 %v550, %v620
      %v662 = vmul.f32 %v553, %v620
      %v663 = vmul.f32 %v556, %v620
      %v664 = vmul.f32 %v559, %v620
      %v665 = vmul.f32 %v562, %v620
      %v666 = vmul.f32 %v565, %v620
      %v667 = vmul.f32 %v568, %v620
      %v668 = vmul.f32 %v571, %v620
      %v669 = vmul.f32 %v574, %v620
      %v670 = vmul.f32 %v577, %v620
      %v671 = vmul.f32 %v580, %v620
      %v672 = vmul.f32 %v583, %v620
      %v673 = vmul.f32 %v586, %v620
      %v674 = vmul.f32 %v589, %v620
      %v675 = vmul.f32 %v592, %v620
      %v676 = vmul.f32 %v595, %v620
      %v677 = vmul.f32 %v598, %v620
      %v678 = vmul.f32 %v601, %v620
      %v679 = vmul.f32 %v604, %v620
      %v680 = vmul.f32 %v607, %v620
      %v681 = vmul.f32 %v610, %v620
      %v682 = vmul.f32 %v613, %v620
      %v683 = vmul.f32 %v616, %v620
      %v684 = vmul.f32 %v619, %v620
      %v685 = vsub.f32 %v363, %v621
      %v686 = vsub.f32 %v364, %v622
      %v687 = vsub.f32 %v365, %v623
      %v688 = vsub.f32 %v366, %v624
      %v689 = vsub.f32 %v367, %v625
      %v690 = vsub.f32 %v368, %v626
      %v691 = vsub.f32 %v369, %v627
      %v692 = vsub.f32 %v370, %v628
      %v693 = vsub.f32 %v371, %v629
      %v694 = vsub.f32 %v372, %v630
      %v695 = vsub.f32 %v373, %v631
      %v696 = vsub.f32 %v374, %v632
      %v697 = vsub.f32 %v375, %v633
      %v698 = vsub.f32 %v376, %v634
      %v699 = vsub.f32 %v377, %v635
      %v700 = vsub.f32 %v378, %v636
      %v701 = vsub.f32 %v379, %v637
      %v702 = vsub.f32 %v380, %v638
      %v703 = vsub.f32 %v381, %v639
      %v704 = vsub.f32 %v382, %v640
      %v705 = vsub.f32 %v383, %v641
      %v706 = vsub.f32 %v384, %v642
      %v707 = vsub.f32 %v385, %v643
      %v708 = vsub.f32 %v386, %v644
      %v709 = vsub.f32 %v387, %v645
      %v710 = vsub.f32 %v388, %v646
      %v711 = vsub.f32 %v389, %v647
      %v712 = vsub.f32 %v390, %v648
      %v713 = vsub.f32 %v391, %v649
      %v714 = vsub.f32 %v392, %v650
      %v715 = vsub.f32 %v393, %v651
      %v716 = vsub.f32 %v394, %v652
      %v717 = vsub.f32 %v395, %v653
      %v718 = vsub.f32 %v396, %v654
      %v719 = vsub.f32 %v397, %v655
      %v720 = vsub.f32 %v398, %v656
      %v721 = vsub.f32 %v399, %v657
      %v722 = vsub.f32 %v400, %v658
      %v723 = vsub.f32 %v401, %v659
      %v724 = vsub.f32 %v402, %v660
      %v725 = vsub.f32 %v403, %v661
      %v726 = vsub.f32 %v404, %v662
      %v727 = vsub.f32 %v405, %v663
      %v728 = vsub.f32 %v406, %v664
      %v729 = vsub.f32 %v407, %v665
      %v730 = vsub.f32 %v408, %v666
      %v731 = vsub.f32 %v409, %v667
      %v732 = vsub.f32 %v410, %v668
      %v733 = vsub.f32 %v411, %v669
      %v734 = vsub.f32 %v412, %v670
      %v735 = vsub.f32 %v413, %v671
      %v736 = vsub.f32 %v414, %v672
      %v737 = vsub.f32 %v415, %v673
      %v738 = vsub.f32 %v416, %v674
      %v739 = vsub.f32 %v417, %v675
      %v740 = vsub.f32 %v418, %v676
      %v741 = vsub.f32 %v419, %v677
      %v742 = vsub.f32 %v420, %v678
      %v743 = vsub.f32 %v421, %v679
      %v744 = vsub.f32 %v422, %v680
      %v745 = vsub.f32 %v423, %v681
      %v746 = vsub.f32 %v424, %v682
      %v747 = vsub.f32 %v425, %v683
      %v748 = vsub.f32 %v426, %v684
      %v749 = vmul.f32 %v685, %v685
      %v750 = vmul.f32 %v686, %v686
      %v751 = vmul.f32 %v687, %v687
      %v752 = vmul.f32 %v688, %v688
      %v753 = vmul.f32 %v689, %v689
      %v754 = vmul.f32 %v690, %v690
      %v755 = vmul.f32 %v691, %v691
      %v756 = vmul.f32 %v692, %v692
      %v757 = vmul.f32 %v693, %v693
      %v758 = vmul.f32 %v694, %v694
      %v759 = vmul.f32 %v695, %v695
      %v760 = vmul.f32 %v696, %v696
      %v761 = vmul.f32 %v697, %v697
      %v762 = vmul.f32 %v698, %v698
      %v763 = vmul.f32 %v699, %v699
      %v764 = vmul.f32 %v700, %v700
      %v765 = vmul.f32 %v701, %v701
      %v766 = vmul.f32 %v702, %v702
      %v767 = vmul.f32 %v703, %v703
      %v768 = vmul.f32 %v704, %v704
      %v769 = vmul.f32 %v705, %v705
      %v770 = vmul.f32 %v706, %v706
      %v771 = vmul.f32 %v707, %v707
      %v772 = vmul.f32 %v708, %v708
      %v773 = vmul.f32 %v709, %v709
      %v774 = vmul.f32 %v710, %v710
      %v775 = vmul.f32 %v711, %v711
      %v776 = vmul.f32 %v712, %v712
      %v777 = vmul.f32 %v713, %v713
      %v778 = vmul.f32 %v714, %v714
      %v779 = vmul.f32 %v715, %v715
      %v780 = vmul.f32 %v716, %v716
      %v781 = vmul.f32 %v717, %v717
      %v782 = vmul.f32 %v718, %v718
      %v783 = vmul.f32 %v719, %v719
      %v784 = vmul.f32 %v720, %v720
      %v785 = vmul.f32 %v721, %v721
      %v786 = vmul.f32 %v722, %v722
      %v787 = vmul.f32 %v723, %v723
      %v788 = vmul.f32 %v724, %v724
      %v789 = vmul.f32 %v725, %v725
      %v790 = vmul.f32 %v726, %v726
      %v791 = vmul.f32 %v727, %v727
      %v792 = vmul.f32 %v728, %v728
      %v793 = vmul.f32 %v729, %v729
      %v794 = vmul.f32 %v730, %v730
      %v795 = vmul.f32 %v731, %v731
      %v796 = vmul.f32 %v732, %v732
      %v797 = vmul.f32 %v733, %v733
      %v798 = vmul.f32 %v734, %v734
      %v799 = vmul.f32 %v735, %v735
      %v800 = vmul.f32 %v736, %v736
      %v801 = vmul.f32 %v737, %v737
      %v802 = vmul.f32 %v738, %v738
      %v803 = vmul.f32 %v739, %v739
      %v804 = vmul.f32 %v740, %v740
      %v805 = vmul.f32 %v741, %v741
      %v806 = vmul.f32 %v742, %v742
      %v807 = vmul.f32 %v743, %v743
      %v808 = vmul.f32 %v744, %v744
      %v809 = vmul.f32 %v745, %v745
      %v810 = vmul.f32 %v746, %v746
      %v811 = vmul.f32 %v747, %v747
      %v812 = vmul.f32 %v748, %v748
      %v813 = vsel %vm427, %v749, 0.0
      %814 = vadd.xlane.f32.xlu0 %v813
      %v815 = vpop.xlane.xlu0 %814
      %v816 = vsel %vm427, %v750, 0.0
      %817 = vadd.xlane.f32.xlu0 %v816
      %v818 = vpop.xlane.xlu0 %817
      %v819 = vsel %vm427, %v751, 0.0
      %820 = vadd.xlane.f32.xlu0 %v819
      %v821 = vpop.xlane.xlu0 %820
      %v822 = vsel %vm427, %v752, 0.0
      %823 = vadd.xlane.f32.xlu0 %v822
      %v824 = vpop.xlane.xlu0 %823
      %v825 = vsel %vm427, %v753, 0.0
      %826 = vadd.xlane.f32.xlu0 %v825
      %v827 = vpop.xlane.xlu0 %826
      %v828 = vsel %vm427, %v754, 0.0
      %829 = vadd.xlane.f32.xlu0 %v828
      %v830 = vpop.xlane.xlu0 %829
      %v831 = vsel %vm427, %v755, 0.0
      %832 = vadd.xlane.f32.xlu0 %v831
      %v833 = vpop.xlane.xlu0 %832
      %v834 = vsel %vm427, %v756, 0.0
      %835 = vadd.xlane.f32.xlu0 %v834
      %v836 = vpop.xlane.xlu0 %835
      %v837 = vsel %vm427, %v757, 0.0
      %838 = vadd.xlane.f32.xlu0 %v837
      %v839 = vpop.xlane.xlu0 %838
      %v840 = vsel %vm427, %v758, 0.0
      %841 = vadd.xlane.f32.xlu0 %v840
      %v842 = vpop.xlane.xlu0 %841
      %v843 = vsel %vm427, %v759, 0.0
      %844 = vadd.xlane.f32.xlu0 %v843
      %v845 = vpop.xlane.xlu0 %844
      %v846 = vsel %vm427, %v760, 0.0
      %847 = vadd.xlane.f32.xlu0 %v846
      %v848 = vpop.xlane.xlu0 %847
      %v849 = vsel %vm427, %v761, 0.0
      %850 = vadd.xlane.f32.xlu0 %v849
      %v851 = vpop.xlane.xlu0 %850
      %v852 = vsel %vm427, %v762, 0.0
      %853 = vadd.xlane.f32.xlu0 %v852
      %v854 = vpop.xlane.xlu0 %853
      %v855 = vsel %vm427, %v763, 0.0
      %856 = vadd.xlane.f32.xlu0 %v855
      %v857 = vpop.xlane.xlu0 %856
      %v858 = vsel %vm427, %v764, 0.0
      %859 = vadd.xlane.f32.xlu0 %v858
      %v860 = vpop.xlane.xlu0 %859
      %v861 = vsel %vm427, %v765, 0.0
      %862 = vadd.xlane.f32.xlu0 %v861
      %v863 = vpop.xlane.xlu0 %862
      %v864 = vsel %vm427, %v766, 0.0
      %865 = vadd.xlane.f32.xlu0 %v864
      %v866 = vpop.xlane.xlu0 %865
      %v867 = vsel %vm427, %v767, 0.0
      %868 = vadd.xlane.f32.xlu0 %v867
      %v869 = vpop.xlane.xlu0 %868
      %v870 = vsel %vm427, %v768, 0.0
      %871 = vadd.xlane.f32.xlu0 %v870
      %v872 = vpop.xlane.xlu0 %871
      %v873 = vsel %vm427, %v769, 0.0
      %874 = vadd.xlane.f32.xlu0 %v873
      %v875 = vpop.xlane.xlu0 %874
      %v876 = vsel %vm427, %v770, 0.0
      %877 = vadd.xlane.f32.xlu0 %v876
      %v878 = vpop.xlane.xlu0 %877
      %v879 = vsel %vm427, %v771, 0.0
      %880 = vadd.xlane.f32.xlu0 %v879
      %v881 = vpop.xlane.xlu0 %880
      %v882 = vsel %vm427, %v772, 0.0
      %883 = vadd.xlane.f32.xlu0 %v882
      %v884 = vpop.xlane.xlu0 %883
      %v885 = vsel %vm427, %v773, 0.0
      %886 = vadd.xlane.f32.xlu0 %v885
      %v887 = vpop.xlane.xlu0 %886
      %v888 = vsel %vm427, %v774, 0.0
      %889 = vadd.xlane.f32.xlu0 %v888
      %v890 = vpop.xlane.xlu0 %889
      %v891 = vsel %vm427, %v775, 0.0
      %892 = vadd.xlane.f32.xlu0 %v891
      %v893 = vpop.xlane.xlu0 %892
      %v894 = vsel %vm427, %v776, 0.0
      %895 = vadd.xlane.f32.xlu0 %v894
      %v896 = vpop.xlane.xlu0 %895
      %v897 = vsel %vm427, %v777, 0.0
      %898 = vadd.xlane.f32.xlu0 %v897
      %v899 = vpop.xlane.xlu0 %898
      %v900 = vsel %vm427, %v778, 0.0
      %901 = vadd.xlane.f32.xlu0 %v900
      %v902 = vpop.xlane.xlu0 %901
      %v903 = vsel %vm427, %v779, 0.0
      %904 = vadd.xlane.f32.xlu0 %v903
      %v905 = vpop.xlane.xlu0 %904
      %v906 = vsel %vm427, %v780, 0.0
      %907 = vadd.xlane.f32.xlu0 %v906
      %v908 = vpop.xlane.xlu0 %907
      %v909 = vsel %vm427, %v781, 0.0
      %910 = vadd.xlane.f32.xlu0 %v909
      %v911 = vpop.xlane.xlu0 %910
      %v912 = vsel %vm427, %v782, 0.0
      %913 = vadd.xlane.f32.xlu0 %v912
      %v914 = vpop.xlane.xlu0 %913
      %v915 = vsel %vm427, %v783, 0.0
      %916 = vadd.xlane.f32.xlu0 %v915
      %v917 = vpop.xlane.xlu0 %916
      %v918 = vsel %vm427, %v784, 0.0
      %919 = vadd.xlane.f32.xlu0 %v918
      %v920 = vpop.xlane.xlu0 %919
      %v921 = vsel %vm427, %v785, 0.0
      %922 = vadd.xlane.f32.xlu0 %v921
      %v923 = vpop.xlane.xlu0 %922
      %v924 = vsel %vm427, %v786, 0.0
      %925 = vadd.xlane.f32.xlu0 %v924
      %v926 = vpop.xlane.xlu0 %925
      %v927 = vsel %vm427, %v787, 0.0
      %928 = vadd.xlane.f32.xlu0 %v927
      %v929 = vpop.xlane.xlu0 %928
      %v930 = vsel %vm427, %v788, 0.0
      %931 = vadd.xlane.f32.xlu0 %v930
      %v932 = vpop.xlane.xlu0 %931
      %v933 = vsel %vm427, %v789, 0.0
      %934 = vadd.xlane.f32.xlu0 %v933
      %v935 = vpop.xlane.xlu0 %934
      %v936 = vsel %vm427, %v790, 0.0
      %937 = vadd.xlane.f32.xlu0 %v936
      %v938 = vpop.xlane.xlu0 %937
      %v939 = vsel %vm427, %v791, 0.0
      %940 = vadd.xlane.f32.xlu0 %v939
      %v941 = vpop.xlane.xlu0 %940
      %v942 = vsel %vm427, %v792, 0.0
      %943 = vadd.xlane.f32.xlu0 %v942
      %v944 = vpop.xlane.xlu0 %943
      %v945 = vsel %vm427, %v793, 0.0
      %946 = vadd.xlane.f32.xlu0 %v945
      %v947 = vpop.xlane.xlu0 %946
      %v948 = vsel %vm427, %v794, 0.0
      %949 = vadd.xlane.f32.xlu0 %v948
      %v950 = vpop.xlane.xlu0 %949
      %v951 = vsel %vm427, %v795, 0.0
      %952 = vadd.xlane.f32.xlu0 %v951
      %v953 = vpop.xlane.xlu0 %952
      %v954 = vsel %vm427, %v796, 0.0
      %955 = vadd.xlane.f32.xlu0 %v954
      %v956 = vpop.xlane.xlu0 %955
      %v957 = vsel %vm427, %v797, 0.0
      %958 = vadd.xlane.f32.xlu0 %v957
      %v959 = vpop.xlane.xlu0 %958
      %v960 = vsel %vm427, %v798, 0.0
      %961 = vadd.xlane.f32.xlu0 %v960
      %v962 = vpop.xlane.xlu0 %961
      %v963 = vsel %vm427, %v799, 0.0
      %964 = vadd.xlane.f32.xlu0 %v963
      %v965 = vpop.xlane.xlu0 %964
      %v966 = vsel %vm427, %v800, 0.0
      %967 = vadd.xlane.f32.xlu0 %v966
      %v968 = vpop.xlane.xlu0 %967
      %v969 = vsel %vm427, %v801, 0.0
      %970 = vadd.xlane.f32.xlu0 %v969
      %v971 = vpop.xlane.xlu0 %970
      %v972 = vsel %vm427, %v802, 0.0
      %973 = vadd.xlane.f32.xlu0 %v972
      %v974 = vpop.xlane.xlu0 %973
      %v975 = vsel %vm427, %v803, 0.0
      %976 = vadd.xlane.f32.xlu0 %v975
      %v977 = vpop.xlane.xlu0 %976
      %v978 = vsel %vm427, %v804, 0.0
      %979 = vadd.xlane.f32.xlu0 %v978
      %v980 = vpop.xlane.xlu0 %979
      %v981 = vsel %vm427, %v805, 0.0
      %982 = vadd.xlane.f32.xlu0 %v981
      %v983 = vpop.xlane.xlu0 %982
      %v984 = vsel %vm427, %v806, 0.0
      %985 = vadd.xlane.f32.xlu0 %v984
      %v986 = vpop.xlane.xlu0 %985
      %v987 = vsel %vm427, %v807, 0.0
      %988 = vadd.xlane.f32.xlu0 %v987
      %v989 = vpop.xlane.xlu0 %988
      %v990 = vsel %vm427, %v808, 0.0
      %991 = vadd.xlane.f32.xlu0 %v990
      %v992 = vpop.xlane.xlu0 %991
      %v993 = vsel %vm427, %v809, 0.0
      %994 = vadd.xlane.f32.xlu0 %v993
      %v995 = vpop.xlane.xlu0 %994
      %v996 = vsel %vm427, %v810, 0.0
      %997 = vadd.xlane.f32.xlu0 %v996
      %v998 = vpop.xlane.xlu0 %997
      %v999 = vsel %vm427, %v811, 0.0
      %1000 = vadd.xlane.f32.xlu0 %v999
      %v1001 = vpop.xlane.xlu0 %1000
      %v1002 = vsel %vm427, %v812, 0.0
      %1003 = vadd.xlane.f32.xlu0 %v1002
      %v1004 = vpop.xlane.xlu0 %1003
      %v1005 = vmul.f32 %v815, %v620
      %v1006 = vmul.f32 %v818, %v620
      %v1007 = vmul.f32 %v821, %v620
      %v1008 = vmul.f32 %v824, %v620
      %v1009 = vmul.f32 %v827, %v620
      %v1010 = vmul.f32 %v830, %v620
      %v1011 = vmul.f32 %v833, %v620
      %v1012 = vmul.f32 %v836, %v620
      %v1013 = vmul.f32 %v839, %v620
      %v1014 = vmul.f32 %v842, %v620
      %v1015 = vmul.f32 %v845, %v620
      %v1016 = vmul.f32 %v848, %v620
      %v1017 = vmul.f32 %v851, %v620
      %v1018 = vmul.f32 %v854, %v620
      %v1019 = vmul.f32 %v857, %v620
      %v1020 = vmul.f32 %v860, %v620
      %v1021 = vmul.f32 %v863, %v620
      %v1022 = vmul.f32 %v866, %v620
      %v1023 = vmul.f32 %v869, %v620
      %v1024 = vmul.f32 %v872, %v620
      %v1025 = vmul.f32 %v875, %v620
      %v1026 = vmul.f32 %v878, %v620
      %v1027 = vmul.f32 %v881, %v620
      %v1028 = vmul.f32 %v884, %v620
      %v1029 = vmul.f32 %v887, %v620
      %v1030 = vmul.f32 %v890, %v620
      %v1031 = vmul.f32 %v893, %v620
      %v1032 = vmul.f32 %v896, %v620
      %v1033 = vmul.f32 %v899, %v620
      %v1034 = vmul.f32 %v902, %v620
      %v1035 = vmul.f32 %v905, %v620
      %v1036 = vmul.f32 %v908, %v620
      %v1037 = vmul.f32 %v911, %v620
      %v1038 = vmul.f32 %v914, %v620
      %v1039 = vmul.f32 %v917, %v620
      %v1040 = vmul.f32 %v920, %v620
      %v1041 = vmul.f32 %v923, %v620
      %v1042 = vmul.f32 %v926, %v620
      %v1043 = vmul.f32 %v929, %v620
      %v1044 = vmul.f32 %v932, %v620
      %v1045 = vmul.f32 %v935, %v620
      %v1046 = vmul.f32 %v938, %v620
      %v1047 = vmul.f32 %v941, %v620
      %v1048 = vmul.f32 %v944, %v620
      %v1049 = vmul.f32 %v947, %v620
      %v1050 = vmul.f32 %v950, %v620
      %v1051 = vmul.f32 %v953, %v620
      %v1052 = vmul.f32 %v956, %v620
      %v1053 = vmul.f32 %v959, %v620
      %v1054 = vmul.f32 %v962, %v620
      %v1055 = vmul.f32 %v965, %v620
      %v1056 = vmul.f32 %v968, %v620
      %v1057 = vmul.f32 %v971, %v620
      %v1058 = vmul.f32 %v974, %v620
      %v1059 = vmul.f32 %v977, %v620
      %v1060 = vmul.f32 %v980, %v620
      %v1061 = vmul.f32 %v983, %v620
      %v1062 = vmul.f32 %v986, %v620
      %v1063 = vmul.f32 %v989, %v620
      %v1064 = vmul.f32 %v992, %v620
      %v1065 = vmul.f32 %v995, %v620
      %v1066 = vmul.f32 %v998, %v620
      %v1067 = vmul.f32 %v1001, %v620
      %v1068 = vmul.f32 %v1004, %v620
      %v1069 = vadd.f32 %v1005, 1e-05
      %v1070 = vadd.f32 %v1006, 1e-05
      %v1071 = vadd.f32 %v1007, 1e-05
      %v1072 = vadd.f32 %v1008, 1e-05
      %v1073 = vadd.f32 %v1009, 1e-05
      %v1074 = vadd.f32 %v1010, 1e-05
      %v1075 = vadd.f32 %v1011, 1e-05
      %v1076 = vadd.f32 %v1012, 1e-05
      %v1077 = vadd.f32 %v1013, 1e-05
      %v1078 = vadd.f32 %v1014, 1e-05
      %v1079 = vadd.f32 %v1015, 1e-05
      %v1080 = vadd.f32 %v1016, 1e-05
      %v1081 = vadd.f32 %v1017, 1e-05
      %v1082 = vadd.f32 %v1018, 1e-05
      %v1083 = vadd.f32 %v1019, 1e-05
      %v1084 = vadd.f32 %v1020, 1e-05
      %v1085 = vadd.f32 %v1021, 1e-05
      %v1086 = vadd.f32 %v1022, 1e-05
      %v1087 = vadd.f32 %v1023, 1e-05
      %v1088 = vadd.f32 %v1024, 1e-05
      %v1089 = vadd.f32 %v1025, 1e-05
      %v1090 = vadd.f32 %v1026, 1e-05
      %v1091 = vadd.f32 %v1027, 1e-05
      %v1092 = vadd.f32 %v1028, 1e-05
      %v1093 = vadd.f32 %v1029, 1e-05
      %v1094 = vadd.f32 %v1030, 1e-05
      %v1095 = vadd.f32 %v1031, 1e-05
      %v1096 = vadd.f32 %v1032, 1e-05
      %v1097 = vadd.f32 %v1033, 1e-05
      %v1098 = vadd.f32 %v1034, 1e-05
      %v1099 = vadd.f32 %v1035, 1e-05
      %v1100 = vadd.f32 %v1036, 1e-05
      %v1101 = vadd.f32 %v1037, 1e-05
      %v1102 = vadd.f32 %v1038, 1e-05
      %v1103 = vadd.f32 %v1039, 1e-05
      %v1104 = vadd.f32 %v1040, 1e-05
      %v1105 = vadd.f32 %v1041, 1e-05
      %v1106 = vadd.f32 %v1042, 1e-05
      %v1107 = vadd.f32 %v1043, 1e-05
      %v1108 = vadd.f32 %v1044, 1e-05
      %v1109 = vadd.f32 %v1045, 1e-05
      %v1110 = vadd.f32 %v1046, 1e-05
      %v1111 = vadd.f32 %v1047, 1e-05
      %v1112 = vadd.f32 %v1048, 1e-05
      %v1113 = vadd.f32 %v1049, 1e-05
      %v1114 = vadd.f32 %v1050, 1e-05
      %v1115 = vadd.f32 %v1051, 1e-05
      %v1116 = vadd.f32 %v1052, 1e-05
      %v1117 = vadd.f32 %v1053, 1e-05
      %v1118 = vadd.f32 %v1054, 1e-05
      %v1119 = vadd.f32 %v1055, 1e-05
      %v1120 = vadd.f32 %v1056, 1e-05
      %v1121 = vadd.f32 %v1057, 1e-05
      %v1122 = vadd.f32 %v1058, 1e-05
      %v1123 = vadd.f32 %v1059, 1e-05
      %v1124 = vadd.f32 %v1060, 1e-05
      %v1125 = vadd.f32 %v1061, 1e-05
      %v1126 = vadd.f32 %v1062, 1e-05
      %v1127 = vadd.f32 %v1063, 1e-05
      %v1128 = vadd.f32 %v1064, 1e-05
      %v1129 = vadd.f32 %v1065, 1e-05
      %v1130 = vadd.f32 %v1066, 1e-05
      %v1131 = vadd.f32 %v1067, 1e-05
      %v1132 = vadd.f32 %v1068, 1e-05
      %v1133 = vrsqrt.pop %v1069
      %v1134 = vrsqrt.pop %v1070
      %v1135 = vrsqrt.pop %v1071
      %v1136 = vrsqrt.pop %v1072
      %v1137 = vrsqrt.pop %v1073
      %v1138 = vrsqrt.pop %v1074
      %v1139 = vrsqrt.pop %v1075
      %v1140 = vrsqrt.pop %v1076
      %v1141 = vrsqrt.pop %v1077
      %v1142 = vrsqrt.pop %v1078
      %v1143 = vrsqrt.pop %v1079
      %v1144 = vrsqrt.pop %v1080
      %v1145 = vrsqrt.pop %v1081
      %v1146 = vrsqrt.pop %v1082
      %v1147 = vrsqrt.pop %v1083
      %v1148 = vrsqrt.pop %v1084
      %v1149 = vrsqrt.pop %v1085
      %v1150 = vrsqrt.pop %v1086
      %v1151 = vrsqrt.pop %v1087
      %v1152 = vrsqrt.pop %v1088
      %v1153 = vrsqrt.pop %v1089
      %v1154 = vrsqrt.pop %v1090
      %v1155 = vrsqrt.pop %v1091
      %v1156 = vrsqrt.pop %v1092
      %v1157 = vrsqrt.pop %v1093
      %v1158 = vrsqrt.pop %v1094
      %v1159 = vrsqrt.pop %v1095
      %v1160 = vrsqrt.pop %v1096
      %v1161 = vrsqrt.pop %v1097
      %v1162 = vrsqrt.pop %v1098
      %v1163 = vrsqrt.pop %v1099
      %v1164 = vrsqrt.pop %v1100
      %v1165 = vrsqrt.pop %v1101
      %v1166 = vrsqrt.pop %v1102
      %v1167 = vrsqrt.pop %v1103
      %v1168 = vrsqrt.pop %v1104
      %v1169 = vrsqrt.pop %v1105
      %v1170 = vrsqrt.pop %v1106
      %v1171 = vrsqrt.pop %v1107
      %v1172 = vrsqrt.pop %v1108
      %v1173 = vrsqrt.pop %v1109
      %v1174 = vrsqrt.pop %v1110
      %v1175 = vrsqrt.pop %v1111
      %v1176 = vrsqrt.pop %v1112
      %v1177 = vrsqrt.pop %v1113
      %v1178 = vrsqrt.pop %v1114
      %v1179 = vrsqrt.pop %v1115
      %v1180 = vrsqrt.pop %v1116
      %v1181 = vrsqrt.pop %v1117
      %v1182 = vrsqrt.pop %v1118
      %v1183 = vrsqrt.pop %v1119
      %v1184 = vrsqrt.pop %v1120
      %v1185 = vrsqrt.pop %v1121
      %v1186 = vrsqrt.pop %v1122
      %v1187 = vrsqrt.pop %v1123
      %v1188 = vrsqrt.pop %v1124
      %v1189 = vrsqrt.pop %v1125
      %v1190 = vrsqrt.pop %v1126
      %v1191 = vrsqrt.pop %v1127
      %v1192 = vrsqrt.pop %v1128
      %v1193 = vrsqrt.pop %v1129
      %v1194 = vrsqrt.pop %v1130
      %v1195 = vrsqrt.pop %v1131
      %v1196 = vrsqrt.pop %v1132
      %v1197 = vmul.f32 %v685, %v1133
      %v1198 = vmul.f32 %v686, %v1134
      %v1199 = vmul.f32 %v687, %v1135
      %v1200 = vmul.f32 %v688, %v1136
      %v1201 = vmul.f32 %v689, %v1137
      %v1202 = vmul.f32 %v690, %v1138
      %v1203 = vmul.f32 %v691, %v1139
      %v1204 = vmul.f32 %v692, %v1140
      %v1205 = vmul.f32 %v693, %v1141
      %v1206 = vmul.f32 %v694, %v1142
      %v1207 = vmul.f32 %v695, %v1143
      %v1208 = vmul.f32 %v696, %v1144
      %v1209 = vmul.f32 %v697, %v1145
      %v1210 = vmul.f32 %v698, %v1146
      %v1211 = vmul.f32 %v699, %v1147
      %v1212 = vmul.f32 %v700, %v1148
      %v1213 = vmul.f32 %v701, %v1149
      %v1214 = vmul.f32 %v702, %v1150
      %v1215 = vmul.f32 %v703, %v1151
      %v1216 = vmul.f32 %v704, %v1152
      %v1217 = vmul.f32 %v705, %v1153
      %v1218 = vmul.f32 %v706, %v1154
      %v1219 = vmul.f32 %v707, %v1155
      %v1220 = vmul.f32 %v708, %v1156
      %v1221 = vmul.f32 %v709, %v1157
      %v1222 = vmul.f32 %v710, %v1158
      %v1223 = vmul.f32 %v711, %v1159
      %v1224 = vmul.f32 %v712, %v1160
      %v1225 = vmul.f32 %v713, %v1161
      %v1226 = vmul.f32 %v714, %v1162
      %v1227 = vmul.f32 %v715, %v1163
      %v1228 = vmul.f32 %v716, %v1164
      %v1229 = vmul.f32 %v717, %v1165
      %v1230 = vmul.f32 %v718, %v1166
      %v1231 = vmul.f32 %v719, %v1167
      %v1232 = vmul.f32 %v720, %v1168
      %v1233 = vmul.f32 %v721, %v1169
      %v1234 = vmul.f32 %v722, %v1170
      %v1235 = vmul.f32 %v723, %v1171
      %v1236 = vmul.f32 %v724, %v1172
      %v1237 = vmul.f32 %v725, %v1173
      %v1238 = vmul.f32 %v726, %v1174
      %v1239 = vmul.f32 %v727, %v1175
      %v1240 = vmul.f32 %v728, %v1176
      %v1241 = vmul.f32 %v729, %v1177
      %v1242 = vmul.f32 %v730, %v1178
      %v1243 = vmul.f32 %v731, %v1179
      %v1244 = vmul.f32 %v732, %v1180
      %v1245 = vmul.f32 %v733, %v1181
      %v1246 = vmul.f32 %v734, %v1182
      %v1247 = vmul.f32 %v735, %v1183
      %v1248 = vmul.f32 %v736, %v1184
      %v1249 = vmul.f32 %v737, %v1185
      %v1250 = vmul.f32 %v738, %v1186
      %v1251 = vmul.f32 %v739, %v1187
      %v1252 = vmul.f32 %v740, %v1188
      %v1253 = vmul.f32 %v741, %v1189
      %v1254 = vmul.f32 %v742, %v1190
      %v1255 = vmul.f32 %v743, %v1191
      %v1256 = vmul.f32 %v744, %v1192
      %v1257 = vmul.f32 %v745, %v1193
      %v1258 = vmul.f32 %v746, %v1194
      %v1259 = vmul.f32 %v747, %v1195
      %v1260 = vmul.f32 %v748, %v1196
      %v1261 = vld [vmem:[%s1] sm:$0x1]
      %v1263 = vlaneseq
      %v1264 = vshrl.u32 %v1263, 7
      %v1265 = vsub.s32 0, %v1264
      %v1266 = vrot.slane %v1261, %v1265
      %v1268 = vmul.f32 %v1197, %v1266
      %v1269 = vmul.f32 %v1198, %v1266
      %v1270 = vmul.f32 %v1199, %v1266
      %v1271 = vmul.f32 %v1200, %v1266
      %v1272 = vmul.f32 %v1201, %v1266
      %v1273 = vmul.f32 %v1202, %v1266
      %v1274 = vmul.f32 %v1203, %v1266
      %v1275 = vmul.f32 %v1204, %v1266
      %v1276 = vmul.f32 %v1205, %v1266
      %v1277 = vmul.f32 %v1206, %v1266
      %v1278 = vmul.f32 %v1207, %v1266
      %v1279 = vmul.f32 %v1208, %v1266
      %v1280 = vmul.f32 %v1209, %v1266
      %v1281 = vmul.f32 %v1210, %v1266
      %v1282 = vmul.f32 %v1211, %v1266
      %v1283 = vmul.f32 %v1212, %v1266
      %v1284 = vmul.f32 %v1213, %v1266
      %v1285 = vmul.f32 %v1214, %v1266
      %v1286 = vmul.f32 %v1215, %v1266
      %v1287 = vmul.f32 %v1216, %v1266
      %v1288 = vmul.f32 %v1217, %v1266
      %v1289 = vmul.f32 %v1218, %v1266
      %v1290 = vmul.f32 %v1219, %v1266
      %v1291 = vmul.f32 %v1220, %v1266
      %v1292 = vmul.f32 %v1221, %v1266
      %v1293 = vmul.f32 %v1222, %v1266
      %v1294 = vmul.f32 %v1223, %v1266
      %v1295 = vmul.f32 %v1224, %v1266
      %v1296 = vmul.f32 %v1225, %v1266
      %v1297 = vmul.f32 %v1226, %v1266
      %v1298 = vmul.f32 %v1227, %v1266
      %v1299 = vmul.f32 %v1228, %v1266
      %v1300 = vmul.f32 %v1229, %v1266
      %v1301 = vmul.f32 %v1230, %v1266
      %v1302 = vmul.f32 %v1231, %v1266
      %v1303 = vmul.f32 %v1232, %v1266
      %v1304 = vmul.f32 %v1233, %v1266
      %v1305 = vmul.f32 %v1234, %v1266
      %v1306 = vmul.f32 %v1235, %v1266
      %v1307 = vmul.f32 %v1236, %v1266
      %v1308 = vmul.f32 %v1237, %v1266
      %v1309 = vmul.f32 %v1238, %v1266
      %v1310 = vmul.f32 %v1239, %v1266
      %v1311 = vmul.f32 %v1240, %v1266
      %v1312 = vmul.f32 %v1241, %v1266
      %v1313 = vmul.f32 %v1242, %v1266
      %v1314 = vmul.f32 %v1243, %v1266
      %v1315 = vmul.f32 %v1244, %v1266
      %v1316 = vmul.f32 %v1245, %v1266
      %v1317 = vmul.f32 %v1246, %v1266
      %v1318 = vmul.f32 %v1247, %v1266
      %v1319 = vmul.f32 %v1248, %v1266
      %v1320 = vmul.f32 %v1249, %v1266
      %v1321 = vmul.f32 %v1250, %v1266
      %v1322 = vmul.f32 %v1251, %v1266
      %v1323 = vmul.f32 %v1252, %v1266
      %v1324 = vmul.f32 %v1253, %v1266
      %v1325 = vmul.f32 %v1254, %v1266
      %v1326 = vmul.f32 %v1255, %v1266
      %v1327 = vmul.f32 %v1256, %v1266
      %v1328 = vmul.f32 %v1257, %v1266
      %v1329 = vmul.f32 %v1258, %v1266
      %v1330 = vmul.f32 %v1259, %v1266
      %v1331 = vmul.f32 %v1260, %v1266
      %v1332 = vld [vmem:[%s2] sm:$0x1]
      %v1334 = vlaneseq
      %v1335 = vshrl.u32 %v1334, 7
      %v1336 = vsub.s32 0, %v1335
      %v1337 = vrot.slane %v1332, %v1336
      %v1339 = vadd.f32 %v1268, %v1337
      %v1340 = vadd.f32 %v1269, %v1337
      %v1341 = vadd.f32 %v1270, %v1337
      %v1342 = vadd.f32 %v1271, %v1337
      %v1343 = vadd.f32 %v1272, %v1337
      %v1344 = vadd.f32 %v1273, %v1337
      %v1345 = vadd.f32 %v1274, %v1337
      %v1346 = vadd.f32 %v1275, %v1337
      %v1347 = vadd.f32 %v1276, %v1337
      %v1348 = vadd.f32 %v1277, %v1337
      %v1349 = vadd.f32 %v1278, %v1337
      %v1350 = vadd.f32 %v1279, %v1337
      %v1351 = vadd.f32 %v1280, %v1337
      %v1352 = vadd.f32 %v1281, %v1337
      %v1353 = vadd.f32 %v1282, %v1337
      %v1354 = vadd.f32 %v1283, %v1337
      %v1355 = vadd.f32 %v1284, %v1337
      %v1356 = vadd.f32 %v1285, %v1337
      %v1357 = vadd.f32 %v1286, %v1337
      %v1358 = vadd.f32 %v1287, %v1337
      %v1359 = vadd.f32 %v1288, %v1337
      %v1360 = vadd.f32 %v1289, %v1337
      %v1361 = vadd.f32 %v1290, %v1337
      %v1362 = vadd.f32 %v1291, %v1337
      %v1363 = vadd.f32 %v1292, %v1337
      %v1364 = vadd.f32 %v1293, %v1337
      %v1365 = vadd.f32 %v1294, %v1337
      %v1366 = vadd.f32 %v1295, %v1337
      %v1367 = vadd.f32 %v1296, %v1337
      %v1368 = vadd.f32 %v1297, %v1337
      %v1369 = vadd.f32 %v1298, %v1337
      %v1370 = vadd.f32 %v1299, %v1337
      %v1371 = vadd.f32 %v1300, %v1337
      %v1372 = vadd.f32 %v1301, %v1337
      %v1373 = vadd.f32 %v1302, %v1337
      %v1374 = vadd.f32 %v1303, %v1337
      %v1375 = vadd.f32 %v1304, %v1337
      %v1376 = vadd.f32 %v1305, %v1337
      %v1377 = vadd.f32 %v1306, %v1337
      %v1378 = vadd.f32 %v1307, %v1337
      %v1379 = vadd.f32 %v1308, %v1337
      %v1380 = vadd.f32 %v1309, %v1337
      %v1381 = vadd.f32 %v1310, %v1337
      %v1382 = vadd.f32 %v1311, %v1337
      %v1383 = vadd.f32 %v1312, %v1337
      %v1384 = vadd.f32 %v1313, %v1337
      %v1385 = vadd.f32 %v1314, %v1337
      %v1386 = vadd.f32 %v1315, %v1337
      %v1387 = vadd.f32 %v1316, %v1337
      %v1388 = vadd.f32 %v1317, %v1337
      %v1389 = vadd.f32 %v1318, %v1337
      %v1390 = vadd.f32 %v1319, %v1337
      %v1391 = vadd.f32 %v1320, %v1337
      %v1392 = vadd.f32 %v1321, %v1337
      %v1393 = vadd.f32 %v1322, %v1337
      %v1394 = vadd.f32 %v1323, %v1337
      %v1395 = vadd.f32 %v1324, %v1337
      %v1396 = vadd.f32 %v1325, %v1337
      %v1397 = vadd.f32 %v1326, %v1337
      %v1398 = vadd.f32 %v1327, %v1337
      %v1399 = vadd.f32 %v1328, %v1337
      %v1400 = vadd.f32 %v1329, %v1337
      %v1401 = vadd.f32 %v1330, %v1337
      %v1402 = vadd.f32 %v1331, %v1337
      %v1403 = vadd.f32 %v363, %v1339
      %v1404 = vadd.f32 %v364, %v1340
      %v1405 = vadd.f32 %v365, %v1341
      %v1406 = vadd.f32 %v366, %v1342
      %v1407 = vadd.f32 %v367, %v1343
      %v1408 = vadd.f32 %v368, %v1344
      %v1409 = vadd.f32 %v369, %v1345
      %v1410 = vadd.f32 %v370, %v1346
      %v1411 = vadd.f32 %v371, %v1347
      %v1412 = vadd.f32 %v372, %v1348
      %v1413 = vadd.f32 %v373, %v1349
      %v1414 = vadd.f32 %v374, %v1350
      %v1415 = vadd.f32 %v375, %v1351
      %v1416 = vadd.f32 %v376, %v1352
      %v1417 = vadd.f32 %v377, %v1353
      %v1418 = vadd.f32 %v378, %v1354
      %v1419 = vadd.f32 %v379, %v1355
      %v1420 = vadd.f32 %v380, %v1356
      %v1421 = vadd.f32 %v381, %v1357
      %v1422 = vadd.f32 %v382, %v1358
      %v1423 = vadd.f32 %v383, %v1359
      %v1424 = vadd.f32 %v384, %v1360
      %v1425 = vadd.f32 %v385, %v1361
      %v1426 = vadd.f32 %v386, %v1362
      %v1427 = vadd.f32 %v387, %v1363
      %v1428 = vadd.f32 %v388, %v1364
      %v1429 = vadd.f32 %v389, %v1365
      %v1430 = vadd.f32 %v390, %v1366
      %v1431 = vadd.f32 %v391, %v1367
      %v1432 = vadd.f32 %v392, %v1368
      %v1433 = vadd.f32 %v393, %v1369
      %v1434 = vadd.f32 %v394, %v1370
      %v1435 = vadd.f32 %v395, %v1371
      %v1436 = vadd.f32 %v396, %v1372
      %v1437 = vadd.f32 %v397, %v1373
      %v1438 = vadd.f32 %v398, %v1374
      %v1439 = vadd.f32 %v399, %v1375
      %v1440 = vadd.f32 %v400, %v1376
      %v1441 = vadd.f32 %v401, %v1377
      %v1442 = vadd.f32 %v402, %v1378
      %v1443 = vadd.f32 %v403, %v1379
      %v1444 = vadd.f32 %v404, %v1380
      %v1445 = vadd.f32 %v405, %v1381
      %v1446 = vadd.f32 %v406, %v1382
      %v1447 = vadd.f32 %v407, %v1383
      %v1448 = vadd.f32 %v408, %v1384
      %v1449 = vadd.f32 %v409, %v1385
      %v1450 = vadd.f32 %v410, %v1386
      %v1451 = vadd.f32 %v411, %v1387
      %v1452 = vadd.f32 %v412, %v1388
      %v1453 = vadd.f32 %v413, %v1389
      %v1454 = vadd.f32 %v414, %v1390
      %v1455 = vadd.f32 %v415, %v1391
      %v1456 = vadd.f32 %v416, %v1392
      %v1457 = vadd.f32 %v417, %v1393
      %v1458 = vadd.f32 %v418, %v1394
      %v1459 = vadd.f32 %v419, %v1395
      %v1460 = vadd.f32 %v420, %v1396
      %v1461 = vadd.f32 %v421, %v1397
      %v1462 = vadd.f32 %v422, %v1398
      %v1463 = vadd.f32 %v423, %v1399
      %v1464 = vadd.f32 %v424, %v1400
      %v1465 = vadd.f32 %v425, %v1401
      %v1466 = vadd.f32 %v426, %v1402
      %v1467 = vsel %vm427, %v1403, 0.0
      %1468 = vadd.xlane.f32.xlu0 %v1467
      %v1469 = vpop.xlane.xlu0 %1468
      %v1470 = vsel %vm427, %v1404, 0.0
      %1471 = vadd.xlane.f32.xlu0 %v1470
      %v1472 = vpop.xlane.xlu0 %1471
      %v1473 = vsel %vm427, %v1405, 0.0
      %1474 = vadd.xlane.f32.xlu0 %v1473
      %v1475 = vpop.xlane.xlu0 %1474
      %v1476 = vsel %vm427, %v1406, 0.0
      %1477 = vadd.xlane.f32.xlu0 %v1476
      %v1478 = vpop.xlane.xlu0 %1477
      %v1479 = vsel %vm427, %v1407, 0.0
      %1480 = vadd.xlane.f32.xlu0 %v1479
      %v1481 = vpop.xlane.xlu0 %1480
      %v1482 = vsel %vm427, %v1408, 0.0
      %1483 = vadd.xlane.f32.xlu0 %v1482
      %v1484 = vpop.xlane.xlu0 %1483
      %v1485 = vsel %vm427, %v1409, 0.0
      %1486 = vadd.xlane.f32.xlu0 %v1485
      %v1487 = vpop.xlane.xlu0 %1486
      %v1488 = vsel %vm427, %v1410, 0.0
      %1489 = vadd.xlane.f32.xlu0 %v1488
      %v1490 = vpop.xlane.xlu0 %1489
      %v1491 = vsel %vm427, %v1411, 0.0
      %1492 = vadd.xlane.f32.xlu0 %v1491
      %v1493 = vpop.xlane.xlu0 %1492
      %v1494 = vsel %vm427, %v1412, 0.0
      %1495 = vadd.xlane.f32.xlu0 %v1494
      %v1496 = vpop.xlane.xlu0 %1495
      %v1497 = vsel %vm427, %v1413, 0.0
      %1498 = vadd.xlane.f32.xlu0 %v1497
      %v1499 = vpop.xlane.xlu0 %1498
      %v1500 = vsel %vm427, %v1414, 0.0
      %1501 = vadd.xlane.f32.xlu0 %v1500
      %v1502 = vpop.xlane.xlu0 %1501
      %v1503 = vsel %vm427, %v1415, 0.0
      %1504 = vadd.xlane.f32.xlu0 %v1503
      %v1505 = vpop.xlane.xlu0 %1504
      %v1506 = vsel %vm427, %v1416, 0.0
      %1507 = vadd.xlane.f32.xlu0 %v1506
      %v1508 = vpop.xlane.xlu0 %1507
      %v1509 = vsel %vm427, %v1417, 0.0
      %1510 = vadd.xlane.f32.xlu0 %v1509
      %v1511 = vpop.xlane.xlu0 %1510
      %v1512 = vsel %vm427, %v1418, 0.0
      %1513 = vadd.xlane.f32.xlu0 %v1512
      %v1514 = vpop.xlane.xlu0 %1513
      %v1515 = vsel %vm427, %v1419, 0.0
      %1516 = vadd.xlane.f32.xlu0 %v1515
      %v1517 = vpop.xlane.xlu0 %1516
      %v1518 = vsel %vm427, %v1420, 0.0
      %1519 = vadd.xlane.f32.xlu0 %v1518
      %v1520 = vpop.xlane.xlu0 %1519
      %v1521 = vsel %vm427, %v1421, 0.0
      %1522 = vadd.xlane.f32.xlu0 %v1521
      %v1523 = vpop.xlane.xlu0 %1522
      %v1524 = vsel %vm427, %v1422, 0.0
      %1525 = vadd.xlane.f32.xlu0 %v1524
      %v1526 = vpop.xlane.xlu0 %1525
      %v1527 = vsel %vm427, %v1423, 0.0
      %1528 = vadd.xlane.f32.xlu0 %v1527
      %v1529 = vpop.xlane.xlu0 %1528
      %v1530 = vsel %vm427, %v1424, 0.0
      %1531 = vadd.xlane.f32.xlu0 %v1530
      %v1532 = vpop.xlane.xlu0 %1531
      %v1533 = vsel %vm427, %v1425, 0.0
      %1534 = vadd.xlane.f32.xlu0 %v1533
      %v1535 = vpop.xlane.xlu0 %1534
      %v1536 = vsel %vm427, %v1426, 0.0
      %1537 = vadd.xlane.f32.xlu0 %v1536
      %v1538 = vpop.xlane.xlu0 %1537
      %v1539 = vsel %vm427, %v1427, 0.0
      %1540 = vadd.xlane.f32.xlu0 %v1539
      %v1541 = vpop.xlane.xlu0 %1540
      %v1542 = vsel %vm427, %v1428, 0.0
      %1543 = vadd.xlane.f32.xlu0 %v1542
      %v1544 = vpop.xlane.xlu0 %1543
      %v1545 = vsel %vm427, %v1429, 0.0
      %1546 = vadd.xlane.f32.xlu0 %v1545
      %v1547 = vpop.xlane.xlu0 %1546
      %v1548 = vsel %vm427, %v1430, 0.0
      %1549 = vadd.xlane.f32.xlu0 %v1548
      %v1550 = vpop.xlane.xlu0 %1549
      %v1551 = vsel %vm427, %v1431, 0.0
      %1552 = vadd.xlane.f32.xlu0 %v1551
      %v1553 = vpop.xlane.xlu0 %1552
      %v1554 = vsel %vm427, %v1432, 0.0
      %1555 = vadd.xlane.f32.xlu0 %v1554
      %v1556 = vpop.xlane.xlu0 %1555
      %v1557 = vsel %vm427, %v1433, 0.0
      %1558 = vadd.xlane.f32.xlu0 %v1557
      %v1559 = vpop.xlane.xlu0 %1558
      %v1560 = vsel %vm427, %v1434, 0.0
      %1561 = vadd.xlane.f32.xlu0 %v1560
      %v1562 = vpop.xlane.xlu0 %1561
      %v1563 = vsel %vm427, %v1435, 0.0
      %1564 = vadd.xlane.f32.xlu0 %v1563
      %v1565 = vpop.xlane.xlu0 %1564
      %v1566 = vsel %vm427, %v1436, 0.0
      %1567 = vadd.xlane.f32.xlu0 %v1566
      %v1568 = vpop.xlane.xlu0 %1567
      %v1569 = vsel %vm427, %v1437, 0.0
      %1570 = vadd.xlane.f32.xlu0 %v1569
      %v1571 = vpop.xlane.xlu0 %1570
      %v1572 = vsel %vm427, %v1438, 0.0
      %1573 = vadd.xlane.f32.xlu0 %v1572
      %v1574 = vpop.xlane.xlu0 %1573
      %v1575 = vsel %vm427, %v1439, 0.0
      %1576 = vadd.xlane.f32.xlu0 %v1575
      %v1577 = vpop.xlane.xlu0 %1576
      %v1578 = vsel %vm427, %v1440, 0.0
      %1579 = vadd.xlane.f32.xlu0 %v1578
      %v1580 = vpop.xlane.xlu0 %1579
      %v1581 = vsel %vm427, %v1441, 0.0
      %1582 = vadd.xlane.f32.xlu0 %v1581
      %v1583 = vpop.xlane.xlu0 %1582
      %v1584 = vsel %vm427, %v1442, 0.0
      %1585 = vadd.xlane.f32.xlu0 %v1584
      %v1586 = vpop.xlane.xlu0 %1585
      %v1587 = vsel %vm427, %v1443, 0.0
      %1588 = vadd.xlane.f32.xlu0 %v1587
      %v1589 = vpop.xlane.xlu0 %1588
      %v1590 = vsel %vm427, %v1444, 0.0
      %1591 = vadd.xlane.f32.xlu0 %v1590
      %v1592 = vpop.xlane.xlu0 %1591
      %v1593 = vsel %vm427, %v1445, 0.0
      %1594 = vadd.xlane.f32.xlu0 %v1593
      %v1595 = vpop.xlane.xlu0 %1594
      %v1596 = vsel %vm427, %v1446, 0.0
      %1597 = vadd.xlane.f32.xlu0 %v1596
      %v1598 = vpop.xlane.xlu0 %1597
      %v1599 = vsel %vm427, %v1447, 0.0
      %1600 = vadd.xlane.f32.xlu0 %v1599
      %v1601 = vpop.xlane.xlu0 %1600
      %v1602 = vsel %vm427, %v1448, 0.0
      %1603 = vadd.xlane.f32.xlu0 %v1602
      %v1604 = vpop.xlane.xlu0 %1603
      %v1605 = vsel %vm427, %v1449, 0.0
      %1606 = vadd.xlane.f32.xlu0 %v1605
      %v1607 = vpop.xlane.xlu0 %1606
      %v1608 = vsel %vm427, %v1450, 0.0
      %1609 = vadd.xlane.f32.xlu0 %v1608
      %v1610 = vpop.xlane.xlu0 %1609
      %v1611 = vsel %vm427, %v1451, 0.0
      %1612 = vadd.xlane.f32.xlu0 %v1611
      %v1613 = vpop.xlane.xlu0 %1612
      %v1614 = vsel %vm427, %v1452, 0.0
      %1615 = vadd.xlane.f32.xlu0 %v1614
      %v1616 = vpop.xlane.xlu0 %1615
      %v1617 = vsel %vm427, %v1453, 0.0
      %1618 = vadd.xlane.f32.xlu0 %v1617
      %v1619 = vpop.xlane.xlu0 %1618
      %v1620 = vsel %vm427, %v1454, 0.0
      %1621 = vadd.xlane.f32.xlu0 %v1620
      %v1622 = vpop.xlane.xlu0 %1621
      %v1623 = vsel %vm427, %v1455, 0.0
      %1624 = vadd.xlane.f32.xlu0 %v1623
      %v1625 = vpop.xlane.xlu0 %1624
      %v1626 = vsel %vm427, %v1456, 0.0
      %1627 = vadd.xlane.f32.xlu0 %v1626
      %v1628 = vpop.xlane.xlu0 %1627
      %v1629 = vsel %vm427, %v1457, 0.0
      %1630 = vadd.xlane.f32.xlu0 %v1629
      %v1631 = vpop.xlane.xlu0 %1630
      %v1632 = vsel %vm427, %v1458, 0.0
      %1633 = vadd.xlane.f32.xlu0 %v1632
      %v1634 = vpop.xlane.xlu0 %1633
      %v1635 = vsel %vm427, %v1459, 0.0
      %1636 = vadd.xlane.f32.xlu0 %v1635
      %v1637 = vpop.xlane.xlu0 %1636
      %v1638 = vsel %vm427, %v1460, 0.0
      %1639 = vadd.xlane.f32.xlu0 %v1638
      %v1640 = vpop.xlane.xlu0 %1639
      %v1641 = vsel %vm427, %v1461, 0.0
      %1642 = vadd.xlane.f32.xlu0 %v1641
      %v1643 = vpop.xlane.xlu0 %1642
      %v1644 = vsel %vm427, %v1462, 0.0
      %1645 = vadd.xlane.f32.xlu0 %v1644
      %v1646 = vpop.xlane.xlu0 %1645
      %v1647 = vsel %vm427, %v1463, 0.0
      %1648 = vadd.xlane.f32.xlu0 %v1647
      %v1649 = vpop.xlane.xlu0 %1648
      %v1650 = vsel %vm427, %v1464, 0.0
      %1651 = vadd.xlane.f32.xlu0 %v1650
      %v1652 = vpop.xlane.xlu0 %1651
      %v1653 = vsel %vm427, %v1465, 0.0
      %1654 = vadd.xlane.f32.xlu0 %v1653
      %v1655 = vpop.xlane.xlu0 %1654
      %v1656 = vsel %vm427, %v1466, 0.0
      %1657 = vadd.xlane.f32.xlu0 %v1656
      %v1658 = vpop.xlane.xlu0 %1657
      %v1659 = vmul.f32 %v1469, %v620
      %v1660 = vmul.f32 %v1472, %v620
      %v1661 = vmul.f32 %v1475, %v620
      %v1662 = vmul.f32 %v1478, %v620
      %v1663 = vmul.f32 %v1481, %v620
      %v1664 = vmul.f32 %v1484, %v620
      %v1665 = vmul.f32 %v1487, %v620
      %v1666 = vmul.f32 %v1490, %v620
      %v1667 = vmul.f32 %v1493, %v620
      %v1668 = vmul.f32 %v1496, %v620
      %v1669 = vmul.f32 %v1499, %v620
      %v1670 = vmul.f32 %v1502, %v620
      %v1671 = vmul.f32 %v1505, %v620
      %v1672 = vmul.f32 %v1508, %v620
      %v1673 = vmul.f32 %v1511, %v620
      %v1674 = vmul.f32 %v1514, %v620
      %v1675 = vmul.f32 %v1517, %v620
      %v1676 = vmul.f32 %v1520, %v620
      %v1677 = vmul.f32 %v1523, %v620
      %v1678 = vmul.f32 %v1526, %v620
      %v1679 = vmul.f32 %v1529, %v620
      %v1680 = vmul.f32 %v1532, %v620
      %v1681 = vmul.f32 %v1535, %v620
      %v1682 = vmul.f32 %v1538, %v620
      %v1683 = vmul.f32 %v1541, %v620
      %v1684 = vmul.f32 %v1544, %v620
      %v1685 = vmul.f32 %v1547, %v620
      %v1686 = vmul.f32 %v1550, %v620
      %v1687 = vmul.f32 %v1553, %v620
      %v1688 = vmul.f32 %v1556, %v620
      %v1689 = vmul.f32 %v1559, %v620
      %v1690 = vmul.f32 %v1562, %v620
      %v1691 = vmul.f32 %v1565, %v620
      %v1692 = vmul.f32 %v1568, %v620
      %v1693 = vmul.f32 %v1571, %v620
      %v1694 = vmul.f32 %v1574, %v620
      %v1695 = vmul.f32 %v1577, %v620
      %v1696 = vmul.f32 %v1580, %v620
      %v1697 = vmul.f32 %v1583, %v620
      %v1698 = vmul.f32 %v1586, %v620
      %v1699 = vmul.f32 %v1589, %v620
      %v1700 = vmul.f32 %v1592, %v620
      %v1701 = vmul.f32 %v1595, %v620
      %v1702 = vmul.f32 %v1598, %v620
      %v1703 = vmul.f32 %v1601, %v620
      %v1704 = vmul.f32 %v1604, %v620
      %v1705 = vmul.f32 %v1607, %v620
      %v1706 = vmul.f32 %v1610, %v620
      %v1707 = vmul.f32 %v1613, %v620
      %v1708 = vmul.f32 %v1616, %v620
      %v1709 = vmul.f32 %v1619, %v620
      %v1710 = vmul.f32 %v1622, %v620
      %v1711 = vmul.f32 %v1625, %v620
      %v1712 = vmul.f32 %v1628, %v620
      %v1713 = vmul.f32 %v1631, %v620
      %v1714 = vmul.f32 %v1634, %v620
      %v1715 = vmul.f32 %v1637, %v620
      %v1716 = vmul.f32 %v1640, %v620
      %v1717 = vmul.f32 %v1643, %v620
      %v1718 = vmul.f32 %v1646, %v620
      %v1719 = vmul.f32 %v1649, %v620
      %v1720 = vmul.f32 %v1652, %v620
      %v1721 = vmul.f32 %v1655, %v620
      %v1722 = vmul.f32 %v1658, %v620
      %v1723 = vsub.f32 %v1403, %v1659
      %v1724 = vsub.f32 %v1404, %v1660
      %v1725 = vsub.f32 %v1405, %v1661
      %v1726 = vsub.f32 %v1406, %v1662
      %v1727 = vsub.f32 %v1407, %v1663
      %v1728 = vsub.f32 %v1408, %v1664
      %v1729 = vsub.f32 %v1409, %v1665
      %v1730 = vsub.f32 %v1410, %v1666
      %v1731 = vsub.f32 %v1411, %v1667
      %v1732 = vsub.f32 %v1412, %v1668
      %v1733 = vsub.f32 %v1413, %v1669
      %v1734 = vsub.f32 %v1414, %v1670
      %v1735 = vsub.f32 %v1415, %v1671
      %v1736 = vsub.f32 %v1416, %v1672
      %v1737 = vsub.f32 %v1417, %v1673
      %v1738 = vsub.f32 %v1418, %v1674
      %v1739 = vsub.f32 %v1419, %v1675
      %v1740 = vsub.f32 %v1420, %v1676
      %v1741 = vsub.f32 %v1421, %v1677
      %v1742 = vsub.f32 %v1422, %v1678
      %v1743 = vsub.f32 %v1423, %v1679
      %v1744 = vsub.f32 %v1424, %v1680
      %v1745 = vsub.f32 %v1425, %v1681
      %v1746 = vsub.f32 %v1426, %v1682
      %v1747 = vsub.f32 %v1427, %v1683
      %v1748 = vsub.f32 %v1428, %v1684
      %v1749 = vsub.f32 %v1429, %v1685
      %v1750 = vsub.f32 %v1430, %v1686
      %v1751 = vsub.f32 %v1431, %v1687
      %v1752 = vsub.f32 %v1432, %v1688
      %v1753 = vsub.f32 %v1433, %v1689
      %v1754 = vsub.f32 %v1434, %v1690
      %v1755 = vsub.f32 %v1435, %v1691
      %v1756 = vsub.f32 %v1436, %v1692
      %v1757 = vsub.f32 %v1437, %v1693
      %v1758 = vsub.f32 %v1438, %v1694
      %v1759 = vsub.f32 %v1439, %v1695
      %v1760 = vsub.f32 %v1440, %v1696
      %v1761 = vsub.f32 %v1441, %v1697
      %v1762 = vsub.f32 %v1442, %v1698
      %v1763 = vsub.f32 %v1443, %v1699
      %v1764 = vsub.f32 %v1444, %v1700
      %v1765 = vsub.f32 %v1445, %v1701
      %v1766 = vsub.f32 %v1446, %v1702
      %v1767 = vsub.f32 %v1447, %v1703
      %v1768 = vsub.f32 %v1448, %v1704
      %v1769 = vsub.f32 %v1449, %v1705
      %v1770 = vsub.f32 %v1450, %v1706
      %v1771 = vsub.f32 %v1451, %v1707
      %v1772 = vsub.f32 %v1452, %v1708
      %v1773 = vsub.f32 %v1453, %v1709
      %v1774 = vsub.f32 %v1454, %v1710
      %v1775 = vsub.f32 %v1455, %v1711
      %v1776 = vsub.f32 %v1456, %v1712
      %v1777 = vsub.f32 %v1457, %v1713
      %v1778 = vsub.f32 %v1458, %v1714
      %v1779 = vsub.f32 %v1459, %v1715
      %v1780 = vsub.f32 %v1460, %v1716
      %v1781 = vsub.f32 %v1461, %v1717
      %v1782 = vsub.f32 %v1462, %v1718
      %v1783 = vsub.f32 %v1463, %v1719
      %v1784 = vsub.f32 %v1464, %v1720
      %v1785 = vsub.f32 %v1465, %v1721
      %v1786 = vsub.f32 %v1466, %v1722
      %v1787 = vmul.f32 %v1723, %v1723
      %v1788 = vmul.f32 %v1724, %v1724
      %v1789 = vmul.f32 %v1725, %v1725
      %v1790 = vmul.f32 %v1726, %v1726
      %v1791 = vmul.f32 %v1727, %v1727
      %v1792 = vmul.f32 %v1728, %v1728
      %v1793 = vmul.f32 %v1729, %v1729
      %v1794 = vmul.f32 %v1730, %v1730
      %v1795 = vmul.f32 %v1731, %v1731
      %v1796 = vmul.f32 %v1732, %v1732
      %v1797 = vmul.f32 %v1733, %v1733
      %v1798 = vmul.f32 %v1734, %v1734
      %v1799 = vmul.f32 %v1735, %v1735
      %v1800 = vmul.f32 %v1736, %v1736
      %v1801 = vmul.f32 %v1737, %v1737
      %v1802 = vmul.f32 %v1738, %v1738
      %v1803 = vmul.f32 %v1739, %v1739
      %v1804 = vmul.f32 %v1740, %v1740
      %v1805 = vmul.f32 %v1741, %v1741
      %v1806 = vmul.f32 %v1742, %v1742
      %v1807 = vmul.f32 %v1743, %v1743
      %v1808 = vmul.f32 %v1744, %v1744
      %v1809 = vmul.f32 %v1745, %v1745
      %v1810 = vmul.f32 %v1746, %v1746
      %v1811 = vmul.f32 %v1747, %v1747
      %v1812 = vmul.f32 %v1748, %v1748
      %v1813 = vmul.f32 %v1749, %v1749
      %v1814 = vmul.f32 %v1750, %v1750
      %v1815 = vmul.f32 %v1751, %v1751
      %v1816 = vmul.f32 %v1752, %v1752
      %v1817 = vmul.f32 %v1753, %v1753
      %v1818 = vmul.f32 %v1754, %v1754
      %v1819 = vmul.f32 %v1755, %v1755
      %v1820 = vmul.f32 %v1756, %v1756
      %v1821 = vmul.f32 %v1757, %v1757
      %v1822 = vmul.f32 %v1758, %v1758
      %v1823 = vmul.f32 %v1759, %v1759
      %v1824 = vmul.f32 %v1760, %v1760
      %v1825 = vmul.f32 %v1761, %v1761
      %v1826 = vmul.f32 %v1762, %v1762
      %v1827 = vmul.f32 %v1763, %v1763
      %v1828 = vmul.f32 %v1764, %v1764
      %v1829 = vmul.f32 %v1765, %v1765
      %v1830 = vmul.f32 %v1766, %v1766
      %v1831 = vmul.f32 %v1767, %v1767
      %v1832 = vmul.f32 %v1768, %v1768
      %v1833 = vmul.f32 %v1769, %v1769
      %v1834 = vmul.f32 %v1770, %v1770
      %v1835 = vmul.f32 %v1771, %v1771
      %v1836 = vmul.f32 %v1772, %v1772
      %v1837 = vmul.f32 %v1773, %v1773
      %v1838 = vmul.f32 %v1774, %v1774
      %v1839 = vmul.f32 %v1775, %v1775
      %v1840 = vmul.f32 %v1776, %v1776
      %v1841 = vmul.f32 %v1777, %v1777
      %v1842 = vmul.f32 %v1778, %v1778
      %v1843 = vmul.f32 %v1779, %v1779
      %v1844 = vmul.f32 %v1780, %v1780
      %v1845 = vmul.f32 %v1781, %v1781
      %v1846 = vmul.f32 %v1782, %v1782
      %v1847 = vmul.f32 %v1783, %v1783
      %v1848 = vmul.f32 %v1784, %v1784
      %v1849 = vmul.f32 %v1785, %v1785
      %v1850 = vmul.f32 %v1786, %v1786
      %v1851 = vsel %vm427, %v1787, 0.0
      %1852 = vadd.xlane.f32.xlu0 %v1851
      %v1853 = vpop.xlane.xlu0 %1852
      %v1854 = vsel %vm427, %v1788, 0.0
      %1855 = vadd.xlane.f32.xlu0 %v1854
      %v1856 = vpop.xlane.xlu0 %1855
      %v1857 = vsel %vm427, %v1789, 0.0
      %1858 = vadd.xlane.f32.xlu0 %v1857
      %v1859 = vpop.xlane.xlu0 %1858
      %v1860 = vsel %vm427, %v1790, 0.0
      %1861 = vadd.xlane.f32.xlu0 %v1860
      %v1862 = vpop.xlane.xlu0 %1861
      %v1863 = vsel %vm427, %v1791, 0.0
      %1864 = vadd.xlane.f32.xlu0 %v1863
      %v1865 = vpop.xlane.xlu0 %1864
      %v1866 = vsel %vm427, %v1792, 0.0
      %1867 = vadd.xlane.f32.xlu0 %v1866
      %v1868 = vpop.xlane.xlu0 %1867
      %v1869 = vsel %vm427, %v1793, 0.0
      %1870 = vadd.xlane.f32.xlu0 %v1869
      %v1871 = vpop.xlane.xlu0 %1870
      %v1872 = vsel %vm427, %v1794, 0.0
      %1873 = vadd.xlane.f32.xlu0 %v1872
      %v1874 = vpop.xlane.xlu0 %1873
      %v1875 = vsel %vm427, %v1795, 0.0
      %1876 = vadd.xlane.f32.xlu0 %v1875
      %v1877 = vpop.xlane.xlu0 %1876
      %v1878 = vsel %vm427, %v1796, 0.0
      %1879 = vadd.xlane.f32.xlu0 %v1878
      %v1880 = vpop.xlane.xlu0 %1879
      %v1881 = vsel %vm427, %v1797, 0.0
      %1882 = vadd.xlane.f32.xlu0 %v1881
      %v1883 = vpop.xlane.xlu0 %1882
      %v1884 = vsel %vm427, %v1798, 0.0
      %1885 = vadd.xlane.f32.xlu0 %v1884
      %v1886 = vpop.xlane.xlu0 %1885
      %v1887 = vsel %vm427, %v1799, 0.0
      %1888 = vadd.xlane.f32.xlu0 %v1887
      %v1889 = vpop.xlane.xlu0 %1888
      %v1890 = vsel %vm427, %v1800, 0.0
      %1891 = vadd.xlane.f32.xlu0 %v1890
      %v1892 = vpop.xlane.xlu0 %1891
      %v1893 = vsel %vm427, %v1801, 0.0
      %1894 = vadd.xlane.f32.xlu0 %v1893
      %v1895 = vpop.xlane.xlu0 %1894
      %v1896 = vsel %vm427, %v1802, 0.0
      %1897 = vadd.xlane.f32.xlu0 %v1896
      %v1898 = vpop.xlane.xlu0 %1897
      %v1899 = vsel %vm427, %v1803, 0.0
      %1900 = vadd.xlane.f32.xlu0 %v1899
      %v1901 = vpop.xlane.xlu0 %1900
      %v1902 = vsel %vm427, %v1804, 0.0
      %1903 = vadd.xlane.f32.xlu0 %v1902
      %v1904 = vpop.xlane.xlu0 %1903
      %v1905 = vsel %vm427, %v1805, 0.0
      %1906 = vadd.xlane.f32.xlu0 %v1905
      %v1907 = vpop.xlane.xlu0 %1906
      %v1908 = vsel %vm427, %v1806, 0.0
      %1909 = vadd.xlane.f32.xlu0 %v1908
      %v1910 = vpop.xlane.xlu0 %1909
      %v1911 = vsel %vm427, %v1807, 0.0
      %1912 = vadd.xlane.f32.xlu0 %v1911
      %v1913 = vpop.xlane.xlu0 %1912
      %v1914 = vsel %vm427, %v1808, 0.0
      %1915 = vadd.xlane.f32.xlu0 %v1914
      %v1916 = vpop.xlane.xlu0 %1915
      %v1917 = vsel %vm427, %v1809, 0.0
      %1918 = vadd.xlane.f32.xlu0 %v1917
      %v1919 = vpop.xlane.xlu0 %1918
      %v1920 = vsel %vm427, %v1810, 0.0
      %1921 = vadd.xlane.f32.xlu0 %v1920
      %v1922 = vpop.xlane.xlu0 %1921
      %v1923 = vsel %vm427, %v1811, 0.0
      %1924 = vadd.xlane.f32.xlu0 %v1923
      %v1925 = vpop.xlane.xlu0 %1924
      %v1926 = vsel %vm427, %v1812, 0.0
      %1927 = vadd.xlane.f32.xlu0 %v1926
      %v1928 = vpop.xlane.xlu0 %1927
      %v1929 = vsel %vm427, %v1813, 0.0
      %1930 = vadd.xlane.f32.xlu0 %v1929
      %v1931 = vpop.xlane.xlu0 %1930
      %v1932 = vsel %vm427, %v1814, 0.0
      %1933 = vadd.xlane.f32.xlu0 %v1932
      %v1934 = vpop.xlane.xlu0 %1933
      %v1935 = vsel %vm427, %v1815, 0.0
      %1936 = vadd.xlane.f32.xlu0 %v1935
      %v1937 = vpop.xlane.xlu0 %1936
      %v1938 = vsel %vm427, %v1816, 0.0
      %1939 = vadd.xlane.f32.xlu0 %v1938
      %v1940 = vpop.xlane.xlu0 %1939
      %v1941 = vsel %vm427, %v1817, 0.0
      %1942 = vadd.xlane.f32.xlu0 %v1941
      %v1943 = vpop.xlane.xlu0 %1942
      %v1944 = vsel %vm427, %v1818, 0.0
      %1945 = vadd.xlane.f32.xlu0 %v1944
      %v1946 = vpop.xlane.xlu0 %1945
      %v1947 = vsel %vm427, %v1819, 0.0
      %1948 = vadd.xlane.f32.xlu0 %v1947
      %v1949 = vpop.xlane.xlu0 %1948
      %v1950 = vsel %vm427, %v1820, 0.0
      %1951 = vadd.xlane.f32.xlu0 %v1950
      %v1952 = vpop.xlane.xlu0 %1951
      %v1953 = vsel %vm427, %v1821, 0.0
      %1954 = vadd.xlane.f32.xlu0 %v1953
      %v1955 = vpop.xlane.xlu0 %1954
      %v1956 = vsel %vm427, %v1822, 0.0
      %1957 = vadd.xlane.f32.xlu0 %v1956
      %v1958 = vpop.xlane.xlu0 %1957
      %v1959 = vsel %vm427, %v1823, 0.0
      %1960 = vadd.xlane.f32.xlu0 %v1959
      %v1961 = vpop.xlane.xlu0 %1960
      %v1962 = vsel %vm427, %v1824, 0.0
      %1963 = vadd.xlane.f32.xlu0 %v1962
      %v1964 = vpop.xlane.xlu0 %1963
      %v1965 = vsel %vm427, %v1825, 0.0
      %1966 = vadd.xlane.f32.xlu0 %v1965
      %v1967 = vpop.xlane.xlu0 %1966
      %v1968 = vsel %vm427, %v1826, 0.0
      %1969 = vadd.xlane.f32.xlu0 %v1968
      %v1970 = vpop.xlane.xlu0 %1969
      %v1971 = vsel %vm427, %v1827, 0.0
      %1972 = vadd.xlane.f32.xlu0 %v1971
      %v1973 = vpop.xlane.xlu0 %1972
      %v1974 = vsel %vm427, %v1828, 0.0
      %1975 = vadd.xlane.f32.xlu0 %v1974
      %v1976 = vpop.xlane.xlu0 %1975
      %v1977 = vsel %vm427, %v1829, 0.0
      %1978 = vadd.xlane.f32.xlu0 %v1977
      %v1979 = vpop.xlane.xlu0 %1978
      %v1980 = vsel %vm427, %v1830, 0.0
      %1981 = vadd.xlane.f32.xlu0 %v1980
      %v1982 = vpop.xlane.xlu0 %1981
      %v1983 = vsel %vm427, %v1831, 0.0
      %1984 = vadd.xlane.f32.xlu0 %v1983
      %v1985 = vpop.xlane.xlu0 %1984
      %v1986 = vsel %vm427, %v1832, 0.0
      %1987 = vadd.xlane.f32.xlu0 %v1986
      %v1988 = vpop.xlane.xlu0 %1987
      %v1989 = vsel %vm427, %v1833, 0.0
      %1990 = vadd.xlane.f32.xlu0 %v1989
      %v1991 = vpop.xlane.xlu0 %1990
      %v1992 = vsel %vm427, %v1834, 0.0
      %1993 = vadd.xlane.f32.xlu0 %v1992
      %v1994 = vpop.xlane.xlu0 %1993
      %v1995 = vsel %vm427, %v1835, 0.0
      %1996 = vadd.xlane.f32.xlu0 %v1995
      %v1997 = vpop.xlane.xlu0 %1996
      %v1998 = vsel %vm427, %v1836, 0.0
      %1999 = vadd.xlane.f32.xlu0 %v1998
      %v2000 = vpop.xlane.xlu0 %1999
      %v2001 = vsel %vm427, %v1837, 0.0
      %2002 = vadd.xlane.f32.xlu0 %v2001
      %v2003 = vpop.xlane.xlu0 %2002
      %v2004 = vsel %vm427, %v1838, 0.0
      %2005 = vadd.xlane.f32.xlu0 %v2004
      %v2006 = vpop.xlane.xlu0 %2005
      %v2007 = vsel %vm427, %v1839, 0.0
      %2008 = vadd.xlane.f32.xlu0 %v2007
      %v2009 = vpop.xlane.xlu0 %2008
      %v2010 = vsel %vm427, %v1840, 0.0
      %2011 = vadd.xlane.f32.xlu0 %v2010
      %v2012 = vpop.xlane.xlu0 %2011
      %v2013 = vsel %vm427, %v1841, 0.0
      %2014 = vadd.xlane.f32.xlu0 %v2013
      %v2015 = vpop.xlane.xlu0 %2014
      %v2016 = vsel %vm427, %v1842, 0.0
      %2017 = vadd.xlane.f32.xlu0 %v2016
      %v2018 = vpop.xlane.xlu0 %2017
      %v2019 = vsel %vm427, %v1843, 0.0
      %2020 = vadd.xlane.f32.xlu0 %v2019
      %v2021 = vpop.xlane.xlu0 %2020
      %v2022 = vsel %vm427, %v1844, 0.0
      %2023 = vadd.xlane.f32.xlu0 %v2022
      %v2024 = vpop.xlane.xlu0 %2023
      %v2025 = vsel %vm427, %v1845, 0.0
      %2026 = vadd.xlane.f32.xlu0 %v2025
      %v2027 = vpop.xlane.xlu0 %2026
      %v2028 = vsel %vm427, %v1846, 0.0
      %2029 = vadd.xlane.f32.xlu0 %v2028
      %v2030 = vpop.xlane.xlu0 %2029
      %v2031 = vsel %vm427, %v1847, 0.0
      %2032 = vadd.xlane.f32.xlu0 %v2031
      %v2033 = vpop.xlane.xlu0 %2032
      %v2034 = vsel %vm427, %v1848, 0.0
      %2035 = vadd.xlane.f32.xlu0 %v2034
      %v2036 = vpop.xlane.xlu0 %2035
      %v2037 = vsel %vm427, %v1849, 0.0
      %2038 = vadd.xlane.f32.xlu0 %v2037
      %v2039 = vpop.xlane.xlu0 %2038
      %v2040 = vsel %vm427, %v1850, 0.0
      %2041 = vadd.xlane.f32.xlu0 %v2040
      %v2042 = vpop.xlane.xlu0 %2041
      %v2043 = vmul.f32 %v1853, %v620
      %v2044 = vmul.f32 %v1856, %v620
      %v2045 = vmul.f32 %v1859, %v620
      %v2046 = vmul.f32 %v1862, %v620
      %v2047 = vmul.f32 %v1865, %v620
      %v2048 = vmul.f32 %v1868, %v620
      %v2049 = vmul.f32 %v1871, %v620
      %v2050 = vmul.f32 %v1874, %v620
      %v2051 = vmul.f32 %v1877, %v620
      %v2052 = vmul.f32 %v1880, %v620
      %v2053 = vmul.f32 %v1883, %v620
      %v2054 = vmul.f32 %v1886, %v620
      %v2055 = vmul.f32 %v1889, %v620
      %v2056 = vmul.f32 %v1892, %v620
      %v2057 = vmul.f32 %v1895, %v620
      %v2058 = vmul.f32 %v1898, %v620
      %v2059 = vmul.f32 %v1901, %v620
      %v2060 = vmul.f32 %v1904, %v620
      %v2061 = vmul.f32 %v1907, %v620
      %v2062 = vmul.f32 %v1910, %v620
      %v2063 = vmul.f32 %v1913, %v620
      %v2064 = vmul.f32 %v1916, %v620
      %v2065 = vmul.f32 %v1919, %v620
      %v2066 = vmul.f32 %v1922, %v620
      %v2067 = vmul.f32 %v1925, %v620
      %v2068 = vmul.f32 %v1928, %v620
      %v2069 = vmul.f32 %v1931, %v620
      %v2070 = vmul.f32 %v1934, %v620
      %v2071 = vmul.f32 %v1937, %v620
      %v2072 = vmul.f32 %v1940, %v620
      %v2073 = vmul.f32 %v1943, %v620
      %v2074 = vmul.f32 %v1946, %v620
      %v2075 = vmul.f32 %v1949, %v620
      %v2076 = vmul.f32 %v1952, %v620
      %v2077 = vmul.f32 %v1955, %v620
      %v2078 = vmul.f32 %v1958, %v620
      %v2079 = vmul.f32 %v1961, %v620
      %v2080 = vmul.f32 %v1964, %v620
      %v2081 = vmul.f32 %v1967, %v620
      %v2082 = vmul.f32 %v1970, %v620
      %v2083 = vmul.f32 %v1973, %v620
      %v2084 = vmul.f32 %v1976, %v620
      %v2085 = vmul.f32 %v1979, %v620
      %v2086 = vmul.f32 %v1982, %v620
      %v2087 = vmul.f32 %v1985, %v620
      %v2088 = vmul.f32 %v1988, %v620
      %v2089 = vmul.f32 %v1991, %v620
      %v2090 = vmul.f32 %v1994, %v620
      %v2091 = vmul.f32 %v1997, %v620
      %v2092 = vmul.f32 %v2000, %v620
      %v2093 = vmul.f32 %v2003, %v620
      %v2094 = vmul.f32 %v2006, %v620
      %v2095 = vmul.f32 %v2009, %v620
      %v2096 = vmul.f32 %v2012, %v620
      %v2097 = vmul.f32 %v2015, %v620
      %v2098 = vmul.f32 %v2018, %v620
      %v2099 = vmul.f32 %v2021, %v620
      %v2100 = vmul.f32 %v2024, %v620
      %v2101 = vmul.f32 %v2027, %v620
      %v2102 = vmul.f32 %v2030, %v620
      %v2103 = vmul.f32 %v2033, %v620
      %v2104 = vmul.f32 %v2036, %v620
      %v2105 = vmul.f32 %v2039, %v620
      %v2106 = vmul.f32 %v2042, %v620
      %v2107 = vadd.f32 %v2043, 1e-05
      %v2108 = vadd.f32 %v2044, 1e-05
      %v2109 = vadd.f32 %v2045, 1e-05
      %v2110 = vadd.f32 %v2046, 1e-05
      %v2111 = vadd.f32 %v2047, 1e-05
      %v2112 = vadd.f32 %v2048, 1e-05
      %v2113 = vadd.f32 %v2049, 1e-05
      %v2114 = vadd.f32 %v2050, 1e-05
      %v2115 = vadd.f32 %v2051, 1e-05
      %v2116 = vadd.f32 %v2052, 1e-05
      %v2117 = vadd.f32 %v2053, 1e-05
      %v2118 = vadd.f32 %v2054, 1e-05
      %v2119 = vadd.f32 %v2055, 1e-05
      %v2120 = vadd.f32 %v2056, 1e-05
      %v2121 = vadd.f32 %v2057, 1e-05
      %v2122 = vadd.f32 %v2058, 1e-05
      %v2123 = vadd.f32 %v2059, 1e-05
      %v2124 = vadd.f32 %v2060, 1e-05
      %v2125 = vadd.f32 %v2061, 1e-05
      %v2126 = vadd.f32 %v2062, 1e-05
      %v2127 = vadd.f32 %v2063, 1e-05
      %v2128 = vadd.f32 %v2064, 1e-05
      %v2129 = vadd.f32 %v2065, 1e-05
      %v2130 = vadd.f32 %v2066, 1e-05
      %v2131 = vadd.f32 %v2067, 1e-05
      %v2132 = vadd.f32 %v2068, 1e-05
      %v2133 = vadd.f32 %v2069, 1e-05
      %v2134 = vadd.f32 %v2070, 1e-05
      %v2135 = vadd.f32 %v2071, 1e-05
      %v2136 = vadd.f32 %v2072, 1e-05
      %v2137 = vadd.f32 %v2073, 1e-05
      %v2138 = vadd.f32 %v2074, 1e-05
      %v2139 = vadd.f32 %v2075, 1e-05
      %v2140 = vadd.f32 %v2076, 1e-05
      %v2141 = vadd.f32 %v2077, 1e-05
      %v2142 = vadd.f32 %v2078, 1e-05
      %v2143 = vadd.f32 %v2079, 1e-05
      %v2144 = vadd.f32 %v2080, 1e-05
      %v2145 = vadd.f32 %v2081, 1e-05
      %v2146 = vadd.f32 %v2082, 1e-05
      %v2147 = vadd.f32 %v2083, 1e-05
      %v2148 = vadd.f32 %v2084, 1e-05
      %v2149 = vadd.f32 %v2085, 1e-05
      %v2150 = vadd.f32 %v2086, 1e-05
      %v2151 = vadd.f32 %v2087, 1e-05
      %v2152 = vadd.f32 %v2088, 1e-05
      %v2153 = vadd.f32 %v2089, 1e-05
      %v2154 = vadd.f32 %v2090, 1e-05
      %v2155 = vadd.f32 %v2091, 1e-05
      %v2156 = vadd.f32 %v2092, 1e-05
      %v2157 = vadd.f32 %v2093, 1e-05
      %v2158 = vadd.f32 %v2094, 1e-05
      %v2159 = vadd.f32 %v2095, 1e-05
      %v2160 = vadd.f32 %v2096, 1e-05
      %v2161 = vadd.f32 %v2097, 1e-05
      %v2162 = vadd.f32 %v2098, 1e-05
      %v2163 = vadd.f32 %v2099, 1e-05
      %v2164 = vadd.f32 %v2100, 1e-05
      %v2165 = vadd.f32 %v2101, 1e-05
      %v2166 = vadd.f32 %v2102, 1e-05
      %v2167 = vadd.f32 %v2103, 1e-05
      %v2168 = vadd.f32 %v2104, 1e-05
      %v2169 = vadd.f32 %v2105, 1e-05
      %v2170 = vadd.f32 %v2106, 1e-05
      %v2171 = vrsqrt.pop %v2107
      %v2172 = vrsqrt.pop %v2108
      %v2173 = vrsqrt.pop %v2109
      %v2174 = vrsqrt.pop %v2110
      %v2175 = vrsqrt.pop %v2111
      %v2176 = vrsqrt.pop %v2112
      %v2177 = vrsqrt.pop %v2113
      %v2178 = vrsqrt.pop %v2114
      %v2179 = vrsqrt.pop %v2115
      %v2180 = vrsqrt.pop %v2116
      %v2181 = vrsqrt.pop %v2117
      %v2182 = vrsqrt.pop %v2118
      %v2183 = vrsqrt.pop %v2119
      %v2184 = vrsqrt.pop %v2120
      %v2185 = vrsqrt.pop %v2121
      %v2186 = vrsqrt.pop %v2122
      %v2187 = vrsqrt.pop %v2123
      %v2188 = vrsqrt.pop %v2124
      %v2189 = vrsqrt.pop %v2125
      %v2190 = vrsqrt.pop %v2126
      %v2191 = vrsqrt.pop %v2127
      %v2192 = vrsqrt.pop %v2128
      %v2193 = vrsqrt.pop %v2129
      %v2194 = vrsqrt.pop %v2130
      %v2195 = vrsqrt.pop %v2131
      %v2196 = vrsqrt.pop %v2132
      %v2197 = vrsqrt.pop %v2133
      %v2198 = vrsqrt.pop %v2134
      %v2199 = vrsqrt.pop %v2135
      %v2200 = vrsqrt.pop %v2136
      %v2201 = vrsqrt.pop %v2137
      %v2202 = vrsqrt.pop %v2138
      %v2203 = vrsqrt.pop %v2139
      %v2204 = vrsqrt.pop %v2140
      %v2205 = vrsqrt.pop %v2141
      %v2206 = vrsqrt.pop %v2142
      %v2207 = vrsqrt.pop %v2143
      %v2208 = vrsqrt.pop %v2144
      %v2209 = vrsqrt.pop %v2145
      %v2210 = vrsqrt.pop %v2146
      %v2211 = vrsqrt.pop %v2147
      %v2212 = vrsqrt.pop %v2148
      %v2213 = vrsqrt.pop %v2149
      %v2214 = vrsqrt.pop %v2150
      %v2215 = vrsqrt.pop %v2151
      %v2216 = vrsqrt.pop %v2152
      %v2217 = vrsqrt.pop %v2153
      %v2218 = vrsqrt.pop %v2154
      %v2219 = vrsqrt.pop %v2155
      %v2220 = vrsqrt.pop %v2156
      %v2221 = vrsqrt.pop %v2157
      %v2222 = vrsqrt.pop %v2158
      %v2223 = vrsqrt.pop %v2159
      %v2224 = vrsqrt.pop %v2160
      %v2225 = vrsqrt.pop %v2161
      %v2226 = vrsqrt.pop %v2162
      %v2227 = vrsqrt.pop %v2163
      %v2228 = vrsqrt.pop %v2164
      %v2229 = vrsqrt.pop %v2165
      %v2230 = vrsqrt.pop %v2166
      %v2231 = vrsqrt.pop %v2167
      %v2232 = vrsqrt.pop %v2168
      %v2233 = vrsqrt.pop %v2169
      %v2234 = vrsqrt.pop %v2170
      %v2235 = vmul.f32 %v1723, %v2171
      %v2236 = vmul.f32 %v1724, %v2172
      %v2237 = vmul.f32 %v1725, %v2173
      %v2238 = vmul.f32 %v1726, %v2174
      %v2239 = vmul.f32 %v1727, %v2175
      %v2240 = vmul.f32 %v1728, %v2176
      %v2241 = vmul.f32 %v1729, %v2177
      %v2242 = vmul.f32 %v1730, %v2178
      %v2243 = vmul.f32 %v1731, %v2179
      %v2244 = vmul.f32 %v1732, %v2180
      %v2245 = vmul.f32 %v1733, %v2181
      %v2246 = vmul.f32 %v1734, %v2182
      %v2247 = vmul.f32 %v1735, %v2183
      %v2248 = vmul.f32 %v1736, %v2184
      %v2249 = vmul.f32 %v1737, %v2185
      %v2250 = vmul.f32 %v1738, %v2186
      %v2251 = vmul.f32 %v1739, %v2187
      %v2252 = vmul.f32 %v1740, %v2188
      %v2253 = vmul.f32 %v1741, %v2189
      %v2254 = vmul.f32 %v1742, %v2190
      %v2255 = vmul.f32 %v1743, %v2191
      %v2256 = vmul.f32 %v1744, %v2192
      %v2257 = vmul.f32 %v1745, %v2193
      %v2258 = vmul.f32 %v1746, %v2194
      %v2259 = vmul.f32 %v1747, %v2195
      %v2260 = vmul.f32 %v1748, %v2196
      %v2261 = vmul.f32 %v1749, %v2197
      %v2262 = vmul.f32 %v1750, %v2198
      %v2263 = vmul.f32 %v1751, %v2199
      %v2264 = vmul.f32 %v1752, %v2200
      %v2265 = vmul.f32 %v1753, %v2201
      %v2266 = vmul.f32 %v1754, %v2202
      %v2267 = vmul.f32 %v1755, %v2203
      %v2268 = vmul.f32 %v1756, %v2204
      %v2269 = vmul.f32 %v1757, %v2205
      %v2270 = vmul.f32 %v1758, %v2206
      %v2271 = vmul.f32 %v1759, %v2207
      %v2272 = vmul.f32 %v1760, %v2208
      %v2273 = vmul.f32 %v1761, %v2209
      %v2274 = vmul.f32 %v1762, %v2210
      %v2275 = vmul.f32 %v1763, %v2211
      %v2276 = vmul.f32 %v1764, %v2212
      %v2277 = vmul.f32 %v1765, %v2213
      %v2278 = vmul.f32 %v1766, %v2214
      %v2279 = vmul.f32 %v1767, %v2215
      %v2280 = vmul.f32 %v1768, %v2216
      %v2281 = vmul.f32 %v1769, %v2217
      %v2282 = vmul.f32 %v1770, %v2218
      %v2283 = vmul.f32 %v1771, %v2219
      %v2284 = vmul.f32 %v1772, %v2220
      %v2285 = vmul.f32 %v1773, %v2221
      %v2286 = vmul.f32 %v1774, %v2222
      %v2287 = vmul.f32 %v1775, %v2223
      %v2288 = vmul.f32 %v1776, %v2224
      %v2289 = vmul.f32 %v1777, %v2225
      %v2290 = vmul.f32 %v1778, %v2226
      %v2291 = vmul.f32 %v1779, %v2227
      %v2292 = vmul.f32 %v1780, %v2228
      %v2293 = vmul.f32 %v1781, %v2229
      %v2294 = vmul.f32 %v1782, %v2230
      %v2295 = vmul.f32 %v1783, %v2231
      %v2296 = vmul.f32 %v1784, %v2232
      %v2297 = vmul.f32 %v1785, %v2233
      %v2298 = vmul.f32 %v1786, %v2234
      %v2299 = vld [vmem:[%s3] sm:$0x1]
      %v2301 = vlaneseq
      %v2302 = vshrl.u32 %v2301, 7
      %v2303 = vsub.s32 0, %v2302
      %v2304 = vrot.slane %v2299, %v2303
      %v2306 = vmul.f32 %v2235, %v2304
      %v2307 = vmul.f32 %v2236, %v2304
      %v2308 = vmul.f32 %v2237, %v2304
      %v2309 = vmul.f32 %v2238, %v2304
      %v2310 = vmul.f32 %v2239, %v2304
      %v2311 = vmul.f32 %v2240, %v2304
      %v2312 = vmul.f32 %v2241, %v2304
      %v2313 = vmul.f32 %v2242, %v2304
      %v2314 = vmul.f32 %v2243, %v2304
      %v2315 = vmul.f32 %v2244, %v2304
      %v2316 = vmul.f32 %v2245, %v2304
      %v2317 = vmul.f32 %v2246, %v2304
      %v2318 = vmul.f32 %v2247, %v2304
      %v2319 = vmul.f32 %v2248, %v2304
      %v2320 = vmul.f32 %v2249, %v2304
      %v2321 = vmul.f32 %v2250, %v2304
      %v2322 = vmul.f32 %v2251, %v2304
      %v2323 = vmul.f32 %v2252, %v2304
      %v2324 = vmul.f32 %v2253, %v2304
      %v2325 = vmul.f32 %v2254, %v2304
      %v2326 = vmul.f32 %v2255, %v2304
      %v2327 = vmul.f32 %v2256, %v2304
      %v2328 = vmul.f32 %v2257, %v2304
      %v2329 = vmul.f32 %v2258, %v2304
      %v2330 = vmul.f32 %v2259, %v2304
      %v2331 = vmul.f32 %v2260, %v2304
      %v2332 = vmul.f32 %v2261, %v2304
      %v2333 = vmul.f32 %v2262, %v2304
      %v2334 = vmul.f32 %v2263, %v2304
      %v2335 = vmul.f32 %v2264, %v2304
      %v2336 = vmul.f32 %v2265, %v2304
      %v2337 = vmul.f32 %v2266, %v2304
      %v2338 = vmul.f32 %v2267, %v2304
      %v2339 = vmul.f32 %v2268, %v2304
      %v2340 = vmul.f32 %v2269, %v2304
      %v2341 = vmul.f32 %v2270, %v2304
      %v2342 = vmul.f32 %v2271, %v2304
      %v2343 = vmul.f32 %v2272, %v2304
      %v2344 = vmul.f32 %v2273, %v2304
      %v2345 = vmul.f32 %v2274, %v2304
      %v2346 = vmul.f32 %v2275, %v2304
      %v2347 = vmul.f32 %v2276, %v2304
      %v2348 = vmul.f32 %v2277, %v2304
      %v2349 = vmul.f32 %v2278, %v2304
      %v2350 = vmul.f32 %v2279, %v2304
      %v2351 = vmul.f32 %v2280, %v2304
      %v2352 = vmul.f32 %v2281, %v2304
      %v2353 = vmul.f32 %v2282, %v2304
      %v2354 = vmul.f32 %v2283, %v2304
      %v2355 = vmul.f32 %v2284, %v2304
      %v2356 = vmul.f32 %v2285, %v2304
      %v2357 = vmul.f32 %v2286, %v2304
      %v2358 = vmul.f32 %v2287, %v2304
      %v2359 = vmul.f32 %v2288, %v2304
      %v2360 = vmul.f32 %v2289, %v2304
      %v2361 = vmul.f32 %v2290, %v2304
      %v2362 = vmul.f32 %v2291, %v2304
      %v2363 = vmul.f32 %v2292, %v2304
      %v2364 = vmul.f32 %v2293, %v2304
      %v2365 = vmul.f32 %v2294, %v2304
      %v2366 = vmul.f32 %v2295, %v2304
      %v2367 = vmul.f32 %v2296, %v2304
      %v2368 = vmul.f32 %v2297, %v2304
      %v2369 = vmul.f32 %v2298, %v2304
      %v2370 = vld [vmem:[%s4] sm:$0x1]
      %v2372 = vlaneseq
      %v2373 = vshrl.u32 %v2372, 7
      %v2374 = vsub.s32 0, %v2373
      %v2375 = vrot.slane %v2370, %v2374
      %v2377 = vadd.f32 %v2306, %v2375
      %v2378 = vadd.f32 %v2307, %v2375
      %v2379 = vadd.f32 %v2308, %v2375
      %v2380 = vadd.f32 %v2309, %v2375
      %v2381 = vadd.f32 %v2310, %v2375
      %v2382 = vadd.f32 %v2311, %v2375
      %v2383 = vadd.f32 %v2312, %v2375
      %v2384 = vadd.f32 %v2313, %v2375
      %v2385 = vadd.f32 %v2314, %v2375
      %v2386 = vadd.f32 %v2315, %v2375
      %v2387 = vadd.f32 %v2316, %v2375
      %v2388 = vadd.f32 %v2317, %v2375
      %v2389 = vadd.f32 %v2318, %v2375
      %v2390 = vadd.f32 %v2319, %v2375
      %v2391 = vadd.f32 %v2320, %v2375
      %v2392 = vadd.f32 %v2321, %v2375
      %v2393 = vadd.f32 %v2322, %v2375
      %v2394 = vadd.f32 %v2323, %v2375
      %v2395 = vadd.f32 %v2324, %v2375
      %v2396 = vadd.f32 %v2325, %v2375
      %v2397 = vadd.f32 %v2326, %v2375
      %v2398 = vadd.f32 %v2327, %v2375
      %v2399 = vadd.f32 %v2328, %v2375
      %v2400 = vadd.f32 %v2329, %v2375
      %v2401 = vadd.f32 %v2330, %v2375
      %v2402 = vadd.f32 %v2331, %v2375
      %v2403 = vadd.f32 %v2332, %v2375
      %v2404 = vadd.f32 %v2333, %v2375
      %v2405 = vadd.f32 %v2334, %v2375
      %v2406 = vadd.f32 %v2335, %v2375
      %v2407 = vadd.f32 %v2336, %v2375
      %v2408 = vadd.f32 %v2337, %v2375
      %v2409 = vadd.f32 %v2338, %v2375
      %v2410 = vadd.f32 %v2339, %v2375
      %v2411 = vadd.f32 %v2340, %v2375
      %v2412 = vadd.f32 %v2341, %v2375
      %v2413 = vadd.f32 %v2342, %v2375
      %v2414 = vadd.f32 %v2343, %v2375
      %v2415 = vadd.f32 %v2344, %v2375
      %v2416 = vadd.f32 %v2345, %v2375
      %v2417 = vadd.f32 %v2346, %v2375
      %v2418 = vadd.f32 %v2347, %v2375
      %v2419 = vadd.f32 %v2348, %v2375
      %v2420 = vadd.f32 %v2349, %v2375
      %v2421 = vadd.f32 %v2350, %v2375
      %v2422 = vadd.f32 %v2351, %v2375
      %v2423 = vadd.f32 %v2352, %v2375
      %v2424 = vadd.f32 %v2353, %v2375
      %v2425 = vadd.f32 %v2354, %v2375
      %v2426 = vadd.f32 %v2355, %v2375
      %v2427 = vadd.f32 %v2356, %v2375
      %v2428 = vadd.f32 %v2357, %v2375
      %v2429 = vadd.f32 %v2358, %v2375
      %v2430 = vadd.f32 %v2359, %v2375
      %v2431 = vadd.f32 %v2360, %v2375
      %v2432 = vadd.f32 %v2361, %v2375
      %v2433 = vadd.f32 %v2362, %v2375
      %v2434 = vadd.f32 %v2363, %v2375
      %v2435 = vadd.f32 %v2364, %v2375
      %v2436 = vadd.f32 %v2365, %v2375
      %v2437 = vadd.f32 %v2366, %v2375
      %v2438 = vadd.f32 %v2367, %v2375
      %v2439 = vadd.f32 %v2368, %v2375
      %v2440 = vadd.f32 %v2369, %v2375
      %2441 = vst.msk [vmem:[%s349] sm:$0xff] %vm427, %v1403
      %2442 = vst.msk [vmem:[%s349 + $0x8] sm:$0xff] %vm427, %v1404
      %2443 = vst.msk [vmem:[%s349 + $0x10] sm:$0xff] %vm427, %v1405
      %2444 = vst.msk [vmem:[%s349 + $0x18] sm:$0xff] %vm427, %v1406
      %2445 = vst.msk [vmem:[%s349 + $0x20] sm:$0xff] %vm427, %v1407
      %2446 = vst.msk [vmem:[%s349 + $0x28] sm:$0xff] %vm427, %v1408
      %2447 = vst.msk [vmem:[%s349 + $0x30] sm:$0xff] %vm427, %v1409
      %2448 = vst.msk [vmem:[%s349 + $0x38] sm:$0xff] %vm427, %v1410
      %2449 = vst.msk [vmem:[%s349 + $0x40] sm:$0xff] %vm427, %v1411
      %2450 = vst.msk [vmem:[%s349 + $0x48] sm:$0xff] %vm427, %v1412
      %2451 = vst.msk [vmem:[%s349 + $0x50] sm:$0xff] %vm427, %v1413
      %2452 = vst.msk [vmem:[%s349 + $0x58] sm:$0xff] %vm427, %v1414
      %2453 = vst.msk [vmem:[%s349 + $0x60] sm:$0xff] %vm427, %v1415
      %2454 = vst.msk [vmem:[%s349 + $0x68] sm:$0xff] %vm427, %v1416
      %2455 = vst.msk [vmem:[%s349 + $0x70] sm:$0xff] %vm427, %v1417
      %2456 = vst.msk [vmem:[%s349 + $0x78] sm:$0xff] %vm427, %v1418
      %2457 = vst.msk [vmem:[%s349 + $0x80] sm:$0xff] %vm427, %v1419
      %2458 = vst.msk [vmem:[%s349 + $0x88] sm:$0xff] %vm427, %v1420
      %2459 = vst.msk [vmem:[%s349 + $0x90] sm:$0xff] %vm427, %v1421
      %2460 = vst.msk [vmem:[%s349 + $0x98] sm:$0xff] %vm427, %v1422
      %2461 = vst.msk [vmem:[%s349 + $0xa0] sm:$0xff] %vm427, %v1423
      %2462 = vst.msk [vmem:[%s349 + $0xa8] sm:$0xff] %vm427, %v1424
      %2463 = vst.msk [vmem:[%s349 + $0xb0] sm:$0xff] %vm427, %v1425
      %2464 = vst.msk [vmem:[%s349 + $0xb8] sm:$0xff] %vm427, %v1426
      %2465 = vst.msk [vmem:[%s349 + $0xc0] sm:$0xff] %vm427, %v1427
      %2466 = vst.msk [vmem:[%s349 + $0xc8] sm:$0xff] %vm427, %v1428
      %2467 = vst.msk [vmem:[%s349 + $0xd0] sm:$0xff] %vm427, %v1429
      %2468 = vst.msk [vmem:[%s349 + $0xd8] sm:$0xff] %vm427, %v1430
      %2469 = vst.msk [vmem:[%s349 + $0xe0] sm:$0xff] %vm427, %v1431
      %2470 = vst.msk [vmem:[%s349 + $0xe8] sm:$0xff] %vm427, %v1432
      %2471 = vst.msk [vmem:[%s349 + $0xf0] sm:$0xff] %vm427, %v1433
      %2472 = vst.msk [vmem:[%s349 + $0xf8] sm:$0xff] %vm427, %v1434
      %2473 = vst.msk [vmem:[%s349 + $0x100] sm:$0xff] %vm427, %v1435
      %2474 = vst.msk [vmem:[%s349 + $0x108] sm:$0xff] %vm427, %v1436
      %2475 = vst.msk [vmem:[%s349 + $0x110] sm:$0xff] %vm427, %v1437
      %2476 = vst.msk [vmem:[%s349 + $0x118] sm:$0xff] %vm427, %v1438
      %2477 = vst.msk [vmem:[%s349 + $0x120] sm:$0xff] %vm427, %v1439
      %2478 = vst.msk [vmem:[%s349 + $0x128] sm:$0xff] %vm427, %v1440
      %2479 = vst.msk [vmem:[%s349 + $0x130] sm:$0xff] %vm427, %v1441
      %2480 = vst.msk [vmem:[%s349 + $0x138] sm:$0xff] %vm427, %v1442
      %2481 = vst.msk [vmem:[%s349 + $0x140] sm:$0xff] %vm427, %v1443
      %2482 = vst.msk [vmem:[%s349 + $0x148] sm:$0xff] %vm427, %v1444
      %2483 = vst.msk [vmem:[%s349 + $0x150] sm:$0xff] %vm427, %v1445
      %2484 = vst.msk [vmem:[%s349 + $0x158] sm:$0xff] %vm427, %v1446
      %2485 = vst.msk [vmem:[%s349 + $0x160] sm:$0xff] %vm427, %v1447
      %2486 = vst.msk [vmem:[%s349 + $0x168] sm:$0xff] %vm427, %v1448
      %2487 = vst.msk [vmem:[%s349 + $0x170] sm:$0xff] %vm427, %v1449
      %2488 = vst.msk [vmem:[%s349 + $0x178] sm:$0xff] %vm427, %v1450
      %2489 = vst.msk [vmem:[%s349 + $0x180] sm:$0xff] %vm427, %v1451
      %2490 = vst.msk [vmem:[%s349 + $0x188] sm:$0xff] %vm427, %v1452
      %2491 = vst.msk [vmem:[%s349 + $0x190] sm:$0xff] %vm427, %v1453
      %2492 = vst.msk [vmem:[%s349 + $0x198] sm:$0xff] %vm427, %v1454
      %2493 = vst.msk [vmem:[%s349 + $0x1a0] sm:$0xff] %vm427, %v1455
      %2494 = vst.msk [vmem:[%s349 + $0x1a8] sm:$0xff] %vm427, %v1456
      %2495 = vst.msk [vmem:[%s349 + $0x1b0] sm:$0xff] %vm427, %v1457
      %2496 = vst.msk [vmem:[%s349 + $0x1b8] sm:$0xff] %vm427, %v1458
      %2497 = vst.msk [vmem:[%s349 + $0x1c0] sm:$0xff] %vm427, %v1459
      %2498 = vst.msk [vmem:[%s349 + $0x1c8] sm:$0xff] %vm427, %v1460
      %2499 = vst.msk [vmem:[%s349 + $0x1d0] sm:$0xff] %vm427, %v1461
      %2500 = vst.msk [vmem:[%s349 + $0x1d8] sm:$0xff] %vm427, %v1462
      %2501 = vst.msk [vmem:[%s349 + $0x1e0] sm:$0xff] %vm427, %v1463
      %2502 = vst.msk [vmem:[%s349 + $0x1e8] sm:$0xff] %vm427, %v1464
      %2503 = vst.msk [vmem:[%s349 + $0x1f0] sm:$0xff] %vm427, %v1465
      %2504 = vst.msk [vmem:[%s349 + $0x1f8] sm:$0xff] %vm427, %v1466
      %v2505 = vld [vmem:[%s5] sm:$0xff]
      %v2506 = vld [vmem:[%s5 + $0x8] sm:$0xff]
      %v2507 = vld [vmem:[%s5 + $0x10] sm:$0xff]
      %v2508 = vld [vmem:[%s5 + $0x18] sm:$0xff]
      %v2510 = vsel %vm427, %v2377, 0
      %v2513 = vsel %vm427, %v2378, 0
      %v2516 = vsel %vm427, %v2379, 0
      %v2519 = vsel %vm427, %v2380, 0
      %v2522 = vsel %vm427, %v2381, 0
      %v2525 = vsel %vm427, %v2382, 0
      %v2528 = vsel %vm427, %v2383, 0
      %v2531 = vsel %vm427, %v2384, 0
      %v2534 = vsel %vm427, %v2385, 0
      %v2537 = vsel %vm427, %v2386, 0
      %v2540 = vsel %vm427, %v2387, 0
      %v2543 = vsel %vm427, %v2388, 0
      %v2546 = vsel %vm427, %v2389, 0
      %v2549 = vsel %vm427, %v2390, 0
      %v2552 = vsel %vm427, %v2391, 0
      %v2555 = vsel %vm427, %v2392, 0
      %v2558 = vsel %vm427, %v2393, 0
      %v2561 = vsel %vm427, %v2394, 0
      %v2564 = vsel %vm427, %v2395, 0
      %v2567 = vsel %vm427, %v2396, 0
      %v2570 = vsel %vm427, %v2397, 0
      %v2573 = vsel %vm427, %v2398, 0
      %v2576 = vsel %vm427, %v2399, 0
      %v2579 = vsel %vm427, %v2400, 0
      %v2582 = vsel %vm427, %v2401, 0
      %v2585 = vsel %vm427, %v2402, 0
      %v2588 = vsel %vm427, %v2403, 0
      %v2591 = vsel %vm427, %v2404, 0
      %v2594 = vsel %vm427, %v2405, 0
      %v2597 = vsel %vm427, %v2406, 0
      %v2600 = vsel %vm427, %v2407, 0
      %v2603 = vsel %vm427, %v2408, 0
      %v2606 = vsel %vm427, %v2409, 0
      %v2609 = vsel %vm427, %v2410, 0
      %v2612 = vsel %vm427, %v2411, 0
      %v2615 = vsel %vm427, %v2412, 0
      %v2618 = vsel %vm427, %v2413, 0
      %v2621 = vsel %vm427, %v2414, 0
      %v2624 = vsel %vm427, %v2415, 0
      %v2627 = vsel %vm427, %v2416, 0
      %v2630 = vsel %vm427, %v2417, 0
      %v2633 = vsel %vm427, %v2418, 0
      %v2636 = vsel %vm427, %v2419, 0
      %v2639 = vsel %vm427, %v2420, 0
      %v2642 = vsel %vm427, %v2421, 0
      %v2645 = vsel %vm427, %v2422, 0
      %v2648 = vsel %vm427, %v2423, 0
      %v2651 = vsel %vm427, %v2424, 0
      %v2654 = vsel %vm427, %v2425, 0
      %v2657 = vsel %vm427, %v2426, 0
      %v2660 = vsel %vm427, %v2427, 0
      %v2663 = vsel %vm427, %v2428, 0
      %v2666 = vsel %vm427, %v2429, 0
      %v2669 = vsel %vm427, %v2430, 0
      %v2672 = vsel %vm427, %v2431, 0
      %v2675 = vsel %vm427, %v2432, 0
      %v2678 = vsel %vm427, %v2433, 0
      %v2681 = vsel %vm427, %v2434, 0
      %v2684 = vsel %vm427, %v2435, 0
      %v2687 = vsel %vm427, %v2436, 0
      %v2690 = vsel %vm427, %v2437, 0
      %v2693 = vsel %vm427, %v2438, 0
      %v2696 = vsel %vm427, %v2439, 0
      %v2699 = vsel %vm427, %v2440, 0
      %2701 = vmatprep.subr.mxu0 0.0
      %2702 = vmatpush1.msra.mxu0 %v2505
      %2703 = vmatprep.subr.mxu0 0.0
      %2704 = vmatpush1.msra.mxu0 %v2506
      %2705 = vmatprep.subr.mxu0 0.0
      %2706 = vmatpush1.msra.mxu0 %v2507
      %2707 = vmatprep.subr.mxu0 0.0
      %2708 = vmatpush1.msra.mxu0 %v2508
      %2709 = vmatprep.subr.mxu0 0.0
      %2710 = vmatpush1.msra.mxu0 0.0
      %2711 = vmatprep.subr.mxu0 0.0
      %2712 = vmatpush1.msra.mxu0 0.0
      %2713 = vmatprep.subr.mxu0 0.0
      %2714 = vmatpush1.msra.mxu0 0.0
      %2715 = vmatprep.subr.mxu0 0.0
      %2716 = vmatpush1.msra.mxu0 0.0
      %2717 = vmatprep.subr.mxu0 0.0
      %2718 = vmatpush1.msra.mxu0 0.0
      %2719 = vmatprep.subr.mxu0 0.0
      %2720 = vmatpush1.msra.mxu0 0.0
      %2721 = vmatprep.subr.mxu0 0.0
      %2722 = vmatpush1.msra.mxu0 0.0
      %2723 = vmatprep.subr.mxu0 0.0
      %2724 = vmatpush1.msra.mxu0 0.0
      %2725 = vmatprep.subr.mxu0 0.0
      %2726 = vmatpush1.msra.mxu0 0.0
      %2727 = vmatprep.subr.mxu0 0.0
      %2728 = vmatpush1.msra.mxu0 0.0
      %2729 = vmatprep.subr.mxu0 0.0
      %2730 = vmatpush1.msra.mxu0 0.0
      %2731 = vmatprep.subr.mxu0 0.0
      %2732 = vmatpush1.msra.mxu0 0.0
      %2733 = vmatprep.subr.mxu0 0.0
      %2734 = vmatpush1.msra.mxu0 0.0
      %2735 = vmatprep.subr.mxu0 0.0
      %2736 = vmatpush1.msra.mxu0 0.0
      %2737 = vmatprep.subr.mxu0 0.0
      %2738 = vmatpush1.msra.mxu0 0.0
      %2739 = vmatprep.subr.mxu0 0.0
      %2740 = vmatpush1.msra.mxu0 0.0
      %2741 = vmatprep.subr.mxu0 0.0
      %2742 = vmatpush1.msra.mxu0 0.0
      %2743 = vmatprep.subr.mxu0 0.0
      %2744 = vmatpush1.msra.mxu0 0.0
      %2745 = vmatprep.subr.mxu0 0.0
      %2746 = vmatpush1.msra.mxu0 0.0
      %2747 = vmatprep.subr.mxu0 0.0
      %2748 = vmatpush1.msra.mxu0 0.0
      %2749 = vmatprep.subr.mxu0 0.0
      %2750 = vmatpush1.msra.mxu0 0.0
      %2751 = vmatprep.subr.mxu0 0.0
      %2752 = vmatpush1.msra.mxu0 0.0
      %2753 = vmatprep.subr.mxu0 0.0
      %2754 = vmatpush1.msra.mxu0 0.0
      %2755 = vmatprep.subr.mxu0 0.0
      %2756 = vmatpush1.msra.mxu0 0.0
      %2757 = vmatprep.subr.mxu0 0.0
      %2758 = vmatpush1.msra.mxu0 0.0
      %2759 = vmatprep.subr.mxu0 0.0
      %2760 = vmatpush1.msra.mxu0 0.0
      %2761 = vmatprep.subr.mxu0 0.0
      %2762 = vmatpush1.msra.mxu0 0.0
      %2763 = vmatprep.subr.mxu0 0.0
      %2764 = vmatpush1.msra.mxu0 0.0
      %2765 = vmatprep.mubr.f32.mxu0 0.0
      %2766 = vmatmul.mubr.f32.gmra.mrb[0].mxu0 %v2510
      %v2767 = vpop.f32.mrb[0].mxu0
      %v2768 = vadd.f32 0.0, %v2767
      %v2769 = vpop.f32.mrb[0].mxu0
      %2770 = vmatprep.mubr.f32.mxu0 0.0
      %2771 = vmatmul.mubr.f32.gmra.mrb[0].mxu0 %v2513
      %v2772 = vpop.f32.mrb[0].mxu0
      %v2773 = vadd.f32 0.0, %v2772
      %v2774 = vpop.f32.mrb[0].mxu0
      %2775 = vmatprep.mubr.f32.mxu0 0.0
      %2776 = vmatmul.mubr.f32.gmra.mrb[0].mxu0 %v2516
      %v2777 = vpop.f32.mrb[0].mxu0
      %v2778 = vadd.f32 0.0, %v2777
      %v2779 = vpop.f32.mrb[0].mxu0
      %2780 = vmatprep.mubr.f32.mxu0 0.0
      %2781 = vmatmul.mubr.f32.gmra.mrb[0].mxu0 %v2519
      %v2782 = vpop.f32.mrb[0].mxu0
      %v2783 = vadd.f32 0.0, %v2782
      %v2784 = vpop.f32.mrb[0].mxu0
      %2785 = vmatprep.mubr.f32.mxu0 0.0
      %2786 = vmatmul.mubr.f32.gmra.mrb[0].mxu0 %v2522
      %v2787 = vpop.f32.mrb[0].mxu0
      %v2788 = vadd.f32 0.0, %v2787
      %v2789 = vpop.f32.mrb[0].mxu0
      %2790 = vmatprep.mubr.f32.mxu0 0.0
      %2791 = vmatmul.mubr.f32.gmra.mrb[0].mxu0 %v2525
      %v2792 = vpop.f32.mrb[0].mxu0
      %v2793 = vadd.f32 0.0, %v2792
      %v2794 = vpop.f32.mrb[0].mxu0
      %2795 = vmatprep.mubr.f32.mxu0 0.0
      %2796 = vmatmul.mubr.f32.gmra.mrb[0].mxu0 %v2528
      %v2797 = vpop.f32.mrb[0].mxu0
      %v2798 = vadd.f32 0.0, %v2797
      %v2799 = vpop.f32.mrb[0].mxu0
      %2800 = vmatprep.mubr.f32.mxu0 0.0
      %2801 = vmatmul.mubr.f32.gmra.mrb[0].mxu0 %v2531
      %v2802 = vpop.f32.mrb[0].mxu0
      %v2803 = vadd.f32 0.0, %v2802
      %v2804 = vpop.f32.mrb[0].mxu0
      %2805 = vmatprep.mubr.f32.mxu0 0.0
      %2806 = vmatmul.mubr.f32.gmra.mrb[0].mxu0 %v2534
      %v2807 = vpop.f32.mrb[0].mxu0
      %v2808 = vadd.f32 0.0, %v2807
      %v2809 = vpop.f32.mrb[0].mxu0
      %2810 = vmatprep.mubr.f32.mxu0 0.0
      %2811 = vmatmul.mubr.f32.gmra.mrb[0].mxu0 %v2537
      %v2812 = vpop.f32.mrb[0].mxu0
      %v2813 = vadd.f32 0.0, %v2812
      %v2814 = vpop.f32.mrb[0].mxu0
      %2815 = vmatprep.mubr.f32.mxu0 0.0
      %2816 = vmatmul.mubr.f32.gmra.mrb[0].mxu0 %v2540
      %v2817 = vpop.f32.mrb[0].mxu0
      %v2818 = vadd.f32 0.0, %v2817
      %v2819 = vpop.f32.mrb[0].mxu0
      %2820 = vmatprep.mubr.f32.mxu0 0.0
      %2821 = vmatmul.mubr.f32.gmra.mrb[0].mxu0 %v2543
      %v2822 = vpop.f32.mrb[0].mxu0
      %v2823 = vadd.f32 0.0, %v2822
      %v2824 = vpop.f32.mrb[0].mxu0
      %2825 = vmatprep.mubr.f32.mxu0 0.0
      %2826 = vmatmul.mubr.f32.gmra.mrb[0].mxu0 %v2546
      %v2827 = vpop.f32.mrb[0].mxu0
      %v2828 = vadd.f32 0.0, %v2827
      %v2829 = vpop.f32.mrb[0].mxu0
      %2830 = vmatprep.mubr.f32.mxu0 0.0
      %2831 = vmatmul.mubr.f32.gmra.mrb[0].mxu0 %v2549
      %v2832 = vpop.f32.mrb[0].mxu0
      %v2833 = vadd.f32 0.0, %v2832
      %v2834 = vpop.f32.mrb[0].mxu0
      %2835 = vmatprep.mubr.f32.mxu0 0.0
      %2836 = vmatmul.mubr.f32.gmra.mrb[0].mxu0 %v2552
      %v2837 = vpop.f32.mrb[0].mxu0
      %v2838 = vadd.f32 0.0, %v2837
      %v2839 = vpop.f32.mrb[0].mxu0
      %2840 = vmatprep.mubr.f32.mxu0 0.0
      %2841 = vmatmul.mubr.f32.gmra.mrb[0].mxu0 %v2555
      %v2842 = vpop.f32.mrb[0].mxu0
      %v2843 = vadd.f32 0.0, %v2842
      %v2844 = vpop.f32.mrb[0].mxu0
      %2845 = vmatprep.mubr.f32.mxu0 0.0
      %2846 = vmatmul.mubr.f32.gmra.mrb[0].mxu0 %v2558
      %v2847 = vpop.f32.mrb[0].mxu0
      %v2848 = vadd.f32 0.0, %v2847
      %v2849 = vpop.f32.mrb[0].mxu0
      %2850 = vmatprep.mubr.f32.mxu0 0.0
      %2851 = vmatmul.mubr.f32.gmra.mrb[0].mxu0 %v2561
      %v2852 = vpop.f32.mrb[0].mxu0
      %v2853 = vadd.f32 0.0, %v2852
      %v2854 = vpop.f32.mrb[0].mxu0
      %2855 = vmatprep.mubr.f32.mxu0 0.0
      %2856 = vmatmul.mubr.f32.gmra.mrb[0].mxu0 %v2564
      %v2857 = vpop.f32.mrb[0].mxu0
      %v2858 = vadd.f32 0.0, %v2857
      %v2859 = vpop.f32.mrb[0].mxu0
      %2860 = vmatprep.mubr.f32.mxu0 0.0
      %2861 = vmatmul.mubr.f32.gmra.mrb[0].mxu0 %v2567
      %v2862 = vpop.f32.mrb[0].mxu0
      %v2863 = vadd.f32 0.0, %v2862
      %v2864 = vpop.f32.mrb[0].mxu0
      %2865 = vmatprep.mubr.f32.mxu0 0.0
      %2866 = vmatmul.mubr.f32.gmra.mrb[0].mxu0 %v2570
      %v2867 = vpop.f32.mrb[0].mxu0
      %v2868 = vadd.f32 0.0, %v2867
      %v2869 = vpop.f32.mrb[0].mxu0
      %2870 = vmatprep.mubr.f32.mxu0 0.0
      %2871 = vmatmul.mubr.f32.gmra.mrb[0].mxu0 %v2573
      %v2872 = vpop.f32.mrb[0].mxu0
      %v2873 = vadd.f32 0.0, %v2872
      %v2874 = vpop.f32.mrb[0].mxu0
      %2875 = vmatprep.mubr.f32.mxu0 0.0
      %2876 = vmatmul.mubr.f32.gmra.mrb[0].mxu0 %v2576
      %v2877 = vpop.f32.mrb[0].mxu0
      %v2878 = vadd.f32 0.0, %v2877
      %v2879 = vpop.f32.mrb[0].mxu0
      %2880 = vmatprep.mubr.f32.mxu0 0.0
      %2881 = vmatmul.mubr.f32.gmra.mrb[0].mxu0 %v2579
      %v2882 = vpop.f32.mrb[0].mxu0
      %v2883 = vadd.f32 0.0, %v2882
      %v2884 = vpop.f32.mrb[0].mxu0
      %2885 = vmatprep.mubr.f32.mxu0 0.0
      %2886 = vmatmul.mubr.f32.gmra.mrb[0].mxu0 %v2582
      %v2887 = vpop.f32.mrb[0].mxu0
      %v2888 = vadd.f32 0.0, %v2887
      %v2889 = vpop.f32.mrb[0].mxu0
      %2890 = vmatprep.mubr.f32.mxu0 0.0
      %2891 = vmatmul.mubr.f32.gmra.mrb[0].mxu0 %v2585
      %v2892 = vpop.f32.mrb[0].mxu0
      %v2893 = vadd.f32 0.0, %v2892
      %v2894 = vpop.f32.mrb[0].mxu0
      %2895 = vmatprep.mubr.f32.mxu0 0.0
      %2896 = vmatmul.mubr.f32.gmra.mrb[0].mxu0 %v2588
      %v2897 = vpop.f32.mrb[0].mxu0
      %v2898 = vadd.f32 0.0, %v2897
      %v2899 = vpop.f32.mrb[0].mxu0
      %2900 = vmatprep.mubr.f32.mxu0 0.0
      %2901 = vmatmul.mubr.f32.gmra.mrb[0].mxu0 %v2591
      %v2902 = vpop.f32.mrb[0].mxu0
      %v2903 = vadd.f32 0.0, %v2902
      %v2904 = vpop.f32.mrb[0].mxu0
      %2905 = vmatprep.mubr.f32.mxu0 0.0
      %2906 = vmatmul.mubr.f32.gmra.mrb[0].mxu0 %v2594
      %v2907 = vpop.f32.mrb[0].mxu0
      %v2908 = vadd.f32 0.0, %v2907
      %v2909 = vpop.f32.mrb[0].mxu0
      %2910 = vmatprep.mubr.f32.mxu0 0.0
      %2911 = vmatmul.mubr.f32.gmra.mrb[0].mxu0 %v2597
      %v2912 = vpop.f32.mrb[0].mxu0
      %v2913 = vadd.f32 0.0, %v2912
      %v2914 = vpop.f32.mrb[0].mxu0
      %2915 = vmatprep.mubr.f32.mxu0 0.0
      %2916 = vmatmul.mubr.f32.gmra.mrb[0].mxu0 %v2600
      %v2917 = vpop.f32.mrb[0].mxu0
      %v2918 = vadd.f32 0.0, %v2917
      %v2919 = vpop.f32.mrb[0].mxu0
      %2920 = vmatprep.mubr.f32.mxu0 0.0
      %2921 = vmatmul.mubr.f32.gmra.mrb[0].mxu0 %v2603
      %v2922 = vpop.f32.mrb[0].mxu0
      %v2923 = vadd.f32 0.0, %v2922
      %v2924 = vpop.f32.mrb[0].mxu0
      %2925 = vmatprep.mubr.f32.mxu0 0.0
      %2926 = vmatmul.mubr.f32.gmra.mrb[0].mxu0 %v2606
      %v2927 = vpop.f32.mrb[0].mxu0
      %v2928 = vadd.f32 0.0, %v2927
      %v2929 = vpop.f32.mrb[0].mxu0
      %2930 = vmatprep.mubr.f32.mxu0 0.0
      %2931 = vmatmul.mubr.f32.gmra.mrb[0].mxu0 %v2609
      %v2932 = vpop.f32.mrb[0].mxu0
      %v2933 = vadd.f32 0.0, %v2932
      %v2934 = vpop.f32.mrb[0].mxu0
      %2935 = vmatprep.mubr.f32.mxu0 0.0
      %2936 = vmatmul.mubr.f32.gmra.mrb[0].mxu0 %v2612
      %v2937 = vpop.f32.mrb[0].mxu0
      %v2938 = vadd.f32 0.0, %v2937
      %v2939 = vpop.f32.mrb[0].mxu0
      %2940 = vmatprep.mubr.f32.mxu0 0.0
      %2941 = vmatmul.mubr.f32.gmra.mrb[0].mxu0 %v2615
      %v2942 = vpop.f32.mrb[0].mxu0
      %v2943 = vadd.f32 0.0, %v2942
      %v2944 = vpop.f32.mrb[0].mxu0
      %2945 = vmatprep.mubr.f32.mxu0 0.0
      %2946 = vmatmul.mubr.f32.gmra.mrb[0].mxu0 %v2618
      %v2947 = vpop.f32.mrb[0].mxu0
      %v2948 = vadd.f32 0.0, %v2947
      %v2949 = vpop.f32.mrb[0].mxu0
      %2950 = vmatprep.mubr.f32.mxu0 0.0
      %2951 = vmatmul.mubr.f32.gmra.mrb[0].mxu0 %v2621
      %v2952 = vpop.f32.mrb[0].mxu0
      %v2953 = vadd.f32 0.0, %v2952
      %v2954 = vpop.f32.mrb[0].mxu0
      %2955 = vmatprep.mubr.f32.mxu0 0.0
      %2956 = vmatmul.mubr.f32.gmra.mrb[0].mxu0 %v2624
      %v2957 = vpop.f32.mrb[0].mxu0
      %v2958 = vadd.f32 0.0, %v2957
      %v2959 = vpop.f32.mrb[0].mxu0
      %2960 = vmatprep.mubr.f32.mxu0 0.0
      %2961 = vmatmul.mubr.f32.gmra.mrb[0].mxu0 %v2627
      %v2962 = vpop.f32.mrb[0].mxu0
      %v2963 = vadd.f32 0.0, %v2962
      %v2964 = vpop.f32.mrb[0].mxu0
      %2965 = vmatprep.mubr.f32.mxu0 0.0
      %2966 = vmatmul.mubr.f32.gmra.mrb[0].mxu0 %v2630
      %v2967 = vpop.f32.mrb[0].mxu0
      %v2968 = vadd.f32 0.0, %v2967
      %v2969 = vpop.f32.mrb[0].mxu0
      %2970 = vmatprep.mubr.f32.mxu0 0.0
      %2971 = vmatmul.mubr.f32.gmra.mrb[0].mxu0 %v2633
      %v2972 = vpop.f32.mrb[0].mxu0
      %v2973 = vadd.f32 0.0, %v2972
      %v2974 = vpop.f32.mrb[0].mxu0
      %2975 = vmatprep.mubr.f32.mxu0 0.0
      %2976 = vmatmul.mubr.f32.gmra.mrb[0].mxu0 %v2636
      %v2977 = vpop.f32.mrb[0].mxu0
      %v2978 = vadd.f32 0.0, %v2977
      %v2979 = vpop.f32.mrb[0].mxu0
      %2980 = vmatprep.mubr.f32.mxu0 0.0
      %2981 = vmatmul.mubr.f32.gmra.mrb[0].mxu0 %v2639
      %v2982 = vpop.f32.mrb[0].mxu0
      %v2983 = vadd.f32 0.0, %v2982
      %v2984 = vpop.f32.mrb[0].mxu0
      %2985 = vmatprep.mubr.f32.mxu0 0.0
      %2986 = vmatmul.mubr.f32.gmra.mrb[0].mxu0 %v2642
      %v2987 = vpop.f32.mrb[0].mxu0
      %v2988 = vadd.f32 0.0, %v2987
      %v2989 = vpop.f32.mrb[0].mxu0
      %2990 = vmatprep.mubr.f32.mxu0 0.0
      %2991 = vmatmul.mubr.f32.gmra.mrb[0].mxu0 %v2645
      %v2992 = vpop.f32.mrb[0].mxu0
      %v2993 = vadd.f32 0.0, %v2992
      %v2994 = vpop.f32.mrb[0].mxu0
      %2995 = vmatprep.mubr.f32.mxu0 0.0
      %2996 = vmatmul.mubr.f32.gmra.mrb[0].mxu0 %v2648
      %v2997 = vpop.f32.mrb[0].mxu0
      %v2998 = vadd.f32 0.0, %v2997
      %v2999 = vpop.f32.mrb[0].mxu0
      %3000 = vmatprep.mubr.f32.mxu0 0.0
      %3001 = vmatmul.mubr.f32.gmra.mrb[0].mxu0 %v2651
      %v3002 = vpop.f32.mrb[0].mxu0
      %v3003 = vadd.f32 0.0, %v3002
      %v3004 = vpop.f32.mrb[0].mxu0
      %3005 = vmatprep.mubr.f32.mxu0 0.0
      %3006 = vmatmul.mubr.f32.gmra.mrb[0].mxu0 %v2654
      %v3007 = vpop.f32.mrb[0].mxu0
      %v3008 = vadd.f32 0.0, %v3007
      %v3009 = vpop.f32.mrb[0].mxu0
      %3010 = vmatprep.mubr.f32.mxu0 0.0
      %3011 = vmatmul.mubr.f32.gmra.mrb[0].mxu0 %v2657
      %v3012 = vpop.f32.mrb[0].mxu0
      %v3013 = vadd.f32 0.0, %v3012
      %v3014 = vpop.f32.mrb[0].mxu0
      %3015 = vmatprep.mubr.f32.mxu0 0.0
      %3016 = vmatmul.mubr.f32.gmra.mrb[0].mxu0 %v2660
      %v3017 = vpop.f32.mrb[0].mxu0
      %v3018 = vadd.f32 0.0, %v3017
      %v3019 = vpop.f32.mrb[0].mxu0
      %3020 = vmatprep.mubr.f32.mxu0 0.0
      %3021 = vmatmul.mubr.f32.gmra.mrb[0].mxu0 %v2663
      %v3022 = vpop.f32.mrb[0].mxu0
      %v3023 = vadd.f32 0.0, %v3022
      %v3024 = vpop.f32.mrb[0].mxu0
      %3025 = vmatprep.mubr.f32.mxu0 0.0
      %3026 = vmatmul.mubr.f32.gmra.mrb[0].mxu0 %v2666
      %v3027 = vpop.f32.mrb[0].mxu0
      %v3028 = vadd.f32 0.0, %v3027
      %v3029 = vpop.f32.mrb[0].mxu0
      %3030 = vmatprep.mubr.f32.mxu0 0.0
      %3031 = vmatmul.mubr.f32.gmra.mrb[0].mxu0 %v2669
      %v3032 = vpop.f32.mrb[0].mxu0
      %v3033 = vadd.f32 0.0, %v3032
      %v3034 = vpop.f32.mrb[0].mxu0
      %3035 = vmatprep.mubr.f32.mxu0 0.0
      %3036 = vmatmul.mubr.f32.gmra.mrb[0].mxu0 %v2672
      %v3037 = vpop.f32.mrb[0].mxu0
      %v3038 = vadd.f32 0.0, %v3037
      %v3039 = vpop.f32.mrb[0].mxu0
      %3040 = vmatprep.mubr.f32.mxu0 0.0
      %3041 = vmatmul.mubr.f32.gmra.mrb[0].mxu0 %v2675
      %v3042 = vpop.f32.mrb[0].mxu0
      %v3043 = vadd.f32 0.0, %v3042
      %v3044 = vpop.f32.mrb[0].mxu0
      %3045 = vmatprep.mubr.f32.mxu0 0.0
      %3046 = vmatmul.mubr.f32.gmra.mrb[0].mxu0 %v2678
      %v3047 = vpop.f32.mrb[0].mxu0
      %v3048 = vadd.f32 0.0, %v3047
      %v3049 = vpop.f32.mrb[0].mxu0
      %3050 = vmatprep.mubr.f32.mxu0 0.0
      %3051 = vmatmul.mubr.f32.gmra.mrb[0].mxu0 %v2681
      %v3052 = vpop.f32.mrb[0].mxu0
      %v3053 = vadd.f32 0.0, %v3052
      %v3054 = vpop.f32.mrb[0].mxu0
      %3055 = vmatprep.mubr.f32.mxu0 0.0
      %3056 = vmatmul.mubr.f32.gmra.mrb[0].mxu0 %v2684
      %v3057 = vpop.f32.mrb[0].mxu0
      %v3058 = vadd.f32 0.0, %v3057
      %v3059 = vpop.f32.mrb[0].mxu0
      %3060 = vmatprep.mubr.f32.mxu0 0.0
      %3061 = vmatmul.mubr.f32.gmra.mrb[0].mxu0 %v2687
      %v3062 = vpop.f32.mrb[0].mxu0
      %v3063 = vadd.f32 0.0, %v3062
      %v3064 = vpop.f32.mrb[0].mxu0
      %3065 = vmatprep.mubr.f32.mxu0 0.0
      %3066 = vmatmul.mubr.f32.gmra.mrb[0].mxu0 %v2690
      %v3067 = vpop.f32.mrb[0].mxu0
      %v3068 = vadd.f32 0.0, %v3067
      %v3069 = vpop.f32.mrb[0].mxu0
      %3070 = vmatprep.mubr.f32.mxu0 0.0
      %3071 = vmatmul.mubr.f32.gmra.mrb[0].mxu0 %v2693
      %v3072 = vpop.f32.mrb[0].mxu0
      %v3073 = vadd.f32 0.0, %v3072
      %v3074 = vpop.f32.mrb[0].mxu0
      %3075 = vmatprep.mubr.f32.mxu0 0.0
      %3076 = vmatmul.mubr.f32.gmra.mrb[0].mxu0 %v2696
      %v3077 = vpop.f32.mrb[0].mxu0
      %v3078 = vadd.f32 0.0, %v3077
      %v3079 = vpop.f32.mrb[0].mxu0
      %3080 = vmatprep.mubr.f32.mxu0 0.0
      %3081 = vmatmul.mubr.f32.gmra.mrb[0].mxu0 %v2699
      %v3082 = vpop.f32.mrb[0].mxu0
      %v3083 = vadd.f32 0.0, %v3082
      %v3084 = vpop.f32.mrb[0].mxu0
      %3085 = vdwg.mxu0
      %3086 = vst.msk [vmem:[%s355] sm:$0xff] %vm427, %v2768
      %3087 = vst.msk [vmem:[%s355 + $0x8] sm:$0xff] %vm427, %v2773
      %3088 = vst.msk [vmem:[%s355 + $0x10] sm:$0xff] %vm427, %v2778
      %3089 = vst.msk [vmem:[%s355 + $0x18] sm:$0xff] %vm427, %v2783
      %3090 = vst.msk [vmem:[%s355 + $0x20] sm:$0xff] %vm427, %v2788
      %3091 = vst.msk [vmem:[%s355 + $0x28] sm:$0xff] %vm427, %v2793
      %3092 = vst.msk [vmem:[%s355 + $0x30] sm:$0xff] %vm427, %v2798
      %3093 = vst.msk [vmem:[%s355 + $0x38] sm:$0xff] %vm427, %v2803
      %3094 = vst.msk [vmem:[%s355 + $0x40] sm:$0xff] %vm427, %v2808
      %3095 = vst.msk [vmem:[%s355 + $0x48] sm:$0xff] %vm427, %v2813
      %3096 = vst.msk [vmem:[%s355 + $0x50] sm:$0xff] %vm427, %v2818
      %3097 = vst.msk [vmem:[%s355 + $0x58] sm:$0xff] %vm427, %v2823
      %3098 = vst.msk [vmem:[%s355 + $0x60] sm:$0xff] %vm427, %v2828
      %3099 = vst.msk [vmem:[%s355 + $0x68] sm:$0xff] %vm427, %v2833
      %3100 = vst.msk [vmem:[%s355 + $0x70] sm:$0xff] %vm427, %v2838
      %3101 = vst.msk [vmem:[%s355 + $0x78] sm:$0xff] %vm427, %v2843
      %3102 = vst.msk [vmem:[%s355 + $0x80] sm:$0xff] %vm427, %v2848
      %3103 = vst.msk [vmem:[%s355 + $0x88] sm:$0xff] %vm427, %v2853
      %3104 = vst.msk [vmem:[%s355 + $0x90] sm:$0xff] %vm427, %v2858
      %3105 = vst.msk [vmem:[%s355 + $0x98] sm:$0xff] %vm427, %v2863
      %3106 = vst.msk [vmem:[%s355 + $0xa0] sm:$0xff] %vm427, %v2868
      %3107 = vst.msk [vmem:[%s355 + $0xa8] sm:$0xff] %vm427, %v2873
      %3108 = vst.msk [vmem:[%s355 + $0xb0] sm:$0xff] %vm427, %v2878
      %3109 = vst.msk [vmem:[%s355 + $0xb8] sm:$0xff] %vm427, %v2883
      %3110 = vst.msk [vmem:[%s355 + $0xc0] sm:$0xff] %vm427, %v2888
      %3111 = vst.msk [vmem:[%s355 + $0xc8] sm:$0xff] %vm427, %v2893
      %3112 = vst.msk [vmem:[%s355 + $0xd0] sm:$0xff] %vm427, %v2898
      %3113 = vst.msk [vmem:[%s355 + $0xd8] sm:$0xff] %vm427, %v2903
      %3114 = vst.msk [vmem:[%s355 + $0xe0] sm:$0xff] %vm427, %v2908
      %3115 = vst.msk [vmem:[%s355 + $0xe8] sm:$0xff] %vm427, %v2913
      %3116 = vst.msk [vmem:[%s355 + $0xf0] sm:$0xff] %vm427, %v2918
      %3117 = vst.msk [vmem:[%s355 + $0xf8] sm:$0xff] %vm427, %v2923
      %3118 = vst.msk [vmem:[%s355 + $0x100] sm:$0xff] %vm427, %v2928
      %3119 = vst.msk [vmem:[%s355 + $0x108] sm:$0xff] %vm427, %v2933
      %3120 = vst.msk [vmem:[%s355 + $0x110] sm:$0xff] %vm427, %v2938
      %3121 = vst.msk [vmem:[%s355 + $0x118] sm:$0xff] %vm427, %v2943
      %3122 = vst.msk [vmem:[%s355 + $0x120] sm:$0xff] %vm427, %v2948
      %3123 = vst.msk [vmem:[%s355 + $0x128] sm:$0xff] %vm427, %v2953
      %3124 = vst.msk [vmem:[%s355 + $0x130] sm:$0xff] %vm427, %v2958
      %3125 = vst.msk [vmem:[%s355 + $0x138] sm:$0xff] %vm427, %v2963
      %3126 = vst.msk [vmem:[%s355 + $0x140] sm:$0xff] %vm427, %v2968
      %3127 = vst.msk [vmem:[%s355 + $0x148] sm:$0xff] %vm427, %v2973
      %3128 = vst.msk [vmem:[%s355 + $0x150] sm:$0xff] %vm427, %v2978
      %3129 = vst.msk [vmem:[%s355 + $0x158] sm:$0xff] %vm427, %v2983
      %3130 = vst.msk [vmem:[%s355 + $0x160] sm:$0xff] %vm427, %v2988
      %3131 = vst.msk [vmem:[%s355 + $0x168] sm:$0xff] %vm427, %v2993
      %3132 = vst.msk [vmem:[%s355 + $0x170] sm:$0xff] %vm427, %v2998
      %3133 = vst.msk [vmem:[%s355 + $0x178] sm:$0xff] %vm427, %v3003
      %3134 = vst.msk [vmem:[%s355 + $0x180] sm:$0xff] %vm427, %v3008
      %3135 = vst.msk [vmem:[%s355 + $0x188] sm:$0xff] %vm427, %v3013
      %3136 = vst.msk [vmem:[%s355 + $0x190] sm:$0xff] %vm427, %v3018
      %3137 = vst.msk [vmem:[%s355 + $0x198] sm:$0xff] %vm427, %v3023
      %3138 = vst.msk [vmem:[%s355 + $0x1a0] sm:$0xff] %vm427, %v3028
      %3139 = vst.msk [vmem:[%s355 + $0x1a8] sm:$0xff] %vm427, %v3033
      %3140 = vst.msk [vmem:[%s355 + $0x1b0] sm:$0xff] %vm427, %v3038
      %3141 = vst.msk [vmem:[%s355 + $0x1b8] sm:$0xff] %vm427, %v3043
      %3142 = vst.msk [vmem:[%s355 + $0x1c0] sm:$0xff] %vm427, %v3048
      %3143 = vst.msk [vmem:[%s355 + $0x1c8] sm:$0xff] %vm427, %v3053
      %3144 = vst.msk [vmem:[%s355 + $0x1d0] sm:$0xff] %vm427, %v3058
      %3145 = vst.msk [vmem:[%s355 + $0x1d8] sm:$0xff] %vm427, %v3063
      %3146 = vst.msk [vmem:[%s355 + $0x1e0] sm:$0xff] %vm427, %v3068
      %3147 = vst.msk [vmem:[%s355 + $0x1e8] sm:$0xff] %vm427, %v3073
      %3148 = vst.msk [vmem:[%s355 + $0x1f0] sm:$0xff] %vm427, %v3078
      %3149 = vst.msk [vmem:[%s355 + $0x1f8] sm:$0xff] %vm427, %v3083
      %v3150 = vld [vmem:[%s6] sm:$0xff]
      %v3151 = vld [vmem:[%s6 + $0x8] sm:$0xff]
      %v3152 = vld [vmem:[%s6 + $0x10] sm:$0xff]
      %v3153 = vld [vmem:[%s6 + $0x18] sm:$0xff]
      %3154 = vmatprep.subr.mxu0 0.0
      %3155 = vmatpush1.msra.mxu0 %v3150
      %3156 = vmatprep.subr.mxu0 0.0
      %3157 = vmatpush1.msra.mxu0 %v3151
      %3158 = vmatprep.subr.mxu0 0.0
      %3159 = vmatpush1.msra.mxu0 %v3152
      %3160 = vmatprep.subr.mxu0 0.0
      %3161 = vmatpush1.msra.mxu0 %v3153
      %3162 = vmatprep.subr.mxu0 0.0
      %3163 = vmatpush1.msra.mxu0 0.0
      %3164 = vmatprep.subr.mxu0 0.0
      %3165 = vmatpush1.msra.mxu0 0.0
      %3166 = vmatprep.subr.mxu0 0.0
      %3167 = vmatpush1.msra.mxu0 0.0
      %3168 = vmatprep.subr.mxu0 0.0
      %3169 = vmatpush1.msra.mxu0 0.0
      %3170 = vmatprep.subr.mxu0 0.0
      %3171 = vmatpush1.msra.mxu0 0.0
      %3172 = vmatprep.subr.mxu0 0.0
      %3173 = vmatpush1.msra.mxu0 0.0
      %3174 = vmatprep.subr.mxu0 0.0
      %3175 = vmatpush1.msra.mxu0 0.0
      %3176 = vmatprep.subr.mxu0 0.0
      %3177 = vmatpush1.msra.mxu0 0.0
      %3178 = vmatprep.subr.mxu0 0.0
      %3179 = vmatpush1.msra.mxu0 0.0
      %3180 = vmatprep.subr.mxu0 0.0
      %3181 = vmatpush1.msra.mxu0 0.0
      %3182 = vmatprep.subr.mxu0 0.0
      %3183 = vmatpush1.msra.mxu0 0.0
      %3184 = vmatprep.subr.mxu0 0.0
      %3185 = vmatpush1.msra.mxu0 0.0
      %3186 = vmatprep.subr.mxu0 0.0
      %3187 = vmatpush1.msra.mxu0 0.0
      %3188 = vmatprep.subr.mxu0 0.0
      %3189 = vmatpush1.msra.mxu0 0.0
      %3190 = vmatprep.subr.mxu0 0.0
      %3191 = vmatpush1.msra.mxu0 0.0
      %3192 = vmatprep.subr.mxu0 0.0
      %3193 = vmatpush1.msra.mxu0 0.0
      %3194 = vmatprep.subr.mxu0 0.0
      %3195 = vmatpush1.msra.mxu0 0.0
      %3196 = vmatprep.subr.mxu0 0.0
      %3197 = vmatpush1.msra.mxu0 0.0
      %3198 = vmatprep.subr.mxu0 0.0
      %3199 = vmatpush1.msra.mxu0 0.0
      %3200 = vmatprep.subr.mxu0 0.0
      %3201 = vmatpush1.msra.mxu0 0.0
      %3202 = vmatprep.subr.mxu0 0.0
      %3203 = vmatpush1.msra.mxu0 0.0
      %3204 = vmatprep.subr.mxu0 0.0
      %3205 = vmatpush1.msra.mxu0 0.0
      %3206 = vmatprep.subr.mxu0 0.0
      %3207 = vmatpush1.msra.mxu0 0.0
      %3208 = vmatprep.subr.mxu0 0.0
      %3209 = vmatpush1.msra.mxu0 0.0
      %3210 = vmatprep.subr.mxu0 0.0
      %3211 = vmatpush1.msra.mxu0 0.0
      %3212 = vmatprep.subr.mxu0 0.0
      %3213 = vmatpush1.msra.mxu0 0.0
      %3214 = vmatprep.subr.mxu0 0.0
      %3215 = vmatpush1.msra.mxu0 0.0
      %3216 = vmatprep.subr.mxu0 0.0
      %3217 = vmatpush1.msra.mxu0 0.0
      %3218 = vmatprep.mubr.f32.mxu0 0.0
      %3219 = vmatmul.mubr.f32.gmra.mrb[0].mxu0 %v2510
      %v3220 = vpop.f32.mrb[0].mxu0
      %v3221 = vadd.f32 0.0, %v3220
      %v3222 = vpop.f32.mrb[0].mxu0
      %3223 = vmatprep.mubr.f32.mxu0 0.0
      %3224 = vmatmul.mubr.f32.gmra.mrb[0].mxu0 %v2513
      %v3225 = vpop.f32.mrb[0].mxu0
      %v3226 = vadd.f32 0.0, %v3225
      %v3227 = vpop.f32.mrb[0].mxu0
      %3228 = vmatprep.mubr.f32.mxu0 0.0
      %3229 = vmatmul.mubr.f32.gmra.mrb[0].mxu0 %v2516
      %v3230 = vpop.f32.mrb[0].mxu0
      %v3231 = vadd.f32 0.0, %v3230
      %v3232 = vpop.f32.mrb[0].mxu0
      %3233 = vmatprep.mubr.f32.mxu0 0.0
      %3234 = vmatmul.mubr.f32.gmra.mrb[0].mxu0 %v2519
      %v3235 = vpop.f32.mrb[0].mxu0
      %v3236 = vadd.f32 0.0, %v3235
      %v3237 = vpop.f32.mrb[0].mxu0
      %3238 = vmatprep.mubr.f32.mxu0 0.0
      %3239 = vmatmul.mubr.f32.gmra.mrb[0].mxu0 %v2522
      %v3240 = vpop.f32.mrb[0].mxu0
      %v3241 = vadd.f32 0.0, %v3240
      %v3242 = vpop.f32.mrb[0].mxu0
      %3243 = vmatprep.mubr.f32.mxu0 0.0
      %3244 = vmatmul.mubr.f32.gmra.mrb[0].mxu0 %v2525
      %v3245 = vpop.f32.mrb[0].mxu0
      %v3246 = vadd.f32 0.0, %v3245
      %v3247 = vpop.f32.mrb[0].mxu0
      %3248 = vmatprep.mubr.f32.mxu0 0.0
      %3249 = vmatmul.mubr.f32.gmra.mrb[0].mxu0 %v2528
      %v3250 = vpop.f32.mrb[0].mxu0
      %v3251 = vadd.f32 0.0, %v3250
      %v3252 = vpop.f32.mrb[0].mxu0
      %3253 = vmatprep.mubr.f32.mxu0 0.0
      %3254 = vmatmul.mubr.f32.gmra.mrb[0].mxu0 %v2531
      %v3255 = vpop.f32.mrb[0].mxu0
      %v3256 = vadd.f32 0.0, %v3255
      %v3257 = vpop.f32.mrb[0].mxu0
      %3258 = vmatprep.mubr.f32.mxu0 0.0
      %3259 = vmatmul.mubr.f32.gmra.mrb[0].mxu0 %v2534
      %v3260 = vpop.f32.mrb[0].mxu0
      %v3261 = vadd.f32 0.0, %v3260
      %v3262 = vpop.f32.mrb[0].mxu0
      %3263 = vmatprep.mubr.f32.mxu0 0.0
      %3264 = vmatmul.mubr.f32.gmra.mrb[0].mxu0 %v2537
      %v3265 = vpop.f32.mrb[0].mxu0
      %v3266 = vadd.f32 0.0, %v3265
      %v3267 = vpop.f32.mrb[0].mxu0
      %3268 = vmatprep.mubr.f32.mxu0 0.0
      %3269 = vmatmul.mubr.f32.gmra.mrb[0].mxu0 %v2540
      %v3270 = vpop.f32.mrb[0].mxu0
      %v3271 = vadd.f32 0.0, %v3270
      %v3272 = vpop.f32.mrb[0].mxu0
      %3273 = vmatprep.mubr.f32.mxu0 0.0
      %3274 = vmatmul.mubr.f32.gmra.mrb[0].mxu0 %v2543
      %v3275 = vpop.f32.mrb[0].mxu0
      %v3276 = vadd.f32 0.0, %v3275
      %v3277 = vpop.f32.mrb[0].mxu0
      %3278 = vmatprep.mubr.f32.mxu0 0.0
      %3279 = vmatmul.mubr.f32.gmra.mrb[0].mxu0 %v2546
      %v3280 = vpop.f32.mrb[0].mxu0
      %v3281 = vadd.f32 0.0, %v3280
      %v3282 = vpop.f32.mrb[0].mxu0
      %3283 = vmatprep.mubr.f32.mxu0 0.0
      %3284 = vmatmul.mubr.f32.gmra.mrb[0].mxu0 %v2549
      %v3285 = vpop.f32.mrb[0].mxu0
      %v3286 = vadd.f32 0.0, %v3285
      %v3287 = vpop.f32.mrb[0].mxu0
      %3288 = vmatprep.mubr.f32.mxu0 0.0
      %3289 = vmatmul.mubr.f32.gmra.mrb[0].mxu0 %v2552
      %v3290 = vpop.f32.mrb[0].mxu0
      %v3291 = vadd.f32 0.0, %v3290
      %v3292 = vpop.f32.mrb[0].mxu0
      %3293 = vmatprep.mubr.f32.mxu0 0.0
      %3294 = vmatmul.mubr.f32.gmra.mrb[0].mxu0 %v2555
      %v3295 = vpop.f32.mrb[0].mxu0
      %v3296 = vadd.f32 0.0, %v3295
      %v3297 = vpop.f32.mrb[0].mxu0
      %3298 = vmatprep.mubr.f32.mxu0 0.0
      %3299 = vmatmul.mubr.f32.gmra.mrb[0].mxu0 %v2558
      %v3300 = vpop.f32.mrb[0].mxu0
      %v3301 = vadd.f32 0.0, %v3300
      %v3302 = vpop.f32.mrb[0].mxu0
      %3303 = vmatprep.mubr.f32.mxu0 0.0
      %3304 = vmatmul.mubr.f32.gmra.mrb[0].mxu0 %v2561
      %v3305 = vpop.f32.mrb[0].mxu0
      %v3306 = vadd.f32 0.0, %v3305
      %v3307 = vpop.f32.mrb[0].mxu0
      %3308 = vmatprep.mubr.f32.mxu0 0.0
      %3309 = vmatmul.mubr.f32.gmra.mrb[0].mxu0 %v2564
      %v3310 = vpop.f32.mrb[0].mxu0
      %v3311 = vadd.f32 0.0, %v3310
      %v3312 = vpop.f32.mrb[0].mxu0
      %3313 = vmatprep.mubr.f32.mxu0 0.0
      %3314 = vmatmul.mubr.f32.gmra.mrb[0].mxu0 %v2567
      %v3315 = vpop.f32.mrb[0].mxu0
      %v3316 = vadd.f32 0.0, %v3315
      %v3317 = vpop.f32.mrb[0].mxu0
      %3318 = vmatprep.mubr.f32.mxu0 0.0
      %3319 = vmatmul.mubr.f32.gmra.mrb[0].mxu0 %v2570
      %v3320 = vpop.f32.mrb[0].mxu0
      %v3321 = vadd.f32 0.0, %v3320
      %v3322 = vpop.f32.mrb[0].mxu0
      %3323 = vmatprep.mubr.f32.mxu0 0.0
      %3324 = vmatmul.mubr.f32.gmra.mrb[0].mxu0 %v2573
      %v3325 = vpop.f32.mrb[0].mxu0
      %v3326 = vadd.f32 0.0, %v3325
      %v3327 = vpop.f32.mrb[0].mxu0
      %3328 = vmatprep.mubr.f32.mxu0 0.0
      %3329 = vmatmul.mubr.f32.gmra.mrb[0].mxu0 %v2576
      %v3330 = vpop.f32.mrb[0].mxu0
      %v3331 = vadd.f32 0.0, %v3330
      %v3332 = vpop.f32.mrb[0].mxu0
      %3333 = vmatprep.mubr.f32.mxu0 0.0
      %3334 = vmatmul.mubr.f32.gmra.mrb[0].mxu0 %v2579
      %v3335 = vpop.f32.mrb[0].mxu0
      %v3336 = vadd.f32 0.0, %v3335
      %v3337 = vpop.f32.mrb[0].mxu0
      %3338 = vmatprep.mubr.f32.mxu0 0.0
      %3339 = vmatmul.mubr.f32.gmra.mrb[0].mxu0 %v2582
      %v3340 = vpop.f32.mrb[0].mxu0
      %v3341 = vadd.f32 0.0, %v3340
      %v3342 = vpop.f32.mrb[0].mxu0
      %3343 = vmatprep.mubr.f32.mxu0 0.0
      %3344 = vmatmul.mubr.f32.gmra.mrb[0].mxu0 %v2585
      %v3345 = vpop.f32.mrb[0].mxu0
      %v3346 = vadd.f32 0.0, %v3345
      %v3347 = vpop.f32.mrb[0].mxu0
      %3348 = vmatprep.mubr.f32.mxu0 0.0
      %3349 = vmatmul.mubr.f32.gmra.mrb[0].mxu0 %v2588
      %v3350 = vpop.f32.mrb[0].mxu0
      %v3351 = vadd.f32 0.0, %v3350
      %v3352 = vpop.f32.mrb[0].mxu0
      %3353 = vmatprep.mubr.f32.mxu0 0.0
      %3354 = vmatmul.mubr.f32.gmra.mrb[0].mxu0 %v2591
      %v3355 = vpop.f32.mrb[0].mxu0
      %v3356 = vadd.f32 0.0, %v3355
      %v3357 = vpop.f32.mrb[0].mxu0
      %3358 = vmatprep.mubr.f32.mxu0 0.0
      %3359 = vmatmul.mubr.f32.gmra.mrb[0].mxu0 %v2594
      %v3360 = vpop.f32.mrb[0].mxu0
      %v3361 = vadd.f32 0.0, %v3360
      %v3362 = vpop.f32.mrb[0].mxu0
      %3363 = vmatprep.mubr.f32.mxu0 0.0
      %3364 = vmatmul.mubr.f32.gmra.mrb[0].mxu0 %v2597
      %v3365 = vpop.f32.mrb[0].mxu0
      %v3366 = vadd.f32 0.0, %v3365
      %v3367 = vpop.f32.mrb[0].mxu0
      %3368 = vmatprep.mubr.f32.mxu0 0.0
      %3369 = vmatmul.mubr.f32.gmra.mrb[0].mxu0 %v2600
      %v3370 = vpop.f32.mrb[0].mxu0
      %v3371 = vadd.f32 0.0, %v3370
      %v3372 = vpop.f32.mrb[0].mxu0
      %3373 = vmatprep.mubr.f32.mxu0 0.0
      %3374 = vmatmul.mubr.f32.gmra.mrb[0].mxu0 %v2603
      %v3375 = vpop.f32.mrb[0].mxu0
      %v3376 = vadd.f32 0.0, %v3375
      %v3377 = vpop.f32.mrb[0].mxu0
      %3378 = vmatprep.mubr.f32.mxu0 0.0
      %3379 = vmatmul.mubr.f32.gmra.mrb[0].mxu0 %v2606
      %v3380 = vpop.f32.mrb[0].mxu0
      %v3381 = vadd.f32 0.0, %v3380
      %v3382 = vpop.f32.mrb[0].mxu0
      %3383 = vmatprep.mubr.f32.mxu0 0.0
      %3384 = vmatmul.mubr.f32.gmra.mrb[0].mxu0 %v2609
      %v3385 = vpop.f32.mrb[0].mxu0
      %v3386 = vadd.f32 0.0, %v3385
      %v3387 = vpop.f32.mrb[0].mxu0
      %3388 = vmatprep.mubr.f32.mxu0 0.0
      %3389 = vmatmul.mubr.f32.gmra.mrb[0].mxu0 %v2612
      %v3390 = vpop.f32.mrb[0].mxu0
      %v3391 = vadd.f32 0.0, %v3390
      %v3392 = vpop.f32.mrb[0].mxu0
      %3393 = vmatprep.mubr.f32.mxu0 0.0
      %3394 = vmatmul.mubr.f32.gmra.mrb[0].mxu0 %v2615
      %v3395 = vpop.f32.mrb[0].mxu0
      %v3396 = vadd.f32 0.0, %v3395
      %v3397 = vpop.f32.mrb[0].mxu0
      %3398 = vmatprep.mubr.f32.mxu0 0.0
      %3399 = vmatmul.mubr.f32.gmra.mrb[0].mxu0 %v2618
      %v3400 = vpop.f32.mrb[0].mxu0
      %v3401 = vadd.f32 0.0, %v3400
      %v3402 = vpop.f32.mrb[0].mxu0
      %3403 = vmatprep.mubr.f32.mxu0 0.0
      %3404 = vmatmul.mubr.f32.gmra.mrb[0].mxu0 %v2621
      %v3405 = vpop.f32.mrb[0].mxu0
      %v3406 = vadd.f32 0.0, %v3405
      %v3407 = vpop.f32.mrb[0].mxu0
      %3408 = vmatprep.mubr.f32.mxu0 0.0
      %3409 = vmatmul.mubr.f32.gmra.mrb[0].mxu0 %v2624
      %v3410 = vpop.f32.mrb[0].mxu0
      %v3411 = vadd.f32 0.0, %v3410
      %v3412 = vpop.f32.mrb[0].mxu0
      %3413 = vmatprep.mubr.f32.mxu0 0.0
      %3414 = vmatmul.mubr.f32.gmra.mrb[0].mxu0 %v2627
      %v3415 = vpop.f32.mrb[0].mxu0
      %v3416 = vadd.f32 0.0, %v3415
      %v3417 = vpop.f32.mrb[0].mxu0
      %3418 = vmatprep.mubr.f32.mxu0 0.0
      %3419 = vmatmul.mubr.f32.gmra.mrb[0].mxu0 %v2630
      %v3420 = vpop.f32.mrb[0].mxu0
      %v3421 = vadd.f32 0.0, %v3420
      %v3422 = vpop.f32.mrb[0].mxu0
      %3423 = vmatprep.mubr.f32.mxu0 0.0
      %3424 = vmatmul.mubr.f32.gmra.mrb[0].mxu0 %v2633
      %v3425 = vpop.f32.mrb[0].mxu0
      %v3426 = vadd.f32 0.0, %v3425
      %v3427 = vpop.f32.mrb[0].mxu0
      %3428 = vmatprep.mubr.f32.mxu0 0.0
      %3429 = vmatmul.mubr.f32.gmra.mrb[0].mxu0 %v2636
      %v3430 = vpop.f32.mrb[0].mxu0
      %v3431 = vadd.f32 0.0, %v3430
      %v3432 = vpop.f32.mrb[0].mxu0
      %3433 = vmatprep.mubr.f32.mxu0 0.0
      %3434 = vmatmul.mubr.f32.gmra.mrb[0].mxu0 %v2639
      %v3435 = vpop.f32.mrb[0].mxu0
      %v3436 = vadd.f32 0.0, %v3435
      %v3437 = vpop.f32.mrb[0].mxu0
      %3438 = vmatprep.mubr.f32.mxu0 0.0
      %3439 = vmatmul.mubr.f32.gmra.mrb[0].mxu0 %v2642
      %v3440 = vpop.f32.mrb[0].mxu0
      %v3441 = vadd.f32 0.0, %v3440
      %v3442 = vpop.f32.mrb[0].mxu0
      %3443 = vmatprep.mubr.f32.mxu0 0.0
      %3444 = vmatmul.mubr.f32.gmra.mrb[0].mxu0 %v2645
      %v3445 = vpop.f32.mrb[0].mxu0
      %v3446 = vadd.f32 0.0, %v3445
      %v3447 = vpop.f32.mrb[0].mxu0
      %3448 = vmatprep.mubr.f32.mxu0 0.0
      %3449 = vmatmul.mubr.f32.gmra.mrb[0].mxu0 %v2648
      %v3450 = vpop.f32.mrb[0].mxu0
      %v3451 = vadd.f32 0.0, %v3450
      %v3452 = vpop.f32.mrb[0].mxu0
      %3453 = vmatprep.mubr.f32.mxu0 0.0
      %3454 = vmatmul.mubr.f32.gmra.mrb[0].mxu0 %v2651
      %v3455 = vpop.f32.mrb[0].mxu0
      %v3456 = vadd.f32 0.0, %v3455
      %v3457 = vpop.f32.mrb[0].mxu0
      %3458 = vmatprep.mubr.f32.mxu0 0.0
      %3459 = vmatmul.mubr.f32.gmra.mrb[0].mxu0 %v2654
      %v3460 = vpop.f32.mrb[0].mxu0
      %v3461 = vadd.f32 0.0, %v3460
      %v3462 = vpop.f32.mrb[0].mxu0
      %3463 = vmatprep.mubr.f32.mxu0 0.0
      %3464 = vmatmul.mubr.f32.gmra.mrb[0].mxu0 %v2657
      %v3465 = vpop.f32.mrb[0].mxu0
      %v3466 = vadd.f32 0.0, %v3465
      %v3467 = vpop.f32.mrb[0].mxu0
      %3468 = vmatprep.mubr.f32.mxu0 0.0
      %3469 = vmatmul.mubr.f32.gmra.mrb[0].mxu0 %v2660
      %v3470 = vpop.f32.mrb[0].mxu0
      %v3471 = vadd.f32 0.0, %v3470
      %v3472 = vpop.f32.mrb[0].mxu0
      %3473 = vmatprep.mubr.f32.mxu0 0.0
      %3474 = vmatmul.mubr.f32.gmra.mrb[0].mxu0 %v2663
      %v3475 = vpop.f32.mrb[0].mxu0
      %v3476 = vadd.f32 0.0, %v3475
      %v3477 = vpop.f32.mrb[0].mxu0
      %3478 = vmatprep.mubr.f32.mxu0 0.0
      %3479 = vmatmul.mubr.f32.gmra.mrb[0].mxu0 %v2666
      %v3480 = vpop.f32.mrb[0].mxu0
      %v3481 = vadd.f32 0.0, %v3480
      %v3482 = vpop.f32.mrb[0].mxu0
      %3483 = vmatprep.mubr.f32.mxu0 0.0
      %3484 = vmatmul.mubr.f32.gmra.mrb[0].mxu0 %v2669
      %v3485 = vpop.f32.mrb[0].mxu0
      %v3486 = vadd.f32 0.0, %v3485
      %v3487 = vpop.f32.mrb[0].mxu0
      %3488 = vmatprep.mubr.f32.mxu0 0.0
      %3489 = vmatmul.mubr.f32.gmra.mrb[0].mxu0 %v2672
      %v3490 = vpop.f32.mrb[0].mxu0
      %v3491 = vadd.f32 0.0, %v3490
      %v3492 = vpop.f32.mrb[0].mxu0
      %3493 = vmatprep.mubr.f32.mxu0 0.0
      %3494 = vmatmul.mubr.f32.gmra.mrb[0].mxu0 %v2675
      %v3495 = vpop.f32.mrb[0].mxu0
      %v3496 = vadd.f32 0.0, %v3495
      %v3497 = vpop.f32.mrb[0].mxu0
      %3498 = vmatprep.mubr.f32.mxu0 0.0
      %3499 = vmatmul.mubr.f32.gmra.mrb[0].mxu0 %v2678
      %v3500 = vpop.f32.mrb[0].mxu0
      %v3501 = vadd.f32 0.0, %v3500
      %v3502 = vpop.f32.mrb[0].mxu0
      %3503 = vmatprep.mubr.f32.mxu0 0.0
      %3504 = vmatmul.mubr.f32.gmra.mrb[0].mxu0 %v2681
      %v3505 = vpop.f32.mrb[0].mxu0
      %v3506 = vadd.f32 0.0, %v3505
      %v3507 = vpop.f32.mrb[0].mxu0
      %3508 = vmatprep.mubr.f32.mxu0 0.0
      %3509 = vmatmul.mubr.f32.gmra.mrb[0].mxu0 %v2684
      %v3510 = vpop.f32.mrb[0].mxu0
      %v3511 = vadd.f32 0.0, %v3510
      %v3512 = vpop.f32.mrb[0].mxu0
      %3513 = vmatprep.mubr.f32.mxu0 0.0
      %3514 = vmatmul.mubr.f32.gmra.mrb[0].mxu0 %v2687
      %v3515 = vpop.f32.mrb[0].mxu0
      %v3516 = vadd.f32 0.0, %v3515
      %v3517 = vpop.f32.mrb[0].mxu0
      %3518 = vmatprep.mubr.f32.mxu0 0.0
      %3519 = vmatmul.mubr.f32.gmra.mrb[0].mxu0 %v2690
      %v3520 = vpop.f32.mrb[0].mxu0
      %v3521 = vadd.f32 0.0, %v3520
      %v3522 = vpop.f32.mrb[0].mxu0
      %3523 = vmatprep.mubr.f32.mxu0 0.0
      %3524 = vmatmul.mubr.f32.gmra.mrb[0].mxu0 %v2693
      %v3525 = vpop.f32.mrb[0].mxu0
      %v3526 = vadd.f32 0.0, %v3525
      %v3527 = vpop.f32.mrb[0].mxu0
      %3528 = vmatprep.mubr.f32.mxu0 0.0
      %3529 = vmatmul.mubr.f32.gmra.mrb[0].mxu0 %v2696
      %v3530 = vpop.f32.mrb[0].mxu0
      %v3531 = vadd.f32 0.0, %v3530
      %v3532 = vpop.f32.mrb[0].mxu0
      %3533 = vmatprep.mubr.f32.mxu0 0.0
      %3534 = vmatmul.mubr.f32.gmra.mrb[0].mxu0 %v2699
      %v3535 = vpop.f32.mrb[0].mxu0
      %v3536 = vadd.f32 0.0, %v3535
      %v3537 = vpop.f32.mrb[0].mxu0
      %3538 = vdwg.mxu0
      %3539 = vst.msk [vmem:[%s361] sm:$0xff] %vm427, %v3221
      %3540 = vst.msk [vmem:[%s361 + $0x8] sm:$0xff] %vm427, %v3226
      %3541 = vst.msk [vmem:[%s361 + $0x10] sm:$0xff] %vm427, %v3231
      %3542 = vst.msk [vmem:[%s361 + $0x18] sm:$0xff] %vm427, %v3236
      %3543 = vst.msk [vmem:[%s361 + $0x20] sm:$0xff] %vm427, %v3241
      %3544 = vst.msk [vmem:[%s361 + $0x28] sm:$0xff] %vm427, %v3246
      %3545 = vst.msk [vmem:[%s361 + $0x30] sm:$0xff] %vm427, %v3251
      %3546 = vst.msk [vmem:[%s361 + $0x38] sm:$0xff] %vm427, %v3256
      %3547 = vst.msk [vmem:[%s361 + $0x40] sm:$0xff] %vm427, %v3261
      %3548 = vst.msk [vmem:[%s361 + $0x48] sm:$0xff] %vm427, %v3266
      %3549 = vst.msk [vmem:[%s361 + $0x50] sm:$0xff] %vm427, %v3271
      %3550 = vst.msk [vmem:[%s361 + $0x58] sm:$0xff] %vm427, %v3276
      %3551 = vst.msk [vmem:[%s361 + $0x60] sm:$0xff] %vm427, %v3281
      %3552 = vst.msk [vmem:[%s361 + $0x68] sm:$0xff] %vm427, %v3286
      %3553 = vst.msk [vmem:[%s361 + $0x70] sm:$0xff] %vm427, %v3291
      %3554 = vst.msk [vmem:[%s361 + $0x78] sm:$0xff] %vm427, %v3296
      %3555 = vst.msk [vmem:[%s361 + $0x80] sm:$0xff] %vm427, %v3301
      %3556 = vst.msk [vmem:[%s361 + $0x88] sm:$0xff] %vm427, %v3306
      %3557 = vst.msk [vmem:[%s361 + $0x90] sm:$0xff] %vm427, %v3311
      %3558 = vst.msk [vmem:[%s361 + $0x98] sm:$0xff] %vm427, %v3316
      %3559 = vst.msk [vmem:[%s361 + $0xa0] sm:$0xff] %vm427, %v3321
      %3560 = vst.msk [vmem:[%s361 + $0xa8] sm:$0xff] %vm427, %v3326
      %3561 = vst.msk [vmem:[%s361 + $0xb0] sm:$0xff] %vm427, %v3331
      %3562 = vst.msk [vmem:[%s361 + $0xb8] sm:$0xff] %vm427, %v3336
      %3563 = vst.msk [vmem:[%s361 + $0xc0] sm:$0xff] %vm427, %v3341
      %3564 = vst.msk [vmem:[%s361 + $0xc8] sm:$0xff] %vm427, %v3346
      %3565 = vst.msk [vmem:[%s361 + $0xd0] sm:$0xff] %vm427, %v3351
      %3566 = vst.msk [vmem:[%s361 + $0xd8] sm:$0xff] %vm427, %v3356
      %3567 = vst.msk [vmem:[%s361 + $0xe0] sm:$0xff] %vm427, %v3361
      %3568 = vst.msk [vmem:[%s361 + $0xe8] sm:$0xff] %vm427, %v3366
      %3569 = vst.msk [vmem:[%s361 + $0xf0] sm:$0xff] %vm427, %v3371
      %3570 = vst.msk [vmem:[%s361 + $0xf8] sm:$0xff] %vm427, %v3376
      %3571 = vst.msk [vmem:[%s361 + $0x100] sm:$0xff] %vm427, %v3381
      %3572 = vst.msk [vmem:[%s361 + $0x108] sm:$0xff] %vm427, %v3386
      %3573 = vst.msk [vmem:[%s361 + $0x110] sm:$0xff] %vm427, %v3391
      %3574 = vst.msk [vmem:[%s361 + $0x118] sm:$0xff] %vm427, %v3396
      %3575 = vst.msk [vmem:[%s361 + $0x120] sm:$0xff] %vm427, %v3401
      %3576 = vst.msk [vmem:[%s361 + $0x128] sm:$0xff] %vm427, %v3406
      %3577 = vst.msk [vmem:[%s361 + $0x130] sm:$0xff] %vm427, %v3411
      %3578 = vst.msk [vmem:[%s361 + $0x138] sm:$0xff] %vm427, %v3416
      %3579 = vst.msk [vmem:[%s361 + $0x140] sm:$0xff] %vm427, %v3421
      %3580 = vst.msk [vmem:[%s361 + $0x148] sm:$0xff] %vm427, %v3426
      %3581 = vst.msk [vmem:[%s361 + $0x150] sm:$0xff] %vm427, %v3431
      %3582 = vst.msk [vmem:[%s361 + $0x158] sm:$0xff] %vm427, %v3436
      %3583 = vst.msk [vmem:[%s361 + $0x160] sm:$0xff] %vm427, %v3441
      %3584 = vst.msk [vmem:[%s361 + $0x168] sm:$0xff] %vm427, %v3446
      %3585 = vst.msk [vmem:[%s361 + $0x170] sm:$0xff] %vm427, %v3451
      %3586 = vst.msk [vmem:[%s361 + $0x178] sm:$0xff] %vm427, %v3456
      %3587 = vst.msk [vmem:[%s361 + $0x180] sm:$0xff] %vm427, %v3461
      %3588 = vst.msk [vmem:[%s361 + $0x188] sm:$0xff] %vm427, %v3466
      %3589 = vst.msk [vmem:[%s361 + $0x190] sm:$0xff] %vm427, %v3471
      %3590 = vst.msk [vmem:[%s361 + $0x198] sm:$0xff] %vm427, %v3476
      %3591 = vst.msk [vmem:[%s361 + $0x1a0] sm:$0xff] %vm427, %v3481
      %3592 = vst.msk [vmem:[%s361 + $0x1a8] sm:$0xff] %vm427, %v3486
      %3593 = vst.msk [vmem:[%s361 + $0x1b0] sm:$0xff] %vm427, %v3491
      %3594 = vst.msk [vmem:[%s361 + $0x1b8] sm:$0xff] %vm427, %v3496
      %3595 = vst.msk [vmem:[%s361 + $0x1c0] sm:$0xff] %vm427, %v3501
      %3596 = vst.msk [vmem:[%s361 + $0x1c8] sm:$0xff] %vm427, %v3506
      %3597 = vst.msk [vmem:[%s361 + $0x1d0] sm:$0xff] %vm427, %v3511
      %3598 = vst.msk [vmem:[%s361 + $0x1d8] sm:$0xff] %vm427, %v3516
      %3599 = vst.msk [vmem:[%s361 + $0x1e0] sm:$0xff] %vm427, %v3521
      %3600 = vst.msk [vmem:[%s361 + $0x1e8] sm:$0xff] %vm427, %v3526
      %3601 = vst.msk [vmem:[%s361 + $0x1f0] sm:$0xff] %vm427, %v3531
      %3602 = vst.msk [vmem:[%s361 + $0x1f8] sm:$0xff] %vm427, %v3536
      %s3603 = smul.u32 64, %s21
      %p3604 = scmp.lt.s32.totalorder %s3603, 255
      %s3605 = scalar_select %p3604, %s3603, 255
      %s3606 = smul.addr %s3605, 8
      %s3607 = scalar_lea.vmem %s7, %s3606
      %s3608 = smul.u32 64, %s21
      %p3609 = scmp.lt.s32.totalorder %s3608, 255
      %s3610 = scalar_select %p3609, %s3608, 255
      %s3611 = smul.addr %s3610, 8
      %s3612 = scalar_lea.vmem %s8, %s3611
      %s3613 = smul.u32 64, %s21
      %p3614 = scmp.lt.s32.totalorder %s3613, 255
      %s3615 = scalar_select %p3614, %s3613, 255
      %s3616 = smul.addr %s3615, 8
      %s3617 = scalar_lea.vmem %s9, %s3616
      // Predicated region
      $region49: #{convnat_block_forward.3} parent=47 // pred_check
        %p3618 = pneg %p191
      $region50: #{convnat_block_forward.3} parent=47 // pred_check_branch
        %3620 = sbr.rel (%p3618) target = $region52
      $region51: #{convnat_block_forward.3} parent=47 // pred_region
        %s3621 = smul.u32 64, %s21
      $region52: #{convnat_block_forward.3} parent=47 // pred_fallthru
        _
      // Predicated region
      $region53: #{convnat_block_forward.3} parent=47 // pred_check
        %p3622 = pneg %p217
      $region54: #{convnat_block_forward.3} parent=47 // pred_check_branch
        %3624 = sbr.rel (%p3622) target = $region56
      $region55: #{convnat_block_forward.3} parent=47 // pred_region
        %s3625 = smul.u32 64, %s21
      $region56: #{convnat_block_forward.3} parent=47 // pred_fallthru
        _
      // Predicated region
      $region57: #{convnat_block_forward.3} parent=47 // pred_check
        %p3626 = pneg %p243
      $region58: #{convnat_block_forward.3} parent=47 // pred_check_branch
        %3628 = sbr.rel (%p3626) target = $region60
      $region59: #{convnat_block_forward.3} parent=47 // pred_region
        %s3629 = smul.u32 64, %s21
      $region60: #{convnat_block_forward.3} parent=47 // pred_fallthru
        _
    $region48: #{convnat_block_forward.3} parent=5 // pred_fallthru
      _
    %p3630 = scmp.le.s32.totalorder 2, %s16
    // Predicated region
    $region61: #{convnat_block_forward.3} parent=5 // pred_check
      %p3631 = pneg %p3630
    $region62: #{convnat_block_forward.3} parent=5 // pred_check_branch
      %3633 = sbr.rel (%p3631) target = $region64
    $region63: #{convnat_block_forward.3} parent=5 // pred_region
      %s3634 = ssub.s32 %s16, 2
      // Predicated region
      $region65: #{convnat_block_forward.3} parent=63 // pred_check
        %p3635 = pneg %p197
      $region66: #{convnat_block_forward.3} parent=63 // pred_check_branch
        %3637 = sbr.rel (%p3635) target = $region68
      $region67: #{convnat_block_forward.3} parent=63 // pred_region
        %s3638 = smul.u32 64, %s22
        %p3639 = scmp.lt.s32.totalorder %s3638, 255
        %s3640 = scalar_select %p3639, %s3638, 255
        %s3641 = smul.addr %s3640, 8
        %s3642 = scalar_lea.vmem %s7, %s3641
      $region68: #{convnat_block_forward.3} parent=63 // pred_fallthru
        _
      // Predicated region
      $region69: #{convnat_block_forward.3} parent=63 // pred_check
        %p3643 = pneg %p223
      $region70: #{convnat_block_forward.3} parent=63 // pred_check_branch
        %3645 = sbr.rel (%p3643) target = $region72
      $region71: #{convnat_block_forward.3} parent=63 // pred_region
        %s3646 = smul.u32 64, %s22
        %p3647 = scmp.lt.s32.totalorder %s3646, 255
        %s3648 = scalar_select %p3647, %s3646, 255
        %s3649 = smul.addr %s3648, 8
        %s3650 = scalar_lea.vmem %s8, %s3649
      $region72: #{convnat_block_forward.3} parent=63 // pred_fallthru
        _
      // Predicated region
      $region73: #{convnat_block_forward.3} parent=63 // pred_check
        %p3651 = pneg %p249
      $region74: #{convnat_block_forward.3} parent=63 // pred_check_branch
        %3653 = sbr.rel (%p3651) target = $region76
      $region75: #{convnat_block_forward.3} parent=63 // pred_region
        %s3654 = smul.u32 64, %s22
        %p3655 = scmp.lt.s32.totalorder %s3654, 255
        %s3656 = scalar_select %p3655, %s3654, 255
        %s3657 = smul.addr %s3656, 8
        %s3658 = scalar_lea.vmem %s9, %s3657
      $region76: #{convnat_block_forward.3} parent=63 // pred_fallthru
        _
    $region64: #{convnat_block_forward.3} parent=5 // pred_fallthru
      _
  $region6: #{convnat_block_forward.3} parent=0 // loop_footer
    %s20 = sadd.s32 1, %s16
  $region7: #{convnat_block_forward.3} parent=0 // loop_footer_branch
    %15 = sbr.rel target = $region3
  $region8: #{convnat_block_forward.3} parent=0 // loop_exit
    _

// kernel: convnat_block_forward.4
$region0: #{convnat_block_forward.4}
  #allocation0 [shape = 'u32[]', space=smem, size = 0x4, offset = 0x4, fixed_abs, tag = 'smem constant byte address 0x4 - core index']
  #allocation1 [shape = 'u32[144,128]{1,0:T(1,128)}', space=vmem, size = 0x12000, scoped, tag = 'internal scratch']
  %s0 = inlined_call_operand.vmem [shape: f32[2,32,1024], index: 0, kind: input, shape index: {}]
  %s1 = inlined_call_operand.vmem [shape: f32[2,32,1024], index: 1, kind: input, shape index: {}]
  %s2 = inlined_call_operand.vmem [shape: f32[9,1024], index: 2, kind: input, shape index: {}]
  %s3 = inlined_call_operand.vmem [shape: f32[9,1024], index: 3, kind: input, shape index: {}]
  %s4 = inlined_call_operand.vmem [shape: f32[2,32,1024], index: 4, kind: output, shape index: {0}]
  %s5 = inlined_call_operand.vmem [shape: f32[2,32,1024], index: 5, kind: output, shape index: {1}]
  %6 = xla_tuple %s4, %s5
  %s7 = sld [smem:[#allocation0]]
  $region57: #{convnat_block_forward.4} parent=0
    _
  %s9 = ssub.s32 1, %s7
  %s10 = scalar_select 0, %s9, %s7
  loop: start=0, step=1, limit=4
  $region2: #{convnat_block_forward.4} parent=0 // loop_pre_header
    _
  $region3: #{convnat_block_forward.4} parent=0 // loop_header
    %s12 = sphi 0, %s16
    %p13 = scmp.ge.s32.totalorder %s12, 4
    %s22 = sphi 0, %s24
    %s25 = sphi 0, %s22
    %s26 = sphi 0, %s25
    %s42 = sphi 0, %s26
    %s48 = sphi 0, %s50
    %s51 = sphi 0, %s48
    %s52 = sphi 0, %s51
    %s68 = sphi 0, %s52
    %s72 = sphi 0, %s72
    %s74 = sphi 0, %s72
    %s75 = sphi 0, %s74
    %s89 = sphi 0, %s75
    %s93 = sphi 0, %s93
    %s95 = sphi 0, %s93
    %s96 = sphi 0, %s95
    %s110 = sphi 0, %s96
    %s116 = sphi 0, %s118
    %s119 = sphi 0, %s116
    %s120 = sphi 0, %s119
    %s136 = sphi 0, %s120
    %s142 = sphi 0, %s144
    %s145 = sphi 0, %s142
    %s146 = sphi 0, %s145
    %s162 = sphi 0, %s146
  $region4: #{convnat_block_forward.4} parent=0 // loop_header_branch
    %15 = sbr.rel (%p13) target = $region8
  $region5: #{convnat_block_forward.4} parent=0 // loop_body
    %s17 = ssub.s32 %s12, 1
    %s18 = ssub.s32 %s12, 2
    %s19 = sadd.s32 %s12, 1
    %s20 = ssub.s32 %s12, %s19
    %p21 = scmp.eq.s32.totalorder %s20, 0
    %s23 = sadd.s32 %s22, 1
    %s24 = scalar_select %p21, %s22, %s23
    %p27 = pneg %p21
    %p28 = scmp.eq.s32.totalorder %s12, 1
    %p29 = por %p27, %p28
    %p30 = scmp.ne.s32.totalorder %s22, %s25
    %p31 = scmp.eq.s32.totalorder %s12, 0
    %p32 = por %p30, %p31
    %p33 = scmp.ne.s32.totalorder %s22, %s25
    %p34 = scmp.eq.s32.totalorder %s17, 1
    %p35 = por %p33, %p34
    %p36 = scmp.ne.s32.totalorder %s25, %s26
    %p37 = scmp.eq.s32.totalorder %s17, 0
    %p38 = por %p36, %p37
    %p39 = scmp.ne.s32.totalorder %s25, %s26
    %p40 = scmp.eq.s32.totalorder %s18, 1
    %p41 = por %p39, %p40
    %p43 = scmp.ne.s32.totalorder %s26, %s42
    %p44 = scmp.eq.s32.totalorder %s18, 0
    %p45 = por %p43, %p44
    %s46 = ssub.s32 %s12, %s19
    %p47 = scmp.eq.s32.totalorder %s46, 0
    %s49 = sadd.s32 %s48, 1
    %s50 = scalar_select %p47, %s48, %s49
    %p53 = pneg %p47
    %p54 = scmp.eq.s32.totalorder %s12, 1
    %p55 = por %p53, %p54
    %p56 = scmp.ne.s32.totalorder %s48, %s51
    %p57 = scmp.eq.s32.totalorder %s12, 0
    %p58 = por %p56, %p57
    %p59 = scmp.ne.s32.totalorder %s48, %s51
    %p60 = scmp.eq.s32.totalorder %s17, 1
    %p61 = por %p59, %p60
    %p62 = scmp.ne.s32.totalorder %s51, %s52
    %p63 = scmp.eq.s32.totalorder %s17, 0
    %p64 = por %p62, %p63
    %p65 = scmp.ne.s32.totalorder %s51, %s52
    %p66 = scmp.eq.s32.totalorder %s18, 1
    %p67 = por %p65, %p66
    %p69 = scmp.ne.s32.totalorder %s52, %s68
    %p70 = scmp.eq.s32.totalorder %s18, 0
    %p71 = por %p69, %p70
    %s73 = sadd.s32 %s72, 1
    %p76 = scmp.eq.s32.totalorder %s12, 1
    %p77 = scmp.ne.s32.totalorder %s72, %s74
    %p78 = scmp.eq.s32.totalorder %s12, 0
    %p79 = por %p77, %p78
    %p80 = scmp.ne.s32.totalorder %s72, %s74
    %p81 = scmp.eq.s32.totalorder %s17, 1
    %p82 = por %p80, %p81
    %p83 = scmp.ne.s32.totalorder %s74, %s75
    %p84 = scmp.eq.s32.totalorder %s17, 0
    %p85 = por %p83, %p84
    %p86 = scmp.ne.s32.totalorder %s74, %s75
    %p87 = scmp.eq.s32.totalorder %s18, 1
    %p88 = por %p86, %p87
    %p90 = scmp.ne.s32.totalorder %s75, %s89
    %p91 = scmp.eq.s32.totalorder %s18, 0
    %p92 = por %p90, %p91
    %s94 = sadd.s32 %s93, 1
    %p97 = scmp.eq.s32.totalorder %s12, 1
    %p98 = scmp.ne.s32.totalorder %s93, %s95
    %p99 = scmp.eq.s32.totalorder %s12, 0
    %p100 = por %p98, %p99
    %p101 = scmp.ne.s32.totalorder %s93, %s95
    %p102 = scmp.eq.s32.totalorder %s17, 1
    %p103 = por %p101, %p102
    %p104 = scmp.ne.s32.totalorder %s95, %s96
    %p105 = scmp.eq.s32.totalorder %s17, 0
    %p106 = por %p104, %p105
    %p107 = scmp.ne.s32.totalorder %s95, %s96
    %p108 = scmp.eq.s32.totalorder %s18, 1
    %p109 = por %p107, %p108
    %p111 = scmp.ne.s32.totalorder %s96, %s110
    %p112 = scmp.eq.s32.totalorder %s18, 0
    %p113 = por %p111, %p112
    %s114 = ssub.s32 %s12, %s19
    %p115 = scmp.eq.s32.totalorder %s114, 0
    %s117 = sadd.s32 %s116, 1
    %s118 = scalar_select %p115, %s116, %s117
    %p121 = pneg %p115
    %p122 = scmp.eq.s32.totalorder %s12, 1
    %p123 = por %p121, %p122
    %p124 = scmp.ne.s32.totalorder %s116, %s119
    %p125 = scmp.eq.s32.totalorder %s12, 0
    %p126 = por %p124, %p125
    %p127 = scmp.ne.s32.totalorder %s116, %s119
    %p128 = scmp.eq.s32.totalorder %s17, 1
    %p129 = por %p127, %p128
    %p130 = scmp.ne.s32.totalorder %s119, %s120
    %p131 = scmp.eq.s32.totalorder %s17, 0
    %p132 = por %p130, %p131
    %p133 = scmp.ne.s32.totalorder %s119, %s120
    %p134 = scmp.eq.s32.totalorder %s18, 1
    %p135 = por %p133, %p134
    %p137 = scmp.ne.s32.totalorder %s120, %s136
    %p138 = scmp.eq.s32.totalorder %s18, 0
    %p139 = por %p137, %p138
    %s140 = ssub.s32 %s12, %s19
    %p141 = scmp.eq.s32.totalorder %s140, 0
    %s143 = sadd.s32 %s142, 1
    %s144 = scalar_select %p141, %s142, %s143
    %p147 = pneg %p141
    %p148 = scmp.eq.s32.totalorder %s12, 1
    %p149 = por %p147, %p148
    %p150 = scmp.ne.s32.totalorder %s142, %s145
    %p151 = scmp.eq.s32.totalorder %s12, 0
    %p152 = por %p150, %p151
    %p153 = scmp.ne.s32.totalorder %s142, %s145
    %p154 = scmp.eq.s32.totalorder %s17, 1
    %p155 = por %p153, %p154
    %p156 = scmp.ne.s32.totalorder %s145, %s146
    %p157 = scmp.eq.s32.totalorder %s17, 0
    %p158 = por %p156, %p157
    %p159 = scmp.ne.s32.totalorder %s145, %s146
    %p160 = scmp.eq.s32.totalorder %s18, 1
    %p161 = por %p159, %p160
    %p163 = scmp.ne.s32.totalorder %s146, %s162
    %p164 = scmp.eq.s32.totalorder %s18, 0
    %p165 = por %p163, %p164
    %p166 = scmp.le.s32.totalorder 1, %s12
    %p167 = scmp.lt.s32.totalorder %s12, 3
    %p168 = pnand %p166, %p167
    %p169 = pneg %p168
    // Predicated region
    $region9: #{convnat_block_forward.4} parent=5 // pred_check
      _
    $region10: #{convnat_block_forward.4} parent=5 // pred_check_branch
      %171 = sbr.rel (%p168) target = $region12
    $region11: #{convnat_block_forward.4} parent=5 // pred_region
      %s172 = ssub.s32 %s12, 1
      // Predicated region
      $region13: #{convnat_block_forward.4} parent=11 // pred_check
        %p173 = pneg %p85
      $region14: #{convnat_block_forward.4} parent=11 // pred_check_branch
        %175 = sbr.rel (%p173) target = $region16
      $region15: #{convnat_block_forward.4} parent=11 // pred_region
        _
      $region16: #{convnat_block_forward.4} parent=11 // pred_fallthru
        _
      // Predicated region
      $region17: #{convnat_block_forward.4} parent=11 // pred_check
        %p176 = pneg %p106
      $region18: #{convnat_block_forward.4} parent=11 // pred_check_branch
        %178 = sbr.rel (%p176) target = $region20
      $region19: #{convnat_block_forward.4} parent=11 // pred_region
        _
      $region20: #{convnat_block_forward.4} parent=11 // pred_fallthru
        _
    $region12: #{convnat_block_forward.4} parent=5 // pred_fallthru
      _
    %p179 = scmp.lt.s32.totalorder %s12, 2
    // Predicated region
    $region21: #{convnat_block_forward.4} parent=5 // pred_check
      %p180 = pneg %p179
    $region22: #{convnat_block_forward.4} parent=5 // pred_check_branch
      %182 = sbr.rel (%p180) target = $region24
    $region23: #{convnat_block_forward.4} parent=5 // pred_region
      // Predicated region
      $region25: #{convnat_block_forward.4} parent=23 // pred_check
        %p183 = pneg %p32
      $region26: #{convnat_block_forward.4} parent=23 // pred_check_branch
        %185 = sbr.rel (%p183) target = $region28
      $region27: #{convnat_block_forward.4} parent=23 // pred_region
        %p186 = scmp.lt.s32.totalorder %s12, 1
        %s187 = scalar_select %p186, %s12, 1
        %s188 = smul.addr %s187, 32
        %s189 = smul.addr %s188, 8
        %s190 = scalar_lea.vmem %s0, %s189
      $region28: #{convnat_block_forward.4} parent=23 // pred_fallthru
        _
      // Predicated region
      $region29: #{convnat_block_forward.4} parent=23 // pred_check
        %p191 = pneg %p58
      $region30: #{convnat_block_forward.4} parent=23 // pred_check_branch
        %193 = sbr.rel (%p191) target = $region32
      $region31: #{convnat_block_forward.4} parent=23 // pred_region
        %p194 = scmp.lt.s32.totalorder %s12, 1
        %s195 = scalar_select %p194, %s12, 1
        %s196 = smul.addr %s195, 32
        %s197 = smul.addr %s196, 8
        %s198 = scalar_lea.vmem %s1, %s197
      $region32: #{convnat_block_forward.4} parent=23 // pred_fallthru
        _
    $region24: #{convnat_block_forward.4} parent=5 // pred_fallthru
      _
    %p199 = scmp.le.s32.totalorder 1, %s12
    %p200 = scmp.lt.s32.totalorder %s12, 3
    %p201 = pnand %p199, %p200
    %p202 = pneg %p201
    // Predicated region
    $region33: #{convnat_block_forward.4} parent=5 // pred_check
      _
    $region34: #{convnat_block_forward.4} parent=5 // pred_check_branch
      %204 = sbr.rel (%p201) target = $region36
    $region35: #{convnat_block_forward.4} parent=5 // pred_region
      %s205 = ssub.s32 %s12, 1
      %p206 = scmp.lt.s32.totalorder %s17, 1
      %s207 = scalar_select %p206, %s17, 1
      %s208 = smul.addr %s207, 32
      %s209 = smul.addr %s208, 8
      %s210 = scalar_lea.vmem %s0, %s209
      %p211 = pneg %p38
      %p212 = pneg %p35
      %p213 = scmp.lt.s32.totalorder %s17, 1
      %s214 = scalar_select %p213, %s17, 1
      %s215 = smul.addr %s214, 32
      %s216 = smul.addr %s215, 8
      %s217 = scalar_lea.vmem %s1, %s216
      %p218 = pneg %p64
      %p219 = pneg %p61
      %p220 = pneg %p85
      %p221 = pneg %p82
      %p222 = pneg %p106
      %p223 = pneg %p103
      %p224 = pneg %p132
      %p225 = pneg %p129
      %p226 = scmp.lt.s32.totalorder %s17, 1
      %s227 = scalar_select %p226, %s17, 1
      %s228 = smul.addr %s227, 32
      %s229 = smul.addr %s228, 8
      %s230 = scalar_lea.vmem %s4, %s229
      %p231 = pneg %p158
      %p232 = pneg %p155
      %p233 = scmp.lt.s32.totalorder %s17, 1
      %s234 = scalar_select %p233, %s17, 1
      %s235 = smul.addr %s234, 32
      %s236 = smul.addr %s235, 8
      %s237 = scalar_lea.vmem %s5, %s236
      %p238 = scmp.lt.s32.totalorder %s17, 1
      %s239 = scalar_select %p238, %s17, 1
      %s240 = smul.addr %s239, 32
      %s241 = smul.addr %s240, 8
      %s242 = scalar_lea.vmem %s0, %s241
      %p243 = scmp.lt.s32.totalorder %s17, 1
      %s244 = scalar_select %p243, %s17, 1
      %s245 = smul.addr %s244, 32
      %s246 = smul.addr %s245, 8
      %s247 = scalar_lea.vmem %s1, %s246
      %p248 = scmp.lt.s32.totalorder %s17, 1
      %s249 = scalar_select %p248, %s17, 1
      %s250 = smul.addr %s249, 32
      %s251 = smul.addr %s250, 8
      %s252 = scalar_lea.vmem %s4, %s251
      %p253 = scmp.lt.s32.totalorder %s17, 1
      %s254 = scalar_select %p253, %s17, 1
      %s255 = smul.addr %s254, 32
      %s256 = smul.addr %s255, 8
      %s257 = scalar_lea.vmem %s5, %s256
      %v258 = vld [vmem:[%s242] sm:$0xff]
      %v259 = vld [vmem:[%s242 + $0x8] sm:$0xff]
      %v260 = vld [vmem:[%s242 + $0x10] sm:$0xff]
      %v261 = vld [vmem:[%s242 + $0x18] sm:$0xff]
      %v262 = vld [vmem:[%s242 + $0x20] sm:$0xff]
      %v263 = vld [vmem:[%s242 + $0x28] sm:$0xff]
      %v264 = vld [vmem:[%s242 + $0x30] sm:$0xff]
      %v265 = vld [vmem:[%s242 + $0x38] sm:$0xff]
      %v266 = vld [vmem:[%s242 + $0x40] sm:$0xff]
      %v267 = vld [vmem:[%s242 + $0x48] sm:$0xff]
      %v268 = vld [vmem:[%s242 + $0x50] sm:$0xff]
      %v269 = vld [vmem:[%s242 + $0x58] sm:$0xff]
      %v270 = vld [vmem:[%s242 + $0x60] sm:$0xff]
      %v271 = vld [vmem:[%s242 + $0x68] sm:$0xff]
      %v272 = vld [vmem:[%s242 + $0x70] sm:$0xff]
      %v273 = vld [vmem:[%s242 + $0x78] sm:$0xff]
      %v274 = vld [vmem:[%s242 + $0x80] sm:$0xff]
      %v275 = vld [vmem:[%s242 + $0x88] sm:$0xff]
      %v276 = vld [vmem:[%s242 + $0x90] sm:$0xff]
      %v277 = vld [vmem:[%s242 + $0x98] sm:$0xff]
      %v278 = vld [vmem:[%s242 + $0xa0] sm:$0xff]
      %v279 = vld [vmem:[%s242 + $0xa8] sm:$0xff]
      %v280 = vld [vmem:[%s242 + $0xb0] sm:$0xff]
      %v281 = vld [vmem:[%s242 + $0xb8] sm:$0xff]
      %v282 = vld [vmem:[%s242 + $0xc0] sm:$0xff]
      %v283 = vld [vmem:[%s242 + $0xc8] sm:$0xff]
      %v284 = vld [vmem:[%s242 + $0xd0] sm:$0xff]
      %v285 = vld [vmem:[%s242 + $0xd8] sm:$0xff]
      %v286 = vld [vmem:[%s242 + $0xe0] sm:$0xff]
      %v287 = vld [vmem:[%s242 + $0xe8] sm:$0xff]
      %v288 = vld [vmem:[%s242 + $0xf0] sm:$0xff]
      %v289 = vld [vmem:[%s242 + $0xf8] sm:$0xff]
      %v290 = vld [vmem:[%s2] sm:$0xff]
      %v291 = vld [vmem:[%s2 + $0x8] sm:$0xff]
      %v292 = vld [vmem:[%s2 + $0x10] sm:$0xff]
      %v293 = vld [vmem:[%s2 + $0x18] sm:$0xff]
      %v294 = vld [vmem:[%s2 + $0x20] sm:$0xff]
      %v295 = vld [vmem:[%s2 + $0x28] sm:$0xff]
      %v296 = vld [vmem:[%s2 + $0x30] sm:$0xff]
      %v297 = vld [vmem:[%s2 + $0x38] sm:$0xff]
      %v298 = vld [vmem:[%s2 + $0x40] sm:$0x1]
      %v299 = vld [vmem:[%s2 + $0x48] sm:$0x1]
      %v300 = vld [vmem:[%s2 + $0x50] sm:$0x1]
      %v301 = vld [vmem:[%s2 + $0x58] sm:$0x1]
      %v302 = vld [vmem:[%s2 + $0x60] sm:$0x1]
      %v303 = vld [vmem:[%s2 + $0x68] sm:$0x1]
      %v304 = vld [vmem:[%s2 + $0x70] sm:$0x1]
      %v305 = vld [vmem:[%s2 + $0x78] sm:$0x1]
      %338 = vrot.lane.b32.xlu0 %v258, 32
      %v339 = vpop.permute.xlu0 %338
      %340 = vrot.lane.b32.xlu0 %v259, 32
      %v341 = vpop.permute.xlu0 %340
      %342 = vrot.lane.b32.xlu0 %v260, 32
      %v343 = vpop.permute.xlu0 %342
      %344 = vrot.lane.b32.xlu0 %v261, 32
      %v345 = vpop.permute.xlu0 %344
      %346 = vrot.lane.b32.xlu0 %v262, 32
      %v347 = vpop.permute.xlu0 %346
      %348 = vrot.lane.b32.xlu0 %v263, 32
      %v349 = vpop.permute.xlu0 %348
      %350 = vrot.lane.b32.xlu0 %v264, 32
      %v351 = vpop.permute.xlu0 %350
      %352 = vrot.lane.b32.xlu0 %v265, 32
      %v353 = vpop.permute.xlu0 %352
      %354 = vrot.lane.b32.xlu0 %v266, 32
      %v355 = vpop.permute.xlu0 %354
      %356 = vrot.lane.b32.xlu0 %v267, 32
      %v357 = vpop.permute.xlu0 %356
      %358 = vrot.lane.b32.xlu0 %v268, 32
      %v359 = vpop.permute.xlu0 %358
      %360 = vrot.lane.b32.xlu0 %v269, 32
      %v361 = vpop.permute.xlu0 %360
      %362 = vrot.lane.b32.xlu0 %v270, 32
      %v363 = vpop.permute.xlu0 %362
      %364 = vrot.lane.b32.xlu0 %v271, 32
      %v365 = vpop.permute.xlu0 %364
      %366 = vrot.lane.b32.xlu0 %v272, 32
      %v367 = vpop.permute.xlu0 %366
      %368 = vrot.lane.b32.xlu0 %v273, 32
      %v369 = vpop.permute.xlu0 %368
      %370 = vrot.lane.b32.xlu0 %v274, 32
      %v371 = vpop.permute.xlu0 %370
      %372 = vrot.lane.b32.xlu0 %v275, 32
      %v373 = vpop.permute.xlu0 %372
      %374 = vrot.lane.b32.xlu0 %v276, 32
      %v375 = vpop.permute.xlu0 %374
      %376 = vrot.lane.b32.xlu0 %v277, 32
      %v377 = vpop.permute.xlu0 %376
      %378 = vrot.lane.b32.xlu0 %v278, 32
      %v379 = vpop.permute.xlu0 %378
      %380 = vrot.lane.b32.xlu0 %v279, 32
      %v381 = vpop.permute.xlu0 %380
      %382 = vrot.lane.b32.xlu0 %v280, 32
      %v383 = vpop.permute.xlu0 %382
      %384 = vrot.lane.b32.xlu0 %v281, 32
      %v385 = vpop.permute.xlu0 %384
      %386 = vrot.lane.b32.xlu0 %v282, 32
      %v387 = vpop.permute.xlu0 %386
      %388 = vrot.lane.b32.xlu0 %v283, 32
      %v389 = vpop.permute.xlu0 %388
      %390 = vrot.lane.b32.xlu0 %v284, 32
      %v391 = vpop.permute.xlu0 %390
      %392 = vrot.lane.b32.xlu0 %v285, 32
      %v393 = vpop.permute.xlu0 %392
      %394 = vrot.lane.b32.xlu0 %v286, 32
      %v395 = vpop.permute.xlu0 %394
      %396 = vrot.lane.b32.xlu0 %v287, 32
      %v397 = vpop.permute.xlu0 %396
      %398 = vrot.lane.b32.xlu0 %v288, 32
      %v399 = vpop.permute.xlu0 %398
      %400 = vrot.lane.b32.xlu0 %v289, 32
      %v401 = vpop.permute.xlu0 %400
      %vm402 = vcmask 261120
      %v403 = vsel %vm402, %v339, %v341
      %v404 = vsel %vm402, %v341, %v343
      %v405 = vsel %vm402, %v343, %v345
      %v406 = vsel %vm402, %v345, %v347
      %v407 = vsel %vm402, %v347, %v349
      %v408 = vsel %vm402, %v349, %v351
      %v409 = vsel %vm402, %v351, %v353
      %v410 = vsel %vm402, %v355, %v357
      %v411 = vsel %vm402, %v357, %v359
      %v412 = vsel %vm402, %v359, %v361
      %v413 = vsel %vm402, %v361, %v363
      %v414 = vsel %vm402, %v363, %v365
      %v415 = vsel %vm402, %v365, %v367
      %v416 = vsel %vm402, %v367, %v369
      %v417 = vsel %vm402, %v371, %v373
      %v418 = vsel %vm402, %v373, %v375
      %v419 = vsel %vm402, %v375, %v377
      %v420 = vsel %vm402, %v377, %v379
      %v421 = vsel %vm402, %v379, %v381
      %v422 = vsel %vm402, %v381, %v383
      %v423 = vsel %vm402, %v383, %v385
      %v424 = vsel %vm402, %v387, %v389
      %v425 = vsel %vm402, %v389, %v391
      %v426 = vsel %vm402, %v391, %v393
      %v427 = vsel %vm402, %v393, %v395
      %v428 = vsel %vm402, %v395, %v397
      %v429 = vsel %vm402, %v397, %v399
      %v430 = vsel %vm402, %v399, %v401
      %v463 = vsel %vm402, 0.0, %v339
      %v464 = vsel %vm402, 0.0, %v355
      %v465 = vsel %vm402, 0.0, %v371
      %v466 = vsel %vm402, 0.0, %v387
      %vm471 = vcmask 1040384
      %v472 = vrot.slane %v463, 7
      %v473 = vrot.slane %v403, 7
      %v474 = vrot.slane %v404, 7
      %v475 = vrot.slane %v405, 7
      %v476 = vrot.slane %v406, 7
      %v477 = vrot.slane %v407, 7
      %v478 = vrot.slane %v408, 7
      %v479 = vrot.slane %v409, 7
      %v480 = vrot.slane %v464, 7
      %v481 = vsel %vm471, %v472, %v480
      %v482 = vrot.slane %v410, 7
      %v483 = vsel %vm471, %v473, %v482
      %v484 = vrot.slane %v411, 7
      %v485 = vsel %vm471, %v474, %v484
      %v486 = vrot.slane %v412, 7
      %v487 = vsel %vm471, %v475, %v486
      %v488 = vrot.slane %v413, 7
      %v489 = vsel %vm471, %v476, %v488
      %v490 = vrot.slane %v414, 7
      %v491 = vsel %vm471, %v477, %v490
      %v492 = vrot.slane %v415, 7
      %v493 = vsel %vm471, %v478, %v492
      %v494 = vrot.slane %v416, 7
      %v495 = vsel %vm471, %v479, %v494
      %v496 = vrot.slane %v465, 7
      %v497 = vsel %vm471, %v480, %v496
      %v498 = vrot.slane %v417, 7
      %v499 = vsel %vm471, %v482, %v498
      %v500 = vrot.slane %v418, 7
      %v501 = vsel %vm471, %v484, %v500
      %v502 = vrot.slane %v419, 7
      %v503 = vsel %vm471, %v486, %v502
      %v504 = vrot.slane %v420, 7
      %v505 = vsel %vm471, %v488, %v504
      %v506 = vrot.slane %v421, 7
      %v507 = vsel %vm471, %v490, %v506
      %v508 = vrot.slane %v422, 7
      %v509 = vsel %vm471, %v492, %v508
      %v510 = vrot.slane %v423, 7
      %v511 = vsel %vm471, %v494, %v510
      %v512 = vrot.slane %v466, 7
      %v513 = vsel %vm471, %v496, %v512
      %v514 = vrot.slane %v424, 7
      %v515 = vsel %vm471, %v498, %v514
      %v516 = vrot.slane %v425, 7
      %v517 = vsel %vm471, %v500, %v516
      %v518 = vrot.slane %v426, 7
      %v519 = vsel %vm471, %v502, %v518
      %v520 = vrot.slane %v427, 7
      %v521 = vsel %vm471, %v504, %v520
      %v522 = vrot.slane %v428, 7
      %v523 = vsel %vm471, %v506, %v522
      %v524 = vrot.slane %v429, 7
      %v525 = vsel %vm471, %v508, %v524
      %v526 = vrot.slane %v430, 7
      %v527 = vsel %vm471, %v510, %v526
      %v560 = vsel %vm471, 0.0, %v472
      %v561 = vsel %vm471, 0.0, %v473
      %v562 = vsel %vm471, 0.0, %v474
      %v563 = vsel %vm471, 0.0, %v475
      %v564 = vsel %vm471, 0.0, %v476
      %v565 = vsel %vm471, 0.0, %v477
      %v566 = vsel %vm471, 0.0, %v478
      %v567 = vsel %vm471, 0.0, %v479
      %v568 = vlaneseq
      %v569 = vshrl.u32 %v568, 7
      %v570 = vsub.s32 0, %v569
      %v571 = vrot.slane %v290, %v570
      %v572 = vlaneseq
      %v573 = vshrl.u32 %v572, 7
      %v574 = vsub.s32 0, %v573
      %v575 = vrot.slane %v291, %v574
      %v576 = vlaneseq
      %v577 = vshrl.u32 %v576, 7
      %v578 = vsub.s32 0, %v577
      %v579 = vrot.slane %v292, %v578
      %v580 = vlaneseq
      %v581 = vshrl.u32 %v580, 7
      %v582 = vsub.s32 0, %v581
      %v583 = vrot.slane %v293, %v582
      %v584 = vlaneseq
      %v585 = vshrl.u32 %v584, 7
      %v586 = vsub.s32 0, %v585
      %v587 = vrot.slane %v294, %v586
      %v588 = vlaneseq
      %v589 = vshrl.u32 %v588, 7
      %v590 = vsub.s32 0, %v589
      %v591 = vrot.slane %v295, %v590
      %v592 = vlaneseq
      %v593 = vshrl.u32 %v592, 7
      %v594 = vsub.s32 0, %v593
      %v595 = vrot.slane %v296, %v594
      %v596 = vlaneseq
      %v597 = vshrl.u32 %v596, 7
      %v598 = vsub.s32 0, %v597
      %v599 = vrot.slane %v297, %v598
      %v600 = vmul.f32 %v560, %v571
      %v601 = vmul.f32 %v561, %v575
      %v602 = vmul.f32 %v562, %v579
      %v603 = vmul.f32 %v563, %v583
      %v604 = vmul.f32 %v564, %v587
      %v605 = vmul.f32 %v565, %v591
      %v606 = vmul.f32 %v566, %v595
      %v607 = vmul.f32 %v567, %v599
      %v608 = vmul.f32 %v481, %v571
      %v609 = vmul.f32 %v483, %v575
      %v610 = vmul.f32 %v485, %v579
      %v611 = vmul.f32 %v487, %v583
      %v612 = vmul.f32 %v489, %v587
      %v613 = vmul.f32 %v491, %v591
      %v614 = vmul.f32 %v493, %v595
      %v615 = vmul.f32 %v495, %v599
      %v616 = vmul.f32 %v497, %v571
      %v617 = vmul.f32 %v499, %v575
      %v618 = vmul.f32 %v501, %v579
      %v619 = vmul.f32 %v503, %v583
      %v620 = vmul.f32 %v505, %v587
      %v621 = vmul.f32 %v507, %v591
      %v622 = vmul.f32 %v509, %v595
      %v623 = vmul.f32 %v511, %v599
      %v624 = vmul.f32 %v513, %v571
      %v625 = vmul.f32 %v515, %v575
      %v626 = vmul.f32 %v517, %v579
      %v627 = vmul.f32 %v519, %v583
      %v628 = vmul.f32 %v521, %v587
      %v629 = vmul.f32 %v523, %v591
      %v630 = vmul.f32 %v525, %v595
      %v631 = vmul.f32 %v527, %v599
      %v632 = vadd.f32 %v600, 0.0
      %v633 = vadd.f32 %v601, 0.0
      %v634 = vadd.f32 %v602, 0.0
      %v635 = vadd.f32 %v603, 0.0
      %v636 = vadd.f32 %v604, 0.0
      %v637 = vadd.f32 %v605, 0.0
      %v638 = vadd.f32 %v606, 0.0
      %v639 = vadd.f32 %v607, 0.0
      %v640 = vadd.f32 %v608, 0.0
      %v641 = vadd.f32 %v609, 0.0
      %v642 = vadd.f32 %v610, 0.0
      %v643 = vadd.f32 %v611, 0.0
      %v644 = vadd.f32 %v612, 0.0
      %v645 = vadd.f32 %v613, 0.0
      %v646 = vadd.f32 %v614, 0.0
      %v647 = vadd.f32 %v615, 0.0
      %v648 = vadd.f32 %v616, 0.0
      %v649 = vadd.f32 %v617, 0.0
      %v650 = vadd.f32 %v618, 0.0
      %v651 = vadd.f32 %v619, 0.0
      %v652 = vadd.f32 %v620, 0.0
      %v653 = vadd.f32 %v621, 0.0
      %v654 = vadd.f32 %v622, 0.0
      %v655 = vadd.f32 %v623, 0.0
      %v656 = vadd.f32 %v624, 0.0
      %v657 = vadd.f32 %v625, 0.0
      %v658 = vadd.f32 %v626, 0.0
      %v659 = vadd.f32 %v627, 0.0
      %v660 = vadd.f32 %v628, 0.0
      %v661 = vadd.f32 %v629, 0.0
      %v662 = vadd.f32 %v630, 0.0
      %v663 = vadd.f32 %v631, 0.0
      %v664 = vrot.slane %v258, 7
      %v665 = vrot.slane %v259, 7
      %v666 = vrot.slane %v260, 7
      %v667 = vrot.slane %v261, 7
      %v668 = vrot.slane %v262, 7
      %v669 = vrot.slane %v263, 7
      %v670 = vrot.slane %v264, 7
      %v671 = vrot.slane %v265, 7
      %v672 = vrot.slane %v266, 7
      %v673 = vsel %vm471, %v664, %v672
      %v674 = vrot.slane %v267, 7
      %v675 = vsel %vm471, %v665, %v674
      %v676 = vrot.slane %v268, 7
      %v677 = vsel %vm471, %v666, %v676
      %v678 = vrot.slane %v269, 7
      %v679 = vsel %vm471, %v667, %v678
      %v680 = vrot.slane %v270, 7
      %v681 = vsel %vm471, %v668, %v680
      %v682 = vrot.slane %v271, 7
      %v683 = vsel %vm471, %v669, %v682
      %v684 = vrot.slane %v272, 7
      %v685 = vsel %vm471, %v670, %v684
      %v686 = vrot.slane %v273, 7
      %v687 = vsel %vm471, %v671, %v686
      %v688 = vrot.slane %v274, 7
      %v689 = vsel %vm471, %v672, %v688
      %v690 = vrot.slane %v275, 7
      %v691 = vsel %vm471, %v674, %v690
      %v692 = vrot.slane %v276, 7
      %v693 = vsel %vm471, %v676, %v692
      %v694 = vrot.slane %v277, 7
      %v695 = vsel %vm471, %v678, %v694
      %v696 = vrot.slane %v278, 7
      %v697 = vsel %vm471, %v680, %v696
      %v698 = vrot.slane %v279, 7
      %v699 = vsel %vm471, %v682, %v698
      %v700 = vrot.slane %v280, 7
      %v701 = vsel %vm471, %v684, %v700
      %v702 = vrot.slane %v281, 7
      %v703 = vsel %vm471, %v686, %v702
      %v704 = vrot.slane %v282, 7
      %v705 = vsel %vm471, %v688, %v704
      %v706 = vrot.slane %v283, 7
      %v707 = vsel %vm471, %v690, %v706
      %v708 = vrot.slane %v284, 7
      %v709 = vsel %vm471, %v692, %v708
      %v710 = vrot.slane %v285, 7
      %v711 = vsel %vm471, %v694, %v710
      %v712 = vrot.slane %v286, 7
      %v713 = vsel %vm471, %v696, %v712
      %v714 = vrot.slane %v287, 7
      %v715 = vsel %vm471, %v698, %v714
      %v716 = vrot.slane %v288, 7
      %v717 = vsel %vm471, %v700, %v716
      %v718 = vrot.slane %v289, 7
      %v719 = vsel %vm471, %v702, %v718
      %v752 = vsel %vm471, 0.0, %v664
      %v753 = vsel %vm471, 0.0, %v665
      %v754 = vsel %vm471, 0.0, %v666
      %v755 = vsel %vm471, 0.0, %v667
      %v756 = vsel %vm471, 0.0, %v668
      %v757 = vsel %vm471, 0.0, %v669
      %v758 = vsel %vm471, 0.0, %v670
      %v759 = vsel %vm471, 0.0, %v671
      %v760 = vlaneseq
      %v761 = vshrl.u32 %v760, 7
      %v762 = vsub.s32 1, %v761
      %v763 = vrot.slane %v290, %v762
      %v764 = vlaneseq
      %v765 = vshrl.u32 %v764, 7
      %v766 = vsub.s32 1, %v765
      %v767 = vrot.slane %v291, %v766
      %v768 = vlaneseq
      %v769 = vshrl.u32 %v768, 7
      %v770 = vsub.s32 1, %v769
      %v771 = vrot.slane %v292, %v770
      %v772 = vlaneseq
      %v773 = vshrl.u32 %v772, 7
      %v774 = vsub.s32 1, %v773
      %v775 = vrot.slane %v293, %v774
      %v776 = vlaneseq
      %v777 = vshrl.u32 %v776, 7
      %v778 = vsub.s32 1, %v777
      %v779 = vrot.slane %v294, %v778
      %v780 = vlaneseq
      %v781 = vshrl.u32 %v780, 7
      %v782 = vsub.s32 1, %v781
      %v783 = vrot.slane %v295, %v782
      %v784 = vlaneseq
      %v785 = vshrl.u32 %v784, 7
      %v786 = vsub.s32 1, %v785
      %v787 = vrot.slane %v296, %v786
      %v788 = vlaneseq
      %v789 = vshrl.u32 %v788, 7
      %v790 = vsub.s32 1, %v789
      %v791 = vrot.slane %v297, %v790
      %v792 = vmul.f32 %v752, %v763
      %v793 = vmul.f32 %v753, %v767
      %v794 = vmul.f32 %v754, %v771
      %v795 = vmul.f32 %v755, %v775
      %v796 = vmul.f32 %v756, %v779
      %v797 = vmul.f32 %v757, %v783
      %v798 = vmul.f32 %v758, %v787
      %v799 = vmul.f32 %v759, %v791
      %v800 = vmul.f32 %v673, %v763
      %v801 = vmul.f32 %v675, %v767
      %v802 = vmul.f32 %v677, %v771
      %v803 = vmul.f32 %v679, %v775
      %v804 = vmul.f32 %v681, %v779
      %v805 = vmul.f32 %v683, %v783
      %v806 = vmul.f32 %v685, %v787
      %v807 = vmul.f32 %v687, %v791
      %v808 = vmul.f32 %v689, %v763
      %v809 = vmul.f32 %v691, %v767
      %v810 = vmul.f32 %v693, %v771
      %v811 = vmul.f32 %v695, %v775
      %v812 = vmul.f32 %v697, %v779
      %v813 = vmul.f32 %v699, %v783
      %v814 = vmul.f32 %v701, %v787
      %v815 = vmul.f32 %v703, %v791
      %v816 = vmul.f32 %v705, %v763
      %v817 = vmul.f32 %v707, %v767
      %v818 = vmul.f32 %v709, %v771
      %v819 = vmul.f32 %v711, %v775
      %v820 = vmul.f32 %v713, %v779
      %v821 = vmul.f32 %v715, %v783
      %v822 = vmul.f32 %v717, %v787
      %v823 = vmul.f32 %v719, %v791
      %v824 = vadd.f32 %v632, %v792
      %v825 = vadd.f32 %v633, %v793
      %v826 = vadd.f32 %v634, %v794
      %v827 = vadd.f32 %v635, %v795
      %v828 = vadd.f32 %v636, %v796
      %v829 = vadd.f32 %v637, %v797
      %v830 = vadd.f32 %v638, %v798
      %v831 = vadd.f32 %v639, %v799
      %v832 = vadd.f32 %v640, %v800
      %v833 = vadd.f32 %v641, %v801
      %v834 = vadd.f32 %v642, %v802
      %v835 = vadd.f32 %v643, %v803
      %v836 = vadd.f32 %v644, %v804
      %v837 = vadd.f32 %v645, %v805
      %v838 = vadd.f32 %v646, %v806
      %v839 = vadd.f32 %v647, %v807
      %v840 = vadd.f32 %v648, %v808
      %v841 = vadd.f32 %v649, %v809
      %v842 = vadd.f32 %v650, %v810
      %v843 = vadd.f32 %v651, %v811
      %v844 = vadd.f32 %v652, %v812
      %v845 = vadd.f32 %v653, %v813
      %v846 = vadd.f32 %v654, %v814
      %v847 = vadd.f32 %v655, %v815
      %v848 = vadd.f32 %v656, %v816
      %v849 = vadd.f32 %v657, %v817
      %v850 = vadd.f32 %v658, %v818
      %v851 = vadd.f32 %v659, %v819
      %v852 = vadd.f32 %v660, %v820
      %v853 = vadd.f32 %v661, %v821
      %v854 = vadd.f32 %v662, %v822
      %v855 = vadd.f32 %v663, %v823
      %856 = vrot.lane.b32.xlu0 %v258, 96
      %v857 = vpop.permute.xlu0 %856
      %858 = vrot.lane.b32.xlu0 %v259, 96
      %v859 = vpop.permute.xlu0 %858
      %860 = vrot.lane.b32.xlu0 %v260, 96
      %v861 = vpop.permute.xlu0 %860
      %862 = vrot.lane.b32.xlu0 %v261, 96
      %v863 = vpop.permute.xlu0 %862
      %864 = vrot.lane.b32.xlu0 %v262, 96
      %v865 = vpop.permute.xlu0 %864
      %866 = vrot.lane.b32.xlu0 %v263, 96
      %v867 = vpop.permute.xlu0 %866
      %868 = vrot.lane.b32.xlu0 %v264, 96
      %v869 = vpop.permute.xlu0 %868
      %870 = vrot.lane.b32.xlu0 %v265, 96
      %v871 = vpop.permute.xlu0 %870
      %872 = vrot.lane.b32.xlu0 %v266, 96
      %v873 = vpop.permute.xlu0 %872
      %874 = vrot.lane.b32.xlu0 %v267, 96
      %v875 = vpop.permute.xlu0 %874
      %876 = vrot.lane.b32.xlu0 %v268, 96
      %v877 = vpop.permute.xlu0 %876
      %878 = vrot.lane.b32.xlu0 %v269, 96
      %v879 = vpop.permute.xlu0 %878
      %880 = vrot.lane.b32.xlu0 %v270, 96
      %v881 = vpop.permute.xlu0 %880
      %882 = vrot.lane.b32.xlu0 %v271, 96
      %v883 = vpop.permute.xlu0 %882
      %884 = vrot.lane.b32.xlu0 %v272, 96
      %v885 = vpop.permute.xlu0 %884
      %886 = vrot.lane.b32.xlu0 %v273, 96
      %v887 = vpop.permute.xlu0 %886
      %888 = vrot.lane.b32.xlu0 %v274, 96
      %v889 = vpop.permute.xlu0 %888
      %890 = vrot.lane.b32.xlu0 %v275, 96
      %v891 = vpop.permute.xlu0 %890
      %892 = vrot.lane.b32.xlu0 %v276, 96
      %v893 = vpop.permute.xlu0 %892
      %894 = vrot.lane.b32.xlu0 %v277, 96
      %v895 = vpop.permute.xlu0 %894
      %896 = vrot.lane.b32.xlu0 %v278, 96
      %v897 = vpop.permute.xlu0 %896
      %898 = vrot.lane.b32.xlu0 %v279, 96
      %v899 = vpop.permute.xlu0 %898
      %900 = vrot.lane.b32.xlu0 %v280, 96
      %v901 = vpop.permute.xlu0 %900
      %902 = vrot.lane.b32.xlu0 %v281, 96
      %v903 = vpop.permute.xlu0 %902
      %904 = vrot.lane.b32.xlu0 %v282, 96
      %v905 = vpop.permute.xlu0 %904
      %906 = vrot.lane.b32.xlu0 %v283, 96
      %v907 = vpop.permute.xlu0 %906
      %908 = vrot.lane.b32.xlu0 %v284, 96
      %v909 = vpop.permute.xlu0 %908
      %910 = vrot.lane.b32.xlu0 %v285, 96
      %v911 = vpop.permute.xlu0 %910
      %912 = vrot.lane.b32.xlu0 %v286, 96
      %v913 = vpop.permute.xlu0 %912
      %914 = vrot.lane.b32.xlu0 %v287, 96
      %v915 = vpop.permute.xlu0 %914
      %916 = vrot.lane.b32.xlu0 %v288, 96
      %v917 = vpop.permute.xlu0 %916
      %918 = vrot.lane.b32.xlu0 %v289, 96
      %v919 = vpop.permute.xlu0 %918
      %vm920 = vcmask 785408
      %v921 = vsel %vm920, %v857, %v859
      %v922 = vsel %vm920, %v859, %v861
      %v923 = vsel %vm920, %v861, %v863
      %v924 = vsel %vm920, %v863, %v865
      %v925 = vsel %vm920, %v865, %v867
      %v926 = vsel %vm920, %v867, %v869
      %v927 = vsel %vm920, %v869, %v871
      %v928 = vsel %vm920, %v873, %v875
      %v929 = vsel %vm920, %v875, %v877
      %v930 = vsel %vm920, %v877, %v879
      %v931 = vsel %vm920, %v879, %v881
      %v932 = vsel %vm920, %v881, %v883
      %v933 = vsel %vm920, %v883, %v885
      %v934 = vsel %vm920, %v885, %v887
      %v935 = vsel %vm920, %v889, %v891
      %v936 = vsel %vm920, %v891, %v893
      %v937 = vsel %vm920, %v893, %v895
      %v938 = vsel %vm920, %v895, %v897
      %v939 = vsel %vm920, %v897, %v899
      %v940 = vsel %vm920, %v899, %v901
      %v941 = vsel %vm920, %v901, %v903
      %v942 = vsel %vm920, %v905, %v907
      %v943 = vsel %vm920, %v907, %v909
      %v944 = vsel %vm920, %v909, %v911
      %v945 = vsel %vm920, %v911, %v913
      %v946 = vsel %vm920, %v913, %v915
      %v947 = vsel %vm920, %v915, %v917
      %v948 = vsel %vm920, %v917, %v919
      %v981 = vsel %vm920, %v871, 0.0
      %v982 = vsel %vm920, %v887, 0.0
      %v983 = vsel %vm920, %v903, 0.0
      %v984 = vsel %vm920, %v919, 0.0
      %v989 = vrot.slane %v921, 7
      %v990 = vrot.slane %v922, 7
      %v991 = vrot.slane %v923, 7
      %v992 = vrot.slane %v924, 7
      %v993 = vrot.slane %v925, 7
      %v994 = vrot.slane %v926, 7
      %v995 = vrot.slane %v927, 7
      %v996 = vrot.slane %v981, 7
      %v997 = vrot.slane %v928, 7
      %v998 = vsel %vm471, %v989, %v997
      %v999 = vrot.slane %v929, 7
      %v1000 = vsel %vm471, %v990, %v999
      %v1001 = vrot.slane %v930, 7
      %v1002 = vsel %vm471, %v991, %v1001
      %v1003 = vrot.slane %v931, 7
      %v1004 = vsel %vm471, %v992, %v1003
      %v1005 = vrot.slane %v932, 7
      %v1006 = vsel %vm471, %v993, %v1005
      %v1007 = vrot.slane %v933, 7
      %v1008 = vsel %vm471, %v994, %v1007
      %v1009 = vrot.slane %v934, 7
      %v1010 = vsel %vm471, %v995, %v1009
      %v1011 = vrot.slane %v982, 7
      %v1012 = vsel %vm471, %v996, %v1011
      %v1013 = vrot.slane %v935, 7
      %v1014 = vsel %vm471, %v997, %v1013
      %v1015 = vrot.slane %v936, 7
      %v1016 = vsel %vm471, %v999, %v1015
      %v1017 = vrot.slane %v937, 7
      %v1018 = vsel %vm471, %v1001, %v1017
      %v1019 = vrot.slane %v938, 7
      %v1020 = vsel %vm471, %v1003, %v1019
      %v1021 = vrot.slane %v939, 7
      %v1022 = vsel %vm471, %v1005, %v1021
      %v1023 = vrot.slane %v940, 7
      %v1024 = vsel %vm471, %v1007, %v1023
      %v1025 = vrot.slane %v941, 7
      %v1026 = vsel %vm471, %v1009, %v1025
      %v1027 = vrot.slane %v983, 7
      %v1028 = vsel %vm471, %v1011, %v1027
      %v1029 = vrot.slane %v942, 7
      %v1030 = vsel %vm471, %v1013, %v1029
      %v1031 = vrot.slane %v943, 7
      %v1032 = vsel %vm471, %v1015, %v1031
      %v1033 = vrot.slane %v944, 7
      %v1034 = vsel %vm471, %v1017, %v1033
      %v1035 = vrot.slane %v945, 7
      %v1036 = vsel %vm471, %v1019, %v1035
      %v1037 = vrot.slane %v946, 7
      %v1038 = vsel %vm471, %v1021, %v1037
      %v1039 = vrot.slane %v947, 7
      %v1040 = vsel %vm471, %v1023, %v1039
      %v1041 = vrot.slane %v948, 7
      %v1042 = vsel %vm471, %v1025, %v1041
      %v1043 = vrot.slane %v984, 7
      %v1044 = vsel %vm471, %v1027, %v1043
      %v1077 = vsel %vm471, 0.0, %v989
      %v1078 = vsel %vm471, 0.0, %v990
      %v1079 = vsel %vm471, 0.0, %v991
      %v1080 = vsel %vm471, 0.0, %v992
      %v1081 = vsel %vm471, 0.0, %v993
      %v1082 = vsel %vm471, 0.0, %v994
      %v1083 = vsel %vm471, 0.0, %v995
      %v1084 = vsel %vm471, 0.0, %v996
      %v1085 = vlaneseq
      %v1086 = vshrl.u32 %v1085, 7
      %v1087 = vsub.s32 2, %v1086
      %v1088 = vrot.slane %v290, %v1087
      %v1089 = vlaneseq
      %v1090 = vshrl.u32 %v1089, 7
      %v1091 = vsub.s32 2, %v1090
      %v1092 = vrot.slane %v291, %v1091
      %v1093 = vlaneseq
      %v1094 = vshrl.u32 %v1093, 7
      %v1095 = vsub.s32 2, %v1094
      %v1096 = vrot.slane %v292, %v1095
      %v1097 = vlaneseq
      %v1098 = vshrl.u32 %v1097, 7
      %v1099 = vsub.s32 2, %v1098
      %v1100 = vrot.slane %v293, %v1099
      %v1101 = vlaneseq
      %v1102 = vshrl.u32 %v1101, 7
      %v1103 = vsub.s32 2, %v1102
      %v1104 = vrot.slane %v294, %v1103
      %v1105 = vlaneseq
      %v1106 = vshrl.u32 %v1105, 7
      %v1107 = vsub.s32 2, %v1106
      %v1108 = vrot.slane %v295, %v1107
      %v1109 = vlaneseq
      %v1110 = vshrl.u32 %v1109, 7
      %v1111 = vsub.s32 2, %v1110
      %v1112 = vrot.slane %v296, %v1111
      %v1113 = vlaneseq
      %v1114 = vshrl.u32 %v1113, 7
      %v1115 = vsub.s32 2, %v1114
      %v1116 = vrot.slane %v297, %v1115
      %v1117 = vmul.f32 %v1077, %v1088
      %v1118 = vmul.f32 %v1078, %v1092
      %v1119 = vmul.f32 %v1079, %v1096
      %v1120 = vmul.f32 %v1080, %v1100
      %v1121 = vmul.f32 %v1081, %v1104
      %v1122 = vmul.f32 %v1082, %v1108
      %v1123 = vmul.f32 %v1083, %v1112
      %v1124 = vmul.f32 %v1084, %v1116
      %v1125 = vmul.f32 %v998, %v1088
      %v1126 = vmul.f32 %v1000, %v1092
      %v1127 = vmul.f32 %v1002, %v1096
      %v1128 = vmul.f32 %v1004, %v1100
      %v1129 = vmul.f32 %v1006, %v1104
      %v1130 = vmul.f32 %v1008, %v1108
      %v1131 = vmul.f32 %v1010, %v1112
      %v1132 = vmul.f32 %v1012, %v1116
      %v1133 = vmul.f32 %v1014, %v1088
      %v1134 = vmul.f32 %v1016, %v1092
      %v1135 = vmul.f32 %v1018, %v1096
      %v1136 = vmul.f32 %v1020, %v1100
      %v1137 = vmul.f32 %v1022, %v1104
      %v1138 = vmul.f32 %v1024, %v1108
      %v1139 = vmul.f32 %v1026, %v1112
      %v1140 = vmul.f32 %v1028, %v1116
      %v1141 = vmul.f32 %v1030, %v1088
      %v1142 = vmul.f32 %v1032, %v1092
      %v1143 = vmul.f32 %v1034, %v1096
      %v1144 = vmul.f32 %v1036, %v1100
      %v1145 = vmul.f32 %v1038, %v1104
      %v1146 = vmul.f32 %v1040, %v1108
      %v1147 = vmul.f32 %v1042, %v1112
      %v1148 = vmul.f32 %v1044, %v1116
      %v1149 = vadd.f32 %v824, %v1117
      %v1150 = vadd.f32 %v825, %v1118
      %v1151 = vadd.f32 %v826, %v1119
      %v1152 = vadd.f32 %v827, %v1120
      %v1153 = vadd.f32 %v828, %v1121
      %v1154 = vadd.f32 %v829, %v1122
      %v1155 = vadd.f32 %v830, %v1123
      %v1156 = vadd.f32 %v831, %v1124
      %v1157 = vadd.f32 %v832, %v1125
      %v1158 = vadd.f32 %v833, %v1126
      %v1159 = vadd.f32 %v834, %v1127
      %v1160 = vadd.f32 %v835, %v1128
      %v1161 = vadd.f32 %v836, %v1129
      %v1162 = vadd.f32 %v837, %v1130
      %v1163 = vadd.f32 %v838, %v1131
      %v1164 = vadd.f32 %v839, %v1132
      %v1165 = vadd.f32 %v840, %v1133
      %v1166 = vadd.f32 %v841, %v1134
      %v1167 = vadd.f32 %v842, %v1135
      %v1168 = vadd.f32 %v843, %v1136
      %v1169 = vadd.f32 %v844, %v1137
      %v1170 = vadd.f32 %v845, %v1138
      %v1171 = vadd.f32 %v846, %v1139
      %v1172 = vadd.f32 %v847, %v1140
      %v1173 = vadd.f32 %v848, %v1141
      %v1174 = vadd.f32 %v849, %v1142
      %v1175 = vadd.f32 %v850, %v1143
      %v1176 = vadd.f32 %v851, %v1144
      %v1177 = vadd.f32 %v852, %v1145
      %v1178 = vadd.f32 %v853, %v1146
      %v1179 = vadd.f32 %v854, %v1147
      %v1180 = vadd.f32 %v855, %v1148
      %v1181 = vlaneseq
      %v1182 = vshrl.u32 %v1181, 7
      %v1183 = vsub.s32 3, %v1182
      %v1184 = vrot.slane %v290, %v1183
      %v1185 = vlaneseq
      %v1186 = vshrl.u32 %v1185, 7
      %v1187 = vsub.s32 3, %v1186
      %v1188 = vrot.slane %v291, %v1187
      %v1189 = vlaneseq
      %v1190 = vshrl.u32 %v1189, 7
      %v1191 = vsub.s32 3, %v1190
      %v1192 = vrot.slane %v292, %v1191
      %v1193 = vlaneseq
      %v1194 = vshrl.u32 %v1193, 7
      %v1195 = vsub.s32 3, %v1194
      %v1196 = vrot.slane %v293, %v1195
      %v1197 = vlaneseq
      %v1198 = vshrl.u32 %v1197, 7
      %v1199 = vsub.s32 3, %v1198
      %v1200 = vrot.slane %v294, %v1199
      %v1201 = vlaneseq
      %v1202 = vshrl.u32 %v1201, 7
      %v1203 = vsub.s32 3, %v1202
      %v1204 = vrot.slane %v295, %v1203
      %v1205 = vlaneseq
      %v1206 = vshrl.u32 %v1205, 7
      %v1207 = vsub.s32 3, %v1206
      %v1208 = vrot.slane %v296, %v1207
      %v1209 = vlaneseq
      %v1210 = vshrl.u32 %v1209, 7
      %v1211 = vsub.s32 3, %v1210
      %v1212 = vrot.slane %v297, %v1211
      %v1213 = vmul.f32 %v463, %v1184
      %v1214 = vmul.f32 %v403, %v1188
      %v1215 = vmul.f32 %v404, %v1192
      %v1216 = vmul.f32 %v405, %v1196
      %v1217 = vmul.f32 %v406, %v1200
      %v1218 = vmul.f32 %v407, %v1204
      %v1219 = vmul.f32 %v408, %v1208
      %v1220 = vmul.f32 %v409, %v1212
      %v1221 = vmul.f32 %v464, %v1184
      %v1222 = vmul.f32 %v410, %v1188
      %v1223 = vmul.f32 %v411, %v1192
      %v1224 = vmul.f32 %v412, %v1196
      %v1225 = vmul.f32 %v413, %v1200
      %v1226 = vmul.f32 %v414, %v1204
      %v1227 = vmul.f32 %v415, %v1208
      %v1228 = vmul.f32 %v416, %v1212
      %v1229 = vmul.f32 %v465, %v1184
      %v1230 = vmul.f32 %v417, %v1188
      %v1231 = vmul.f32 %v418, %v1192
      %v1232 = vmul.f32 %v419, %v1196
      %v1233 = vmul.f32 %v420, %v1200
      %v1234 = vmul.f32 %v421, %v1204
      %v1235 = vmul.f32 %v422, %v1208
      %v1236 = vmul.f32 %v423, %v1212
      %v1237 = vmul.f32 %v466, %v1184
      %v1238 = vmul.f32 %v424, %v1188
      %v1239 = vmul.f32 %v425, %v1192
      %v1240 = vmul.f32 %v426, %v1196
      %v1241 = vmul.f32 %v427, %v1200
      %v1242 = vmul.f32 %v428, %v1204
      %v1243 = vmul.f32 %v429, %v1208
      %v1244 = vmul.f32 %v430, %v1212
      %v1245 = vadd.f32 %v1149, %v1213
      %v1246 = vadd.f32 %v1150, %v1214
      %v1247 = vadd.f32 %v1151, %v1215
      %v1248 = vadd.f32 %v1152, %v1216
      %v1249 = vadd.f32 %v1153, %v1217
      %v1250 = vadd.f32 %v1154, %v1218
      %v1251 = vadd.f32 %v1155, %v1219
      %v1252 = vadd.f32 %v1156, %v1220
      %v1253 = vadd.f32 %v1157, %v1221
      %v1254 = vadd.f32 %v1158, %v1222
      %v1255 = vadd.f32 %v1159, %v1223
      %v1256 = vadd.f32 %v1160, %v1224
      %v1257 = vadd.f32 %v1161, %v1225
      %v1258 = vadd.f32 %v1162, %v1226
      %v1259 = vadd.f32 %v1163, %v1227
      %v1260 = vadd.f32 %v1164, %v1228
      %v1261 = vadd.f32 %v1165, %v1229
      %v1262 = vadd.f32 %v1166, %v1230
      %v1263 = vadd.f32 %v1167, %v1231
      %v1264 = vadd.f32 %v1168, %v1232
      %v1265 = vadd.f32 %v1169, %v1233
      %v1266 = vadd.f32 %v1170, %v1234
      %v1267 = vadd.f32 %v1171, %v1235
      %v1268 = vadd.f32 %v1172, %v1236
      %v1269 = vadd.f32 %v1173, %v1237
      %v1270 = vadd.f32 %v1174, %v1238
      %v1271 = vadd.f32 %v1175, %v1239
      %v1272 = vadd.f32 %v1176, %v1240
      %v1273 = vadd.f32 %v1177, %v1241
      %v1274 = vadd.f32 %v1178, %v1242
      %v1275 = vadd.f32 %v1179, %v1243
      %v1276 = vadd.f32 %v1180, %v1244
      %v1277 = vlaneseq
      %v1278 = vshrl.u32 %v1277, 7
      %v1279 = vsub.s32 4, %v1278
      %v1280 = vrot.slane %v290, %v1279
      %v1281 = vlaneseq
      %v1282 = vshrl.u32 %v1281, 7
      %v1283 = vsub.s32 4, %v1282
      %v1284 = vrot.slane %v291, %v1283
      %v1285 = vlaneseq
      %v1286 = vshrl.u32 %v1285, 7
      %v1287 = vsub.s32 4, %v1286
      %v1288 = vrot.slane %v292, %v1287
      %v1289 = vlaneseq
      %v1290 = vshrl.u32 %v1289, 7
      %v1291 = vsub.s32 4, %v1290
      %v1292 = vrot.slane %v293, %v1291
      %v1293 = vlaneseq
      %v1294 = vshrl.u32 %v1293, 7
      %v1295 = vsub.s32 4, %v1294
      %v1296 = vrot.slane %v294, %v1295
      %v1297 = vlaneseq
      %v1298 = vshrl.u32 %v1297, 7
      %v1299 = vsub.s32 4, %v1298
      %v1300 = vrot.slane %v295, %v1299
      %v1301 = vlaneseq
      %v1302 = vshrl.u32 %v1301, 7
      %v1303 = vsub.s32 4, %v1302
      %v1304 = vrot.slane %v296, %v1303
      %v1305 = vlaneseq
      %v1306 = vshrl.u32 %v1305, 7
      %v1307 = vsub.s32 4, %v1306
      %v1308 = vrot.slane %v297, %v1307
      %v1309 = vmul.f32 %v258, %v1280
      %v1310 = vmul.f32 %v259, %v1284
      %v1311 = vmul.f32 %v260, %v1288
      %v1312 = vmul.f32 %v261, %v1292
      %v1313 = vmul.f32 %v262, %v1296
      %v1314 = vmul.f32 %v263, %v1300
      %v1315 = vmul.f32 %v264, %v1304
      %v1316 = vmul.f32 %v265, %v1308
      %v1317 = vmul.f32 %v266, %v1280
      %v1318 = vmul.f32 %v267, %v1284
      %v1319 = vmul.f32 %v268, %v1288
      %v1320 = vmul.f32 %v269, %v1292
      %v1321 = vmul.f32 %v270, %v1296
      %v1322 = vmul.f32 %v271, %v1300
      %v1323 = vmul.f32 %v272, %v1304
      %v1324 = vmul.f32 %v273, %v1308
      %v1325 = vmul.f32 %v274, %v1280
      %v1326 = vmul.f32 %v275, %v1284
      %v1327 = vmul.f32 %v276, %v1288
      %v1328 = vmul.f32 %v277, %v1292
      %v1329 = vmul.f32 %v278, %v1296
      %v1330 = vmul.f32 %v279, %v1300
      %v1331 = vmul.f32 %v280, %v1304
      %v1332 = vmul.f32 %v281, %v1308
      %v1333 = vmul.f32 %v282, %v1280
      %v1334 = vmul.f32 %v283, %v1284
      %v1335 = vmul.f32 %v284, %v1288
      %v1336 = vmul.f32 %v285, %v1292
      %v1337 = vmul.f32 %v286, %v1296
      %v1338 = vmul.f32 %v287, %v1300
      %v1339 = vmul.f32 %v288, %v1304
      %v1340 = vmul.f32 %v289, %v1308
      %v1341 = vadd.f32 %v1245, %v1309
      %v1342 = vadd.f32 %v1246, %v1310
      %v1343 = vadd.f32 %v1247, %v1311
      %v1344 = vadd.f32 %v1248, %v1312
      %v1345 = vadd.f32 %v1249, %v1313
      %v1346 = vadd.f32 %v1250, %v1314
      %v1347 = vadd.f32 %v1251, %v1315
      %v1348 = vadd.f32 %v1252, %v1316
      %v1349 = vadd.f32 %v1253, %v1317
      %v1350 = vadd.f32 %v1254, %v1318
      %v1351 = vadd.f32 %v1255, %v1319
      %v1352 = vadd.f32 %v1256, %v1320
      %v1353 = vadd.f32 %v1257, %v1321
      %v1354 = vadd.f32 %v1258, %v1322
      %v1355 = vadd.f32 %v1259, %v1323
      %v1356 = vadd.f32 %v1260, %v1324
      %v1357 = vadd.f32 %v1261, %v1325
      %v1358 = vadd.f32 %v1262, %v1326
      %v1359 = vadd.f32 %v1263, %v1327
      %v1360 = vadd.f32 %v1264, %v1328
      %v1361 = vadd.f32 %v1265, %v1329
      %v1362 = vadd.f32 %v1266, %v1330
      %v1363 = vadd.f32 %v1267, %v1331
      %v1364 = vadd.f32 %v1268, %v1332
      %v1365 = vadd.f32 %v1269, %v1333
      %v1366 = vadd.f32 %v1270, %v1334
      %v1367 = vadd.f32 %v1271, %v1335
      %v1368 = vadd.f32 %v1272, %v1336
      %v1369 = vadd.f32 %v1273, %v1337
      %v1370 = vadd.f32 %v1274, %v1338
      %v1371 = vadd.f32 %v1275, %v1339
      %v1372 = vadd.f32 %v1276, %v1340
      %v1373 = vlaneseq
      %v1374 = vshrl.u32 %v1373, 7
      %v1375 = vsub.s32 5, %v1374
      %v1376 = vrot.slane %v290, %v1375
      %v1377 = vlaneseq
      %v1378 = vshrl.u32 %v1377, 7
      %v1379 = vsub.s32 5, %v1378
      %v1380 = vrot.slane %v291, %v1379
      %v1381 = vlaneseq
      %v1382 = vshrl.u32 %v1381, 7
      %v1383 = vsub.s32 5, %v1382
      %v1384 = vrot.slane %v292, %v1383
      %v1385 = vlaneseq
      %v1386 = vshrl.u32 %v1385, 7
      %v1387 = vsub.s32 5, %v1386
      %v1388 = vrot.slane %v293, %v1387
      %v1389 = vlaneseq
      %v1390 = vshrl.u32 %v1389, 7
      %v1391 = vsub.s32 5, %v1390
      %v1392 = vrot.slane %v294, %v1391
      %v1393 = vlaneseq
      %v1394 = vshrl.u32 %v1393, 7
      %v1395 = vsub.s32 5, %v1394
      %v1396 = vrot.slane %v295, %v1395
      %v1397 = vlaneseq
      %v1398 = vshrl.u32 %v1397, 7
      %v1399 = vsub.s32 5, %v1398
      %v1400 = vrot.slane %v296, %v1399
      %v1401 = vlaneseq
      %v1402 = vshrl.u32 %v1401, 7
      %v1403 = vsub.s32 5, %v1402
      %v1404 = vrot.slane %v297, %v1403
      %v1405 = vmul.f32 %v921, %v1376
      %v1406 = vmul.f32 %v922, %v1380
      %v1407 = vmul.f32 %v923, %v1384
      %v1408 = vmul.f32 %v924, %v1388
      %v1409 = vmul.f32 %v925, %v1392
      %v1410 = vmul.f32 %v926, %v1396
      %v1411 = vmul.f32 %v927, %v1400
      %v1412 = vmul.f32 %v981, %v1404
      %v1413 = vmul.f32 %v928, %v1376
      %v1414 = vmul.f32 %v929, %v1380
      %v1415 = vmul.f32 %v930, %v1384
      %v1416 = vmul.f32 %v931, %v1388
      %v1417 = vmul.f32 %v932, %v1392
      %v1418 = vmul.f32 %v933, %v1396
      %v1419 = vmul.f32 %v934, %v1400
      %v1420 = vmul.f32 %v982, %v1404
      %v1421 = vmul.f32 %v935, %v1376
      %v1422 = vmul.f32 %v936, %v1380
      %v1423 = vmul.f32 %v937, %v1384
      %v1424 = vmul.f32 %v938, %v1388
      %v1425 = vmul.f32 %v939, %v1392
      %v1426 = vmul.f32 %v940, %v1396
      %v1427 = vmul.f32 %v941, %v1400
      %v1428 = vmul.f32 %v983, %v1404
      %v1429 = vmul.f32 %v942, %v1376
      %v1430 = vmul.f32 %v943, %v1380
      %v1431 = vmul.f32 %v944, %v1384
      %v1432 = vmul.f32 %v945, %v1388
      %v1433 = vmul.f32 %v946, %v1392
      %v1434 = vmul.f32 %v947, %v1396
      %v1435 = vmul.f32 %v948, %v1400
      %v1436 = vmul.f32 %v984, %v1404
      %v1437 = vadd.f32 %v1341, %v1405
      %v1438 = vadd.f32 %v1342, %v1406
      %v1439 = vadd.f32 %v1343, %v1407
      %v1440 = vadd.f32 %v1344, %v1408
      %v1441 = vadd.f32 %v1345, %v1409
      %v1442 = vadd.f32 %v1346, %v1410
      %v1443 = vadd.f32 %v1347, %v1411
      %v1444 = vadd.f32 %v1348, %v1412
      %v1445 = vadd.f32 %v1349, %v1413
      %v1446 = vadd.f32 %v1350, %v1414
      %v1447 = vadd.f32 %v1351, %v1415
      %v1448 = vadd.f32 %v1352, %v1416
      %v1449 = vadd.f32 %v1353, %v1417
      %v1450 = vadd.f32 %v1354, %v1418
      %v1451 = vadd.f32 %v1355, %v1419
      %v1452 = vadd.f32 %v1356, %v1420
      %v1453 = vadd.f32 %v1357, %v1421
      %v1454 = vadd.f32 %v1358, %v1422
      %v1455 = vadd.f32 %v1359, %v1423
      %v1456 = vadd.f32 %v1360, %v1424
      %v1457 = vadd.f32 %v1361, %v1425
      %v1458 = vadd.f32 %v1362, %v1426
      %v1459 = vadd.f32 %v1363, %v1427
      %v1460 = vadd.f32 %v1364, %v1428
      %v1461 = vadd.f32 %v1365, %v1429
      %v1462 = vadd.f32 %v1366, %v1430
      %v1463 = vadd.f32 %v1367, %v1431
      %v1464 = vadd.f32 %v1368, %v1432
      %v1465 = vadd.f32 %v1369, %v1433
      %v1466 = vadd.f32 %v1370, %v1434
      %v1467 = vadd.f32 %v1371, %v1435
      %v1468 = vadd.f32 %v1372, %v1436
      %vm1469 = vcmask 1046528
      %v1470 = vrot.slane %v463, 1
      %v1471 = vrot.slane %v464, 1
      %v1472 = vsel %vm1469, %v1470, %v1471
      %v1473 = vrot.slane %v403, 1
      %v1474 = vrot.slane %v410, 1
      %v1475 = vsel %vm1469, %v1473, %v1474
      %v1476 = vrot.slane %v404, 1
      %v1477 = vrot.slane %v411, 1
      %v1478 = vsel %vm1469, %v1476, %v1477
      %v1479 = vrot.slane %v405, 1
      %v1480 = vrot.slane %v412, 1
      %v1481 = vsel %vm1469, %v1479, %v1480
      %v1482 = vrot.slane %v406, 1
      %v1483 = vrot.slane %v413, 1
      %v1484 = vsel %vm1469, %v1482, %v1483
      %v1485 = vrot.slane %v407, 1
      %v1486 = vrot.slane %v414, 1
      %v1487 = vsel %vm1469, %v1485, %v1486
      %v1488 = vrot.slane %v408, 1
      %v1489 = vrot.slane %v415, 1
      %v1490 = vsel %vm1469, %v1488, %v1489
      %v1491 = vrot.slane %v409, 1
      %v1492 = vrot.slane %v416, 1
      %v1493 = vsel %vm1469, %v1491, %v1492
      %v1494 = vrot.slane %v465, 1
      %v1495 = vsel %vm1469, %v1471, %v1494
      %v1496 = vrot.slane %v417, 1
      %v1497 = vsel %vm1469, %v1474, %v1496
      %v1498 = vrot.slane %v418, 1
      %v1499 = vsel %vm1469, %v1477, %v1498
      %v1500 = vrot.slane %v419, 1
      %v1501 = vsel %vm1469, %v1480, %v1500
      %v1502 = vrot.slane %v420, 1
      %v1503 = vsel %vm1469, %v1483, %v1502
      %v1504 = vrot.slane %v421, 1
      %v1505 = vsel %vm1469, %v1486, %v1504
      %v1506 = vrot.slane %v422, 1
      %v1507 = vsel %vm1469, %v1489, %v1506
      %v1508 = vrot.slane %v423, 1
      %v1509 = vsel %vm1469, %v1492, %v1508
      %v1510 = vrot.slane %v466, 1
      %v1511 = vsel %vm1469, %v1494, %v1510
      %v1512 = vrot.slane %v424, 1
      %v1513 = vsel %vm1469, %v1496, %v1512
      %v1514 = vrot.slane %v425, 1
      %v1515 = vsel %vm1469, %v1498, %v1514
      %v1516 = vrot.slane %v426, 1
      %v1517 = vsel %vm1469, %v1500, %v1516
      %v1518 = vrot.slane %v427, 1
      %v1519 = vsel %vm1469, %v1502, %v1518
      %v1520 = vrot.slane %v428, 1
      %v1521 = vsel %vm1469, %v1504, %v1520
      %v1522 = vrot.slane %v429, 1
      %v1523 = vsel %vm1469, %v1506, %v1522
      %v1524 = vrot.slane %v430, 1
      %v1525 = vsel %vm1469, %v1508, %v1524
      %v1558 = vsel %vm1469, %v1510, 0.0
      %v1559 = vsel %vm1469, %v1512, 0.0
      %v1560 = vsel %vm1469, %v1514, 0.0
      %v1561 = vsel %vm1469, %v1516, 0.0
      %v1562 = vsel %vm1469, %v1518, 0.0
      %v1563 = vsel %vm1469, %v1520, 0.0
      %v1564 = vsel %vm1469, %v1522, 0.0
      %v1565 = vsel %vm1469, %v1524, 0.0
      %v1566 = vlaneseq
      %v1567 = vshrl.u32 %v1566, 7
      %v1568 = vsub.s32 6, %v1567
      %v1569 = vrot.slane %v290, %v1568
      %v1570 = vlaneseq
      %v1571 = vshrl.u32 %v1570, 7
      %v1572 = vsub.s32 6, %v1571
      %v1573 = vrot.slane %v291, %v1572
      %v1574 = vlaneseq
      %v1575 = vshrl.u32 %v1574, 7
      %v1576 = vsub.s32 6, %v1575
      %v1577 = vrot.slane %v292, %v1576
      %v1578 = vlaneseq
      %v1579 = vshrl.u32 %v1578, 7
      %v1580 = vsub.s32 6, %v1579
      %v1581 = vrot.slane %v293, %v1580
      %v1582 = vlaneseq
      %v1583 = vshrl.u32 %v1582, 7
      %v1584 = vsub.s32 6, %v1583
      %v1585 = vrot.slane %v294, %v1584
      %v1586 = vlaneseq
      %v1587 = vshrl.u32 %v1586, 7
      %v1588 = vsub.s32 6, %v1587
      %v1589 = vrot.slane %v295, %v1588
      %v1590 = vlaneseq
      %v1591 = vshrl.u32 %v1590, 7
      %v1592 = vsub.s32 6, %v1591
      %v1593 = vrot.slane %v296, %v1592
      %v1594 = vlaneseq
      %v1595 = vshrl.u32 %v1594, 7
      %v1596 = vsub.s32 6, %v1595
      %v1597 = vrot.slane %v297, %v1596
      %v1598 = vmul.f32 %v1472, %v1569
      %v1599 = vmul.f32 %v1475, %v1573
      %v1600 = vmul.f32 %v1478, %v1577
      %v1601 = vmul.f32 %v1481, %v1581
      %v1602 = vmul.f32 %v1484, %v1585
      %v1603 = vmul.f32 %v1487, %v1589
      %v1604 = vmul.f32 %v1490, %v1593
      %v1605 = vmul.f32 %v1493, %v1597
      %v1606 = vmul.f32 %v1495, %v1569
      %v1607 = vmul.f32 %v1497, %v1573
      %v1608 = vmul.f32 %v1499, %v1577
      %v1609 = vmul.f32 %v1501, %v1581
      %v1610 = vmul.f32 %v1503, %v1585
      %v1611 = vmul.f32 %v1505, %v1589
      %v1612 = vmul.f32 %v1507, %v1593
      %v1613 = vmul.f32 %v1509, %v1597
      %v1614 = vmul.f32 %v1511, %v1569
      %v1615 = vmul.f32 %v1513, %v1573
      %v1616 = vmul.f32 %v1515, %v1577
      %v1617 = vmul.f32 %v1517, %v1581
      %v1618 = vmul.f32 %v1519, %v1585
      %v1619 = vmul.f32 %v1521, %v1589
      %v1620 = vmul.f32 %v1523, %v1593
      %v1621 = vmul.f32 %v1525, %v1597
      %v1622 = vmul.f32 %v1558, %v1569
      %v1623 = vmul.f32 %v1559, %v1573
      %v1624 = vmul.f32 %v1560, %v1577
      %v1625 = vmul.f32 %v1561, %v1581
      %v1626 = vmul.f32 %v1562, %v1585
      %v1627 = vmul.f32 %v1563, %v1589
      %v1628 = vmul.f32 %v1564, %v1593
      %v1629 = vmul.f32 %v1565, %v1597
      %v1630 = vadd.f32 %v1437, %v1598
      %v1631 = vadd.f32 %v1438, %v1599
      %v1632 = vadd.f32 %v1439, %v1600
      %v1633 = vadd.f32 %v1440, %v1601
      %v1634 = vadd.f32 %v1441, %v1602
      %v1635 = vadd.f32 %v1442, %v1603
      %v1636 = vadd.f32 %v1443, %v1604
      %v1637 = vadd.f32 %v1444, %v1605
      %v1638 = vadd.f32 %v1445, %v1606
      %v1639 = vadd.f32 %v1446, %v1607
      %v1640 = vadd.f32 %v1447, %v1608
      %v1641 = vadd.f32 %v1448, %v1609
      %v1642 = vadd.f32 %v1449, %v1610
      %v1643 = vadd.f32 %v1450, %v1611
      %v1644 = vadd.f32 %v1451, %v1612
      %v1645 = vadd.f32 %v1452, %v1613
      %v1646 = vadd.f32 %v1453, %v1614
      %v1647 = vadd.f32 %v1454, %v1615
      %v1648 = vadd.f32 %v1455, %v1616
      %v1649 = vadd.f32 %v1456, %v1617
      %v1650 = vadd.f32 %v1457, %v1618
      %v1651 = vadd.f32 %v1458, %v1619
      %v1652 = vadd.f32 %v1459, %v1620
      %v1653 = vadd.f32 %v1460, %v1621
      %v1654 = vadd.f32 %v1461, %v1622
      %v1655 = vadd.f32 %v1462, %v1623
      %v1656 = vadd.f32 %v1463, %v1624
      %v1657 = vadd.f32 %v1464, %v1625
      %v1658 = vadd.f32 %v1465, %v1626
      %v1659 = vadd.f32 %v1466, %v1627
      %v1660 = vadd.f32 %v1467, %v1628
      %v1661 = vadd.f32 %v1468, %v1629
      %v1662 = vrot.slane %v258, 1
      %v1663 = vrot.slane %v266, 1
      %v1664 = vsel %vm1469, %v1662, %v1663
      %v1665 = vrot.slane %v259, 1
      %v1666 = vrot.slane %v267, 1
      %v1667 = vsel %vm1469, %v1665, %v1666
      %v1668 = vrot.slane %v260, 1
      %v1669 = vrot.slane %v268, 1
      %v1670 = vsel %vm1469, %v1668, %v1669
      %v1671 = vrot.slane %v261, 1
      %v1672 = vrot.slane %v269, 1
      %v1673 = vsel %vm1469, %v1671, %v1672
      %v1674 = vrot.slane %v262, 1
      %v1675 = vrot.slane %v270, 1
      %v1676 = vsel %vm1469, %v1674, %v1675
      %v1677 = vrot.slane %v263, 1
      %v1678 = vrot.slane %v271, 1
      %v1679 = vsel %vm1469, %v1677, %v1678
      %v1680 = vrot.slane %v264, 1
      %v1681 = vrot.slane %v272, 1
      %v1682 = vsel %vm1469, %v1680, %v1681
      %v1683 = vrot.slane %v265, 1
      %v1684 = vrot.slane %v273, 1
      %v1685 = vsel %vm1469, %v1683, %v1684
      %v1686 = vrot.slane %v274, 1
      %v1687 = vsel %vm1469, %v1663, %v1686
      %v1688 = vrot.slane %v275, 1
      %v1689 = vsel %vm1469, %v1666, %v1688
      %v1690 = vrot.slane %v276, 1
      %v1691 = vsel %vm1469, %v1669, %v1690
      %v1692 = vrot.slane %v277, 1
      %v1693 = vsel %vm1469, %v1672, %v1692
      %v1694 = vrot.slane %v278, 1
      %v1695 = vsel %vm1469, %v1675, %v1694
      %v1696 = vrot.slane %v279, 1
      %v1697 = vsel %vm1469, %v1678, %v1696
      %v1698 = vrot.slane %v280, 1
      %v1699 = vsel %vm1469, %v1681, %v1698
      %v1700 = vrot.slane %v281, 1
      %v1701 = vsel %vm1469, %v1684, %v1700
      %v1702 = vrot.slane %v282, 1
      %v1703 = vsel %vm1469, %v1686, %v1702
      %v1704 = vrot.slane %v283, 1
      %v1705 = vsel %vm1469, %v1688, %v1704
      %v1706 = vrot.slane %v284, 1
      %v1707 = vsel %vm1469, %v1690, %v1706
      %v1708 = vrot.slane %v285, 1
      %v1709 = vsel %vm1469, %v1692, %v1708
      %v1710 = vrot.slane %v286, 1
      %v1711 = vsel %vm1469, %v1694, %v1710
      %v1712 = vrot.slane %v287, 1
      %v1713 = vsel %vm1469, %v1696, %v1712
      %v1714 = vrot.slane %v288, 1
      %v1715 = vsel %vm1469, %v1698, %v1714
      %v1716 = vrot.slane %v289, 1
      %v1717 = vsel %vm1469, %v1700, %v1716
      %v1750 = vsel %vm1469, %v1702, 0.0
      %v1751 = vsel %vm1469, %v1704, 0.0
      %v1752 = vsel %vm1469, %v1706, 0.0
      %v1753 = vsel %vm1469, %v1708, 0.0
      %v1754 = vsel %vm1469, %v1710, 0.0
      %v1755 = vsel %vm1469, %v1712, 0.0
      %v1756 = vsel %vm1469, %v1714, 0.0
      %v1757 = vsel %vm1469, %v1716, 0.0
      %v1758 = vlaneseq
      %v1759 = vshrl.u32 %v1758, 7
      %v1760 = vsub.s32 7, %v1759
      %v1761 = vrot.slane %v290, %v1760
      %v1762 = vlaneseq
      %v1763 = vshrl.u32 %v1762, 7
      %v1764 = vsub.s32 7, %v1763
      %v1765 = vrot.slane %v291, %v1764
      %v1766 = vlaneseq
      %v1767 = vshrl.u32 %v1766, 7
      %v1768 = vsub.s32 7, %v1767
      %v1769 = vrot.slane %v292, %v1768
      %v1770 = vlaneseq
      %v1771 = vshrl.u32 %v1770, 7
      %v1772 = vsub.s32 7, %v1771
      %v1773 = vrot.slane %v293, %v1772
      %v1774 = vlaneseq
      %v1775 = vshrl.u32 %v1774, 7
      %v1776 = vsub.s32 7, %v1775
      %v1777 = vrot.slane %v294, %v1776
      %v1778 = vlaneseq
      %v1779 = vshrl.u32 %v1778, 7
      %v1780 = vsub.s32 7, %v1779
      %v1781 = vrot.slane %v295, %v1780
      %v1782 = vlaneseq
      %v1783 = vshrl.u32 %v1782, 7
      %v1784 = vsub.s32 7, %v1783
      %v1785 = vrot.slane %v296, %v1784
      %v1786 = vlaneseq
      %v1787 = vshrl.u32 %v1786, 7
      %v1788 = vsub.s32 7, %v1787
      %v1789 = vrot.slane %v297, %v1788
      %v1790 = vmul.f32 %v1664, %v1761
      %v1791 = vmul.f32 %v1667, %v1765
      %v1792 = vmul.f32 %v1670, %v1769
      %v1793 = vmul.f32 %v1673, %v1773
      %v1794 = vmul.f32 %v1676, %v1777
      %v1795 = vmul.f32 %v1679, %v1781
      %v1796 = vmul.f32 %v1682, %v1785
      %v1797 = vmul.f32 %v1685, %v1789
      %v1798 = vmul.f32 %v1687, %v1761
      %v1799 = vmul.f32 %v1689, %v1765
      %v1800 = vmul.f32 %v1691, %v1769
      %v1801 = vmul.f32 %v1693, %v1773
      %v1802 = vmul.f32 %v1695, %v1777
      %v1803 = vmul.f32 %v1697, %v1781
      %v1804 = vmul.f32 %v1699, %v1785
      %v1805 = vmul.f32 %v1701, %v1789
      %v1806 = vmul.f32 %v1703, %v1761
      %v1807 = vmul.f32 %v1705, %v1765
      %v1808 = vmul.f32 %v1707, %v1769
      %v1809 = vmul.f32 %v1709, %v1773
      %v1810 = vmul.f32 %v1711, %v1777
      %v1811 = vmul.f32 %v1713, %v1781
      %v1812 = vmul.f32 %v1715, %v1785
      %v1813 = vmul.f32 %v1717, %v1789
      %v1814 = vmul.f32 %v1750, %v1761
      %v1815 = vmul.f32 %v1751, %v1765
      %v1816 = vmul.f32 %v1752, %v1769
      %v1817 = vmul.f32 %v1753, %v1773
      %v1818 = vmul.f32 %v1754, %v1777
      %v1819 = vmul.f32 %v1755, %v1781
      %v1820 = vmul.f32 %v1756, %v1785
      %v1821 = vmul.f32 %v1757, %v1789
      %v1822 = vadd.f32 %v1630, %v1790
      %v1823 = vadd.f32 %v1631, %v1791
      %v1824 = vadd.f32 %v1632, %v1792
      %v1825 = vadd.f32 %v1633, %v1793
      %v1826 = vadd.f32 %v1634, %v1794
      %v1827 = vadd.f32 %v1635, %v1795
      %v1828 = vadd.f32 %v1636, %v1796
      %v1829 = vadd.f32 %v1637, %v1797
      %v1830 = vadd.f32 %v1638, %v1798
      %v1831 = vadd.f32 %v1639, %v1799
      %v1832 = vadd.f32 %v1640, %v1800
      %v1833 = vadd.f32 %v1641, %v1801
      %v1834 = vadd.f32 %v1642, %v1802
      %v1835 = vadd.f32 %v1643, %v1803
      %v1836 = vadd.f32 %v1644, %v1804
      %v1837 = vadd.f32 %v1645, %v1805
      %v1838 = vadd.f32 %v1646, %v1806
      %v1839 = vadd.f32 %v1647, %v1807
      %v1840 = vadd.f32 %v1648, %v1808
      %v1841 = vadd.f32 %v1649, %v1809
      %v1842 = vadd.f32 %v1650, %v1810
      %v1843 = vadd.f32 %v1651, %v1811
      %v1844 = vadd.f32 %v1652, %v1812
      %v1845 = vadd.f32 %v1653, %v1813
      %v1846 = vadd.f32 %v1654, %v1814
      %v1847 = vadd.f32 %v1655, %v1815
      %v1848 = vadd.f32 %v1656, %v1816
      %v1849 = vadd.f32 %v1657, %v1817
      %v1850 = vadd.f32 %v1658, %v1818
      %v1851 = vadd.f32 %v1659, %v1819
      %v1852 = vadd.f32 %v1660, %v1820
      %v1853 = vadd.f32 %v1661, %v1821
      %v1854 = vrot.slane %v921, 1
      %v1855 = vrot.slane %v928, 1
      %v1856 = vsel %vm1469, %v1854, %v1855
      %v1857 = vrot.slane %v922, 1
      %v1858 = vrot.slane %v929, 1
      %v1859 = vsel %vm1469, %v1857, %v1858
      %v1860 = vrot.slane %v923, 1
      %v1861 = vrot.slane %v930, 1
      %v1862 = vsel %vm1469, %v1860, %v1861
      %v1863 = vrot.slane %v924, 1
      %v1864 = vrot.slane %v931, 1
      %v1865 = vsel %vm1469, %v1863, %v1864
      %v1866 = vrot.slane %v925, 1
      %v1867 = vrot.slane %v932, 1
      %v1868 = vsel %vm1469, %v1866, %v1867
      %v1869 = vrot.slane %v926, 1
      %v1870 = vrot.slane %v933, 1
      %v1871 = vsel %vm1469, %v1869, %v1870
      %v1872 = vrot.slane %v927, 1
      %v1873 = vrot.slane %v934, 1
      %v1874 = vsel %vm1469, %v1872, %v1873
      %v1875 = vrot.slane %v981, 1
      %v1876 = vrot.slane %v982, 1
      %v1877 = vsel %vm1469, %v1875, %v1876
      %v1878 = vrot.slane %v935, 1
      %v1879 = vsel %vm1469, %v1855, %v1878
      %v1880 = vrot.slane %v936, 1
      %v1881 = vsel %vm1469, %v1858, %v1880
      %v1882 = vrot.slane %v937, 1
      %v1883 = vsel %vm1469, %v1861, %v1882
      %v1884 = vrot.slane %v938, 1
      %v1885 = vsel %vm1469, %v1864, %v1884
      %v1886 = vrot.slane %v939, 1
      %v1887 = vsel %vm1469, %v1867, %v1886
      %v1888 = vrot.slane %v940, 1
      %v1889 = vsel %vm1469, %v1870, %v1888
      %v1890 = vrot.slane %v941, 1
      %v1891 = vsel %vm1469, %v1873, %v1890
      %v1892 = vrot.slane %v983, 1
      %v1893 = vsel %vm1469, %v1876, %v1892
      %v1894 = vrot.slane %v942, 1
      %v1895 = vsel %vm1469, %v1878, %v1894
      %v1896 = vrot.slane %v943, 1
      %v1897 = vsel %vm1469, %v1880, %v1896
      %v1898 = vrot.slane %v944, 1
      %v1899 = vsel %vm1469, %v1882, %v1898
      %v1900 = vrot.slane %v945, 1
      %v1901 = vsel %vm1469, %v1884, %v1900
      %v1902 = vrot.slane %v946, 1
      %v1903 = vsel %vm1469, %v1886, %v1902
      %v1904 = vrot.slane %v947, 1
      %v1905 = vsel %vm1469, %v1888, %v1904
      %v1906 = vrot.slane %v948, 1
      %v1907 = vsel %vm1469, %v1890, %v1906
      %v1908 = vrot.slane %v984, 1
      %v1909 = vsel %vm1469, %v1892, %v1908
      %v1942 = vsel %vm1469, %v1894, 0.0
      %v1943 = vsel %vm1469, %v1896, 0.0
      %v1944 = vsel %vm1469, %v1898, 0.0
      %v1945 = vsel %vm1469, %v1900, 0.0
      %v1946 = vsel %vm1469, %v1902, 0.0
      %v1947 = vsel %vm1469, %v1904, 0.0
      %v1948 = vsel %vm1469, %v1906, 0.0
      %v1949 = vsel %vm1469, %v1908, 0.0
      %v1950 = vlaneseq
      %v1951 = vshrl.u32 %v1950, 7
      %v1952 = vsub.s32 0, %v1951
      %v1953 = vrot.slane %v298, %v1952
      %v1954 = vlaneseq
      %v1955 = vshrl.u32 %v1954, 7
      %v1956 = vsub.s32 0, %v1955
      %v1957 = vrot.slane %v299, %v1956
      %v1958 = vlaneseq
      %v1959 = vshrl.u32 %v1958, 7
      %v1960 = vsub.s32 0, %v1959
      %v1961 = vrot.slane %v300, %v1960
      %v1962 = vlaneseq
      %v1963 = vshrl.u32 %v1962, 7
      %v1964 = vsub.s32 0, %v1963
      %v1965 = vrot.slane %v301, %v1964
      %v1966 = vlaneseq
      %v1967 = vshrl.u32 %v1966, 7
      %v1968 = vsub.s32 0, %v1967
      %v1969 = vrot.slane %v302, %v1968
      %v1970 = vlaneseq
      %v1971 = vshrl.u32 %v1970, 7
      %v1972 = vsub.s32 0, %v1971
      %v1973 = vrot.slane %v303, %v1972
      %v1974 = vlaneseq
      %v1975 = vshrl.u32 %v1974, 7
      %v1976 = vsub.s32 0, %v1975
      %v1977 = vrot.slane %v304, %v1976
      %v1978 = vlaneseq
      %v1979 = vshrl.u32 %v1978, 7
      %v1980 = vsub.s32 0, %v1979
      %v1981 = vrot.slane %v305, %v1980
      %v1982 = vmul.f32 %v1856, %v1953
      %v1983 = vmul.f32 %v1859, %v1957
      %v1984 = vmul.f32 %v1862, %v1961
      %v1985 = vmul.f32 %v1865, %v1965
      %v1986 = vmul.f32 %v1868, %v1969
      %v1987 = vmul.f32 %v1871, %v1973
      %v1988 = vmul.f32 %v1874, %v1977
      %v1989 = vmul.f32 %v1877, %v1981
      %v1990 = vmul.f32 %v1879, %v1953
      %v1991 = vmul.f32 %v1881, %v1957
      %v1992 = vmul.f32 %v1883, %v1961
      %v1993 = vmul.f32 %v1885, %v1965
      %v1994 = vmul.f32 %v1887, %v1969
      %v1995 = vmul.f32 %v1889, %v1973
      %v1996 = vmul.f32 %v1891, %v1977
      %v1997 = vmul.f32 %v1893, %v1981
      %v1998 = vmul.f32 %v1895, %v1953
      %v1999 = vmul.f32 %v1897, %v1957
      %v2000 = vmul.f32 %v1899, %v1961
      %v2001 = vmul.f32 %v1901, %v1965
      %v2002 = vmul.f32 %v1903, %v1969
      %v2003 = vmul.f32 %v1905, %v1973
      %v2004 = vmul.f32 %v1907, %v1977
      %v2005 = vmul.f32 %v1909, %v1981
      %v2006 = vmul.f32 %v1942, %v1953
      %v2007 = vmul.f32 %v1943, %v1957
      %v2008 = vmul.f32 %v1944, %v1961
      %v2009 = vmul.f32 %v1945, %v1965
      %v2010 = vmul.f32 %v1946, %v1969
      %v2011 = vmul.f32 %v1947, %v1973
      %v2012 = vmul.f32 %v1948, %v1977
      %v2013 = vmul.f32 %v1949, %v1981
      %v2014 = vadd.f32 %v1822, %v1982
      %v2015 = vadd.f32 %v1823, %v1983
      %v2016 = vadd.f32 %v1824, %v1984
      %v2017 = vadd.f32 %v1825, %v1985
      %v2018 = vadd.f32 %v1826, %v1986
      %v2019 = vadd.f32 %v1827, %v1987
      %v2020 = vadd.f32 %v1828, %v1988
      %v2021 = vadd.f32 %v1829, %v1989
      %v2022 = vadd.f32 %v1830, %v1990
      %v2023 = vadd.f32 %v1831, %v1991
      %v2024 = vadd.f32 %v1832, %v1992
      %v2025 = vadd.f32 %v1833, %v1993
      %v2026 = vadd.f32 %v1834, %v1994
      %v2027 = vadd.f32 %v1835, %v1995
      %v2028 = vadd.f32 %v1836, %v1996
      %v2029 = vadd.f32 %v1837, %v1997
      %v2030 = vadd.f32 %v1838, %v1998
      %v2031 = vadd.f32 %v1839, %v1999
      %v2032 = vadd.f32 %v1840, %v2000
      %v2033 = vadd.f32 %v1841, %v2001
      %v2034 = vadd.f32 %v1842, %v2002
      %v2035 = vadd.f32 %v1843, %v2003
      %v2036 = vadd.f32 %v1844, %v2004
      %v2037 = vadd.f32 %v1845, %v2005
      %v2038 = vadd.f32 %v1846, %v2006
      %v2039 = vadd.f32 %v1847, %v2007
      %v2040 = vadd.f32 %v1848, %v2008
      %v2041 = vadd.f32 %v1849, %v2009
      %v2042 = vadd.f32 %v1850, %v2010
      %v2043 = vadd.f32 %v1851, %v2011
      %v2044 = vadd.f32 %v1852, %v2012
      %v2045 = vadd.f32 %v1853, %v2013
      %2046 = vst [vmem:[%s252] sm:$0xff] %v2014
      %2047 = vst [vmem:[%s252 + $0x8] sm:$0xff] %v2015
      %2048 = vst [vmem:[%s252 + $0x10] sm:$0xff] %v2016
      %2049 = vst [vmem:[%s252 + $0x18] sm:$0xff] %v2017
      %2050 = vst [vmem:[%s252 + $0x20] sm:$0xff] %v2018
      %2051 = vst [vmem:[%s252 + $0x28] sm:$0xff] %v2019
      %2052 = vst [vmem:[%s252 + $0x30] sm:$0xff] %v2020
      %2053 = vst [vmem:[%s252 + $0x38] sm:$0xff] %v2021
      %2054 = vst [vmem:[%s252 + $0x40] sm:$0xff] %v2022
      %2055 = vst [vmem:[%s252 + $0x48] sm:$0xff] %v2023
      %2056 = vst [vmem:[%s252 + $0x50] sm:$0xff] %v2024
      %2057 = vst [vmem:[%s252 + $0x58] sm:$0xff] %v2025
      %2058 = vst [vmem:[%s252 + $0x60] sm:$0xff] %v2026
      %2059 = vst [vmem:[%s252 + $0x68] sm:$0xff] %v2027
      %2060 = vst [vmem:[%s252 + $0x70] sm:$0xff] %v2028
      %2061 = vst [vmem:[%s252 + $0x78] sm:$0xff] %v2029
      %2062 = vst [vmem:[%s252 + $0x80] sm:$0xff] %v2030
      %2063 = vst [vmem:[%s252 + $0x88] sm:$0xff] %v2031
      %2064 = vst [vmem:[%s252 + $0x90] sm:$0xff] %v2032
      %2065 = vst [vmem:[%s252 + $0x98] sm:$0xff] %v2033
      %2066 = vst [vmem:[%s252 + $0xa0] sm:$0xff] %v2034
      %2067 = vst [vmem:[%s252 + $0xa8] sm:$0xff] %v2035
      %2068 = vst [vmem:[%s252 + $0xb0] sm:$0xff] %v2036
      %2069 = vst [vmem:[%s252 + $0xb8] sm:$0xff] %v2037
      %2070 = vst [vmem:[%s252 + $0xc0] sm:$0xff] %v2038
      %2071 = vst [vmem:[%s252 + $0xc8] sm:$0xff] %v2039
      %2072 = vst [vmem:[%s252 + $0xd0] sm:$0xff] %v2040
      %2073 = vst [vmem:[%s252 + $0xd8] sm:$0xff] %v2041
      %2074 = vst [vmem:[%s252 + $0xe0] sm:$0xff] %v2042
      %2075 = vst [vmem:[%s252 + $0xe8] sm:$0xff] %v2043
      %2076 = vst [vmem:[%s252 + $0xf0] sm:$0xff] %v2044
      %2077 = vst [vmem:[%s252 + $0xf8] sm:$0xff] %v2045
      %v2078 = vld [vmem:[%s247] sm:$0xff]
      %v2079 = vld [vmem:[%s247 + $0x8] sm:$0xff]
      %v2080 = vld [vmem:[%s247 + $0x10] sm:$0xff]
      %v2081 = vld [vmem:[%s247 + $0x18] sm:$0xff]
      %v2082 = vld [vmem:[%s247 + $0x20] sm:$0xff]
      %v2083 = vld [vmem:[%s247 + $0x28] sm:$0xff]
      %v2084 = vld [vmem:[%s247 + $0x30] sm:$0xff]
      %v2085 = vld [vmem:[%s247 + $0x38] sm:$0xff]
      %v2086 = vld [vmem:[%s247 + $0x40] sm:$0xff]
      %v2087 = vld [vmem:[%s247 + $0x48] sm:$0xff]
      %v2088 = vld [vmem:[%s247 + $0x50] sm:$0xff]
      %v2089 = vld [vmem:[%s247 + $0x58] sm:$0xff]
      %v2090 = vld [vmem:[%s247 + $0x60] sm:$0xff]
      %v2091 = vld [vmem:[%s247 + $0x68] sm:$0xff]
      %v2092 = vld [vmem:[%s247 + $0x70] sm:$0xff]
      %v2093 = vld [vmem:[%s247 + $0x78] sm:$0xff]
      %v2094 = vld [vmem:[%s247 + $0x80] sm:$0xff]
      %v2095 = vld [vmem:[%s247 + $0x88] sm:$0xff]
      %v2096 = vld [vmem:[%s247 + $0x90] sm:$0xff]
      %v2097 = vld [vmem:[%s247 + $0x98] sm:$0xff]
      %v2098 = vld [vmem:[%s247 + $0xa0] sm:$0xff]
      %v2099 = vld [vmem:[%s247 + $0xa8] sm:$0xff]
      %v2100 = vld [vmem:[%s247 + $0xb0] sm:$0xff]
      %v2101 = vld [vmem:[%s247 + $0xb8] sm:$0xff]
      %v2102 = vld [vmem:[%s247 + $0xc0] sm:$0xff]
      %v2103 = vld [vmem:[%s247 + $0xc8] sm:$0xff]
      %v2104 = vld [vmem:[%s247 + $0xd0] sm:$0xff]
      %v2105 = vld [vmem:[%s247 + $0xd8] sm:$0xff]
      %v2106 = vld [vmem:[%s247 + $0xe0] sm:$0xff]
      %v2107 = vld [vmem:[%s247 + $0xe8] sm:$0xff]
      %v2108 = vld [vmem:[%s247 + $0xf0] sm:$0xff]
      %v2109 = vld [vmem:[%s247 + $0xf8] sm:$0xff]
      %v2110 = vld [vmem:[%s3] sm:$0xff]
      %v2111 = vld [vmem:[%s3 + $0x8] sm:$0xff]
      %v2112 = vld [vmem:[%s3 + $0x10] sm:$0xff]
      %v2113 = vld [vmem:[%s3 + $0x18] sm:$0xff]
      %v2114 = vld [vmem:[%s3 + $0x20] sm:$0xff]
      %v2115 = vld [vmem:[%s3 + $0x28] sm:$0xff]
      %v2116 = vld [vmem:[%s3 + $0x30] sm:$0xff]
      %v2117 = vld [vmem:[%s3 + $0x38] sm:$0xff]
      %v2118 = vld [vmem:[%s3 + $0x40] sm:$0x1]
      %v2119 = vld [vmem:[%s3 + $0x48] sm:$0x1]
      %v2120 = vld [vmem:[%s3 + $0x50] sm:$0x1]
      %v2121 = vld [vmem:[%s3 + $0x58] sm:$0x1]
      %v2122 = vld [vmem:[%s3 + $0x60] sm:$0x1]
      %v2123 = vld [vmem:[%s3 + $0x68] sm:$0x1]
      %v2124 = vld [vmem:[%s3 + $0x70] sm:$0x1]
      %v2125 = vld [vmem:[%s3 + $0x78] sm:$0x1]
      %2158 = vrot.lane.b32.xlu0 %v2078, 32
      %v2159 = vpop.permute.xlu0 %2158
      %2160 = vrot.lane.b32.xlu0 %v2079, 32
      %v2161 = vpop.permute.xlu0 %2160
      %2162 = vrot.lane.b32.xlu0 %v2080, 32
      %v2163 = vpop.permute.xlu0 %2162
      %2164 = vrot.lane.b32.xlu0 %v2081, 32
      %v2165 = vpop.permute.xlu0 %2164
      %2166 = vrot.lane.b32.xlu0 %v2082, 32
      %v2167 = vpop.permute.xlu0 %2166
      %2168 = vrot.lane.b32.xlu0 %v2083, 32
      %v2169 = vpop.permute.xlu0 %2168
      %2170 = vrot.lane.b32.xlu0 %v2084, 32
      %v2171 = vpop.permute.xlu0 %2170
      %2172 = vrot.lane.b32.xlu0 %v2085, 32
      %v2173 = vpop.permute.xlu0 %2172
      %2174 = vrot.lane.b32.xlu0 %v2086, 32
      %v2175 = vpop.permute.xlu0 %2174
      %2176 = vrot.lane.b32.xlu0 %v2087, 32
      %v2177 = vpop.permute.xlu0 %2176
      %2178 = vrot.lane.b32.xlu0 %v2088, 32
      %v2179 = vpop.permute.xlu0 %2178
      %2180 = vrot.lane.b32.xlu0 %v2089, 32
      %v2181 = vpop.permute.xlu0 %2180
      %2182 = vrot.lane.b32.xlu0 %v2090, 32
      %v2183 = vpop.permute.xlu0 %2182
      %2184 = vrot.lane.b32.xlu0 %v2091, 32
      %v2185 = vpop.permute.xlu0 %2184
      %2186 = vrot.lane.b32.xlu0 %v2092, 32
      %v2187 = vpop.permute.xlu0 %2186
      %2188 = vrot.lane.b32.xlu0 %v2093, 32
      %v2189 = vpop.permute.xlu0 %2188
      %2190 = vrot.lane.b32.xlu0 %v2094, 32
      %v2191 = vpop.permute.xlu0 %2190
      %2192 = vrot.lane.b32.xlu0 %v2095, 32
      %v2193 = vpop.permute.xlu0 %2192
      %2194 = vrot.lane.b32.xlu0 %v2096, 32
      %v2195 = vpop.permute.xlu0 %2194
      %2196 = vrot.lane.b32.xlu0 %v2097, 32
      %v2197 = vpop.permute.xlu0 %2196
      %2198 = vrot.lane.b32.xlu0 %v2098, 32
      %v2199 = vpop.permute.xlu0 %2198
      %2200 = vrot.lane.b32.xlu0 %v2099, 32
      %v2201 = vpop.permute.xlu0 %2200
      %2202 = vrot.lane.b32.xlu0 %v2100, 32
      %v2203 = vpop.permute.xlu0 %2202
      %2204 = vrot.lane.b32.xlu0 %v2101, 32
      %v2205 = vpop.permute.xlu0 %2204
      %2206 = vrot.lane.b32.xlu0 %v2102, 32
      %v2207 = vpop.permute.xlu0 %2206
      %2208 = vrot.lane.b32.xlu0 %v2103, 32
      %v2209 = vpop.permute.xlu0 %2208
      %2210 = vrot.lane.b32.xlu0 %v2104, 32
      %v2211 = vpop.permute.xlu0 %2210
      %2212 = vrot.lane.b32.xlu0 %v2105, 32
      %v2213 = vpop.permute.xlu0 %2212
      %2214 = vrot.lane.b32.xlu0 %v2106, 32
      %v2215 = vpop.permute.xlu0 %2214
      %2216 = vrot.lane.b32.xlu0 %v2107, 32
      %v2217 = vpop.permute.xlu0 %2216
      %2218 = vrot.lane.b32.xlu0 %v2108, 32
      %v2219 = vpop.permute.xlu0 %2218
      %2220 = vrot.lane.b32.xlu0 %v2109, 32
      %v2221 = vpop.permute.xlu0 %2220
      %v2222 = vsel %vm402, %v2159, %v2161
      %v2223 = vsel %vm402, %v2161, %v2163
      %v2224 = vsel %vm402, %v2163, %v2165
      %v2225 = vsel %vm402, %v2165, %v2167
      %v2226 = vsel %vm402, %v2167, %v2169
      %v2227 = vsel %vm402, %v2169, %v2171
      %v2228 = vsel %vm402, %v2171, %v2173
      %v2229 = vsel %vm402, %v2175, %v2177
      %v2230 = vsel %vm402, %v2177, %v2179
      %v2231 = vsel %vm402, %v2179, %v2181
      %v2232 = vsel %vm402, %v2181, %v2183
      %v2233 = vsel %vm402, %v2183, %v2185
      %v2234 = vsel %vm402, %v2185, %v2187
      %v2235 = vsel %vm402, %v2187, %v2189
      %v2236 = vsel %vm402, %v2191, %v2193
      %v2237 = vsel %vm402, %v2193, %v2195
      %v2238 = vsel %vm402, %v2195, %v2197
      %v2239 = vsel %vm402, %v2197, %v2199
      %v2240 = vsel %vm402, %v2199, %v2201
      %v2241 = vsel %vm402, %v2201, %v2203
      %v2242 = vsel %vm402, %v2203, %v2205
      %v2243 = vsel %vm402, %v2207, %v2209
      %v2244 = vsel %vm402, %v2209, %v2211
      %v2245 = vsel %vm402, %v2211, %v2213
      %v2246 = vsel %vm402, %v2213, %v2215
      %v2247 = vsel %vm402, %v2215, %v2217
      %v2248 = vsel %vm402, %v2217, %v2219
      %v2249 = vsel %vm402, %v2219, %v2221
      %v2282 = vsel %vm402, 0.0, %v2159
      %v2283 = vsel %vm402, 0.0, %v2175
      %v2284 = vsel %vm402, 0.0, %v2191
      %v2285 = vsel %vm402, 0.0, %v2207
      %v2290 = vrot.slane %v2282, 7
      %v2291 = vrot.slane %v2222, 7
      %v2292 = vrot.slane %v2223, 7
      %v2293 = vrot.slane %v2224, 7
      %v2294 = vrot.slane %v2225, 7
      %v2295 = vrot.slane %v2226, 7
      %v2296 = vrot.slane %v2227, 7
      %v2297 = vrot.slane %v2228, 7
      %v2298 = vrot.slane %v2283, 7
      %v2299 = vsel %vm471, %v2290, %v2298
      %v2300 = vrot.slane %v2229, 7
      %v2301 = vsel %vm471, %v2291, %v2300
      %v2302 = vrot.slane %v2230, 7
      %v2303 = vsel %vm471, %v2292, %v2302
      %v2304 = vrot.slane %v2231, 7
      %v2305 = vsel %vm471, %v2293, %v2304
      %v2306 = vrot.slane %v2232, 7
      %v2307 = vsel %vm471, %v2294, %v2306
      %v2308 = vrot.slane %v2233, 7
      %v2309 = vsel %vm471, %v2295, %v2308
      %v2310 = vrot.slane %v2234, 7
      %v2311 = vsel %vm471, %v2296, %v2310
      %v2312 = vrot.slane %v2235, 7
      %v2313 = vsel %vm471, %v2297, %v2312
      %v2314 = vrot.slane %v2284, 7
      %v2315 = vsel %vm471, %v2298, %v2314
      %v2316 = vrot.slane %v2236, 7
      %v2317 = vsel %vm471, %v2300, %v2316
      %v2318 = vrot.slane %v2237, 7
      %v2319 = vsel %vm471, %v2302, %v2318
      %v2320 = vrot.slane %v2238, 7
      %v2321 = vsel %vm471, %v2304, %v2320
      %v2322 = vrot.slane %v2239, 7
      %v2323 = vsel %vm471, %v2306, %v2322
      %v2324 = vrot.slane %v2240, 7
      %v2325 = vsel %vm471, %v2308, %v2324
      %v2326 = vrot.slane %v2241, 7
      %v2327 = vsel %vm471, %v2310, %v2326
      %v2328 = vrot.slane %v2242, 7
      %v2329 = vsel %vm471, %v2312, %v2328
      %v2330 = vrot.slane %v2285, 7
      %v2331 = vsel %vm471, %v2314, %v2330
      %v2332 = vrot.slane %v2243, 7
      %v2333 = vsel %vm471, %v2316, %v2332
      %v2334 = vrot.slane %v2244, 7
      %v2335 = vsel %vm471, %v2318, %v2334
      %v2336 = vrot.slane %v2245, 7
      %v2337 = vsel %vm471, %v2320, %v2336
      %v2338 = vrot.slane %v2246, 7
      %v2339 = vsel %vm471, %v2322, %v2338
      %v2340 = vrot.slane %v2247, 7
      %v2341 = vsel %vm471, %v2324, %v2340
      %v2342 = vrot.slane %v2248, 7
      %v2343 = vsel %vm471, %v2326, %v2342
      %v2344 = vrot.slane %v2249, 7
      %v2345 = vsel %vm471, %v2328, %v2344
      %v2378 = vsel %vm471, 0.0, %v2290
      %v2379 = vsel %vm471, 0.0, %v2291
      %v2380 = vsel %vm471, 0.0, %v2292
      %v2381 = vsel %vm471, 0.0, %v2293
      %v2382 = vsel %vm471, 0.0, %v2294
      %v2383 = vsel %vm471, 0.0, %v2295
      %v2384 = vsel %vm471, 0.0, %v2296
      %v2385 = vsel %vm471, 0.0, %v2297
      %v2386 = vlaneseq
      %v2387 = vshrl.u32 %v2386, 7
      %v2388 = vsub.s32 0, %v2387
      %v2389 = vrot.slane %v2110, %v2388
      %v2390 = vlaneseq
      %v2391 = vshrl.u32 %v2390, 7
      %v2392 = vsub.s32 0, %v2391
      %v2393 = vrot.slane %v2111, %v2392
      %v2394 = vlaneseq
      %v2395 = vshrl.u32 %v2394, 7
      %v2396 = vsub.s32 0, %v2395
      %v2397 = vrot.slane %v2112, %v2396
      %v2398 = vlaneseq
      %v2399 = vshrl.u32 %v2398, 7
      %v2400 = vsub.s32 0, %v2399
      %v2401 = vrot.slane %v2113, %v2400
      %v2402 = vlaneseq
      %v2403 = vshrl.u32 %v2402, 7
      %v2404 = vsub.s32 0, %v2403
      %v2405 = vrot.slane %v2114, %v2404
      %v2406 = vlaneseq
      %v2407 = vshrl.u32 %v2406, 7
      %v2408 = vsub.s32 0, %v2407
      %v2409 = vrot.slane %v2115, %v2408
      %v2410 = vlaneseq
      %v2411 = vshrl.u32 %v2410, 7
      %v2412 = vsub.s32 0, %v2411
      %v2413 = vrot.slane %v2116, %v2412
      %v2414 = vlaneseq
      %v2415 = vshrl.u32 %v2414, 7
      %v2416 = vsub.s32 0, %v2415
      %v2417 = vrot.slane %v2117, %v2416
      %v2418 = vmul.f32 %v2378, %v2389
      %v2419 = vmul.f32 %v2379, %v2393
      %v2420 = vmul.f32 %v2380, %v2397
      %v2421 = vmul.f32 %v2381, %v2401
      %v2422 = vmul.f32 %v2382, %v2405
      %v2423 = vmul.f32 %v2383, %v2409
      %v2424 = vmul.f32 %v2384, %v2413
      %v2425 = vmul.f32 %v2385, %v2417
      %v2426 = vmul.f32 %v2299, %v2389
      %v2427 = vmul.f32 %v2301, %v2393
      %v2428 = vmul.f32 %v2303, %v2397
      %v2429 = vmul.f32 %v2305, %v2401
      %v2430 = vmul.f32 %v2307, %v2405
      %v2431 = vmul.f32 %v2309, %v2409
      %v2432 = vmul.f32 %v2311, %v2413
      %v2433 = vmul.f32 %v2313, %v2417
      %v2434 = vmul.f32 %v2315, %v2389
      %v2435 = vmul.f32 %v2317, %v2393
      %v2436 = vmul.f32 %v2319, %v2397
      %v2437 = vmul.f32 %v2321, %v2401
      %v2438 = vmul.f32 %v2323, %v2405
      %v2439 = vmul.f32 %v2325, %v2409
      %v2440 = vmul.f32 %v2327, %v2413
      %v2441 = vmul.f32 %v2329, %v2417
      %v2442 = vmul.f32 %v2331, %v2389
      %v2443 = vmul.f32 %v2333, %v2393
      %v2444 = vmul.f32 %v2335, %v2397
      %v2445 = vmul.f32 %v2337, %v2401
      %v2446 = vmul.f32 %v2339, %v2405
      %v2447 = vmul.f32 %v2341, %v2409
      %v2448 = vmul.f32 %v2343, %v2413
      %v2449 = vmul.f32 %v2345, %v2417
      %v2450 = vadd.f32 %v2418, 0.0
      %v2451 = vadd.f32 %v2419, 0.0
      %v2452 = vadd.f32 %v2420, 0.0
      %v2453 = vadd.f32 %v2421, 0.0
      %v2454 = vadd.f32 %v2422, 0.0
      %v2455 = vadd.f32 %v2423, 0.0
      %v2456 = vadd.f32 %v2424, 0.0
      %v2457 = vadd.f32 %v2425, 0.0
      %v2458 = vadd.f32 %v2426, 0.0
      %v2459 = vadd.f32 %v2427, 0.0
      %v2460 = vadd.f32 %v2428, 0.0
      %v2461 = vadd.f32 %v2429, 0.0
      %v2462 = vadd.f32 %v2430, 0.0
      %v2463 = vadd.f32 %v2431, 0.0
      %v2464 = vadd.f32 %v2432, 0.0
      %v2465 = vadd.f32 %v2433, 0.0
      %v2466 = vadd.f32 %v2434, 0.0
      %v2467 = vadd.f32 %v2435, 0.0
      %v2468 = vadd.f32 %v2436, 0.0
      %v2469 = vadd.f32 %v2437, 0.0
      %v2470 = vadd.f32 %v2438, 0.0
      %v2471 = vadd.f32 %v2439, 0.0
      %v2472 = vadd.f32 %v2440, 0.0
      %v2473 = vadd.f32 %v2441, 0.0
      %v2474 = vadd.f32 %v2442, 0.0
      %v2475 = vadd.f32 %v2443, 0.0
      %v2476 = vadd.f32 %v2444, 0.0
      %v2477 = vadd.f32 %v2445, 0.0
      %v2478 = vadd.f32 %v2446, 0.0
      %v2479 = vadd.f32 %v2447, 0.0
      %v2480 = vadd.f32 %v2448, 0.0
      %v2481 = vadd.f32 %v2449, 0.0
      %v2482 = vrot.slane %v2078, 7
      %v2483 = vrot.slane %v2079, 7
      %v2484 = vrot.slane %v2080, 7
      %v2485 = vrot.slane %v2081, 7
      %v2486 = vrot.slane %v2082, 7
      %v2487 = vrot.slane %v2083, 7
      %v2488 = vrot.slane %v2084, 7
      %v2489 = vrot.slane %v2085, 7
      %v2490 = vrot.slane %v2086, 7
      %v2491 = vsel %vm471, %v2482, %v2490
      %v2492 = vrot.slane %v2087, 7
      %v2493 = vsel %vm471, %v2483, %v2492
      %v2494 = vrot.slane %v2088, 7
      %v2495 = vsel %vm471, %v2484, %v2494
      %v2496 = vrot.slane %v2089, 7
      %v2497 = vsel %vm471, %v2485, %v2496
      %v2498 = vrot.slane %v2090, 7
      %v2499 = vsel %vm471, %v2486, %v2498
      %v2500 = vrot.slane %v2091, 7
      %v2501 = vsel %vm471, %v2487, %v2500
      %v2502 = vrot.slane %v2092, 7
      %v2503 = vsel %vm471, %v2488, %v2502
      %v2504 = vrot.slane %v2093, 7
      %v2505 = vsel %vm471, %v2489, %v2504
      %v2506 = vrot.slane %v2094, 7
      %v2507 = vsel %vm471, %v2490, %v2506
      %v2508 = vrot.slane %v2095, 7
      %v2509 = vsel %vm471, %v2492, %v2508
      %v2510 = vrot.slane %v2096, 7
      %v2511 = vsel %vm471, %v2494, %v2510
      %v2512 = vrot.slane %v2097, 7
      %v2513 = vsel %vm471, %v2496, %v2512
      %v2514 = vrot.slane %v2098, 7
      %v2515 = vsel %vm471, %v2498, %v2514
      %v2516 = vrot.slane %v2099, 7
      %v2517 = vsel %vm471, %v2500, %v2516
      %v2518 = vrot.slane %v2100, 7
      %v2519 = vsel %vm471, %v2502, %v2518
      %v2520 = vrot.slane %v2101, 7
      %v2521 = vsel %vm471, %v2504, %v2520
      %v2522 = vrot.slane %v2102, 7
      %v2523 = vsel %vm471, %v2506, %v2522
      %v2524 = vrot.slane %v2103, 7
      %v2525 = vsel %vm471, %v2508, %v2524
      %v2526 = vrot.slane %v2104, 7
      %v2527 = vsel %vm471, %v2510, %v2526
      %v2528 = vrot.slane %v2105, 7
      %v2529 = vsel %vm471, %v2512, %v2528
      %v2530 = vrot.slane %v2106, 7
      %v2531 = vsel %vm471, %v2514, %v2530
      %v2532 = vrot.slane %v2107, 7
      %v2533 = vsel %vm471, %v2516, %v2532
      %v2534 = vrot.slane %v2108, 7
      %v2535 = vsel %vm471, %v2518, %v2534
      %v2536 = vrot.slane %v2109, 7
      %v2537 = vsel %vm471, %v2520, %v2536
      %v2570 = vsel %vm471, 0.0, %v2482
      %v2571 = vsel %vm471, 0.0, %v2483
      %v2572 = vsel %vm471, 0.0, %v2484
      %v2573 = vsel %vm471, 0.0, %v2485
      %v2574 = vsel %vm471, 0.0, %v2486
      %v2575 = vsel %vm471, 0.0, %v2487
      %v2576 = vsel %vm471, 0.0, %v2488
      %v2577 = vsel %vm471, 0.0, %v2489
      %v2578 = vlaneseq
      %v2579 = vshrl.u32 %v2578, 7
      %v2580 = vsub.s32 1, %v2579
      %v2581 = vrot.slane %v2110, %v2580
      %v2582 = vlaneseq
      %v2583 = vshrl.u32 %v2582, 7
      %v2584 = vsub.s32 1, %v2583
      %v2585 = vrot.slane %v2111, %v2584
      %v2586 = vlaneseq
      %v2587 = vshrl.u32 %v2586, 7
      %v2588 = vsub.s32 1, %v2587
      %v2589 = vrot.slane %v2112, %v2588
      %v2590 = vlaneseq
      %v2591 = vshrl.u32 %v2590, 7
      %v2592 = vsub.s32 1, %v2591
      %v2593 = vrot.slane %v2113, %v2592
      %v2594 = vlaneseq
      %v2595 = vshrl.u32 %v2594, 7
      %v2596 = vsub.s32 1, %v2595
      %v2597 = vrot.slane %v2114, %v2596
      %v2598 = vlaneseq
      %v2599 = vshrl.u32 %v2598, 7
      %v2600 = vsub.s32 1, %v2599
      %v2601 = vrot.slane %v2115, %v2600
      %v2602 = vlaneseq
      %v2603 = vshrl.u32 %v2602, 7
      %v2604 = vsub.s32 1, %v2603
      %v2605 = vrot.slane %v2116, %v2604
      %v2606 = vlaneseq
      %v2607 = vshrl.u32 %v2606, 7
      %v2608 = vsub.s32 1, %v2607
      %v2609 = vrot.slane %v2117, %v2608
      %v2610 = vmul.f32 %v2570, %v2581
      %v2611 = vmul.f32 %v2571, %v2585
      %v2612 = vmul.f32 %v2572, %v2589
      %v2613 = vmul.f32 %v2573, %v2593
      %v2614 = vmul.f32 %v2574, %v2597
      %v2615 = vmul.f32 %v2575, %v2601
      %v2616 = vmul.f32 %v2576, %v2605
      %v2617 = vmul.f32 %v2577, %v2609
      %v2618 = vmul.f32 %v2491, %v2581
      %v2619 = vmul.f32 %v2493, %v2585
      %v2620 = vmul.f32 %v2495, %v2589
      %v2621 = vmul.f32 %v2497, %v2593
      %v2622 = vmul.f32 %v2499, %v2597
      %v2623 = vmul.f32 %v2501, %v2601
      %v2624 = vmul.f32 %v2503, %v2605
      %v2625 = vmul.f32 %v2505, %v2609
      %v2626 = vmul.f32 %v2507, %v2581
      %v2627 = vmul.f32 %v2509, %v2585
      %v2628 = vmul.f32 %v2511, %v2589
      %v2629 = vmul.f32 %v2513, %v2593
      %v2630 = vmul.f32 %v2515, %v2597
      %v2631 = vmul.f32 %v2517, %v2601
      %v2632 = vmul.f32 %v2519, %v2605
      %v2633 = vmul.f32 %v2521, %v2609
      %v2634 = vmul.f32 %v2523, %v2581
      %v2635 = vmul.f32 %v2525, %v2585
      %v2636 = vmul.f32 %v2527, %v2589
      %v2637 = vmul.f32 %v2529, %v2593
      %v2638 = vmul.f32 %v2531, %v2597
      %v2639 = vmul.f32 %v2533, %v2601
      %v2640 = vmul.f32 %v2535, %v2605
      %v2641 = vmul.f32 %v2537, %v2609
      %v2642 = vadd.f32 %v2450, %v2610
      %v2643 = vadd.f32 %v2451, %v2611
      %v2644 = vadd.f32 %v2452, %v2612
      %v2645 = vadd.f32 %v2453, %v2613
      %v2646 = vadd.f32 %v2454, %v2614
      %v2647 = vadd.f32 %v2455, %v2615
      %v2648 = vadd.f32 %v2456, %v2616
      %v2649 = vadd.f32 %v2457, %v2617
      %v2650 = vadd.f32 %v2458, %v2618
      %v2651 = vadd.f32 %v2459, %v2619
      %v2652 = vadd.f32 %v2460, %v2620
      %v2653 = vadd.f32 %v2461, %v2621
      %v2654 = vadd.f32 %v2462, %v2622
      %v2655 = vadd.f32 %v2463, %v2623
      %v2656 = vadd.f32 %v2464, %v2624
      %v2657 = vadd.f32 %v2465, %v2625
      %v2658 = vadd.f32 %v2466, %v2626
      %v2659 = vadd.f32 %v2467, %v2627
      %v2660 = vadd.f32 %v2468, %v2628
      %v2661 = vadd.f32 %v2469, %v2629
      %v2662 = vadd.f32 %v2470, %v2630
      %v2663 = vadd.f32 %v2471, %v2631
      %v2664 = vadd.f32 %v2472, %v2632
      %v2665 = vadd.f32 %v2473, %v2633
      %v2666 = vadd.f32 %v2474, %v2634
      %v2667 = vadd.f32 %v2475, %v2635
      %v2668 = vadd.f32 %v2476, %v2636
      %v2669 = vadd.f32 %v2477, %v2637
      %v2670 = vadd.f32 %v2478, %v2638
      %v2671 = vadd.f32 %v2479, %v2639
      %v2672 = vadd.f32 %v2480, %v2640
      %v2673 = vadd.f32 %v2481, %v2641
      %2674 = vrot.lane.b32.xlu0 %v2078, 96
      %v2675 = vpop.permute.xlu0 %2674
      %2676 = vrot.lane.b32.xlu0 %v2079, 96
      %v2677 = vpop.permute.xlu0 %2676
      %2678 = vrot.lane.b32.xlu0 %v2080, 96
      %v2679 = vpop.permute.xlu0 %2678
      %2680 = vrot.lane.b32.xlu0 %v2081, 96
      %v2681 = vpop.permute.xlu0 %2680
      %2682 = vrot.lane.b32.xlu0 %v2082, 96
      %v2683 = vpop.permute.xlu0 %2682
      %2684 = vrot.lane.b32.xlu0 %v2083, 96
      %v2685 = vpop.permute.xlu0 %2684
      %2686 = vrot.lane.b32.xlu0 %v2084, 96
      %v2687 = vpop.permute.xlu0 %2686
      %2688 = vrot.lane.b32.xlu0 %v2085, 96
      %v2689 = vpop.permute.xlu0 %2688
      %2690 = vrot.lane.b32.xlu0 %v2086, 96
      %v2691 = vpop.permute.xlu0 %2690
      %2692 = vrot.lane.b32.xlu0 %v2087, 96
      %v2693 = vpop.permute.xlu0 %2692
      %2694 = vrot.lane.b32.xlu0 %v2088, 96
      %v2695 = vpop.permute.xlu0 %2694
      %2696 = vrot.lane.b32.xlu0 %v2089, 96
      %v2697 = vpop.permute.xlu0 %2696
      %2698 = vrot.lane.b32.xlu0 %v2090, 96
      %v2699 = vpop.permute.xlu0 %2698
      %2700 = vrot.lane.b32.xlu0 %v2091, 96
      %v2701 = vpop.permute.xlu0 %2700
      %2702 = vrot.lane.b32.xlu0 %v2092, 96
      %v2703 = vpop.permute.xlu0 %2702
      %2704 = vrot.lane.b32.xlu0 %v2093, 96
      %v2705 = vpop.permute.xlu0 %2704
      %2706 = vrot.lane.b32.xlu0 %v2094, 96
      %v2707 = vpop.permute.xlu0 %2706
      %2708 = vrot.lane.b32.xlu0 %v2095, 96
      %v2709 = vpop.permute.xlu0 %2708
      %2710 = vrot.lane.b32.xlu0 %v2096, 96
      %v2711 = vpop.permute.xlu0 %2710
      %2712 = vrot.lane.b32.xlu0 %v2097, 96
      %v2713 = vpop.permute.xlu0 %2712
      %2714 = vrot.lane.b32.xlu0 %v2098, 96
      %v2715 = vpop.permute.xlu0 %2714
      %2716 = vrot.lane.b32.xlu0 %v2099, 96
      %v2717 = vpop.permute.xlu0 %2716
      %2718 = vrot.lane.b32.xlu0 %v2100, 96
      %v2719 = vpop.permute.xlu0 %2718
      %2720 = vrot.lane.b32.xlu0 %v2101, 96
      %v2721 = vpop.permute.xlu0 %2720
      %2722 = vrot.lane.b32.xlu0 %v2102, 96
      %v2723 = vpop.permute.xlu0 %2722
      %2724 = vrot.lane.b32.xlu0 %v2103, 96
      %v2725 = vpop.permute.xlu0 %2724
      %2726 = vrot.lane.b32.xlu0 %v2104, 96
      %v2727 = vpop.permute.xlu0 %2726
      %2728 = vrot.lane.b32.xlu0 %v2105, 96
      %v2729 = vpop.permute.xlu0 %2728
      %2730 = vrot.lane.b32.xlu0 %v2106, 96
      %v2731 = vpop.permute.xlu0 %2730
      %2732 = vrot.lane.b32.xlu0 %v2107, 96
      %v2733 = vpop.permute.xlu0 %2732
      %2734 = vrot.lane.b32.xlu0 %v2108, 96
      %v2735 = vpop.permute.xlu0 %2734
      %2736 = vrot.lane.b32.xlu0 %v2109, 96
      %v2737 = vpop.permute.xlu0 %2736
      %v2738 = vsel %vm920, %v2675, %v2677
      %v2739 = vsel %vm920, %v2677, %v2679
      %v2740 = vsel %vm920, %v2679, %v2681
      %v2741 = vsel %vm920, %v2681, %v2683
      %v2742 = vsel %vm920, %v2683, %v2685
      %v2743 = vsel %vm920, %v2685, %v2687
      %v2744 = vsel %vm920, %v2687, %v2689
      %v2745 = vsel %vm920, %v2691, %v2693
      %v2746 = vsel %vm920, %v2693, %v2695
      %v2747 = vsel %vm920, %v2695, %v2697
      %v2748 = vsel %vm920, %v2697, %v2699
      %v2749 = vsel %vm920, %v2699, %v2701
      %v2750 = vsel %vm920, %v2701, %v2703
      %v2751 = vsel %vm920, %v2703, %v2705
      %v2752 = vsel %vm920, %v2707, %v2709
      %v2753 = vsel %vm920, %v2709, %v2711
      %v2754 = vsel %vm920, %v2711, %v2713
      %v2755 = vsel %vm920, %v2713, %v2715
      %v2756 = vsel %vm920, %v2715, %v2717
      %v2757 = vsel %vm920, %v2717, %v2719
      %v2758 = vsel %vm920, %v2719, %v2721
      %v2759 = vsel %vm920, %v2723, %v2725
      %v2760 = vsel %vm920, %v2725, %v2727
      %v2761 = vsel %vm920, %v2727, %v2729
      %v2762 = vsel %vm920, %v2729, %v2731
      %v2763 = vsel %vm920, %v2731, %v2733
      %v2764 = vsel %vm920, %v2733, %v2735
      %v2765 = vsel %vm920, %v2735, %v2737
      %v2798 = vsel %vm920, %v2689, 0.0
      %v2799 = vsel %vm920, %v2705, 0.0
      %v2800 = vsel %vm920, %v2721, 0.0
      %v2801 = vsel %vm920, %v2737, 0.0
      %v2806 = vrot.slane %v2738, 7
      %v2807 = vrot.slane %v2739, 7
      %v2808 = vrot.slane %v2740, 7
      %v2809 = vrot.slane %v2741, 7
      %v2810 = vrot.slane %v2742, 7
      %v2811 = vrot.slane %v2743, 7
      %v2812 = vrot.slane %v2744, 7
      %v2813 = vrot.slane %v2798, 7
      %v2814 = vrot.slane %v2745, 7
      %v2815 = vsel %vm471, %v2806, %v2814
      %v2816 = vrot.slane %v2746, 7
      %v2817 = vsel %vm471, %v2807, %v2816
      %v2818 = vrot.slane %v2747, 7
      %v2819 = vsel %vm471, %v2808, %v2818
      %v2820 = vrot.slane %v2748, 7
      %v2821 = vsel %vm471, %v2809, %v2820
      %v2822 = vrot.slane %v2749, 7
      %v2823 = vsel %vm471, %v2810, %v2822
      %v2824 = vrot.slane %v2750, 7
      %v2825 = vsel %vm471, %v2811, %v2824
      %v2826 = vrot.slane %v2751, 7
      %v2827 = vsel %vm471, %v2812, %v2826
      %v2828 = vrot.slane %v2799, 7
      %v2829 = vsel %vm471, %v2813, %v2828
      %v2830 = vrot.slane %v2752, 7
      %v2831 = vsel %vm471, %v2814, %v2830
      %v2832 = vrot.slane %v2753, 7
      %v2833 = vsel %vm471, %v2816, %v2832
      %v2834 = vrot.slane %v2754, 7
      %v2835 = vsel %vm471, %v2818, %v2834
      %v2836 = vrot.slane %v2755, 7
      %v2837 = vsel %vm471, %v2820, %v2836
      %v2838 = vrot.slane %v2756, 7
      %v2839 = vsel %vm471, %v2822, %v2838
      %v2840 = vrot.slane %v2757, 7
      %v2841 = vsel %vm471, %v2824, %v2840
      %v2842 = vrot.slane %v2758, 7
      %v2843 = vsel %vm471, %v2826, %v2842
      %v2844 = vrot.slane %v2800, 7
      %v2845 = vsel %vm471, %v2828, %v2844
      %v2846 = vrot.slane %v2759, 7
      %v2847 = vsel %vm471, %v2830, %v2846
      %v2848 = vrot.slane %v2760, 7
      %v2849 = vsel %vm471, %v2832, %v2848
      %v2850 = vrot.slane %v2761, 7
      %v2851 = vsel %vm471, %v2834, %v2850
      %v2852 = vrot.slane %v2762, 7
      %v2853 = vsel %vm471, %v2836, %v2852
      %v2854 = vrot.slane %v2763, 7
      %v2855 = vsel %vm471, %v2838, %v2854
      %v2856 = vrot.slane %v2764, 7
      %v2857 = vsel %vm471, %v2840, %v2856
      %v2858 = vrot.slane %v2765, 7
      %v2859 = vsel %vm471, %v2842, %v2858
      %v2860 = vrot.slane %v2801, 7
      %v2861 = vsel %vm471, %v2844, %v2860
      %v2894 = vsel %vm471, 0.0, %v2806
      %v2895 = vsel %vm471, 0.0, %v2807
      %v2896 = vsel %vm471, 0.0, %v2808
      %v2897 = vsel %vm471, 0.0, %v2809
      %v2898 = vsel %vm471, 0.0, %v2810
      %v2899 = vsel %vm471, 0.0, %v2811
      %v2900 = vsel %vm471, 0.0, %v2812
      %v2901 = vsel %vm471, 0.0, %v2813
      %v2902 = vlaneseq
      %v2903 = vshrl.u32 %v2902, 7
      %v2904 = vsub.s32 2, %v2903
      %v2905 = vrot.slane %v2110, %v2904
      %v2906 = vlaneseq
      %v2907 = vshrl.u32 %v2906, 7
      %v2908 = vsub.s32 2, %v2907
      %v2909 = vrot.slane %v2111, %v2908
      %v2910 = vlaneseq
      %v2911 = vshrl.u32 %v2910, 7
      %v2912 = vsub.s32 2, %v2911
      %v2913 = vrot.slane %v2112, %v2912
      %v2914 = vlaneseq
      %v2915 = vshrl.u32 %v2914, 7
      %v2916 = vsub.s32 2, %v2915
      %v2917 = vrot.slane %v2113, %v2916
      %v2918 = vlaneseq
      %v2919 = vshrl.u32 %v2918, 7
      %v2920 = vsub.s32 2, %v2919
      %v2921 = vrot.slane %v2114, %v2920
      %v2922 = vlaneseq
      %v2923 = vshrl.u32 %v2922, 7
      %v2924 = vsub.s32 2, %v2923
      %v2925 = vrot.slane %v2115, %v2924
      %v2926 = vlaneseq
      %v2927 = vshrl.u32 %v2926, 7
      %v2928 = vsub.s32 2, %v2927
      %v2929 = vrot.slane %v2116, %v2928
      %v2930 = vlaneseq
      %v2931 = vshrl.u32 %v2930, 7
      %v2932 = vsub.s32 2, %v2931
      %v2933 = vrot.slane %v2117, %v2932
      %v2934 = vmul.f32 %v2894, %v2905
      %v2935 = vmul.f32 %v2895, %v2909
      %v2936 = vmul.f32 %v2896, %v2913
      %v2937 = vmul.f32 %v2897, %v2917
      %v2938 = vmul.f32 %v2898, %v2921
      %v2939 = vmul.f32 %v2899, %v2925
      %v2940 = vmul.f32 %v2900, %v2929
      %v2941 = vmul.f32 %v2901, %v2933
      %v2942 = vmul.f32 %v2815, %v2905
      %v2943 = vmul.f32 %v2817, %v2909
      %v2944 = vmul.f32 %v2819, %v2913
      %v2945 = vmul.f32 %v2821, %v2917
      %v2946 = vmul.f32 %v2823, %v2921
      %v2947 = vmul.f32 %v2825, %v2925
      %v2948 = vmul.f32 %v2827, %v2929
      %v2949 = vmul.f32 %v2829, %v2933
      %v2950 = vmul.f32 %v2831, %v2905
      %v2951 = vmul.f32 %v2833, %v2909
      %v2952 = vmul.f32 %v2835, %v2913
      %v2953 = vmul.f32 %v2837, %v2917
      %v2954 = vmul.f32 %v2839, %v2921
      %v2955 = vmul.f32 %v2841, %v2925
      %v2956 = vmul.f32 %v2843, %v2929
      %v2957 = vmul.f32 %v2845, %v2933
      %v2958 = vmul.f32 %v2847, %v2905
      %v2959 = vmul.f32 %v2849, %v2909
      %v2960 = vmul.f32 %v2851, %v2913
      %v2961 = vmul.f32 %v2853, %v2917
      %v2962 = vmul.f32 %v2855, %v2921
      %v2963 = vmul.f32 %v2857, %v2925
      %v2964 = vmul.f32 %v2859, %v2929
      %v2965 = vmul.f32 %v2861, %v2933
      %v2966 = vadd.f32 %v2642, %v2934
      %v2967 = vadd.f32 %v2643, %v2935
      %v2968 = vadd.f32 %v2644, %v2936
      %v2969 = vadd.f32 %v2645, %v2937
      %v2970 = vadd.f32 %v2646, %v2938
      %v2971 = vadd.f32 %v2647, %v2939
      %v2972 = vadd.f32 %v2648, %v2940
      %v2973 = vadd.f32 %v2649, %v2941
      %v2974 = vadd.f32 %v2650, %v2942
      %v2975 = vadd.f32 %v2651, %v2943
      %v2976 = vadd.f32 %v2652, %v2944
      %v2977 = vadd.f32 %v2653, %v2945
      %v2978 = vadd.f32 %v2654, %v2946
      %v2979 = vadd.f32 %v2655, %v2947
      %v2980 = vadd.f32 %v2656, %v2948
      %v2981 = vadd.f32 %v2657, %v2949
      %v2982 = vadd.f32 %v2658, %v2950
      %v2983 = vadd.f32 %v2659, %v2951
      %v2984 = vadd.f32 %v2660, %v2952
      %v2985 = vadd.f32 %v2661, %v2953
      %v2986 = vadd.f32 %v2662, %v2954
      %v2987 = vadd.f32 %v2663, %v2955
      %v2988 = vadd.f32 %v2664, %v2956
      %v2989 = vadd.f32 %v2665, %v2957
      %v2990 = vadd.f32 %v2666, %v2958
      %v2991 = vadd.f32 %v2667, %v2959
      %v2992 = vadd.f32 %v2668, %v2960
      %v2993 = vadd.f32 %v2669, %v2961
      %v2994 = vadd.f32 %v2670, %v2962
      %v2995 = vadd.f32 %v2671, %v2963
      %v2996 = vadd.f32 %v2672, %v2964
      %v2997 = vadd.f32 %v2673, %v2965
      %v2998 = vlaneseq
      %v2999 = vshrl.u32 %v2998, 7
      %v3000 = vsub.s32 3, %v2999
      %v3001 = vrot.slane %v2110, %v3000
      %v3002 = vlaneseq
      %v3003 = vshrl.u32 %v3002, 7
      %v3004 = vsub.s32 3, %v3003
      %v3005 = vrot.slane %v2111, %v3004
      %v3006 = vlaneseq
      %v3007 = vshrl.u32 %v3006, 7
      %v3008 = vsub.s32 3, %v3007
      %v3009 = vrot.slane %v2112, %v3008
      %v3010 = vlaneseq
      %v3011 = vshrl.u32 %v3010, 7
      %v3012 = vsub.s32 3, %v3011
      %v3013 = vrot.slane %v2113, %v3012
      %v3014 = vlaneseq
      %v3015 = vshrl.u32 %v3014, 7
      %v3016 = vsub.s32 3, %v3015
      %v3017 = vrot.slane %v2114, %v3016
      %v3018 = vlaneseq
      %v3019 = vshrl.u32 %v3018, 7
      %v3020 = vsub.s32 3, %v3019
      %v3021 = vrot.slane %v2115, %v3020
      %v3022 = vlaneseq
      %v3023 = vshrl.u32 %v3022, 7
      %v3024 = vsub.s32 3, %v3023
      %v3025 = vrot.slane %v2116, %v3024
      %v3026 = vlaneseq
      %v3027 = vshrl.u32 %v3026, 7
      %v3028 = vsub.s32 3, %v3027
      %v3029 = vrot.slane %v2117, %v3028
      %v3030 = vmul.f32 %v2282, %v3001
      %v3031 = vmul.f32 %v2222, %v3005
      %v3032 = vmul.f32 %v2223, %v3009
      %v3033 = vmul.f32 %v2224, %v3013
      %v3034 = vmul.f32 %v2225, %v3017
      %v3035 = vmul.f32 %v2226, %v3021
      %v3036 = vmul.f32 %v2227, %v3025
      %v3037 = vmul.f32 %v2228, %v3029
      %v3038 = vmul.f32 %v2283, %v3001
      %v3039 = vmul.f32 %v2229, %v3005
      %v3040 = vmul.f32 %v2230, %v3009
      %v3041 = vmul.f32 %v2231, %v3013
      %v3042 = vmul.f32 %v2232, %v3017
      %v3043 = vmul.f32 %v2233, %v3021
      %v3044 = vmul.f32 %v2234, %v3025
      %v3045 = vmul.f32 %v2235, %v3029
      %v3046 = vmul.f32 %v2284, %v3001
      %v3047 = vmul.f32 %v2236, %v3005
      %v3048 = vmul.f32 %v2237, %v3009
      %v3049 = vmul.f32 %v2238, %v3013
      %v3050 = vmul.f32 %v2239, %v3017
      %v3051 = vmul.f32 %v2240, %v3021
      %v3052 = vmul.f32 %v2241, %v3025
      %v3053 = vmul.f32 %v2242, %v3029
      %v3054 = vmul.f32 %v2285, %v3001
      %v3055 = vmul.f32 %v2243, %v3005
      %v3056 = vmul.f32 %v2244, %v3009
      %v3057 = vmul.f32 %v2245, %v3013
      %v3058 = vmul.f32 %v2246, %v3017
      %v3059 = vmul.f32 %v2247, %v3021
      %v3060 = vmul.f32 %v2248, %v3025
      %v3061 = vmul.f32 %v2249, %v3029
      %v3062 = vadd.f32 %v2966, %v3030
      %v3063 = vadd.f32 %v2967, %v3031
      %v3064 = vadd.f32 %v2968, %v3032
      %v3065 = vadd.f32 %v2969, %v3033
      %v3066 = vadd.f32 %v2970, %v3034
      %v3067 = vadd.f32 %v2971, %v3035
      %v3068 = vadd.f32 %v2972, %v3036
      %v3069 = vadd.f32 %v2973, %v3037
      %v3070 = vadd.f32 %v2974, %v3038
      %v3071 = vadd.f32 %v2975, %v3039
      %v3072 = vadd.f32 %v2976, %v3040
      %v3073 = vadd.f32 %v2977, %v3041
      %v3074 = vadd.f32 %v2978, %v3042
      %v3075 = vadd.f32 %v2979, %v3043
      %v3076 = vadd.f32 %v2980, %v3044
      %v3077 = vadd.f32 %v2981, %v3045
      %v3078 = vadd.f32 %v2982, %v3046
      %v3079 = vadd.f32 %v2983, %v3047
      %v3080 = vadd.f32 %v2984, %v3048
      %v3081 = vadd.f32 %v2985, %v3049
      %v3082 = vadd.f32 %v2986, %v3050
      %v3083 = vadd.f32 %v2987, %v3051
      %v3084 = vadd.f32 %v2988, %v3052
      %v3085 = vadd.f32 %v2989, %v3053
      %v3086 = vadd.f32 %v2990, %v3054
      %v3087 = vadd.f32 %v2991, %v3055
      %v3088 = vadd.f32 %v2992, %v3056
      %v3089 = vadd.f32 %v2993, %v3057
      %v3090 = vadd.f32 %v2994, %v3058
      %v3091 = vadd.f32 %v2995, %v3059
      %v3092 = vadd.f32 %v2996, %v3060
      %v3093 = vadd.f32 %v2997, %v3061
      %v3094 = vlaneseq
      %v3095 = vshrl.u32 %v3094, 7
      %v3096 = vsub.s32 4, %v3095
      %v3097 = vrot.slane %v2110, %v3096
      %v3098 = vlaneseq
      %v3099 = vshrl.u32 %v3098, 7
      %v3100 = vsub.s32 4, %v3099
      %v3101 = vrot.slane %v2111, %v3100
      %v3102 = vlaneseq
      %v3103 = vshrl.u32 %v3102, 7
      %v3104 = vsub.s32 4, %v3103
      %v3105 = vrot.slane %v2112, %v3104
      %v3106 = vlaneseq
      %v3107 = vshrl.u32 %v3106, 7
      %v3108 = vsub.s32 4, %v3107
      %v3109 = vrot.slane %v2113, %v3108
      %v3110 = vlaneseq
      %v3111 = vshrl.u32 %v3110, 7
      %v3112 = vsub.s32 4, %v3111
      %v3113 = vrot.slane %v2114, %v3112
      %v3114 = vlaneseq
      %v3115 = vshrl.u32 %v3114, 7
      %v3116 = vsub.s32 4, %v3115
      %v3117 = vrot.slane %v2115, %v3116
      %v3118 = vlaneseq
      %v3119 = vshrl.u32 %v3118, 7
      %v3120 = vsub.s32 4, %v3119
      %v3121 = vrot.slane %v2116, %v3120
      %v3122 = vlaneseq
      %v3123 = vshrl.u32 %v3122, 7
      %v3124 = vsub.s32 4, %v3123
      %v3125 = vrot.slane %v2117, %v3124
      %v3126 = vmul.f32 %v2078, %v3097
      %v3127 = vmul.f32 %v2079, %v3101
      %v3128 = vmul.f32 %v2080, %v3105
      %v3129 = vmul.f32 %v2081, %v3109
      %v3130 = vmul.f32 %v2082, %v3113
      %v3131 = vmul.f32 %v2083, %v3117
      %v3132 = vmul.f32 %v2084, %v3121
      %v3133 = vmul.f32 %v2085, %v3125
      %v3134 = vmul.f32 %v2086, %v3097
      %v3135 = vmul.f32 %v2087, %v3101
      %v3136 = vmul.f32 %v2088, %v3105
      %v3137 = vmul.f32 %v2089, %v3109
      %v3138 = vmul.f32 %v2090, %v3113
      %v3139 = vmul.f32 %v2091, %v3117
      %v3140 = vmul.f32 %v2092, %v3121
      %v3141 = vmul.f32 %v2093, %v3125
      %v3142 = vmul.f32 %v2094, %v3097
      %v3143 = vmul.f32 %v2095, %v3101
      %v3144 = vmul.f32 %v2096, %v3105
      %v3145 = vmul.f32 %v2097, %v3109
      %v3146 = vmul.f32 %v2098, %v3113
      %v3147 = vmul.f32 %v2099, %v3117
      %v3148 = vmul.f32 %v2100, %v3121
      %v3149 = vmul.f32 %v2101, %v3125
      %v3150 = vmul.f32 %v2102, %v3097
      %v3151 = vmul.f32 %v2103, %v3101
      %v3152 = vmul.f32 %v2104, %v3105
      %v3153 = vmul.f32 %v2105, %v3109
      %v3154 = vmul.f32 %v2106, %v3113
      %v3155 = vmul.f32 %v2107, %v3117
      %v3156 = vmul.f32 %v2108, %v3121
      %v3157 = vmul.f32 %v2109, %v3125
      %v3158 = vadd.f32 %v3062, %v3126
      %v3159 = vadd.f32 %v3063, %v3127
      %v3160 = vadd.f32 %v3064, %v3128
      %v3161 = vadd.f32 %v3065, %v3129
      %v3162 = vadd.f32 %v3066, %v3130
      %v3163 = vadd.f32 %v3067, %v3131
      %v3164 = vadd.f32 %v3068, %v3132
      %v3165 = vadd.f32 %v3069, %v3133
      %v3166 = vadd.f32 %v3070, %v3134
      %v3167 = vadd.f32 %v3071, %v3135
      %v3168 = vadd.f32 %v3072, %v3136
      %v3169 = vadd.f32 %v3073, %v3137
      %v3170 = vadd.f32 %v3074, %v3138
      %v3171 = vadd.f32 %v3075, %v3139
      %v3172 = vadd.f32 %v3076, %v3140
      %v3173 = vadd.f32 %v3077, %v3141
      %v3174 = vadd.f32 %v3078, %v3142
      %v3175 = vadd.f32 %v3079, %v3143
      %v3176 = vadd.f32 %v3080, %v3144
      %v3177 = vadd.f32 %v3081, %v3145
      %v3178 = vadd.f32 %v3082, %v3146
      %v3179 = vadd.f32 %v3083, %v3147
      %v3180 = vadd.f32 %v3084, %v3148
      %v3181 = vadd.f32 %v3085, %v3149
      %v3182 = vadd.f32 %v3086, %v3150
      %v3183 = vadd.f32 %v3087, %v3151
      %v3184 = vadd.f32 %v3088, %v3152
      %v3185 = vadd.f32 %v3089, %v3153
      %v3186 = vadd.f32 %v3090, %v3154
      %v3187 = vadd.f32 %v3091, %v3155
      %v3188 = vadd.f32 %v3092, %v3156
      %v3189 = vadd.f32 %v3093, %v3157
      %v3190 = vlaneseq
      %v3191 = vshrl.u32 %v3190, 7
      %v3192 = vsub.s32 5, %v3191
      %v3193 = vrot.slane %v2110, %v3192
      %v3194 = vlaneseq
      %v3195 = vshrl.u32 %v3194, 7
      %v3196 = vsub.s32 5, %v3195
      %v3197 = vrot.slane %v2111, %v3196
      %v3198 = vlaneseq
      %v3199 = vshrl.u32 %v3198, 7
      %v3200 = vsub.s32 5, %v3199
      %v3201 = vrot.slane %v2112, %v3200
      %v3202 = vlaneseq
      %v3203 = vshrl.u32 %v3202, 7
      %v3204 = vsub.s32 5, %v3203
      %v3205 = vrot.slane %v2113, %v3204
      %v3206 = vlaneseq
      %v3207 = vshrl.u32 %v3206, 7
      %v3208 = vsub.s32 5, %v3207
      %v3209 = vrot.slane %v2114, %v3208
      %v3210 = vlaneseq
      %v3211 = vshrl.u32 %v3210, 7
      %v3212 = vsub.s32 5, %v3211
      %v3213 = vrot.slane %v2115, %v3212
      %v3214 = vlaneseq
      %v3215 = vshrl.u32 %v3214, 7
      %v3216 = vsub.s32 5, %v3215
      %v3217 = vrot.slane %v2116, %v3216
      %v3218 = vlaneseq
      %v3219 = vshrl.u32 %v3218, 7
      %v3220 = vsub.s32 5, %v3219
      %v3221 = vrot.slane %v2117, %v3220
      %v3222 = vmul.f32 %v2738, %v3193
      %v3223 = vmul.f32 %v2739, %v3197
      %v3224 = vmul.f32 %v2740, %v3201
      %v3225 = vmul.f32 %v2741, %v3205
      %v3226 = vmul.f32 %v2742, %v3209
      %v3227 = vmul.f32 %v2743, %v3213
      %v3228 = vmul.f32 %v2744, %v3217
      %v3229 = vmul.f32 %v2798, %v3221
      %v3230 = vmul.f32 %v2745, %v3193
      %v3231 = vmul.f32 %v2746, %v3197
      %v3232 = vmul.f32 %v2747, %v3201
      %v3233 = vmul.f32 %v2748, %v3205
      %v3234 = vmul.f32 %v2749, %v3209
      %v3235 = vmul.f32 %v2750, %v3213
      %v3236 = vmul.f32 %v2751, %v3217
      %v3237 = vmul.f32 %v2799, %v3221
      %v3238 = vmul.f32 %v2752, %v3193
      %v3239 = vmul.f32 %v2753, %v3197
      %v3240 = vmul.f32 %v2754, %v3201
      %v3241 = vmul.f32 %v2755, %v3205
      %v3242 = vmul.f32 %v2756, %v3209
      %v3243 = vmul.f32 %v2757, %v3213
      %v3244 = vmul.f32 %v2758, %v3217
      %v3245 = vmul.f32 %v2800, %v3221
      %v3246 = vmul.f32 %v2759, %v3193
      %v3247 = vmul.f32 %v2760, %v3197
      %v3248 = vmul.f32 %v2761, %v3201
      %v3249 = vmul.f32 %v2762, %v3205
      %v3250 = vmul.f32 %v2763, %v3209
      %v3251 = vmul.f32 %v2764, %v3213
      %v3252 = vmul.f32 %v2765, %v3217
      %v3253 = vmul.f32 %v2801, %v3221
      %v3254 = vadd.f32 %v3158, %v3222
      %v3255 = vadd.f32 %v3159, %v3223
      %v3256 = vadd.f32 %v3160, %v3224
      %v3257 = vadd.f32 %v3161, %v3225
      %v3258 = vadd.f32 %v3162, %v3226
      %v3259 = vadd.f32 %v3163, %v3227
      %v3260 = vadd.f32 %v3164, %v3228
      %v3261 = vadd.f32 %v3165, %v3229
      %v3262 = vadd.f32 %v3166, %v3230
      %v3263 = vadd.f32 %v3167, %v3231
      %v3264 = vadd.f32 %v3168, %v3232
      %v3265 = vadd.f32 %v3169, %v3233
      %v3266 = vadd.f32 %v3170, %v3234
      %v3267 = vadd.f32 %v3171, %v3235
      %v3268 = vadd.f32 %v3172, %v3236
      %v3269 = vadd.f32 %v3173, %v3237
      %v3270 = vadd.f32 %v3174, %v3238
      %v3271 = vadd.f32 %v3175, %v3239
      %v3272 = vadd.f32 %v3176, %v3240
      %v3273 = vadd.f32 %v3177, %v3241
      %v3274 = vadd.f32 %v3178, %v3242
      %v3275 = vadd.f32 %v3179, %v3243
      %v3276 = vadd.f32 %v3180, %v3244
      %v3277 = vadd.f32 %v3181, %v3245
      %v3278 = vadd.f32 %v3182, %v3246
      %v3279 = vadd.f32 %v3183, %v3247
      %v3280 = vadd.f32 %v3184, %v3248
      %v3281 = vadd.f32 %v3185, %v3249
      %v3282 = vadd.f32 %v3186, %v3250
      %v3283 = vadd.f32 %v3187, %v3251
      %v3284 = vadd.f32 %v3188, %v3252
      %v3285 = vadd.f32 %v3189, %v3253
      %v3286 = vrot.slane %v2282, 1
      %v3287 = vrot.slane %v2283, 1
      %v3288 = vsel %vm1469, %v3286, %v3287
      %v3289 = vrot.slane %v2222, 1
      %v3290 = vrot.slane %v2229, 1
      %v3291 = vsel %vm1469, %v3289, %v3290
      %v3292 = vrot.slane %v2223, 1
      %v3293 = vrot.slane %v2230, 1
      %v3294 = vsel %vm1469, %v3292, %v3293
      %v3295 = vrot.slane %v2224, 1
      %v3296 = vrot.slane %v2231, 1
      %v3297 = vsel %vm1469, %v3295, %v3296
      %v3298 = vrot.slane %v2225, 1
      %v3299 = vrot.slane %v2232, 1
      %v3300 = vsel %vm1469, %v3298, %v3299
      %v3301 = vrot.slane %v2226, 1
      %v3302 = vrot.slane %v2233, 1
      %v3303 = vsel %vm1469, %v3301, %v3302
      %v3304 = vrot.slane %v2227, 1
      %v3305 = vrot.slane %v2234, 1
      %v3306 = vsel %vm1469, %v3304, %v3305
      %v3307 = vrot.slane %v2228, 1
      %v3308 = vrot.slane %v2235, 1
      %v3309 = vsel %vm1469, %v3307, %v3308
      %v3310 = vrot.slane %v2284, 1
      %v3311 = vsel %vm1469, %v3287, %v3310
      %v3312 = vrot.slane %v2236, 1
      %v3313 = vsel %vm1469, %v3290, %v3312
      %v3314 = vrot.slane %v2237, 1
      %v3315 = vsel %vm1469, %v3293, %v3314
      %v3316 = vrot.slane %v2238, 1
      %v3317 = vsel %vm1469, %v3296, %v3316
      %v3318 = vrot.slane %v2239, 1
      %v3319 = vsel %vm1469, %v3299, %v3318
      %v3320 = vrot.slane %v2240, 1
      %v3321 = vsel %vm1469, %v3302, %v3320
      %v3322 = vrot.slane %v2241, 1
      %v3323 = vsel %vm1469, %v3305, %v3322
      %v3324 = vrot.slane %v2242, 1
      %v3325 = vsel %vm1469, %v3308, %v3324
      %v3326 = vrot.slane %v2285, 1
      %v3327 = vsel %vm1469, %v3310, %v3326
      %v3328 = vrot.slane %v2243, 1
      %v3329 = vsel %vm1469, %v3312, %v3328
      %v3330 = vrot.slane %v2244, 1
      %v3331 = vsel %vm1469, %v3314, %v3330
      %v3332 = vrot.slane %v2245, 1
      %v3333 = vsel %vm1469, %v3316, %v3332
      %v3334 = vrot.slane %v2246, 1
      %v3335 = vsel %vm1469, %v3318, %v3334
      %v3336 = vrot.slane %v2247, 1
      %v3337 = vsel %vm1469, %v3320, %v3336
      %v3338 = vrot.slane %v2248, 1
      %v3339 = vsel %vm1469, %v3322, %v3338
      %v3340 = vrot.slane %v2249, 1
      %v3341 = vsel %vm1469, %v3324, %v3340
      %v3374 = vsel %vm1469, %v3326, 0.0
      %v3375 = vsel %vm1469, %v3328, 0.0
      %v3376 = vsel %vm1469, %v3330, 0.0
      %v3377 = vsel %vm1469, %v3332, 0.0
      %v3378 = vsel %vm1469, %v3334, 0.0
      %v3379 = vsel %vm1469, %v3336, 0.0
      %v3380 = vsel %vm1469, %v3338, 0.0
      %v3381 = vsel %vm1469, %v3340, 0.0
      %v3382 = vlaneseq
      %v3383 = vshrl.u32 %v3382, 7
      %v3384 = vsub.s32 6, %v3383
      %v3385 = vrot.slane %v2110, %v3384
      %v3386 = vlaneseq
      %v3387 = vshrl.u32 %v3386, 7
      %v3388 = vsub.s32 6, %v3387
      %v3389 = vrot.slane %v2111, %v3388
      %v3390 = vlaneseq
      %v3391 = vshrl.u32 %v3390, 7
      %v3392 = vsub.s32 6, %v3391
      %v3393 = vrot.slane %v2112, %v3392
      %v3394 = vlaneseq
      %v3395 = vshrl.u32 %v3394, 7
      %v3396 = vsub.s32 6, %v3395
      %v3397 = vrot.slane %v2113, %v3396
      %v3398 = vlaneseq
      %v3399 = vshrl.u32 %v3398, 7
      %v3400 = vsub.s32 6, %v3399
      %v3401 = vrot.slane %v2114, %v3400
      %v3402 = vlaneseq
      %v3403 = vshrl.u32 %v3402, 7
      %v3404 = vsub.s32 6, %v3403
      %v3405 = vrot.slane %v2115, %v3404
      %v3406 = vlaneseq
      %v3407 = vshrl.u32 %v3406, 7
      %v3408 = vsub.s32 6, %v3407
      %v3409 = vrot.slane %v2116, %v3408
      %v3410 = vlaneseq
      %v3411 = vshrl.u32 %v3410, 7
      %v3412 = vsub.s32 6, %v3411
      %v3413 = vrot.slane %v2117, %v3412
      %v3414 = vmul.f32 %v3288, %v3385
      %v3415 = vmul.f32 %v3291, %v3389
      %v3416 = vmul.f32 %v3294, %v3393
      %v3417 = vmul.f32 %v3297, %v3397
      %v3418 = vmul.f32 %v3300, %v3401
      %v3419 = vmul.f32 %v3303, %v3405
      %v3420 = vmul.f32 %v3306, %v3409
      %v3421 = vmul.f32 %v3309, %v3413
      %v3422 = vmul.f32 %v3311, %v3385
      %v3423 = vmul.f32 %v3313, %v3389
      %v3424 = vmul.f32 %v3315, %v3393
      %v3425 = vmul.f32 %v3317, %v3397
      %v3426 = vmul.f32 %v3319, %v3401
      %v3427 = vmul.f32 %v3321, %v3405
      %v3428 = vmul.f32 %v3323, %v3409
      %v3429 = vmul.f32 %v3325, %v3413
      %v3430 = vmul.f32 %v3327, %v3385
      %v3431 = vmul.f32 %v3329, %v3389
      %v3432 = vmul.f32 %v3331, %v3393
      %v3433 = vmul.f32 %v3333, %v3397
      %v3434 = vmul.f32 %v3335, %v3401
      %v3435 = vmul.f32 %v3337, %v3405
      %v3436 = vmul.f32 %v3339, %v3409
      %v3437 = vmul.f32 %v3341, %v3413
      %v3438 = vmul.f32 %v3374, %v3385
      %v3439 = vmul.f32 %v3375, %v3389
      %v3440 = vmul.f32 %v3376, %v3393
      %v3441 = vmul.f32 %v3377, %v3397
      %v3442 = vmul.f32 %v3378, %v3401
      %v3443 = vmul.f32 %v3379, %v3405
      %v3444 = vmul.f32 %v3380, %v3409
      %v3445 = vmul.f32 %v3381, %v3413
      %v3446 = vadd.f32 %v3254, %v3414
      %v3447 = vadd.f32 %v3255, %v3415
      %v3448 = vadd.f32 %v3256, %v3416
      %v3449 = vadd.f32 %v3257, %v3417
      %v3450 = vadd.f32 %v3258, %v3418
      %v3451 = vadd.f32 %v3259, %v3419
      %v3452 = vadd.f32 %v3260, %v3420
      %v3453 = vadd.f32 %v3261, %v3421
      %v3454 = vadd.f32 %v3262, %v3422
      %v3455 = vadd.f32 %v3263, %v3423
      %v3456 = vadd.f32 %v3264, %v3424
      %v3457 = vadd.f32 %v3265, %v3425
      %v3458 = vadd.f32 %v3266, %v3426
      %v3459 = vadd.f32 %v3267, %v3427
      %v3460 = vadd.f32 %v3268, %v3428
      %v3461 = vadd.f32 %v3269, %v3429
      %v3462 = vadd.f32 %v3270, %v3430
      %v3463 = vadd.f32 %v3271, %v3431
      %v3464 = vadd.f32 %v3272, %v3432
      %v3465 = vadd.f32 %v3273, %v3433
      %v3466 = vadd.f32 %v3274, %v3434
      %v3467 = vadd.f32 %v3275, %v3435
      %v3468 = vadd.f32 %v3276, %v3436
      %v3469 = vadd.f32 %v3277, %v3437
      %v3470 = vadd.f32 %v3278, %v3438
      %v3471 = vadd.f32 %v3279, %v3439
      %v3472 = vadd.f32 %v3280, %v3440
      %v3473 = vadd.f32 %v3281, %v3441
      %v3474 = vadd.f32 %v3282, %v3442
      %v3475 = vadd.f32 %v3283, %v3443
      %v3476 = vadd.f32 %v3284, %v3444
      %v3477 = vadd.f32 %v3285, %v3445
      %v3478 = vrot.slane %v2078, 1
      %v3479 = vrot.slane %v2086, 1
      %v3480 = vsel %vm1469, %v3478, %v3479
      %v3481 = vrot.slane %v2079, 1
      %v3482 = vrot.slane %v2087, 1
      %v3483 = vsel %vm1469, %v3481, %v3482
      %v3484 = vrot.slane %v2080, 1
      %v3485 = vrot.slane %v2088, 1
      %v3486 = vsel %vm1469, %v3484, %v3485
      %v3487 = vrot.slane %v2081, 1
      %v3488 = vrot.slane %v2089, 1
      %v3489 = vsel %vm1469, %v3487, %v3488
      %v3490 = vrot.slane %v2082, 1
      %v3491 = vrot.slane %v2090, 1
      %v3492 = vsel %vm1469, %v3490, %v3491
      %v3493 = vrot.slane %v2083, 1
      %v3494 = vrot.slane %v2091, 1
      %v3495 = vsel %vm1469, %v3493, %v3494
      %v3496 = vrot.slane %v2084, 1
      %v3497 = vrot.slane %v2092, 1
      %v3498 = vsel %vm1469, %v3496, %v3497
      %v3499 = vrot.slane %v2085, 1
      %v3500 = vrot.slane %v2093, 1
      %v3501 = vsel %vm1469, %v3499, %v3500
      %v3502 = vrot.slane %v2094, 1
      %v3503 = vsel %vm1469, %v3479, %v3502
      %v3504 = vrot.slane %v2095, 1
      %v3505 = vsel %vm1469, %v3482, %v3504
      %v3506 = vrot.slane %v2096, 1
      %v3507 = vsel %vm1469, %v3485, %v3506
      %v3508 = vrot.slane %v2097, 1
      %v3509 = vsel %vm1469, %v3488, %v3508
      %v3510 = vrot.slane %v2098, 1
      %v3511 = vsel %vm1469, %v3491, %v3510
      %v3512 = vrot.slane %v2099, 1
      %v3513 = vsel %vm1469, %v3494, %v3512
      %v3514 = vrot.slane %v2100, 1
      %v3515 = vsel %vm1469, %v3497, %v3514
      %v3516 = vrot.slane %v2101, 1
      %v3517 = vsel %vm1469, %v3500, %v3516
      %v3518 = vrot.slane %v2102, 1
      %v3519 = vsel %vm1469, %v3502, %v3518
      %v3520 = vrot.slane %v2103, 1
      %v3521 = vsel %vm1469, %v3504, %v3520
      %v3522 = vrot.slane %v2104, 1
      %v3523 = vsel %vm1469, %v3506, %v3522
      %v3524 = vrot.slane %v2105, 1
      %v3525 = vsel %vm1469, %v3508, %v3524
      %v3526 = vrot.slane %v2106, 1
      %v3527 = vsel %vm1469, %v3510, %v3526
      %v3528 = vrot.slane %v2107, 1
      %v3529 = vsel %vm1469, %v3512, %v3528
      %v3530 = vrot.slane %v2108, 1
      %v3531 = vsel %vm1469, %v3514, %v3530
      %v3532 = vrot.slane %v2109, 1
      %v3533 = vsel %vm1469, %v3516, %v3532
      %v3566 = vsel %vm1469, %v3518, 0.0
      %v3567 = vsel %vm1469, %v3520, 0.0
      %v3568 = vsel %vm1469, %v3522, 0.0
      %v3569 = vsel %vm1469, %v3524, 0.0
      %v3570 = vsel %vm1469, %v3526, 0.0
      %v3571 = vsel %vm1469, %v3528, 0.0
      %v3572 = vsel %vm1469, %v3530, 0.0
      %v3573 = vsel %vm1469, %v3532, 0.0
      %v3574 = vlaneseq
      %v3575 = vshrl.u32 %v3574, 7
      %v3576 = vsub.s32 7, %v3575
      %v3577 = vrot.slane %v2110, %v3576
      %v3578 = vlaneseq
      %v3579 = vshrl.u32 %v3578, 7
      %v3580 = vsub.s32 7, %v3579
      %v3581 = vrot.slane %v2111, %v3580
      %v3582 = vlaneseq
      %v3583 = vshrl.u32 %v3582, 7
      %v3584 = vsub.s32 7, %v3583
      %v3585 = vrot.slane %v2112, %v3584
      %v3586 = vlaneseq
      %v3587 = vshrl.u32 %v3586, 7
      %v3588 = vsub.s32 7, %v3587
      %v3589 = vrot.slane %v2113, %v3588
      %v3590 = vlaneseq
      %v3591 = vshrl.u32 %v3590, 7
      %v3592 = vsub.s32 7, %v3591
      %v3593 = vrot.slane %v2114, %v3592
      %v3594 = vlaneseq
      %v3595 = vshrl.u32 %v3594, 7
      %v3596 = vsub.s32 7, %v3595
      %v3597 = vrot.slane %v2115, %v3596
      %v3598 = vlaneseq
      %v3599 = vshrl.u32 %v3598, 7
      %v3600 = vsub.s32 7, %v3599
      %v3601 = vrot.slane %v2116, %v3600
      %v3602 = vlaneseq
      %v3603 = vshrl.u32 %v3602, 7
      %v3604 = vsub.s32 7, %v3603
      %v3605 = vrot.slane %v2117, %v3604
      %v3606 = vmul.f32 %v3480, %v3577
      %v3607 = vmul.f32 %v3483, %v3581
      %v3608 = vmul.f32 %v3486, %v3585
      %v3609 = vmul.f32 %v3489, %v3589
      %v3610 = vmul.f32 %v3492, %v3593
      %v3611 = vmul.f32 %v3495, %v3597
      %v3612 = vmul.f32 %v3498, %v3601
      %v3613 = vmul.f32 %v3501, %v3605
      %v3614 = vmul.f32 %v3503, %v3577
      %v3615 = vmul.f32 %v3505, %v3581
      %v3616 = vmul.f32 %v3507, %v3585
      %v3617 = vmul.f32 %v3509, %v3589
      %v3618 = vmul.f32 %v3511, %v3593
      %v3619 = vmul.f32 %v3513, %v3597
      %v3620 = vmul.f32 %v3515, %v3601
      %v3621 = vmul.f32 %v3517, %v3605
      %v3622 = vmul.f32 %v3519, %v3577
      %v3623 = vmul.f32 %v3521, %v3581
      %v3624 = vmul.f32 %v3523, %v3585
      %v3625 = vmul.f32 %v3525, %v3589
      %v3626 = vmul.f32 %v3527, %v3593
      %v3627 = vmul.f32 %v3529, %v3597
      %v3628 = vmul.f32 %v3531, %v3601
      %v3629 = vmul.f32 %v3533, %v3605
      %v3630 = vmul.f32 %v3566, %v3577
      %v3631 = vmul.f32 %v3567, %v3581
      %v3632 = vmul.f32 %v3568, %v3585
      %v3633 = vmul.f32 %v3569, %v3589
      %v3634 = vmul.f32 %v3570, %v3593
      %v3635 = vmul.f32 %v3571, %v3597
      %v3636 = vmul.f32 %v3572, %v3601
      %v3637 = vmul.f32 %v3573, %v3605
      %v3638 = vadd.f32 %v3446, %v3606
      %v3639 = vadd.f32 %v3447, %v3607
      %v3640 = vadd.f32 %v3448, %v3608
      %v3641 = vadd.f32 %v3449, %v3609
      %v3642 = vadd.f32 %v3450, %v3610
      %v3643 = vadd.f32 %v3451, %v3611
      %v3644 = vadd.f32 %v3452, %v3612
      %v3645 = vadd.f32 %v3453, %v3613
      %v3646 = vadd.f32 %v3454, %v3614
      %v3647 = vadd.f32 %v3455, %v3615
      %v3648 = vadd.f32 %v3456, %v3616
      %v3649 = vadd.f32 %v3457, %v3617
      %v3650 = vadd.f32 %v3458, %v3618
      %v3651 = vadd.f32 %v3459, %v3619
      %v3652 = vadd.f32 %v3460, %v3620
      %v3653 = vadd.f32 %v3461, %v3621
      %v3654 = vadd.f32 %v3462, %v3622
      %v3655 = vadd.f32 %v3463, %v3623
      %v3656 = vadd.f32 %v3464, %v3624
      %v3657 = vadd.f32 %v3465, %v3625
      %v3658 = vadd.f32 %v3466, %v3626
      %v3659 = vadd.f32 %v3467, %v3627
      %v3660 = vadd.f32 %v3468, %v3628
      %v3661 = vadd.f32 %v3469, %v3629
      %v3662 = vadd.f32 %v3470, %v3630
      %v3663 = vadd.f32 %v3471, %v3631
      %v3664 = vadd.f32 %v3472, %v3632
      %v3665 = vadd.f32 %v3473, %v3633
      %v3666 = vadd.f32 %v3474, %v3634
      %v3667 = vadd.f32 %v3475, %v3635
      %v3668 = vadd.f32 %v3476, %v3636
      %v3669 = vadd.f32 %v3477, %v3637
      %v3670 = vrot.slane %v2738, 1
      %v3671 = vrot.slane %v2745, 1
      %v3672 = vsel %vm1469, %v3670, %v3671
      %v3673 = vrot.slane %v2739, 1
      %v3674 = vrot.slane %v2746, 1
      %v3675 = vsel %vm1469, %v3673, %v3674
      %v3676 = vrot.slane %v2740, 1
      %v3677 = vrot.slane %v2747, 1
      %v3678 = vsel %vm1469, %v3676, %v3677
      %v3679 = vrot.slane %v2741, 1
      %v3680 = vrot.slane %v2748, 1
      %v3681 = vsel %vm1469, %v3679, %v3680
      %v3682 = vrot.slane %v2742, 1
      %v3683 = vrot.slane %v2749, 1
      %v3684 = vsel %vm1469, %v3682, %v3683
      %v3685 = vrot.slane %v2743, 1
      %v3686 = vrot.slane %v2750, 1
      %v3687 = vsel %vm1469, %v3685, %v3686
      %v3688 = vrot.slane %v2744, 1
      %v3689 = vrot.slane %v2751, 1
      %v3690 = vsel %vm1469, %v3688, %v3689
      %v3691 = vrot.slane %v2798, 1
      %v3692 = vrot.slane %v2799, 1
      %v3693 = vsel %vm1469, %v3691, %v3692
      %v3694 = vrot.slane %v2752, 1
      %v3695 = vsel %vm1469, %v3671, %v3694
      %v3696 = vrot.slane %v2753, 1
      %v3697 = vsel %vm1469, %v3674, %v3696
      %v3698 = vrot.slane %v2754, 1
      %v3699 = vsel %vm1469, %v3677, %v3698
      %v3700 = vrot.slane %v2755, 1
      %v3701 = vsel %vm1469, %v3680, %v3700
      %v3702 = vrot.slane %v2756, 1
      %v3703 = vsel %vm1469, %v3683, %v3702
      %v3704 = vrot.slane %v2757, 1
      %v3705 = vsel %vm1469, %v3686, %v3704
      %v3706 = vrot.slane %v2758, 1
      %v3707 = vsel %vm1469, %v3689, %v3706
      %v3708 = vrot.slane %v2800, 1
      %v3709 = vsel %vm1469, %v3692, %v3708
      %v3710 = vrot.slane %v2759, 1
      %v3711 = vsel %vm1469, %v3694, %v3710
      %v3712 = vrot.slane %v2760, 1
      %v3713 = vsel %vm1469, %v3696, %v3712
      %v3714 = vrot.slane %v2761, 1
      %v3715 = vsel %vm1469, %v3698, %v3714
      %v3716 = vrot.slane %v2762, 1
      %v3717 = vsel %vm1469, %v3700, %v3716
      %v3718 = vrot.slane %v2763, 1
      %v3719 = vsel %vm1469, %v3702, %v3718
      %v3720 = vrot.slane %v2764, 1
      %v3721 = vsel %vm1469, %v3704, %v3720
      %v3722 = vrot.slane %v2765, 1
      %v3723 = vsel %vm1469, %v3706, %v3722
      %v3724 = vrot.slane %v2801, 1
      %v3725 = vsel %vm1469, %v3708, %v3724
      %v3758 = vsel %vm1469, %v3710, 0.0
      %v3759 = vsel %vm1469, %v3712, 0.0
      %v3760 = vsel %vm1469, %v3714, 0.0
      %v3761 = vsel %vm1469, %v3716, 0.0
      %v3762 = vsel %vm1469, %v3718, 0.0
      %v3763 = vsel %vm1469, %v3720, 0.0
      %v3764 = vsel %vm1469, %v3722, 0.0
      %v3765 = vsel %vm1469, %v3724, 0.0
      %v3766 = vlaneseq
      %v3767 = vshrl.u32 %v3766, 7
      %v3768 = vsub.s32 0, %v3767
      %v3769 = vrot.slane %v2118, %v3768
      %v3770 = vlaneseq
      %v3771 = vshrl.u32 %v3770, 7
      %v3772 = vsub.s32 0, %v3771
      %v3773 = vrot.slane %v2119, %v3772
      %v3774 = vlaneseq
      %v3775 = vshrl.u32 %v3774, 7
      %v3776 = vsub.s32 0, %v3775
      %v3777 = vrot.slane %v2120, %v3776
      %v3778 = vlaneseq
      %v3779 = vshrl.u32 %v3778, 7
      %v3780 = vsub.s32 0, %v3779
      %v3781 = vrot.slane %v2121, %v3780
      %v3782 = vlaneseq
      %v3783 = vshrl.u32 %v3782, 7
      %v3784 = vsub.s32 0, %v3783
      %v3785 = vrot.slane %v2122, %v3784
      %v3786 = vlaneseq
      %v3787 = vshrl.u32 %v3786, 7
      %v3788 = vsub.s32 0, %v3787
      %v3789 = vrot.slane %v2123, %v3788
      %v3790 = vlaneseq
      %v3791 = vshrl.u32 %v3790, 7
      %v3792 = vsub.s32 0, %v3791
      %v3793 = vrot.slane %v2124, %v3792
      %v3794 = vlaneseq
      %v3795 = vshrl.u32 %v3794, 7
      %v3796 = vsub.s32 0, %v3795
      %v3797 = vrot.slane %v2125, %v3796
      %v3798 = vmul.f32 %v3672, %v3769
      %v3799 = vmul.f32 %v3675, %v3773
      %v3800 = vmul.f32 %v3678, %v3777
      %v3801 = vmul.f32 %v3681, %v3781
      %v3802 = vmul.f32 %v3684, %v3785
      %v3803 = vmul.f32 %v3687, %v3789
      %v3804 = vmul.f32 %v3690, %v3793
      %v3805 = vmul.f32 %v3693, %v3797
      %v3806 = vmul.f32 %v3695, %v3769
      %v3807 = vmul.f32 %v3697, %v3773
      %v3808 = vmul.f32 %v3699, %v3777
      %v3809 = vmul.f32 %v3701, %v3781
      %v3810 = vmul.f32 %v3703, %v3785
      %v3811 = vmul.f32 %v3705, %v3789
      %v3812 = vmul.f32 %v3707, %v3793
      %v3813 = vmul.f32 %v3709, %v3797
      %v3814 = vmul.f32 %v3711, %v3769
      %v3815 = vmul.f32 %v3713, %v3773
      %v3816 = vmul.f32 %v3715, %v3777
      %v3817 = vmul.f32 %v3717, %v3781
      %v3818 = vmul.f32 %v3719, %v3785
      %v3819 = vmul.f32 %v3721, %v3789
      %v3820 = vmul.f32 %v3723, %v3793
      %v3821 = vmul.f32 %v3725, %v3797
      %v3822 = vmul.f32 %v3758, %v3769
      %v3823 = vmul.f32 %v3759, %v3773
      %v3824 = vmul.f32 %v3760, %v3777
      %v3825 = vmul.f32 %v3761, %v3781
      %v3826 = vmul.f32 %v3762, %v3785
      %v3827 = vmul.f32 %v3763, %v3789
      %v3828 = vmul.f32 %v3764, %v3793
      %v3829 = vmul.f32 %v3765, %v3797
      %v3830 = vadd.f32 %v3638, %v3798
      %v3831 = vadd.f32 %v3639, %v3799
      %v3832 = vadd.f32 %v3640, %v3800
      %v3833 = vadd.f32 %v3641, %v3801
      %v3834 = vadd.f32 %v3642, %v3802
      %v3835 = vadd.f32 %v3643, %v3803
      %v3836 = vadd.f32 %v3644, %v3804
      %v3837 = vadd.f32 %v3645, %v3805
      %v3838 = vadd.f32 %v3646, %v3806
      %v3839 = vadd.f32 %v3647, %v3807
      %v3840 = vadd.f32 %v3648, %v3808
      %v3841 = vadd.f32 %v3649, %v3809
      %v3842 = vadd.f32 %v3650, %v3810
      %v3843 = vadd.f32 %v3651, %v3811
      %v3844 = vadd.f32 %v3652, %v3812
      %v3845 = vadd.f32 %v3653, %v3813
      %v3846 = vadd.f32 %v3654, %v3814
      %v3847 = vadd.f32 %v3655, %v3815
      %v3848 = vadd.f32 %v3656, %v3816
      %v3849 = vadd.f32 %v3657, %v3817
      %v3850 = vadd.f32 %v3658, %v3818
      %v3851 = vadd.f32 %v3659, %v3819
      %v3852 = vadd.f32 %v3660, %v3820
      %v3853 = vadd.f32 %v3661, %v3821
      %v3854 = vadd.f32 %v3662, %v3822
      %v3855 = vadd.f32 %v3663, %v3823
      %v3856 = vadd.f32 %v3664, %v3824
      %v3857 = vadd.f32 %v3665, %v3825
      %v3858 = vadd.f32 %v3666, %v3826
      %v3859 = vadd.f32 %v3667, %v3827
      %v3860 = vadd.f32 %v3668, %v3828
      %v3861 = vadd.f32 %v3669, %v3829
      %3862 = vst [vmem:[%s257] sm:$0xff] %v3830
      %3863 = vst [vmem:[%s257 + $0x8] sm:$0xff] %v3831
      %3864 = vst [vmem:[%s257 + $0x10] sm:$0xff] %v3832
      %3865 = vst [vmem:[%s257 + $0x18] sm:$0xff] %v3833
      %3866 = vst [vmem:[%s257 + $0x20] sm:$0xff] %v3834
      %3867 = vst [vmem:[%s257 + $0x28] sm:$0xff] %v3835
      %3868 = vst [vmem:[%s257 + $0x30] sm:$0xff] %v3836
      %3869 = vst [vmem:[%s257 + $0x38] sm:$0xff] %v3837
      %3870 = vst [vmem:[%s257 + $0x40] sm:$0xff] %v3838
      %3871 = vst [vmem:[%s257 + $0x48] sm:$0xff] %v3839
      %3872 = vst [vmem:[%s257 + $0x50] sm:$0xff] %v3840
      %3873 = vst [vmem:[%s257 + $0x58] sm:$0xff] %v3841
      %3874 = vst [vmem:[%s257 + $0x60] sm:$0xff] %v3842
      %3875 = vst [vmem:[%s257 + $0x68] sm:$0xff] %v3843
      %3876 = vst [vmem:[%s257 + $0x70] sm:$0xff] %v3844
      %3877 = vst [vmem:[%s257 + $0x78] sm:$0xff] %v3845
      %3878 = vst [vmem:[%s257 + $0x80] sm:$0xff] %v3846
      %3879 = vst [vmem:[%s257 + $0x88] sm:$0xff] %v3847
      %3880 = vst [vmem:[%s257 + $0x90] sm:$0xff] %v3848
      %3881 = vst [vmem:[%s257 + $0x98] sm:$0xff] %v3849
      %3882 = vst [vmem:[%s257 + $0xa0] sm:$0xff] %v3850
      %3883 = vst [vmem:[%s257 + $0xa8] sm:$0xff] %v3851
      %3884 = vst [vmem:[%s257 + $0xb0] sm:$0xff] %v3852
      %3885 = vst [vmem:[%s257 + $0xb8] sm:$0xff] %v3853
      %3886 = vst [vmem:[%s257 + $0xc0] sm:$0xff] %v3854
      %3887 = vst [vmem:[%s257 + $0xc8] sm:$0xff] %v3855
      %3888 = vst [vmem:[%s257 + $0xd0] sm:$0xff] %v3856
      %3889 = vst [vmem:[%s257 + $0xd8] sm:$0xff] %v3857
      %3890 = vst [vmem:[%s257 + $0xe0] sm:$0xff] %v3858
      %3891 = vst [vmem:[%s257 + $0xe8] sm:$0xff] %v3859
      %3892 = vst [vmem:[%s257 + $0xf0] sm:$0xff] %v3860
      %3893 = vst [vmem:[%s257 + $0xf8] sm:$0xff] %v3861
      %p3894 = scmp.lt.s32.totalorder %s17, 1
      %s3895 = scalar_select %p3894, %s17, 1
      %s3896 = smul.addr %s3895, 32
      %s3897 = smul.addr %s3896, 8
      %s3898 = scalar_lea.vmem %s4, %s3897
      %p3899 = scmp.lt.s32.totalorder %s17, 1
      %s3900 = scalar_select %p3899, %s17, 1
      %s3901 = smul.addr %s3900, 32
      %s3902 = smul.addr %s3901, 8
      %s3903 = scalar_lea.vmem %s5, %s3902
      // Predicated region
      $region37: #{convnat_block_forward.4} parent=35 // pred_check
        %p3904 = pneg %p129
      $region38: #{convnat_block_forward.4} parent=35 // pred_check_branch
        %3906 = sbr.rel (%p3904) target = $region40
      $region39: #{convnat_block_forward.4} parent=35 // pred_region
        _
      $region40: #{convnat_block_forward.4} parent=35 // pred_fallthru
        _
      // Predicated region
      $region41: #{convnat_block_forward.4} parent=35 // pred_check
        %p3907 = pneg %p155
      $region42: #{convnat_block_forward.4} parent=35 // pred_check_branch
        %3909 = sbr.rel (%p3907) target = $region44
      $region43: #{convnat_block_forward.4} parent=35 // pred_region
        _
      $region44: #{convnat_block_forward.4} parent=35 // pred_fallthru
        _
    $region36: #{convnat_block_forward.4} parent=5 // pred_fallthru
      _
    %p3910 = scmp.le.s32.totalorder 2, %s12
    // Predicated region
    $region45: #{convnat_block_forward.4} parent=5 // pred_check
      %p3911 = pneg %p3910
    $region46: #{convnat_block_forward.4} parent=5 // pred_check_branch
      %3913 = sbr.rel (%p3911) target = $region48
    $region47: #{convnat_block_forward.4} parent=5 // pred_region
      %s3914 = ssub.s32 %s12, 2
      // Predicated region
      $region49: #{convnat_block_forward.4} parent=47 // pred_check
        %p3915 = pneg %p135
      $region50: #{convnat_block_forward.4} parent=47 // pred_check_branch
        %3917 = sbr.rel (%p3915) target = $region52
      $region51: #{convnat_block_forward.4} parent=47 // pred_region
        %p3918 = scmp.lt.s32.totalorder %s18, 1
        %s3919 = scalar_select %p3918, %s18, 1
        %s3920 = smul.addr %s3919, 32
        %s3921 = smul.addr %s3920, 8
        %s3922 = scalar_lea.vmem %s4, %s3921
      $region52: #{convnat_block_forward.4} parent=47 // pred_fallthru
        _
      // Predicated region
      $region53: #{convnat_block_forward.4} parent=47 // pred_check
        %p3923 = pneg %p161
      $region54: #{convnat_block_forward.4} parent=47 // pred_check_branch
        %3925 = sbr.rel (%p3923) target = $region56
      $region55: #{convnat_block_forward.4} parent=47 // pred_region
        %p3926 = scmp.lt.s32.totalorder %s18, 1
        %s3927 = scalar_select %p3926, %s18, 1
        %s3928 = smul.addr %s3927, 32
        %s3929 = smul.addr %s3928, 8
        %s3930 = scalar_lea.vmem %s5, %s3929
      $region56: #{convnat_block_forward.4} parent=47 // pred_fallthru
        _
    $region48: #{convnat_block_forward.4} parent=5 // pred_fallthru
      _
  $region6: #{convnat_block_forward.4} parent=0 // loop_footer
    %s16 = sadd.s32 1, %s12
  $region7: #{convnat_block_forward.4} parent=0 // loop_footer_branch
    %11 = sbr.rel target = $region3
  $region8: #{convnat_block_forward.4} parent=0 // loop_exit
    _

// kernel: convnat_block_forward.5
$region0: #{convnat_block_forward.5}
  #allocation0 [shape = 'u32[]', space=smem, size = 0x4, offset = 0x4, fixed_abs, tag = 'smem constant byte address 0x4 - core index']
  #allocation1 [shape = 'u32[144,128]{1,0:T(1,128)}', space=vmem, size = 0x12000, scoped, tag = 'internal scratch']
  %s0 = inlined_call_operand.vmem [shape: f32[2048,32], index: 0, kind: input, shape index: {}]
  %s1 = inlined_call_operand.vmem [shape: f32[2048,32], index: 1, kind: input, shape index: {}]
  %s2 = inlined_call_operand.vmem [shape: f32[2048,32], index: 2, kind: input, shape index: {}]
  %s3 = inlined_call_operand.vmem [shape: f32[32,32], index: 3, kind: input, shape index: {}]
  %s4 = inlined_call_operand.vmem [shape: f32[2048,32], index: 4, kind: output, shape index: {}]
  %s5 = sld [smem:[#allocation0]]
  $region49: #{convnat_block_forward.5} parent=0
    _
  %s7 = ssub.s32 1, %s5
  %s8 = scalar_select 0, %s7, %s5
  loop: start=0, step=1, limit=6
  $region2: #{convnat_block_forward.5} parent=0 // loop_pre_header
    _
  $region3: #{convnat_block_forward.5} parent=0 // loop_header
    %s10 = sphi 0, %s14
    %p11 = scmp.ge.s32.totalorder %s10, 6
    %s20 = sphi 0, %s22
    %s23 = sphi 0, %s20
    %s24 = sphi 0, %s23
    %s40 = sphi 0, %s24
    %s46 = sphi 0, %s48
    %s49 = sphi 0, %s46
    %s50 = sphi 0, %s49
    %s66 = sphi 0, %s50
    %s72 = sphi 0, %s74
    %s75 = sphi 0, %s72
    %s76 = sphi 0, %s75
    %s92 = sphi 0, %s76
    %s96 = sphi 0, %s96
    %s98 = sphi 0, %s96
    %s99 = sphi 0, %s98
    %s113 = sphi 0, %s99
    %s119 = sphi 0, %s121
    %s122 = sphi 0, %s119
    %s123 = sphi 0, %s122
    %s139 = sphi 0, %s123
  $region4: #{convnat_block_forward.5} parent=0 // loop_header_branch
    %13 = sbr.rel (%p11) target = $region8
  $region5: #{convnat_block_forward.5} parent=0 // loop_body
    %s15 = ssub.s32 %s10, 1
    %s16 = ssub.s32 %s10, 2
    %s17 = sadd.s32 %s10, 1
    %s18 = ssub.s32 %s10, %s17
    %p19 = scmp.eq.s32.totalorder %s18, 0
    %s21 = sadd.s32 %s20, 1
    %s22 = scalar_select %p19, %s20, %s21
    %p25 = pneg %p19
    %p26 = scmp.eq.s32.totalorder %s10, 3
    %p27 = por %p25, %p26
    %p28 = scmp.ne.s32.totalorder %s20, %s23
    %p29 = scmp.eq.s32.totalorder %s10, 0
    %p30 = por %p28, %p29
    %p31 = scmp.ne.s32.totalorder %s20, %s23
    %p32 = scmp.eq.s32.totalorder %s15, 3
    %p33 = por %p31, %p32
    %p34 = scmp.ne.s32.totalorder %s23, %s24
    %p35 = scmp.eq.s32.totalorder %s15, 0
    %p36 = por %p34, %p35
    %p37 = scmp.ne.s32.totalorder %s23, %s24
    %p38 = scmp.eq.s32.totalorder %s16, 3
    %p39 = por %p37, %p38
    %p41 = scmp.ne.s32.totalorder %s24, %s40
    %p42 = scmp.eq.s32.totalorder %s16, 0
    %p43 = por %p41, %p42
    %s44 = ssub.s32 %s10, %s17
    %p45 = scmp.eq.s32.totalorder %s44, 0
    %s47 = sadd.s32 %s46, 1
    %s48 = scalar_select %p45, %s46, %s47
    %p51 = pneg %p45
    %p52 = scmp.eq.s32.totalorder %s10, 3
    %p53 = por %p51, %p52
    %p54 = scmp.ne.s32.totalorder %s46, %s49
    %p55 = scmp.eq.s32.totalorder %s10, 0
    %p56 = por %p54, %p55
    %p57 = scmp.ne.s32.totalorder %s46, %s49
    %p58 = scmp.eq.s32.totalorder %s15, 3
    %p59 = por %p57, %p58
    %p60 = scmp.ne.s32.totalorder %s49, %s50
    %p61 = scmp.eq.s32.totalorder %s15, 0
    %p62 = por %p60, %p61
    %p63 = scmp.ne.s32.totalorder %s49, %s50
    %p64 = scmp.eq.s32.totalorder %s16, 3
    %p65 = por %p63, %p64
    %p67 = scmp.ne.s32.totalorder %s50, %s66
    %p68 = scmp.eq.s32.totalorder %s16, 0
    %p69 = por %p67, %p68
    %s70 = ssub.s32 %s10, %s17
    %p71 = scmp.eq.s32.totalorder %s70, 0
    %s73 = sadd.s32 %s72, 1
    %s74 = scalar_select %p71, %s72, %s73
    %p77 = pneg %p71
    %p78 = scmp.eq.s32.totalorder %s10, 3
    %p79 = por %p77, %p78
    %p80 = scmp.ne.s32.totalorder %s72, %s75
    %p81 = scmp.eq.s32.totalorder %s10, 0
    %p82 = por %p80, %p81
    %p83 = scmp.ne.s32.totalorder %s72, %s75
    %p84 = scmp.eq.s32.totalorder %s15, 3
    %p85 = por %p83, %p84
    %p86 = scmp.ne.s32.totalorder %s75, %s76
    %p87 = scmp.eq.s32.totalorder %s15, 0
    %p88 = por %p86, %p87
    %p89 = scmp.ne.s32.totalorder %s75, %s76
    %p90 = scmp.eq.s32.totalorder %s16, 3
    %p91 = por %p89, %p90
    %p93 = scmp.ne.s32.totalorder %s76, %s92
    %p94 = scmp.eq.s32.totalorder %s16, 0
    %p95 = por %p93, %p94
    %s97 = sadd.s32 %s96, 1
    %p100 = scmp.eq.s32.totalorder %s10, 3
    %p101 = scmp.ne.s32.totalorder %s96, %s98
    %p102 = scmp.eq.s32.totalorder %s10, 0
    %p103 = por %p101, %p102
    %p104 = scmp.ne.s32.totalorder %s96, %s98
    %p105 = scmp.eq.s32.totalorder %s15, 3
    %p106 = por %p104, %p105
    %p107 = scmp.ne.s32.totalorder %s98, %s99
    %p108 = scmp.eq.s32.totalorder %s15, 0
    %p109 = por %p107, %p108
    %p110 = scmp.ne.s32.totalorder %s98, %s99
    %p111 = scmp.eq.s32.totalorder %s16, 3
    %p112 = por %p110, %p111
    %p114 = scmp.ne.s32.totalorder %s99, %s113
    %p115 = scmp.eq.s32.totalorder %s16, 0
    %p116 = por %p114, %p115
    %s117 = ssub.s32 %s10, %s17
    %p118 = scmp.eq.s32.totalorder %s117, 0
    %s120 = sadd.s32 %s119, 1
    %s121 = scalar_select %p118, %s119, %s120
    %p124 = pneg %p118
    %p125 = scmp.eq.s32.totalorder %s10, 3
    %p126 = por %p124, %p125
    %p127 = scmp.ne.s32.totalorder %s119, %s122
    %p128 = scmp.eq.s32.totalorder %s10, 0
    %p129 = por %p127, %p128
    %p130 = scmp.ne.s32.totalorder %s119, %s122
    %p131 = scmp.eq.s32.totalorder %s15, 3
    %p132 = por %p130, %p131
    %p133 = scmp.ne.s32.totalorder %s122, %s123
    %p134 = scmp.eq.s32.totalorder %s15, 0
    %p135 = por %p133, %p134
    %p136 = scmp.ne.s32.totalorder %s122, %s123
    %p137 = scmp.eq.s32.totalorder %s16, 3
    %p138 = por %p136, %p137
    %p140 = scmp.ne.s32.totalorder %s123, %s139
    %p141 = scmp.eq.s32.totalorder %s16, 0
    %p142 = por %p140, %p141
    %p143 = scmp.le.s32.totalorder 1, %s10
    %p144 = scmp.lt.s32.totalorder %s10, 5
    %p145 = pnand %p143, %p144
    %p146 = pneg %p145
    // Predicated region
    $region9: #{convnat_block_forward.5} parent=5 // pred_check
      _
    $region10: #{convnat_block_forward.5} parent=5 // pred_check_branch
      %148 = sbr.rel (%p145) target = $region12
    $region11: #{convnat_block_forward.5} parent=5 // pred_region
      %s149 = ssub.s32 %s10, 1
      // Predicated region
      $region13: #{convnat_block_forward.5} parent=11 // pred_check
        %p150 = pneg %p109
      $region14: #{convnat_block_forward.5} parent=11 // pred_check_branch
        %152 = sbr.rel (%p150) target = $region16
      $region15: #{convnat_block_forward.5} parent=11 // pred_region
        _
      $region16: #{convnat_block_forward.5} parent=11 // pred_fallthru
        _
    $region12: #{convnat_block_forward.5} parent=5 // pred_fallthru
      _
    %p153 = scmp.lt.s32.totalorder %s10, 4
    // Predicated region
    $region17: #{convnat_block_forward.5} parent=5 // pred_check
      %p154 = pneg %p153
    $region18: #{convnat_block_forward.5} parent=5 // pred_check_branch
      %156 = sbr.rel (%p154) target = $region20
    $region19: #{convnat_block_forward.5} parent=5 // pred_region
      // Predicated region
      $region21: #{convnat_block_forward.5} parent=19 // pred_check
        %p157 = pneg %p30
      $region22: #{convnat_block_forward.5} parent=19 // pred_check_branch
        %159 = sbr.rel (%p157) target = $region24
      $region23: #{convnat_block_forward.5} parent=19 // pred_region
        %s160 = smul.u32 64, %s10
        %p161 = scmp.lt.s32.totalorder %s160, 255
        %s162 = scalar_select %p161, %s160, 255
        %s163 = smul.addr %s162, 8
        %s164 = scalar_lea.vmem %s0, %s163
        %s165 = smul.u32 64, %s10
      $region24: #{convnat_block_forward.5} parent=19 // pred_fallthru
        _
      // Predicated region
      $region25: #{convnat_block_forward.5} parent=19 // pred_check
        %p166 = pneg %p56
      $region26: #{convnat_block_forward.5} parent=19 // pred_check_branch
        %168 = sbr.rel (%p166) target = $region28
      $region27: #{convnat_block_forward.5} parent=19 // pred_region
        %s169 = smul.u32 64, %s10
        %p170 = scmp.lt.s32.totalorder %s169, 255
        %s171 = scalar_select %p170, %s169, 255
        %s172 = smul.addr %s171, 8
        %s173 = scalar_lea.vmem %s1, %s172
        %s174 = smul.u32 64, %s10
      $region28: #{convnat_block_forward.5} parent=19 // pred_fallthru
        _
      // Predicated region
      $region29: #{convnat_block_forward.5} parent=19 // pred_check
        %p175 = pneg %p82
      $region30: #{convnat_block_forward.5} parent=19 // pred_check_branch
        %177 = sbr.rel (%p175) target = $region32
      $region31: #{convnat_block_forward.5} parent=19 // pred_region
        %s178 = smul.u32 64, %s10
        %p179 = scmp.lt.s32.totalorder %s178, 255
        %s180 = scalar_select %p179, %s178, 255
        %s181 = smul.addr %s180, 8
        %s182 = scalar_lea.vmem %s2, %s181
        %s183 = smul.u32 64, %s10
      $region32: #{convnat_block_forward.5} parent=19 // pred_fallthru
        _
    $region20: #{convnat_block_forward.5} parent=5 // pred_fallthru
      _
    %p184 = scmp.le.s32.totalorder 1, %s10
    %p185 = scmp.lt.s32.totalorder %s10, 5
    %p186 = pnand %p184, %p185
    %p187 = pneg %p186
    // Predicated region
    $region33: #{convnat_block_forward.5} parent=5 // pred_check
      _
    $region34: #{convnat_block_forward.5} parent=5 // pred_check_branch
      %189 = sbr.rel (%p186) target = $region36
    $region35: #{convnat_block_forward.5} parent=5 // pred_region
      %s190 = ssub.s32 %s10, 1
      %s191 = smul.u32 64, %s15
      %p192 = scmp.lt.s32.totalorder %s191, 255
      %s193 = scalar_select %p192, %s191, 255
      %s194 = smul.addr %s193, 8
      %s195 = scalar_lea.vmem %s0, %s194
      %p196 = pneg %p36
      %p197 = pneg %p33
      %s198 = smul.u32 64, %s15
      %p199 = scmp.lt.s32.totalorder %s198, 255
      %s200 = scalar_select %p199, %s198, 255
      %s201 = smul.addr %s200, 8
      %s202 = scalar_lea.vmem %s1, %s201
      %p203 = pneg %p62
      %p204 = pneg %p59
      %s205 = smul.u32 64, %s15
      %p206 = scmp.lt.s32.totalorder %s205, 255
      %s207 = scalar_select %p206, %s205, 255
      %s208 = smul.addr %s207, 8
      %s209 = scalar_lea.vmem %s2, %s208
      %p210 = pneg %p88
      %p211 = pneg %p85
      %p212 = pneg %p109
      %p213 = pneg %p106
      %p214 = pneg %p135
      %p215 = pneg %p132
      %s216 = smul.u32 64, %s15
      %p217 = scmp.lt.s32.totalorder %s216, 255
      %s218 = scalar_select %p217, %s216, 255
      %s219 = smul.addr %s218, 8
      %s220 = scalar_lea.vmem %s4, %s219
      %s221 = smul.u32 64, %s15
      %p222 = scmp.lt.s32.totalorder %s221, 255
      %s223 = scalar_select %p222, %s221, 255
      %s224 = smul.addr %s223, 8
      %s225 = scalar_lea.vmem %s0, %s224
      %s226 = smul.u32 64, %s15
      %s227 = smul.u32 64, %s15
      %p228 = scmp.lt.s32.totalorder %s227, 255
      %s229 = scalar_select %p228, %s227, 255
      %s230 = smul.addr %s229, 8
      %s231 = scalar_lea.vmem %s1, %s230
      %s232 = smul.u32 64, %s15
      %s233 = smul.u32 64, %s15
      %p234 = scmp.lt.s32.totalorder %s233, 255
      %s235 = scalar_select %p234, %s233, 255
      %s236 = smul.addr %s235, 8
      %s237 = scalar_lea.vmem %s2, %s236
      %s238 = smul.u32 64, %s15
      %s239 = smul.u32 64, %s15
      %p240 = scmp.lt.s32.totalorder %s239, 255
      %s241 = scalar_select %p240, %s239, 255
      %s242 = smul.addr %s241, 8
      %s243 = scalar_lea.vmem %s4, %s242
      %s244 = smul.u32 64, %s15
      %v245 = vld [vmem:[%s225] sm:$0xff]
      %v246 = vld [vmem:[%s225 + $0x8] sm:$0xff]
      %v247 = vld [vmem:[%s225 + $0x10] sm:$0xff]
      %v248 = vld [vmem:[%s225 + $0x18] sm:$0xff]
      %v249 = vld [vmem:[%s225 + $0x20] sm:$0xff]
      %v250 = vld [vmem:[%s225 + $0x28] sm:$0xff]
      %v251 = vld [vmem:[%s225 + $0x30] sm:$0xff]
      %v252 = vld [vmem:[%s225 + $0x38] sm:$0xff]
      %v253 = vld [vmem:[%s225 + $0x40] sm:$0xff]
      %v254 = vld [vmem:[%s225 + $0x48] sm:$0xff]
      %v255 = vld [vmem:[%s225 + $0x50] sm:$0xff]
      %v256 = vld [vmem:[%s225 + $0x58] sm:$0xff]
      %v257 = vld [vmem:[%s225 + $0x60] sm:$0xff]
      %v258 = vld [vmem:[%s225 + $0x68] sm:$0xff]
      %v259 = vld [vmem:[%s225 + $0x70] sm:$0xff]
      %v260 = vld [vmem:[%s225 + $0x78] sm:$0xff]
      %v261 = vld [vmem:[%s225 + $0x80] sm:$0xff]
      %v262 = vld [vmem:[%s225 + $0x88] sm:$0xff]
      %v263 = vld [vmem:[%s225 + $0x90] sm:$0xff]
      %v264 = vld [vmem:[%s225 + $0x98] sm:$0xff]
      %v265 = vld [vmem:[%s225 + $0xa0] sm:$0xff]
      %v266 = vld [vmem:[%s225 + $0xa8] sm:$0xff]
      %v267 = vld [vmem:[%s225 + $0xb0] sm:$0xff]
      %v268 = vld [vmem:[%s225 + $0xb8] sm:$0xff]
      %v269 = vld [vmem:[%s225 + $0xc0] sm:$0xff]
      %v270 = vld [vmem:[%s225 + $0xc8] sm:$0xff]
      %v271 = vld [vmem:[%s225 + $0xd0] sm:$0xff]
      %v272 = vld [vmem:[%s225 + $0xd8] sm:$0xff]
      %v273 = vld [vmem:[%s225 + $0xe0] sm:$0xff]
      %v274 = vld [vmem:[%s225 + $0xe8] sm:$0xff]
      %v275 = vld [vmem:[%s225 + $0xf0] sm:$0xff]
      %v276 = vld [vmem:[%s225 + $0xf8] sm:$0xff]
      %v277 = vld [vmem:[%s225 + $0x100] sm:$0xff]
      %v278 = vld [vmem:[%s225 + $0x108] sm:$0xff]
      %v279 = vld [vmem:[%s225 + $0x110] sm:$0xff]
      %v280 = vld [vmem:[%s225 + $0x118] sm:$0xff]
      %v281 = vld [vmem:[%s225 + $0x120] sm:$0xff]
      %v282 = vld [vmem:[%s225 + $0x128] sm:$0xff]
      %v283 = vld [vmem:[%s225 + $0x130] sm:$0xff]
      %v284 = vld [vmem:[%s225 + $0x138] sm:$0xff]
      %v285 = vld [vmem:[%s225 + $0x140] sm:$0xff]
      %v286 = vld [vmem:[%s225 + $0x148] sm:$0xff]
      %v287 = vld [vmem:[%s225 + $0x150] sm:$0xff]
      %v288 = vld [vmem:[%s225 + $0x158] sm:$0xff]
      %v289 = vld [vmem:[%s225 + $0x160] sm:$0xff]
      %v290 = vld [vmem:[%s225 + $0x168] sm:$0xff]
      %v291 = vld [vmem:[%s225 + $0x170] sm:$0xff]
      %v292 = vld [vmem:[%s225 + $0x178] sm:$0xff]
      %v293 = vld [vmem:[%s225 + $0x180] sm:$0xff]
      %v294 = vld [vmem:[%s225 + $0x188] sm:$0xff]
      %v295 = vld [vmem:[%s225 + $0x190] sm:$0xff]
      %v296 = vld [vmem:[%s225 + $0x198] sm:$0xff]
      %v297 = vld [vmem:[%s225 + $0x1a0] sm:$0xff]
      %v298 = vld [vmem:[%s225 + $0x1a8] sm:$0xff]
      %v299 = vld [vmem:[%s225 + $0x1b0] sm:$0xff]
      %v300 = vld [vmem:[%s225 + $0x1b8] sm:$0xff]
      %v301 = vld [vmem:[%s225 + $0x1c0] sm:$0xff]
      %v302 = vld [vmem:[%s225 + $0x1c8] sm:$0xff]
      %v303 = vld [vmem:[%s225 + $0x1d0] sm:$0xff]
      %v304 = vld [vmem:[%s225 + $0x1d8] sm:$0xff]
      %v305 = vld [vmem:[%s225 + $0x1e0] sm:$0xff]
      %v306 = vld [vmem:[%s225 + $0x1e8] sm:$0xff]
      %v307 = vld [vmem:[%s225 + $0x1f0] sm:$0xff]
      %v308 = vld [vmem:[%s225 + $0x1f8] sm:$0xff]
      %v309 = vld [vmem:[%s231] sm:$0xff]
      %v310 = vld [vmem:[%s231 + $0x8] sm:$0xff]
      %v311 = vld [vmem:[%s231 + $0x10] sm:$0xff]
      %v312 = vld [vmem:[%s231 + $0x18] sm:$0xff]
      %v313 = vld [vmem:[%s231 + $0x20] sm:$0xff]
      %v314 = vld [vmem:[%s231 + $0x28] sm:$0xff]
      %v315 = vld [vmem:[%s231 + $0x30] sm:$0xff]
      %v316 = vld [vmem:[%s231 + $0x38] sm:$0xff]
      %v317 = vld [vmem:[%s231 + $0x40] sm:$0xff]
      %v318 = vld [vmem:[%s231 + $0x48] sm:$0xff]
      %v319 = vld [vmem:[%s231 + $0x50] sm:$0xff]
      %v320 = vld [vmem:[%s231 + $0x58] sm:$0xff]
      %v321 = vld [vmem:[%s231 + $0x60] sm:$0xff]
      %v322 = vld [vmem:[%s231 + $0x68] sm:$0xff]
      %v323 = vld [vmem:[%s231 + $0x70] sm:$0xff]
      %v324 = vld [vmem:[%s231 + $0x78] sm:$0xff]
      %v325 = vld [vmem:[%s231 + $0x80] sm:$0xff]
      %v326 = vld [vmem:[%s231 + $0x88] sm:$0xff]
      %v327 = vld [vmem:[%s231 + $0x90] sm:$0xff]
      %v328 = vld [vmem:[%s231 + $0x98] sm:$0xff]
      %v329 = vld [vmem:[%s231 + $0xa0] sm:$0xff]
      %v330 = vld [vmem:[%s231 + $0xa8] sm:$0xff]
      %v331 = vld [vmem:[%s231 + $0xb0] sm:$0xff]
      %v332 = vld [vmem:[%s231 + $0xb8] sm:$0xff]
      %v333 = vld [vmem:[%s231 + $0xc0] sm:$0xff]
      %v334 = vld [vmem:[%s231 + $0xc8] sm:$0xff]
      %v335 = vld [vmem:[%s231 + $0xd0] sm:$0xff]
      %v336 = vld [vmem:[%s231 + $0xd8] sm:$0xff]
      %v337 = vld [vmem:[%s231 + $0xe0] sm:$0xff]
      %v338 = vld [vmem:[%s231 + $0xe8] sm:$0xff]
      %v339 = vld [vmem:[%s231 + $0xf0] sm:$0xff]
      %v340 = vld [vmem:[%s231 + $0xf8] sm:$0xff]
      %v341 = vld [vmem:[%s231 + $0x100] sm:$0xff]
      %v342 = vld [vmem:[%s231 + $0x108] sm:$0xff]
      %v343 = vld [vmem:[%s231 + $0x110] sm:$0xff]
      %v344 = vld [vmem:[%s231 + $0x118] sm:$0xff]
      %v345 = vld [vmem:[%s231 + $0x120] sm:$0xff]
      %v346 = vld [vmem:[%s231 + $0x128] sm:$0xff]
      %v347 = vld [vmem:[%s231 + $0x130] sm:$0xff]
      %v348 = vld [vmem:[%s231 + $0x138] sm:$0xff]
      %v349 = vld [vmem:[%s231 + $0x140] sm:$0xff]
      %v350 = vld [vmem:[%s231 + $0x148] sm:$0xff]
      %v351 = vld [vmem:[%s231 + $0x150] sm:$0xff]
      %v352 = vld [vmem:[%s231 + $0x158] sm:$0xff]
      %v353 = vld [vmem:[%s231 + $0x160] sm:$0xff]
      %v354 = vld [vmem:[%s231 + $0x168] sm:$0xff]
      %v355 = vld [vmem:[%s231 + $0x170] sm:$0xff]
      %v356 = vld [vmem:[%s231 + $0x178] sm:$0xff]
      %v357 = vld [vmem:[%s231 + $0x180] sm:$0xff]
      %v358 = vld [vmem:[%s231 + $0x188] sm:$0xff]
      %v359 = vld [vmem:[%s231 + $0x190] sm:$0xff]
      %v360 = vld [vmem:[%s231 + $0x198] sm:$0xff]
      %v361 = vld [vmem:[%s231 + $0x1a0] sm:$0xff]
      %v362 = vld [vmem:[%s231 + $0x1a8] sm:$0xff]
      %v363 = vld [vmem:[%s231 + $0x1b0] sm:$0xff]
      %v364 = vld [vmem:[%s231 + $0x1b8] sm:$0xff]
      %v365 = vld [vmem:[%s231 + $0x1c0] sm:$0xff]
      %v366 = vld [vmem:[%s231 + $0x1c8] sm:$0xff]
      %v367 = vld [vmem:[%s231 + $0x1d0] sm:$0xff]
      %v368 = vld [vmem:[%s231 + $0x1d8] sm:$0xff]
      %v369 = vld [vmem:[%s231 + $0x1e0] sm:$0xff]
      %v370 = vld [vmem:[%s231 + $0x1e8] sm:$0xff]
      %v371 = vld [vmem:[%s231 + $0x1f0] sm:$0xff]
      %v372 = vld [vmem:[%s231 + $0x1f8] sm:$0xff]
      %v373 = vmul.f32 %v245, 0.5
      %v374 = vmul.f32 %v246, 0.5
      %v375 = vmul.f32 %v247, 0.5
      %v376 = vmul.f32 %v248, 0.5
      %v377 = vmul.f32 %v249, 0.5
      %v378 = vmul.f32 %v250, 0.5
      %v379 = vmul.f32 %v251, 0.5
      %v380 = vmul.f32 %v252, 0.5
      %v381 = vmul.f32 %v253, 0.5
      %v382 = vmul.f32 %v254, 0.5
      %v383 = vmul.f32 %v255, 0.5
      %v384 = vmul.f32 %v256, 0.5
      %v385 = vmul.f32 %v257, 0.5
      %v386 = vmul.f32 %v258, 0.5
      %v387 = vmul.f32 %v259, 0.5
      %v388 = vmul.f32 %v260, 0.5
      %v389 = vmul.f32 %v261, 0.5
      %v390 = vmul.f32 %v262, 0.5
      %v391 = vmul.f32 %v263, 0.5
      %v392 = vmul.f32 %v264, 0.5
      %v393 = vmul.f32 %v265, 0.5
      %v394 = vmul.f32 %v266, 0.5
      %v395 = vmul.f32 %v267, 0.5
      %v396 = vmul.f32 %v268, 0.5
      %v397 = vmul.f32 %v269, 0.5
      %v398 = vmul.f32 %v270, 0.5
      %v399 = vmul.f32 %v271, 0.5
      %v400 = vmul.f32 %v272, 0.5
      %v401 = vmul.f32 %v273, 0.5
      %v402 = vmul.f32 %v274, 0.5
      %v403 = vmul.f32 %v275, 0.5
      %v404 = vmul.f32 %v276, 0.5
      %v405 = vmul.f32 %v277, 0.5
      %v406 = vmul.f32 %v278, 0.5
      %v407 = vmul.f32 %v279, 0.5
      %v408 = vmul.f32 %v280, 0.5
      %v409 = vmul.f32 %v281, 0.5
      %v410 = vmul.f32 %v282, 0.5
      %v411 = vmul.f32 %v283, 0.5
      %v412 = vmul.f32 %v284, 0.5
      %v413 = vmul.f32 %v285, 0.5
      %v414 = vmul.f32 %v286, 0.5
      %v415 = vmul.f32 %v287, 0.5
      %v416 = vmul.f32 %v288, 0.5
      %v417 = vmul.f32 %v289, 0.5
      %v418 = vmul.f32 %v290, 0.5
      %v419 = vmul.f32 %v291, 0.5
      %v420 = vmul.f32 %v292, 0.5
      %v421 = vmul.f32 %v293, 0.5
      %v422 = vmul.f32 %v294, 0.5
      %v423 = vmul.f32 %v295, 0.5
      %v424 = vmul.f32 %v296, 0.5
      %v425 = vmul.f32 %v297, 0.5
      %v426 = vmul.f32 %v298, 0.5
      %v427 = vmul.f32 %v299, 0.5
      %v428 = vmul.f32 %v300, 0.5
      %v429 = vmul.f32 %v301, 0.5
      %v430 = vmul.f32 %v302, 0.5
      %v431 = vmul.f32 %v303, 0.5
      %v432 = vmul.f32 %v304, 0.5
      %v433 = vmul.f32 %v305, 0.5
      %v434 = vmul.f32 %v306, 0.5
      %v435 = vmul.f32 %v307, 0.5
      %v436 = vmul.f32 %v308, 0.5
      %v437 = vmul.f32 %v245, 0.70710677
      %v438 = vmul.f32 %v246, 0.70710677
      %v439 = vmul.f32 %v247, 0.70710677
      %v440 = vmul.f32 %v248, 0.70710677
      %v441 = vmul.f32 %v249, 0.70710677
      %v442 = vmul.f32 %v250, 0.70710677
      %v443 = vmul.f32 %v251, 0.70710677
      %v444 = vmul.f32 %v252, 0.70710677
      %v445 = vmul.f32 %v253, 0.70710677
      %v446 = vmul.f32 %v254, 0.70710677
      %v447 = vmul.f32 %v255, 0.70710677
      %v448 = vmul.f32 %v256, 0.70710677
      %v449 = vmul.f32 %v257, 0.70710677
      %v450 = vmul.f32 %v258, 0.70710677
      %v451 = vmul.f32 %v259, 0.70710677
      %v452 = vmul.f32 %v260, 0.70710677
      %v453 = vmul.f32 %v261, 0.70710677
      %v454 = vmul.f32 %v262, 0.70710677
      %v455 = vmul.f32 %v263, 0.70710677
      %v456 = vmul.f32 %v264, 0.70710677
      %v457 = vmul.f32 %v265, 0.70710677
      %v458 = vmul.f32 %v266, 0.70710677
      %v459 = vmul.f32 %v267, 0.70710677
      %v460 = vmul.f32 %v268, 0.70710677
      %v461 = vmul.f32 %v269, 0.70710677
      %v462 = vmul.f32 %v270, 0.70710677
      %v463 = vmul.f32 %v271, 0.70710677
      %v464 = vmul.f32 %v272, 0.70710677
      %v465 = vmul.f32 %v273, 0.70710677
      %v466 = vmul.f32 %v274, 0.70710677
      %v467 = vmul.f32 %v275, 0.70710677
      %v468 = vmul.f32 %v276, 0.70710677
      %v469 = vmul.f32 %v277, 0.70710677
      %v470 = vmul.f32 %v278, 0.70710677
      %v471 = vmul.f32 %v279, 0.70710677
      %v472 = vmul.f32 %v280, 0.70710677
      %v473 = vmul.f32 %v281, 0.70710677
      %v474 = vmul.f32 %v282, 0.70710677
      %v475 = vmul.f32 %v283, 0.70710677
      %v476 = vmul.f32 %v284, 0.70710677
      %v477 = vmul.f32 %v285, 0.70710677
      %v478 = vmul.f32 %v286, 0.70710677
      %v479 = vmul.f32 %v287, 0.70710677
      %v480 = vmul.f32 %v288, 0.70710677
      %v481 = vmul.f32 %v289, 0.70710677
      %v482 = vmul.f32 %v290, 0.70710677
      %v483 = vmul.f32 %v291, 0.70710677
      %v484 = vmul.f32 %v292, 0.70710677
      %v485 = vmul.f32 %v293, 0.70710677
      %v486 = vmul.f32 %v294, 0.70710677
      %v487 = vmul.f32 %v295, 0.70710677
      %v488 = vmul.f32 %v296, 0.70710677
      %v489 = vmul.f32 %v297, 0.70710677
      %v490 = vmul.f32 %v298, 0.70710677
      %v491 = vmul.f32 %v299, 0.70710677
      %v492 = vmul.f32 %v300, 0.70710677
      %v493 = vmul.f32 %v301, 0.70710677
      %v494 = vmul.f32 %v302, 0.70710677
      %v495 = vmul.f32 %v303, 0.70710677
      %v496 = vmul.f32 %v304, 0.70710677
      %v497 = vmul.f32 %v305, 0.70710677
      %v498 = vmul.f32 %v306, 0.70710677
      %v499 = vmul.f32 %v307, 0.70710677
      %v500 = vmul.f32 %v308, 0.70710677
      %v501 = verf.f32.pop %v437
      %v502 = verf.f32.pop %v438
      %v503 = verf.f32.pop %v439
      %v504 = verf.f32.pop %v440
      %v505 = verf.f32.pop %v441
      %v506 = verf.f32.pop %v442
      %v507 = verf.f32.pop %v443
      %v508 = verf.f32.pop %v444
      %v509 = verf.f32.pop %v445
      %v510 = verf.f32.pop %v446
      %v511 = verf.f32.pop %v447
      %v512 = verf.f32.pop %v448
      %v513 = verf.f32.pop %v449
      %v514 = verf.f32.pop %v450
      %v515 = verf.f32.pop %v451
      %v516 = verf.f32.pop %v452
      %v517 = verf.f32.pop %v453
      %v518 = verf.f32.pop %v454
      %v519 = verf.f32.pop %v455
      %v520 = verf.f32.pop %v456
      %v521 = verf.f32.pop %v457
      %v522 = verf.f32.pop %v458
      %v523 = verf.f32.pop %v459
      %v524 = verf.f32.pop %v460
      %v525 = verf.f32.pop %v461
      %v526 = verf.f32.pop %v462
      %v527 = verf.f32.pop %v463
      %v528 = verf.f32.pop %v464
      %v529 = verf.f32.pop %v465
      %v530 = verf.f32.pop %v466
      %v531 = verf.f32.pop %v467
      %v532 = verf.f32.pop %v468
      %v533 = verf.f32.pop %v469
      %v534 = verf.f32.pop %v470
      %v535 = verf.f32.pop %v471
      %v536 = verf.f32.pop %v472
      %v537 = verf.f32.pop %v473
      %v538 = verf.f32.pop %v474
      %v539 = verf.f32.pop %v475
      %v540 = verf.f32.pop %v476
      %v541 = verf.f32.pop %v477
      %v542 = verf.f32.pop %v478
      %v543 = verf.f32.pop %v479
      %v544 = verf.f32.pop %v480
      %v545 = verf.f32.pop %v481
      %v546 = verf.f32.pop %v482
      %v547 = verf.f32.pop %v483
      %v548 = verf.f32.pop %v484
      %v549 = verf.f32.pop %v485
      %v550 = verf.f32.pop %v486
      %v551 = verf.f32.pop %v487
      %v552 = verf.f32.pop %v488
      %v553 = verf.f32.pop %v489
      %v554 = verf.f32.pop %v490
      %v555 = verf.f32.pop %v491
      %v556 = verf.f32.pop %v492
      %v557 = verf.f32.pop %v493
      %v558 = verf.f32.pop %v494
      %v559 = verf.f32.pop %v495
      %v560 = verf.f32.pop %v496
      %v561 = verf.f32.pop %v497
      %v562 = verf.f32.pop %v498
      %v563 = verf.f32.pop %v499
      %v564 = verf.f32.pop %v500
      %v565 = vadd.f32 %v501, 1.0
      %v566 = vadd.f32 %v502, 1.0
      %v567 = vadd.f32 %v503, 1.0
      %v568 = vadd.f32 %v504, 1.0
      %v569 = vadd.f32 %v505, 1.0
      %v570 = vadd.f32 %v506, 1.0
      %v571 = vadd.f32 %v507, 1.0
      %v572 = vadd.f32 %v508, 1.0
      %v573 = vadd.f32 %v509, 1.0
      %v574 = vadd.f32 %v510, 1.0
      %v575 = vadd.f32 %v511, 1.0
      %v576 = vadd.f32 %v512, 1.0
      %v577 = vadd.f32 %v513, 1.0
      %v578 = vadd.f32 %v514, 1.0
      %v579 = vadd.f32 %v515, 1.0
      %v580 = vadd.f32 %v516, 1.0
      %v581 = vadd.f32 %v517, 1.0
      %v582 = vadd.f32 %v518, 1.0
      %v583 = vadd.f32 %v519, 1.0
      %v584 = vadd.f32 %v520, 1.0
      %v585 = vadd.f32 %v521, 1.0
      %v586 = vadd.f32 %v522, 1.0
      %v587 = vadd.f32 %v523, 1.0
      %v588 = vadd.f32 %v524, 1.0
      %v589 = vadd.f32 %v525, 1.0
      %v590 = vadd.f32 %v526, 1.0
      %v591 = vadd.f32 %v527, 1.0
      %v592 = vadd.f32 %v528, 1.0
      %v593 = vadd.f32 %v529, 1.0
      %v594 = vadd.f32 %v530, 1.0
      %v595 = vadd.f32 %v531, 1.0
      %v596 = vadd.f32 %v532, 1.0
      %v597 = vadd.f32 %v533, 1.0
      %v598 = vadd.f32 %v534, 1.0
      %v599 = vadd.f32 %v535, 1.0
      %v600 = vadd.f32 %v536, 1.0
      %v601 = vadd.f32 %v537, 1.0
      %v602 = vadd.f32 %v538, 1.0
      %v603 = vadd.f32 %v539, 1.0
      %v604 = vadd.f32 %v540, 1.0
      %v605 = vadd.f32 %v541, 1.0
      %v606 = vadd.f32 %v542, 1.0
      %v607 = vadd.f32 %v543, 1.0
      %v608 = vadd.f32 %v544, 1.0
      %v609 = vadd.f32 %v545, 1.0
      %v610 = vadd.f32 %v546, 1.0
      %v611 = vadd.f32 %v547, 1.0
      %v612 = vadd.f32 %v548, 1.0
      %v613 = vadd.f32 %v549, 1.0
      %v614 = vadd.f32 %v550, 1.0
      %v615 = vadd.f32 %v551, 1.0
      %v616 = vadd.f32 %v552, 1.0
      %v617 = vadd.f32 %v553, 1.0
      %v618 = vadd.f32 %v554, 1.0
      %v619 = vadd.f32 %v555, 1.0
      %v620 = vadd.f32 %v556, 1.0
      %v621 = vadd.f32 %v557, 1.0
      %v622 = vadd.f32 %v558, 1.0
      %v623 = vadd.f32 %v559, 1.0
      %v624 = vadd.f32 %v560, 1.0
      %v625 = vadd.f32 %v561, 1.0
      %v626 = vadd.f32 %v562, 1.0
      %v627 = vadd.f32 %v563, 1.0
      %v628 = vadd.f32 %v564, 1.0
      %v629 = vmul.f32 %v373, %v565
      %v630 = vmul.f32 %v374, %v566
      %v631 = vmul.f32 %v375, %v567
      %v632 = vmul.f32 %v376, %v568
      %v633 = vmul.f32 %v377, %v569
      %v634 = vmul.f32 %v378, %v570
      %v635 = vmul.f32 %v379, %v571
      %v636 = vmul.f32 %v380, %v572
      %v637 = vmul.f32 %v381, %v573
      %v638 = vmul.f32 %v382, %v574
      %v639 = vmul.f32 %v383, %v575
      %v640 = vmul.f32 %v384, %v576
      %v641 = vmul.f32 %v385, %v577
      %v642 = vmul.f32 %v386, %v578
      %v643 = vmul.f32 %v387, %v579
      %v644 = vmul.f32 %v388, %v580
      %v645 = vmul.f32 %v389, %v581
      %v646 = vmul.f32 %v390, %v582
      %v647 = vmul.f32 %v391, %v583
      %v648 = vmul.f32 %v392, %v584
      %v649 = vmul.f32 %v393, %v585
      %v650 = vmul.f32 %v394, %v586
      %v651 = vmul.f32 %v395, %v587
      %v652 = vmul.f32 %v396, %v588
      %v653 = vmul.f32 %v397, %v589
      %v654 = vmul.f32 %v398, %v590
      %v655 = vmul.f32 %v399, %v591
      %v656 = vmul.f32 %v400, %v592
      %v657 = vmul.f32 %v401, %v593
      %v658 = vmul.f32 %v402, %v594
      %v659 = vmul.f32 %v403, %v595
      %v660 = vmul.f32 %v404, %v596
      %v661 = vmul.f32 %v405, %v597
      %v662 = vmul.f32 %v406, %v598
      %v663 = vmul.f32 %v407, %v599
      %v664 = vmul.f32 %v408, %v600
      %v665 = vmul.f32 %v409, %v601
      %v666 = vmul.f32 %v410, %v602
      %v667 = vmul.f32 %v411, %v603
      %v668 = vmul.f32 %v412, %v604
      %v669 = vmul.f32 %v413, %v605
      %v670 = vmul.f32 %v414, %v606
      %v671 = vmul.f32 %v415, %v607
      %v672 = vmul.f32 %v416, %v608
      %v673 = vmul.f32 %v417, %v609
      %v674 = vmul.f32 %v418, %v610
      %v675 = vmul.f32 %v419, %v611
      %v676 = vmul.f32 %v420, %v612
      %v677 = vmul.f32 %v421, %v613
      %v678 = vmul.f32 %v422, %v614
      %v679 = vmul.f32 %v423, %v615
      %v680 = vmul.f32 %v424, %v616
      %v681 = vmul.f32 %v425, %v617
      %v682 = vmul.f32 %v426, %v618
      %v683 = vmul.f32 %v427, %v619
      %v684 = vmul.f32 %v428, %v620
      %v685 = vmul.f32 %v429, %v621
      %v686 = vmul.f32 %v430, %v622
      %v687 = vmul.f32 %v431, %v623
      %v688 = vmul.f32 %v432, %v624
      %v689 = vmul.f32 %v433, %v625
      %v690 = vmul.f32 %v434, %v626
      %v691 = vmul.f32 %v435, %v627
      %v692 = vmul.f32 %v436, %v628
      %v693 = vmul.f32 %v629, %v309
      %v694 = vmul.f32 %v630, %v310
      %v695 = vmul.f32 %v631, %v311
      %v696 = vmul.f32 %v632, %v312
      %v697 = vmul.f32 %v633, %v313
      %v698 = vmul.f32 %v634, %v314
      %v699 = vmul.f32 %v635, %v315
      %v700 = vmul.f32 %v636, %v316
      %v701 = vmul.f32 %v637, %v317
      %v702 = vmul.f32 %v638, %v318
      %v703 = vmul.f32 %v639, %v319
      %v704 = vmul.f32 %v640, %v320
      %v705 = vmul.f32 %v641, %v321
      %v706 = vmul.f32 %v642, %v322
      %v707 = vmul.f32 %v643, %v323
      %v708 = vmul.f32 %v644, %v324
      %v709 = vmul.f32 %v645, %v325
      %v710 = vmul.f32 %v646, %v326
      %v711 = vmul.f32 %v647, %v327
      %v712 = vmul.f32 %v648, %v328
      %v713 = vmul.f32 %v649, %v329
      %v714 = vmul.f32 %v650, %v330
      %v715 = vmul.f32 %v651, %v331
      %v716 = vmul.f32 %v652, %v332
      %v717 = vmul.f32 %v653, %v333
      %v718 = vmul.f32 %v654, %v334
      %v719 = vmul.f32 %v655, %v335
      %v720 = vmul.f32 %v656, %v336
      %v721 = vmul.f32 %v657, %v337
      %v722 = vmul.f32 %v658, %v338
      %v723 = vmul.f32 %v659, %v339
      %v724 = vmul.f32 %v660, %v340
      %v725 = vmul.f32 %v661, %v341
      %v726 = vmul.f32 %v662, %v342
      %v727 = vmul.f32 %v663, %v343
      %v728 = vmul.f32 %v664, %v344
      %v729 = vmul.f32 %v665, %v345
      %v730 = vmul.f32 %v666, %v346
      %v731 = vmul.f32 %v667, %v347
      %v732 = vmul.f32 %v668, %v348
      %v733 = vmul.f32 %v669, %v349
      %v734 = vmul.f32 %v670, %v350
      %v735 = vmul.f32 %v671, %v351
      %v736 = vmul.f32 %v672, %v352
      %v737 = vmul.f32 %v673, %v353
      %v738 = vmul.f32 %v674, %v354
      %v739 = vmul.f32 %v675, %v355
      %v740 = vmul.f32 %v676, %v356
      %v741 = vmul.f32 %v677, %v357
      %v742 = vmul.f32 %v678, %v358
      %v743 = vmul.f32 %v679, %v359
      %v744 = vmul.f32 %v680, %v360
      %v745 = vmul.f32 %v681, %v361
      %v746 = vmul.f32 %v682, %v362
      %v747 = vmul.f32 %v683, %v363
      %v748 = vmul.f32 %v684, %v364
      %v749 = vmul.f32 %v685, %v365
      %v750 = vmul.f32 %v686, %v366
      %v751 = vmul.f32 %v687, %v367
      %v752 = vmul.f32 %v688, %v368
      %v753 = vmul.f32 %v689, %v369
      %v754 = vmul.f32 %v690, %v370
      %v755 = vmul.f32 %v691, %v371
      %v756 = vmul.f32 %v692, %v372
      %v757 = vld [vmem:[%s3] sm:$0xff]
      %v758 = vld [vmem:[%s3 + $0x8] sm:$0xff]
      %v759 = vld [vmem:[%s3 + $0x10] sm:$0xff]
      %v760 = vld [vmem:[%s3 + $0x18] sm:$0xff]
      %v761 = vld [vmem:[%s237] sm:$0xff]
      %v762 = vld [vmem:[%s237 + $0x8] sm:$0xff]
      %v763 = vld [vmem:[%s237 + $0x10] sm:$0xff]
      %v764 = vld [vmem:[%s237 + $0x18] sm:$0xff]
      %v765 = vld [vmem:[%s237 + $0x20] sm:$0xff]
      %v766 = vld [vmem:[%s237 + $0x28] sm:$0xff]
      %v767 = vld [vmem:[%s237 + $0x30] sm:$0xff]
      %v768 = vld [vmem:[%s237 + $0x38] sm:$0xff]
      %v769 = vld [vmem:[%s237 + $0x40] sm:$0xff]
      %v770 = vld [vmem:[%s237 + $0x48] sm:$0xff]
      %v771 = vld [vmem:[%s237 + $0x50] sm:$0xff]
      %v772 = vld [vmem:[%s237 + $0x58] sm:$0xff]
      %v773 = vld [vmem:[%s237 + $0x60] sm:$0xff]
      %v774 = vld [vmem:[%s237 + $0x68] sm:$0xff]
      %v775 = vld [vmem:[%s237 + $0x70] sm:$0xff]
      %v776 = vld [vmem:[%s237 + $0x78] sm:$0xff]
      %v777 = vld [vmem:[%s237 + $0x80] sm:$0xff]
      %v778 = vld [vmem:[%s237 + $0x88] sm:$0xff]
      %v779 = vld [vmem:[%s237 + $0x90] sm:$0xff]
      %v780 = vld [vmem:[%s237 + $0x98] sm:$0xff]
      %v781 = vld [vmem:[%s237 + $0xa0] sm:$0xff]
      %v782 = vld [vmem:[%s237 + $0xa8] sm:$0xff]
      %v783 = vld [vmem:[%s237 + $0xb0] sm:$0xff]
      %v784 = vld [vmem:[%s237 + $0xb8] sm:$0xff]
      %v785 = vld [vmem:[%s237 + $0xc0] sm:$0xff]
      %v786 = vld [vmem:[%s237 + $0xc8] sm:$0xff]
      %v787 = vld [vmem:[%s237 + $0xd0] sm:$0xff]
      %v788 = vld [vmem:[%s237 + $0xd8] sm:$0xff]
      %v789 = vld [vmem:[%s237 + $0xe0] sm:$0xff]
      %v790 = vld [vmem:[%s237 + $0xe8] sm:$0xff]
      %v791 = vld [vmem:[%s237 + $0xf0] sm:$0xff]
      %v792 = vld [vmem:[%s237 + $0xf8] sm:$0xff]
      %v793 = vld [vmem:[%s237 + $0x100] sm:$0xff]
      %v794 = vld [vmem:[%s237 + $0x108] sm:$0xff]
      %v795 = vld [vmem:[%s237 + $0x110] sm:$0xff]
      %v796 = vld [vmem:[%s237 + $0x118] sm:$0xff]
      %v797 = vld [vmem:[%s237 + $0x120] sm:$0xff]
      %v798 = vld [vmem:[%s237 + $0x128] sm:$0xff]
      %v799 = vld [vmem:[%s237 + $0x130] sm:$0xff]
      %v800 = vld [vmem:[%s237 + $0x138] sm:$0xff]
      %v801 = vld [vmem:[%s237 + $0x140] sm:$0xff]
      %v802 = vld [vmem:[%s237 + $0x148] sm:$0xff]
      %v803 = vld [vmem:[%s237 + $0x150] sm:$0xff]
      %v804 = vld [vmem:[%s237 + $0x158] sm:$0xff]
      %v805 = vld [vmem:[%s237 + $0x160] sm:$0xff]
      %v806 = vld [vmem:[%s237 + $0x168] sm:$0xff]
      %v807 = vld [vmem:[%s237 + $0x170] sm:$0xff]
      %v808 = vld [vmem:[%s237 + $0x178] sm:$0xff]
      %v809 = vld [vmem:[%s237 + $0x180] sm:$0xff]
      %v810 = vld [vmem:[%s237 + $0x188] sm:$0xff]
      %v811 = vld [vmem:[%s237 + $0x190] sm:$0xff]
      %v812 = vld [vmem:[%s237 + $0x198] sm:$0xff]
      %v813 = vld [vmem:[%s237 + $0x1a0] sm:$0xff]
      %v814 = vld [vmem:[%s237 + $0x1a8] sm:$0xff]
      %v815 = vld [vmem:[%s237 + $0x1b0] sm:$0xff]
      %v816 = vld [vmem:[%s237 + $0x1b8] sm:$0xff]
      %v817 = vld [vmem:[%s237 + $0x1c0] sm:$0xff]
      %v818 = vld [vmem:[%s237 + $0x1c8] sm:$0xff]
      %v819 = vld [vmem:[%s237 + $0x1d0] sm:$0xff]
      %v820 = vld [vmem:[%s237 + $0x1d8] sm:$0xff]
      %v821 = vld [vmem:[%s237 + $0x1e0] sm:$0xff]
      %v822 = vld [vmem:[%s237 + $0x1e8] sm:$0xff]
      %v823 = vld [vmem:[%s237 + $0x1f0] sm:$0xff]
      %v824 = vld [vmem:[%s237 + $0x1f8] sm:$0xff]
      %vm825 = vcmask 261120
      %v827 = vsel %vm825, %v693, 0
      %v830 = vsel %vm825, %v694, 0
      %v833 = vsel %vm825, %v695, 0
      %v836 = vsel %vm825, %v696, 0
      %v839 = vsel %vm825, %v697, 0
      %v842 = vsel %vm825, %v698, 0
      %v845 = vsel %vm825, %v699, 0
      %v848 = vsel %vm825, %v700, 0
      %v851 = vsel %vm825, %v701, 0
      %v854 = vsel %vm825, %v702, 0
      %v857 = vsel %vm825, %v703, 0
      %v860 = vsel %vm825, %v704, 0
      %v863 = vsel %vm825, %v705, 0
      %v866 = vsel %vm825, %v706, 0
      %v869 = vsel %vm825, %v707, 0
      %v872 = vsel %vm825, %v708, 0
      %v875 = vsel %vm825, %v709, 0
      %v878 = vsel %vm825, %v710, 0
      %v881 = vsel %vm825, %v711, 0
      %v884 = vsel %vm825, %v712, 0
      %v887 = vsel %vm825, %v713, 0
      %v890 = vsel %vm825, %v714, 0
      %v893 = vsel %vm825, %v715, 0
      %v896 = vsel %vm825, %v716, 0
      %v899 = vsel %vm825, %v717, 0
      %v902 = vsel %vm825, %v718, 0
      %v905 = vsel %vm825, %v719, 0
      %v908 = vsel %vm825, %v720, 0
      %v911 = vsel %vm825, %v721, 0
      %v914 = vsel %vm825, %v722, 0
      %v917 = vsel %vm825, %v723, 0
      %v920 = vsel %vm825, %v724, 0
      %v923 = vsel %vm825, %v725, 0
      %v926 = vsel %vm825, %v726, 0
      %v929 = vsel %vm825, %v727, 0
      %v932 = vsel %vm825, %v728, 0
      %v935 = vsel %vm825, %v729, 0
      %v938 = vsel %vm825, %v730, 0
      %v941 = vsel %vm825, %v731, 0
      %v944 = vsel %vm825, %v732, 0
      %v947 = vsel %vm825, %v733, 0
      %v950 = vsel %vm825, %v734, 0
      %v953 = vsel %vm825, %v735, 0
      %v956 = vsel %vm825, %v736, 0
      %v959 = vsel %vm825, %v737, 0
      %v962 = vsel %vm825, %v738, 0
      %v965 = vsel %vm825, %v739, 0
      %v968 = vsel %vm825, %v740, 0
      %v971 = vsel %vm825, %v741, 0
      %v974 = vsel %vm825, %v742, 0
      %v977 = vsel %vm825, %v743, 0
      %v980 = vsel %vm825, %v744, 0
      %v983 = vsel %vm825, %v745, 0
      %v986 = vsel %vm825, %v746, 0
      %v989 = vsel %vm825, %v747, 0
      %v992 = vsel %vm825, %v748, 0
      %v995 = vsel %vm825, %v749, 0
      %v998 = vsel %vm825, %v750, 0
      %v1001 = vsel %vm825, %v751, 0
      %v1004 = vsel %vm825, %v752, 0
      %v1007 = vsel %vm825, %v753, 0
      %v1010 = vsel %vm825, %v754, 0
      %v1013 = vsel %vm825, %v755, 0
      %v1016 = vsel %vm825, %v756, 0
      %1018 = vmatprep.subr.mxu0 0.0
      %1019 = vmatpush1.msra.mxu0 %v757
      %1020 = vmatprep.subr.mxu0 0.0
      %1021 = vmatpush1.msra.mxu0 %v758
      %1022 = vmatprep.subr.mxu0 0.0
      %1023 = vmatpush1.msra.mxu0 %v759
      %1024 = vmatprep.subr.mxu0 0.0
      %1025 = vmatpush1.msra.mxu0 %v760
      %1026 = vmatprep.subr.mxu0 0.0
      %1027 = vmatpush1.msra.mxu0 0.0
      %1028 = vmatprep.subr.mxu0 0.0
      %1029 = vmatpush1.msra.mxu0 0.0
      %1030 = vmatprep.subr.mxu0 0.0
      %1031 = vmatpush1.msra.mxu0 0.0
      %1032 = vmatprep.subr.mxu0 0.0
      %1033 = vmatpush1.msra.mxu0 0.0
      %1034 = vmatprep.subr.mxu0 0.0
      %1035 = vmatpush1.msra.mxu0 0.0
      %1036 = vmatprep.subr.mxu0 0.0
      %1037 = vmatpush1.msra.mxu0 0.0
      %1038 = vmatprep.subr.mxu0 0.0
      %1039 = vmatpush1.msra.mxu0 0.0
      %1040 = vmatprep.subr.mxu0 0.0
      %1041 = vmatpush1.msra.mxu0 0.0
      %1042 = vmatprep.subr.mxu0 0.0
      %1043 = vmatpush1.msra.mxu0 0.0
      %1044 = vmatprep.subr.mxu0 0.0
      %1045 = vmatpush1.msra.mxu0 0.0
      %1046 = vmatprep.subr.mxu0 0.0
      %1047 = vmatpush1.msra.mxu0 0.0
      %1048 = vmatprep.subr.mxu0 0.0
      %1049 = vmatpush1.msra.mxu0 0.0
      %1050 = vmatprep.subr.mxu0 0.0
      %1051 = vmatpush1.msra.mxu0 0.0
      %1052 = vmatprep.subr.mxu0 0.0
      %1053 = vmatpush1.msra.mxu0 0.0
      %1054 = vmatprep.subr.mxu0 0.0
      %1055 = vmatpush1.msra.mxu0 0.0
      %1056 = vmatprep.subr.mxu0 0.0
      %1057 = vmatpush1.msra.mxu0 0.0
      %1058 = vmatprep.subr.mxu0 0.0
      %1059 = vmatpush1.msra.mxu0 0.0
      %1060 = vmatprep.subr.mxu0 0.0
      %1061 = vmatpush1.msra.mxu0 0.0
      %1062 = vmatprep.subr.mxu0 0.0
      %1063 = vmatpush1.msra.mxu0 0.0
      %1064 = vmatprep.subr.mxu0 0.0
      %1065 = vmatpush1.msra.mxu0 0.0
      %1066 = vmatprep.subr.mxu0 0.0
      %1067 = vmatpush1.msra.mxu0 0.0
      %1068 = vmatprep.subr.mxu0 0.0
      %1069 = vmatpush1.msra.mxu0 0.0
      %1070 = vmatprep.subr.mxu0 0.0
      %1071 = vmatpush1.msra.mxu0 0.0
      %1072 = vmatprep.subr.mxu0 0.0
      %1073 = vmatpush1.msra.mxu0 0.0
      %1074 = vmatprep.subr.mxu0 0.0
      %1075 = vmatpush1.msra.mxu0 0.0
      %1076 = vmatprep.subr.mxu0 0.0
      %1077 = vmatpush1.msra.mxu0 0.0
      %1078 = vmatprep.subr.mxu0 0.0
      %1079 = vmatpush1.msra.mxu0 0.0
      %1080 = vmatprep.subr.mxu0 0.0
      %1081 = vmatpush1.msra.mxu0 0.0
      %1082 = vmatprep.mubr.f32.mxu0 0.0
      %1083 = vmatmul.mubr.f32.gmra.mrb[0].mxu0 %v827
      %v1084 = vpop.f32.mrb[0].mxu0
      %v1085 = vadd.f32 %v761, %v1084
      %v1086 = vpop.f32.mrb[0].mxu0
      %1087 = vmatprep.mubr.f32.mxu0 0.0
      %1088 = vmatmul.mubr.f32.gmra.mrb[0].mxu0 %v830
      %v1089 = vpop.f32.mrb[0].mxu0
      %v1090 = vadd.f32 %v762, %v1089
      %v1091 = vpop.f32.mrb[0].mxu0
      %1092 = vmatprep.mubr.f32.mxu0 0.0
      %1093 = vmatmul.mubr.f32.gmra.mrb[0].mxu0 %v833
      %v1094 = vpop.f32.mrb[0].mxu0
      %v1095 = vadd.f32 %v763, %v1094
      %v1096 = vpop.f32.mrb[0].mxu0
      %1097 = vmatprep.mubr.f32.mxu0 0.0
      %1098 = vmatmul.mubr.f32.gmra.mrb[0].mxu0 %v836
      %v1099 = vpop.f32.mrb[0].mxu0
      %v1100 = vadd.f32 %v764, %v1099
      %v1101 = vpop.f32.mrb[0].mxu0
      %1102 = vmatprep.mubr.f32.mxu0 0.0
      %1103 = vmatmul.mubr.f32.gmra.mrb[0].mxu0 %v839
      %v1104 = vpop.f32.mrb[0].mxu0
      %v1105 = vadd.f32 %v765, %v1104
      %v1106 = vpop.f32.mrb[0].mxu0
      %1107 = vmatprep.mubr.f32.mxu0 0.0
      %1108 = vmatmul.mubr.f32.gmra.mrb[0].mxu0 %v842
      %v1109 = vpop.f32.mrb[0].mxu0
      %v1110 = vadd.f32 %v766, %v1109
      %v1111 = vpop.f32.mrb[0].mxu0
      %1112 = vmatprep.mubr.f32.mxu0 0.0
      %1113 = vmatmul.mubr.f32.gmra.mrb[0].mxu0 %v845
      %v1114 = vpop.f32.mrb[0].mxu0
      %v1115 = vadd.f32 %v767, %v1114
      %v1116 = vpop.f32.mrb[0].mxu0
      %1117 = vmatprep.mubr.f32.mxu0 0.0
      %1118 = vmatmul.mubr.f32.gmra.mrb[0].mxu0 %v848
      %v1119 = vpop.f32.mrb[0].mxu0
      %v1120 = vadd.f32 %v768, %v1119
      %v1121 = vpop.f32.mrb[0].mxu0
      %1122 = vmatprep.mubr.f32.mxu0 0.0
      %1123 = vmatmul.mubr.f32.gmra.mrb[0].mxu0 %v851
      %v1124 = vpop.f32.mrb[0].mxu0
      %v1125 = vadd.f32 %v769, %v1124
      %v1126 = vpop.f32.mrb[0].mxu0
      %1127 = vmatprep.mubr.f32.mxu0 0.0
      %1128 = vmatmul.mubr.f32.gmra.mrb[0].mxu0 %v854
      %v1129 = vpop.f32.mrb[0].mxu0
      %v1130 = vadd.f32 %v770, %v1129
      %v1131 = vpop.f32.mrb[0].mxu0
      %1132 = vmatprep.mubr.f32.mxu0 0.0
      %1133 = vmatmul.mubr.f32.gmra.mrb[0].mxu0 %v857
      %v1134 = vpop.f32.mrb[0].mxu0
      %v1135 = vadd.f32 %v771, %v1134
      %v1136 = vpop.f32.mrb[0].mxu0
      %1137 = vmatprep.mubr.f32.mxu0 0.0
      %1138 = vmatmul.mubr.f32.gmra.mrb[0].mxu0 %v860
      %v1139 = vpop.f32.mrb[0].mxu0
      %v1140 = vadd.f32 %v772, %v1139
      %v1141 = vpop.f32.mrb[0].mxu0
      %1142 = vmatprep.mubr.f32.mxu0 0.0
      %1143 = vmatmul.mubr.f32.gmra.mrb[0].mxu0 %v863
      %v1144 = vpop.f32.mrb[0].mxu0
      %v1145 = vadd.f32 %v773, %v1144
      %v1146 = vpop.f32.mrb[0].mxu0
      %1147 = vmatprep.mubr.f32.mxu0 0.0
      %1148 = vmatmul.mubr.f32.gmra.mrb[0].mxu0 %v866
      %v1149 = vpop.f32.mrb[0].mxu0
      %v1150 = vadd.f32 %v774, %v1149
      %v1151 = vpop.f32.mrb[0].mxu0
      %1152 = vmatprep.mubr.f32.mxu0 0.0
      %1153 = vmatmul.mubr.f32.gmra.mrb[0].mxu0 %v869
      %v1154 = vpop.f32.mrb[0].mxu0
      %v1155 = vadd.f32 %v775, %v1154
      %v1156 = vpop.f32.mrb[0].mxu0
      %1157 = vmatprep.mubr.f32.mxu0 0.0
      %1158 = vmatmul.mubr.f32.gmra.mrb[0].mxu0 %v872
      %v1159 = vpop.f32.mrb[0].mxu0
      %v1160 = vadd.f32 %v776, %v1159
      %v1161 = vpop.f32.mrb[0].mxu0
      %1162 = vmatprep.mubr.f32.mxu0 0.0
      %1163 = vmatmul.mubr.f32.gmra.mrb[0].mxu0 %v875
      %v1164 = vpop.f32.mrb[0].mxu0
      %v1165 = vadd.f32 %v777, %v1164
      %v1166 = vpop.f32.mrb[0].mxu0
      %1167 = vmatprep.mubr.f32.mxu0 0.0
      %1168 = vmatmul.mubr.f32.gmra.mrb[0].mxu0 %v878
      %v1169 = vpop.f32.mrb[0].mxu0
      %v1170 = vadd.f32 %v778, %v1169
      %v1171 = vpop.f32.mrb[0].mxu0
      %1172 = vmatprep.mubr.f32.mxu0 0.0
      %1173 = vmatmul.mubr.f32.gmra.mrb[0].mxu0 %v881
      %v1174 = vpop.f32.mrb[0].mxu0
      %v1175 = vadd.f32 %v779, %v1174
      %v1176 = vpop.f32.mrb[0].mxu0
      %1177 = vmatprep.mubr.f32.mxu0 0.0
      %1178 = vmatmul.mubr.f32.gmra.mrb[0].mxu0 %v884
      %v1179 = vpop.f32.mrb[0].mxu0
      %v1180 = vadd.f32 %v780, %v1179
      %v1181 = vpop.f32.mrb[0].mxu0
      %1182 = vmatprep.mubr.f32.mxu0 0.0
      %1183 = vmatmul.mubr.f32.gmra.mrb[0].mxu0 %v887
      %v1184 = vpop.f32.mrb[0].mxu0
      %v1185 = vadd.f32 %v781, %v1184
      %v1186 = vpop.f32.mrb[0].mxu0
      %1187 = vmatprep.mubr.f32.mxu0 0.0
      %1188 = vmatmul.mubr.f32.gmra.mrb[0].mxu0 %v890
      %v1189 = vpop.f32.mrb[0].mxu0
      %v1190 = vadd.f32 %v782, %v1189
      %v1191 = vpop.f32.mrb[0].mxu0
      %1192 = vmatprep.mubr.f32.mxu0 0.0
      %1193 = vmatmul.mubr.f32.gmra.mrb[0].mxu0 %v893
      %v1194 = vpop.f32.mrb[0].mxu0
      %v1195 = vadd.f32 %v783, %v1194
      %v1196 = vpop.f32.mrb[0].mxu0
      %1197 = vmatprep.mubr.f32.mxu0 0.0
      %1198 = vmatmul.mubr.f32.gmra.mrb[0].mxu0 %v896
      %v1199 = vpop.f32.mrb[0].mxu0
      %v1200 = vadd.f32 %v784, %v1199
      %v1201 = vpop.f32.mrb[0].mxu0
      %1202 = vmatprep.mubr.f32.mxu0 0.0
      %1203 = vmatmul.mubr.f32.gmra.mrb[0].mxu0 %v899
      %v1204 = vpop.f32.mrb[0].mxu0
      %v1205 = vadd.f32 %v785, %v1204
      %v1206 = vpop.f32.mrb[0].mxu0
      %1207 = vmatprep.mubr.f32.mxu0 0.0
      %1208 = vmatmul.mubr.f32.gmra.mrb[0].mxu0 %v902
      %v1209 = vpop.f32.mrb[0].mxu0
      %v1210 = vadd.f32 %v786, %v1209
      %v1211 = vpop.f32.mrb[0].mxu0
      %1212 = vmatprep.mubr.f32.mxu0 0.0
      %1213 = vmatmul.mubr.f32.gmra.mrb[0].mxu0 %v905
      %v1214 = vpop.f32.mrb[0].mxu0
      %v1215 = vadd.f32 %v787, %v1214
      %v1216 = vpop.f32.mrb[0].mxu0
      %1217 = vmatprep.mubr.f32.mxu0 0.0
      %1218 = vmatmul.mubr.f32.gmra.mrb[0].mxu0 %v908
      %v1219 = vpop.f32.mrb[0].mxu0
      %v1220 = vadd.f32 %v788, %v1219
      %v1221 = vpop.f32.mrb[0].mxu0
      %1222 = vmatprep.mubr.f32.mxu0 0.0
      %1223 = vmatmul.mubr.f32.gmra.mrb[0].mxu0 %v911
      %v1224 = vpop.f32.mrb[0].mxu0
      %v1225 = vadd.f32 %v789, %v1224
      %v1226 = vpop.f32.mrb[0].mxu0
      %1227 = vmatprep.mubr.f32.mxu0 0.0
      %1228 = vmatmul.mubr.f32.gmra.mrb[0].mxu0 %v914
      %v1229 = vpop.f32.mrb[0].mxu0
      %v1230 = vadd.f32 %v790, %v1229
      %v1231 = vpop.f32.mrb[0].mxu0
      %1232 = vmatprep.mubr.f32.mxu0 0.0
      %1233 = vmatmul.mubr.f32.gmra.mrb[0].mxu0 %v917
      %v1234 = vpop.f32.mrb[0].mxu0
      %v1235 = vadd.f32 %v791, %v1234
      %v1236 = vpop.f32.mrb[0].mxu0
      %1237 = vmatprep.mubr.f32.mxu0 0.0
      %1238 = vmatmul.mubr.f32.gmra.mrb[0].mxu0 %v920
      %v1239 = vpop.f32.mrb[0].mxu0
      %v1240 = vadd.f32 %v792, %v1239
      %v1241 = vpop.f32.mrb[0].mxu0
      %1242 = vmatprep.mubr.f32.mxu0 0.0
      %1243 = vmatmul.mubr.f32.gmra.mrb[0].mxu0 %v923
      %v1244 = vpop.f32.mrb[0].mxu0
      %v1245 = vadd.f32 %v793, %v1244
      %v1246 = vpop.f32.mrb[0].mxu0
      %1247 = vmatprep.mubr.f32.mxu0 0.0
      %1248 = vmatmul.mubr.f32.gmra.mrb[0].mxu0 %v926
      %v1249 = vpop.f32.mrb[0].mxu0
      %v1250 = vadd.f32 %v794, %v1249
      %v1251 = vpop.f32.mrb[0].mxu0
      %1252 = vmatprep.mubr.f32.mxu0 0.0
      %1253 = vmatmul.mubr.f32.gmra.mrb[0].mxu0 %v929
      %v1254 = vpop.f32.mrb[0].mxu0
      %v1255 = vadd.f32 %v795, %v1254
      %v1256 = vpop.f32.mrb[0].mxu0
      %1257 = vmatprep.mubr.f32.mxu0 0.0
      %1258 = vmatmul.mubr.f32.gmra.mrb[0].mxu0 %v932
      %v1259 = vpop.f32.mrb[0].mxu0
      %v1260 = vadd.f32 %v796, %v1259
      %v1261 = vpop.f32.mrb[0].mxu0
      %1262 = vmatprep.mubr.f32.mxu0 0.0
      %1263 = vmatmul.mubr.f32.gmra.mrb[0].mxu0 %v935
      %v1264 = vpop.f32.mrb[0].mxu0
      %v1265 = vadd.f32 %v797, %v1264
      %v1266 = vpop.f32.mrb[0].mxu0
      %1267 = vmatprep.mubr.f32.mxu0 0.0
      %1268 = vmatmul.mubr.f32.gmra.mrb[0].mxu0 %v938
      %v1269 = vpop.f32.mrb[0].mxu0
      %v1270 = vadd.f32 %v798, %v1269
      %v1271 = vpop.f32.mrb[0].mxu0
      %1272 = vmatprep.mubr.f32.mxu0 0.0
      %1273 = vmatmul.mubr.f32.gmra.mrb[0].mxu0 %v941
      %v1274 = vpop.f32.mrb[0].mxu0
      %v1275 = vadd.f32 %v799, %v1274
      %v1276 = vpop.f32.mrb[0].mxu0
      %1277 = vmatprep.mubr.f32.mxu0 0.0
      %1278 = vmatmul.mubr.f32.gmra.mrb[0].mxu0 %v944
      %v1279 = vpop.f32.mrb[0].mxu0
      %v1280 = vadd.f32 %v800, %v1279
      %v1281 = vpop.f32.mrb[0].mxu0
      %1282 = vmatprep.mubr.f32.mxu0 0.0
      %1283 = vmatmul.mubr.f32.gmra.mrb[0].mxu0 %v947
      %v1284 = vpop.f32.mrb[0].mxu0
      %v1285 = vadd.f32 %v801, %v1284
      %v1286 = vpop.f32.mrb[0].mxu0
      %1287 = vmatprep.mubr.f32.mxu0 0.0
      %1288 = vmatmul.mubr.f32.gmra.mrb[0].mxu0 %v950
      %v1289 = vpop.f32.mrb[0].mxu0
      %v1290 = vadd.f32 %v802, %v1289
      %v1291 = vpop.f32.mrb[0].mxu0
      %1292 = vmatprep.mubr.f32.mxu0 0.0
      %1293 = vmatmul.mubr.f32.gmra.mrb[0].mxu0 %v953
      %v1294 = vpop.f32.mrb[0].mxu0
      %v1295 = vadd.f32 %v803, %v1294
      %v1296 = vpop.f32.mrb[0].mxu0
      %1297 = vmatprep.mubr.f32.mxu0 0.0
      %1298 = vmatmul.mubr.f32.gmra.mrb[0].mxu0 %v956
      %v1299 = vpop.f32.mrb[0].mxu0
      %v1300 = vadd.f32 %v804, %v1299
      %v1301 = vpop.f32.mrb[0].mxu0
      %1302 = vmatprep.mubr.f32.mxu0 0.0
      %1303 = vmatmul.mubr.f32.gmra.mrb[0].mxu0 %v959
      %v1304 = vpop.f32.mrb[0].mxu0
      %v1305 = vadd.f32 %v805, %v1304
      %v1306 = vpop.f32.mrb[0].mxu0
      %1307 = vmatprep.mubr.f32.mxu0 0.0
      %1308 = vmatmul.mubr.f32.gmra.mrb[0].mxu0 %v962
      %v1309 = vpop.f32.mrb[0].mxu0
      %v1310 = vadd.f32 %v806, %v1309
      %v1311 = vpop.f32.mrb[0].mxu0
      %1312 = vmatprep.mubr.f32.mxu0 0.0
      %1313 = vmatmul.mubr.f32.gmra.mrb[0].mxu0 %v965
      %v1314 = vpop.f32.mrb[0].mxu0
      %v1315 = vadd.f32 %v807, %v1314
      %v1316 = vpop.f32.mrb[0].mxu0
      %1317 = vmatprep.mubr.f32.mxu0 0.0
      %1318 = vmatmul.mubr.f32.gmra.mrb[0].mxu0 %v968
      %v1319 = vpop.f32.mrb[0].mxu0
      %v1320 = vadd.f32 %v808, %v1319
      %v1321 = vpop.f32.mrb[0].mxu0
      %1322 = vmatprep.mubr.f32.mxu0 0.0
      %1323 = vmatmul.mubr.f32.gmra.mrb[0].mxu0 %v971
      %v1324 = vpop.f32.mrb[0].mxu0
      %v1325 = vadd.f32 %v809, %v1324
      %v1326 = vpop.f32.mrb[0].mxu0
      %1327 = vmatprep.mubr.f32.mxu0 0.0
      %1328 = vmatmul.mubr.f32.gmra.mrb[0].mxu0 %v974
      %v1329 = vpop.f32.mrb[0].mxu0
      %v1330 = vadd.f32 %v810, %v1329
      %v1331 = vpop.f32.mrb[0].mxu0
      %1332 = vmatprep.mubr.f32.mxu0 0.0
      %1333 = vmatmul.mubr.f32.gmra.mrb[0].mxu0 %v977
      %v1334 = vpop.f32.mrb[0].mxu0
      %v1335 = vadd.f32 %v811, %v1334
      %v1336 = vpop.f32.mrb[0].mxu0
      %1337 = vmatprep.mubr.f32.mxu0 0.0
      %1338 = vmatmul.mubr.f32.gmra.mrb[0].mxu0 %v980
      %v1339 = vpop.f32.mrb[0].mxu0
      %v1340 = vadd.f32 %v812, %v1339
      %v1341 = vpop.f32.mrb[0].mxu0
      %1342 = vmatprep.mubr.f32.mxu0 0.0
      %1343 = vmatmul.mubr.f32.gmra.mrb[0].mxu0 %v983
      %v1344 = vpop.f32.mrb[0].mxu0
      %v1345 = vadd.f32 %v813, %v1344
      %v1346 = vpop.f32.mrb[0].mxu0
      %1347 = vmatprep.mubr.f32.mxu0 0.0
      %1348 = vmatmul.mubr.f32.gmra.mrb[0].mxu0 %v986
      %v1349 = vpop.f32.mrb[0].mxu0
      %v1350 = vadd.f32 %v814, %v1349
      %v1351 = vpop.f32.mrb[0].mxu0
      %1352 = vmatprep.mubr.f32.mxu0 0.0
      %1353 = vmatmul.mubr.f32.gmra.mrb[0].mxu0 %v989
      %v1354 = vpop.f32.mrb[0].mxu0
      %v1355 = vadd.f32 %v815, %v1354
      %v1356 = vpop.f32.mrb[0].mxu0
      %1357 = vmatprep.mubr.f32.mxu0 0.0
      %1358 = vmatmul.mubr.f32.gmra.mrb[0].mxu0 %v992
      %v1359 = vpop.f32.mrb[0].mxu0
      %v1360 = vadd.f32 %v816, %v1359
      %v1361 = vpop.f32.mrb[0].mxu0
      %1362 = vmatprep.mubr.f32.mxu0 0.0
      %1363 = vmatmul.mubr.f32.gmra.mrb[0].mxu0 %v995
      %v1364 = vpop.f32.mrb[0].mxu0
      %v1365 = vadd.f32 %v817, %v1364
      %v1366 = vpop.f32.mrb[0].mxu0
      %1367 = vmatprep.mubr.f32.mxu0 0.0
      %1368 = vmatmul.mubr.f32.gmra.mrb[0].mxu0 %v998
      %v1369 = vpop.f32.mrb[0].mxu0
      %v1370 = vadd.f32 %v818, %v1369
      %v1371 = vpop.f32.mrb[0].mxu0
      %1372 = vmatprep.mubr.f32.mxu0 0.0
      %1373 = vmatmul.mubr.f32.gmra.mrb[0].mxu0 %v1001
      %v1374 = vpop.f32.mrb[0].mxu0
      %v1375 = vadd.f32 %v819, %v1374
      %v1376 = vpop.f32.mrb[0].mxu0
      %1377 = vmatprep.mubr.f32.mxu0 0.0
      %1378 = vmatmul.mubr.f32.gmra.mrb[0].mxu0 %v1004
      %v1379 = vpop.f32.mrb[0].mxu0
      %v1380 = vadd.f32 %v820, %v1379
      %v1381 = vpop.f32.mrb[0].mxu0
      %1382 = vmatprep.mubr.f32.mxu0 0.0
      %1383 = vmatmul.mubr.f32.gmra.mrb[0].mxu0 %v1007
      %v1384 = vpop.f32.mrb[0].mxu0
      %v1385 = vadd.f32 %v821, %v1384
      %v1386 = vpop.f32.mrb[0].mxu0
      %1387 = vmatprep.mubr.f32.mxu0 0.0
      %1388 = vmatmul.mubr.f32.gmra.mrb[0].mxu0 %v1010
      %v1389 = vpop.f32.mrb[0].mxu0
      %v1390 = vadd.f32 %v822, %v1389
      %v1391 = vpop.f32.mrb[0].mxu0
      %1392 = vmatprep.mubr.f32.mxu0 0.0
      %1393 = vmatmul.mubr.f32.gmra.mrb[0].mxu0 %v1013
      %v1394 = vpop.f32.mrb[0].mxu0
      %v1395 = vadd.f32 %v823, %v1394
      %v1396 = vpop.f32.mrb[0].mxu0
      %1397 = vmatprep.mubr.f32.mxu0 0.0
      %1398 = vmatmul.mubr.f32.gmra.mrb[0].mxu0 %v1016
      %v1399 = vpop.f32.mrb[0].mxu0
      %v1400 = vadd.f32 %v824, %v1399
      %v1401 = vpop.f32.mrb[0].mxu0
      %1402 = vdwg.mxu0
      %1403 = vst.msk [vmem:[%s243] sm:$0xff] %vm825, %v1085
      %1404 = vst.msk [vmem:[%s243 + $0x8] sm:$0xff] %vm825, %v1090
      %1405 = vst.msk [vmem:[%s243 + $0x10] sm:$0xff] %vm825, %v1095
      %1406 = vst.msk [vmem:[%s243 + $0x18] sm:$0xff] %vm825, %v1100
      %1407 = vst.msk [vmem:[%s243 + $0x20] sm:$0xff] %vm825, %v1105
      %1408 = vst.msk [vmem:[%s243 + $0x28] sm:$0xff] %vm825, %v1110
      %1409 = vst.msk [vmem:[%s243 + $0x30] sm:$0xff] %vm825, %v1115
      %1410 = vst.msk [vmem:[%s243 + $0x38] sm:$0xff] %vm825, %v1120
      %1411 = vst.msk [vmem:[%s243 + $0x40] sm:$0xff] %vm825, %v1125
      %1412 = vst.msk [vmem:[%s243 + $0x48] sm:$0xff] %vm825, %v1130
      %1413 = vst.msk [vmem:[%s243 + $0x50] sm:$0xff] %vm825, %v1135
      %1414 = vst.msk [vmem:[%s243 + $0x58] sm:$0xff] %vm825, %v1140
      %1415 = vst.msk [vmem:[%s243 + $0x60] sm:$0xff] %vm825, %v1145
      %1416 = vst.msk [vmem:[%s243 + $0x68] sm:$0xff] %vm825, %v1150
      %1417 = vst.msk [vmem:[%s243 + $0x70] sm:$0xff] %vm825, %v1155
      %1418 = vst.msk [vmem:[%s243 + $0x78] sm:$0xff] %vm825, %v1160
      %1419 = vst.msk [vmem:[%s243 + $0x80] sm:$0xff] %vm825, %v1165
      %1420 = vst.msk [vmem:[%s243 + $0x88] sm:$0xff] %vm825, %v1170
      %1421 = vst.msk [vmem:[%s243 + $0x90] sm:$0xff] %vm825, %v1175
      %1422 = vst.msk [vmem:[%s243 + $0x98] sm:$0xff] %vm825, %v1180
      %1423 = vst.msk [vmem:[%s243 + $0xa0] sm:$0xff] %vm825, %v1185
      %1424 = vst.msk [vmem:[%s243 + $0xa8] sm:$0xff] %vm825, %v1190
      %1425 = vst.msk [vmem:[%s243 + $0xb0] sm:$0xff] %vm825, %v1195
      %1426 = vst.msk [vmem:[%s243 + $0xb8] sm:$0xff] %vm825, %v1200
      %1427 = vst.msk [vmem:[%s243 + $0xc0] sm:$0xff] %vm825, %v1205
      %1428 = vst.msk [vmem:[%s243 + $0xc8] sm:$0xff] %vm825, %v1210
      %1429 = vst.msk [vmem:[%s243 + $0xd0] sm:$0xff] %vm825, %v1215
      %1430 = vst.msk [vmem:[%s243 + $0xd8] sm:$0xff] %vm825, %v1220
      %1431 = vst.msk [vmem:[%s243 + $0xe0] sm:$0xff] %vm825, %v1225
      %1432 = vst.msk [vmem:[%s243 + $0xe8] sm:$0xff] %vm825, %v1230
      %1433 = vst.msk [vmem:[%s243 + $0xf0] sm:$0xff] %vm825, %v1235
      %1434 = vst.msk [vmem:[%s243 + $0xf8] sm:$0xff] %vm825, %v1240
      %1435 = vst.msk [vmem:[%s243 + $0x100] sm:$0xff] %vm825, %v1245
      %1436 = vst.msk [vmem:[%s243 + $0x108] sm:$0xff] %vm825, %v1250
      %1437 = vst.msk [vmem:[%s243 + $0x110] sm:$0xff] %vm825, %v1255
      %1438 = vst.msk [vmem:[%s243 + $0x118] sm:$0xff] %vm825, %v1260
      %1439 = vst.msk [vmem:[%s243 + $0x120] sm:$0xff] %vm825, %v1265
      %1440 = vst.msk [vmem:[%s243 + $0x128] sm:$0xff] %vm825, %v1270
      %1441 = vst.msk [vmem:[%s243 + $0x130] sm:$0xff] %vm825, %v1275
      %1442 = vst.msk [vmem:[%s243 + $0x138] sm:$0xff] %vm825, %v1280
      %1443 = vst.msk [vmem:[%s243 + $0x140] sm:$0xff] %vm825, %v1285
      %1444 = vst.msk [vmem:[%s243 + $0x148] sm:$0xff] %vm825, %v1290
      %1445 = vst.msk [vmem:[%s243 + $0x150] sm:$0xff] %vm825, %v1295
      %1446 = vst.msk [vmem:[%s243 + $0x158] sm:$0xff] %vm825, %v1300
      %1447 = vst.msk [vmem:[%s243 + $0x160] sm:$0xff] %vm825, %v1305
      %1448 = vst.msk [vmem:[%s243 + $0x168] sm:$0xff] %vm825, %v1310
      %1449 = vst.msk [vmem:[%s243 + $0x170] sm:$0xff] %vm825, %v1315
      %1450 = vst.msk [vmem:[%s243 + $0x178] sm:$0xff] %vm825, %v1320
      %1451 = vst.msk [vmem:[%s243 + $0x180] sm:$0xff] %vm825, %v1325
      %1452 = vst.msk [vmem:[%s243 + $0x188] sm:$0xff] %vm825, %v1330
      %1453 = vst.msk [vmem:[%s243 + $0x190] sm:$0xff] %vm825, %v1335
      %1454 = vst.msk [vmem:[%s243 + $0x198] sm:$0xff] %vm825, %v1340
      %1455 = vst.msk [vmem:[%s243 + $0x1a0] sm:$0xff] %vm825, %v1345
      %1456 = vst.msk [vmem:[%s243 + $0x1a8] sm:$0xff] %vm825, %v1350
      %1457 = vst.msk [vmem:[%s243 + $0x1b0] sm:$0xff] %vm825, %v1355
      %1458 = vst.msk [vmem:[%s243 + $0x1b8] sm:$0xff] %vm825, %v1360
      %1459 = vst.msk [vmem:[%s243 + $0x1c0] sm:$0xff] %vm825, %v1365
      %1460 = vst.msk [vmem:[%s243 + $0x1c8] sm:$0xff] %vm825, %v1370
      %1461 = vst.msk [vmem:[%s243 + $0x1d0] sm:$0xff] %vm825, %v1375
      %1462 = vst.msk [vmem:[%s243 + $0x1d8] sm:$0xff] %vm825, %v1380
      %1463 = vst.msk [vmem:[%s243 + $0x1e0] sm:$0xff] %vm825, %v1385
      %1464 = vst.msk [vmem:[%s243 + $0x1e8] sm:$0xff] %vm825, %v1390
      %1465 = vst.msk [vmem:[%s243 + $0x1f0] sm:$0xff] %vm825, %v1395
      %1466 = vst.msk [vmem:[%s243 + $0x1f8] sm:$0xff] %vm825, %v1400
      %s1467 = smul.u32 64, %s15
      %p1468 = scmp.lt.s32.totalorder %s1467, 255
      %s1469 = scalar_select %p1468, %s1467, 255
      %s1470 = smul.addr %s1469, 8
      %s1471 = scalar_lea.vmem %s4, %s1470
      // Predicated region
      $region37: #{convnat_block_forward.5} parent=35 // pred_check
        %p1472 = pneg %p132
      $region38: #{convnat_block_forward.5} parent=35 // pred_check_branch
        %1474 = sbr.rel (%p1472) target = $region40
      $region39: #{convnat_block_forward.5} parent=35 // pred_region
        %s1475 = smul.u32 64, %s15
      $region40: #{convnat_block_forward.5} parent=35 // pred_fallthru
        _
    $region36: #{convnat_block_forward.5} parent=5 // pred_fallthru
      _
    %p1476 = scmp.le.s32.totalorder 2, %s10
    // Predicated region
    $region41: #{convnat_block_forward.5} parent=5 // pred_check
      %p1477 = pneg %p1476
    $region42: #{convnat_block_forward.5} parent=5 // pred_check_branch
      %1479 = sbr.rel (%p1477) target = $region44
    $region43: #{convnat_block_forward.5} parent=5 // pred_region
      %s1480 = ssub.s32 %s10, 2
      // Predicated region
      $region45: #{convnat_block_forward.5} parent=43 // pred_check
        %p1481 = pneg %p138
      $region46: #{convnat_block_forward.5} parent=43 // pred_check_branch
        %1483 = sbr.rel (%p1481) target = $region48
      $region47: #{convnat_block_forward.5} parent=43 // pred_region
        %s1484 = smul.u32 64, %s16
        %p1485 = scmp.lt.s32.totalorder %s1484, 255
        %s1486 = scalar_select %p1485, %s1484, 255
        %s1487 = smul.addr %s1486, 8
        %s1488 = scalar_lea.vmem %s4, %s1487
      $region48: #{convnat_block_forward.5} parent=43 // pred_fallthru
        _
    $region44: #{convnat_block_forward.5} parent=5 // pred_fallthru
      _
  $region6: #{convnat_block_forward.5} parent=0 // loop_footer
    %s14 = sadd.s32 1, %s10
  $region7: #{convnat_block_forward.5} parent=0 // loop_footer_branch
    %9 = sbr.rel target = $region3
  $region8: #{convnat_block_forward.5} parent=0 // loop_exit
    _

</llo_original>
